<compile_context>
chip_gen: v6e
topology: v6e:2x2x1
jax: 0.10.0
libtpu: 0.0.40
codegen_flags: <defaults>
</compile_context>

<pallas_src>
import functools
import math

import numpy as np

import jax
import jax.numpy as jnp
from jax import lax
from jax.experimental import pallas as pl
from jax.experimental.pallas import tpu as pltpu


# --------------------------------------------------------------------------
# Fused Pallas kernel: one full MHA block
#   attention (all heads, all batch rows) -> +res/BN -> FFN -> +res/BN
# --------------------------------------------------------------------------
def _fused_mha_block_kernel(x_ref, bias_ref, wqkv_ref, wo_ref,
                            g1_ref, b1_ref, w1_ref, c1_ref, w2_ref, c2_ref,
                            g2_ref, b2_ref, o_ref, *, nh, d, scale, eps):
    """x:(N,E) flattened batch*seq rows; bias:(N,N) block-diagonal mask (0 / -1e30);
    wqkv:(E, 3*nh*d) fused QKV weights; wo:(nh, d, E); BN affine (1,E);
    FFN w1:(E,F) c1:(1,F) w2:(F,E) c2:(1,E); output o:(N,E)."""
    x = x_ref[...]                                                        # (N, E)
    bias = bias_ref[...]                                                  # (N, N)

    # Fused QKV projection: one MXU matmul instead of 3*nh small ones.
    qkv = jnp.dot(x, wqkv_ref[...], preferred_element_type=jnp.float32)  # (N, 3*nh*d)
    hd = nh * d

    a = None
    for h in range(nh):                                                   # static unroll (nh=2)
        q_h = qkv[:, h * d:(h + 1) * d]
        k_h = qkv[:, hd + h * d:hd + (h + 1) * d]
        v_h = qkv[:, 2 * hd + h * d:2 * hd + (h + 1) * d]

        # NT contraction Q @ K^T for all batch rows at once; block-diagonal bias keeps
        # different batch elements from attending to each other.
        s = lax.dot_general(q_h, k_h, (((1,), (1,)), ((), ())),
                            preferred_element_type=jnp.float32) * scale + bias  # (N, N)
        s = s - jnp.max(s, axis=-1, keepdims=True)
        p = jnp.exp(s)
        inv = pl.reciprocal(jnp.sum(p, axis=-1, keepdims=True), approx=True)    # EUP
        head = jnp.dot(p * inv, v_h, preferred_element_type=jnp.float32)        # (N, d)

        contrib = jnp.dot(head, wo_ref[h], preferred_element_type=jnp.float32)  # (N, E)
        a = contrib if a is None else a + contrib

    def batch_norm(t, g, b):
        mu = jnp.mean(t, axis=0, keepdims=True)
        var = jnp.mean((t - mu) * (t - mu), axis=0, keepdims=True)
        return (t - mu) * lax.rsqrt(var + eps) * g + b

    pq = x + batch_norm(a, g1_ref[...], b1_ref[...])
    hid = jnp.dot(pq, w1_ref[...], preferred_element_type=jnp.float32) + c1_ref[...]
    hid = jnp.maximum(hid, 0.0)
    y = pq + jnp.dot(hid, w2_ref[...], preferred_element_type=jnp.float32) + c2_ref[...]
    o_ref[...] = batch_norm(y, g2_ref[...], b2_ref[...])


def _full_spec(shape):
    nd = len(shape)
    return pl.BlockSpec(shape, lambda i, _n=nd: (0,) * _n)


def mha_block(x, p):
    """One MHA block: pq = x + BN1(MHA(x));  return BN2(pq + FFN(pq)).  x:(B,S,E)."""
    B, S, E = x.shape
    nh = int(p["nh"])
    d = E // nh
    N = B * S
    F = p["w1"].shape[1]
    scale = 1.0 / math.sqrt(d)

    # Block-diagonal additive bias (constant at trace time): rows of different batch
    # elements never attend to each other even though they share the score matmul.
    ids = np.arange(N) // S
    bias = jnp.asarray(np.where(ids[:, None] == ids[None, :], 0.0, -1e30), jnp.float32)

    flops = int(2 * N * E * 3 * nh * d          # fused QKV
                + nh * (4 * N * N * d           # scores + attn@V
                        + 2 * N * d * E)        # output projection
                + 4 * N * E * F)                # FFN
    bytes_accessed = int(4 * (2 * N * E + N * N + 3 * E * nh * d + nh * d * E
                              + 2 * E * F + 6 * E + F))
    transcendentals = int(nh * N * N)

    kern = functools.partial(_fused_mha_block_kernel,
                             nh=nh, d=d, scale=scale, eps=1e-5)

    out = pl.pallas_call(
        kern,
        out_shape=jax.ShapeDtypeStruct((N, E), jnp.float32),
        grid=(1,),
        in_specs=[
            _full_spec((N, E)),               # x
            _full_spec((N, N)),               # block-diag bias
            _full_spec((E, 3 * nh * d)),      # fused QKV weights
            _full_spec((nh, d, E)),           # per-head output projection
            _full_spec((1, E)), _full_spec((1, E)),   # BN1 gamma/beta
            _full_spec((E, F)), _full_spec((1, F)),   # FFN w1, b1
            _full_spec((F, E)), _full_spec((1, E)),   # FFN w2, b2
            _full_spec((1, E)), _full_spec((1, E)),   # BN2 gamma/beta
        ],
        out_specs=_full_spec((N, E)),
        compiler_params=pltpu.CompilerParams(dimension_semantics=("arbitrary",)),
        cost_estimate=pl.CostEstimate(flops=flops, transcendentals=transcendentals,
                                      bytes_accessed=bytes_accessed),
    )(x.reshape(N, E), bias, p["wqkv"], p["wo"],
      p["bn1_g"], p["bn1_b"], p["w1"], p["c1"], p["w2"], p["c2"],
      p["bn2_g"], p["bn2_b"])
    return out.reshape(B, S, E)


# --------------------------------------------------------------------------
# Plain-JAX helpers (tiny ops left to XLA inside the jitted forward)
# --------------------------------------------------------------------------
def _conv1d(x, w, b):
    # x:(N, C_in, L)  w:(C_out, C_in, K)  b:(C_out,)
    y = lax.conv_general_dilated(x, w, window_strides=(1,), padding="VALID",
                                 dimension_numbers=("NCH", "OIH", "NCH"))
    return y + b[None, :, None]


def _max_pool1d(x):
    return lax.reduce_window(x, -jnp.inf, lax.max, (1, 1, 2), (1, 1, 2), "VALID")


def _layer_norm(x, g, b, eps=1e-5):
    mu = jnp.mean(x, axis=-1, keepdims=True)
    var = jnp.mean((x - mu) ** 2, axis=-1, keepdims=True)
    return (x - mu) * lax.rsqrt(var + eps) * g + b


def _uniform(key, shape, scale):
    return jax.random.uniform(key, shape, jnp.float32, -scale, scale)


def _init_mha_params(key, n_heads, embed_dim, ff_hidden):
    d = embed_dim // n_heads
    ks = jax.random.split(key, 8)
    s_qkv = 1.0 / math.sqrt(d)            # stdv = 1/sqrt(key_dim / val_dim)
    s_out = 1.0 / math.sqrt(embed_dim)

    wq = _uniform(ks[0], (n_heads, embed_dim, d), s_qkv)
    wk = _uniform(ks[1], (n_heads, embed_dim, d), s_qkv)
    wv = _uniform(ks[2], (n_heads, embed_dim, d), s_qkv)
    wo = _uniform(ks[3], (n_heads, d, embed_dim), s_out)

    def cat(w):  # (nh, E, d) -> (E, nh*d) ; column block h == w[h]
        return jnp.transpose(w, (1, 0, 2)).reshape(embed_dim, n_heads * d)

    wqkv = jnp.concatenate([cat(wq), cat(wk), cat(wv)], axis=1)   # (E, 3*nh*d)

    return dict(
        nh=n_heads,
        wqkv=wqkv,
        wo=wo,
        bn1_g=jnp.ones((1, embed_dim), jnp.float32),
        bn1_b=jnp.zeros((1, embed_dim), jnp.float32),
        bn2_g=jnp.ones((1, embed_dim), jnp.float32),
        bn2_b=jnp.zeros((1, embed_dim), jnp.float32),
        w1=_uniform(ks[4], (embed_dim, ff_hidden), 1.0 / math.sqrt(embed_dim)),
        c1=_uniform(ks[5], (1, ff_hidden), 1.0 / math.sqrt(embed_dim)),
        w2=_uniform(ks[6], (ff_hidden, embed_dim), 1.0 / math.sqrt(ff_hidden)),
        c2=_uniform(ks[7], (1, embed_dim), 1.0 / math.sqrt(ff_hidden)),
    )


# --------------------------------------------------------------------------
# Attn1 module (forward-pass equivalent of the PyTorch spec)
# --------------------------------------------------------------------------
class Attn1:
    def __init__(self, key, time_len, n_wt, n_feat, hidden_size, pred_len,
                 factor=0.5, attention_dropout=0.1, layer_num=2, n_heads=2):
        self.layer_num = layer_num
        self.n_wt = n_wt
        H = hidden_size
        keys = iter(jax.random.split(key, 64))
        self._jit_cache = {}

        def lin(k, fan_in, fan_out, bias=True):
            s = 1.0 / math.sqrt(fan_in)
            w = _uniform(k, (fan_in, fan_out), s)
            b = _uniform(jax.random.fold_in(k, 1), (fan_out,), s) if bias else None
            return w, b

        # project_in: Linear(n_feat,H) -> ReLU -> Linear(H,H, bias=False)
        self.win1, self.bin1 = lin(next(keys), n_feat, H)
        self.win2, _ = lin(next(keys), H, H, bias=False)

        self.conv_w, self.conv_b = [], []
        self.attn_a, self.attn_b = [], []
        tl = time_len
        for _ in range(layer_num):
            s = 1.0 / math.sqrt(H * 4)
            self.conv_w.append(_uniform(next(keys), (H, H, 4), s))
            self.conv_b.append(_uniform(next(keys), (H,), s))
            self.attn_a.append(_init_mha_params(next(keys), n_heads, H * n_wt, H * n_wt))
            self.attn_b.append(_init_mha_params(next(keys), n_heads, H * tl, H * tl))
            tl = (tl - 3 - 2) // 2 + 1
        self.final_tl = tl

        self.wph1, self.bph1 = lin(next(keys), H * tl, H * 2)
        self.wph2, self.bph2 = lin(next(keys), H * 2, H)
        self.wout, self.bout = lin(next(keys), H, pred_len)
        self.ln1_g = jnp.ones((H,), jnp.float32)
        self.ln1_b = jnp.zeros((H,), jnp.float32)
        self.ln2_g = jnp.ones((H,), jnp.float32)
        self.ln2_b = jnp.zeros((H,), jnp.float32)

    def _forward(self, wt, x):
        # x: (B, L, P, n_feat), P == n_wt
        x = jnp.maximum(x @ self.win1 + self.bin1, 0.0) @ self.win2        # project_in
        B, L, P, H = x.shape
        for i in range(self.layer_num):
            # attention over time (embed = P*H)
            x = mha_block(x.reshape(B, L, P * H), self.attn_a[i]).reshape(B, L, P, H)
            x = jnp.transpose(x, (0, 2, 1, 3))                              # (B, P, L, H)
            # attention over turbines (embed = L*H)
            x = mha_block(x.reshape(B, P, L * H), self.attn_b[i]).reshape(B, P, L, H)
            x = _layer_norm(x, self.ln1_g, self.ln1_b)
            # conv + pool along time
            x = jnp.transpose(x, (0, 1, 3, 2)).reshape(B * P, H, L)
            x = _max_pool1d(_conv1d(x, self.conv_w[i], self.conv_b[i]))
            L = (L - 3 - 2) // 2 + 1
            x = jnp.transpose(x.reshape(B, P, H, L), (0, 3, 1, 2))          # (B, L, P, H)
            x = _layer_norm(x, self.ln2_g, self.ln2_b)
        # select turbine wt and project
        x = x[:, :, wt].reshape(B, -1)                                      # (B, L_final*H)
        # TODO(synk): nn.Dropout(0.1) of project_hidden applied as identity (deterministic).
        x = jnp.maximum(x @ self.wph1 + self.bph1, 0.0)
        x = x @ self.wph2 + self.bph2
        return x @ self.wout + self.bout                                    # (B, pred_len)

    def __call__(self, wt, x):
        # jit the entire forward (cached per static turbine index `wt`)
        fn = self._jit_cache.get(wt)
        if fn is None:
            fn = jax.jit(functools.partial(self._forward, wt))
            self._jit_cache[wt] = fn
        return fn(x)


# --------------------------------------------------------------------------
if __name__ == "__main__":
    B, time_len, n_wt, n_feat, hidden_size, pred_len = 2, 16, 2, 4, 32, 4

    key = jax.random.PRNGKey(0)
    k_param, k_x = jax.random.split(key)

    model = Attn1(k_param, time_len, n_wt, n_feat, hidden_size, pred_len,
                  layer_num=2, n_heads=2)
    x = jax.random.normal(k_x, (B, time_len, n_wt, n_feat), jnp.float32)
    wt = 1

    out = model(wt, x)
    jax.block_until_ready(out)
    # second call hits the jit cache (no retrace / redispatch overhead)
    out = model(wt, x)
    jax.block_until_ready(out)

    assert out.shape == (B, pred_len)
    assert bool(jnp.all(jnp.isfinite(out)))
    print("KERNEL_OK")
</pallas_src>

<mosaic_0001>
module attributes {stable_mosaic.version = 11 : i64} {
  func.func @_fused_mha_block_kernel(%arg0: i32, %arg1: memref<32x64xf32, #tpu.memory_space<vmem>>, %arg2: memref<32x32xf32, #tpu.memory_space<vmem>>, %arg3: memref<64x192xf32, #tpu.memory_space<vmem>>, %arg4: memref<2x32x64xf32, #tpu.memory_space<vmem>>, %arg5: memref<1x64xf32, #tpu.memory_space<vmem>>, %arg6: memref<1x64xf32, #tpu.memory_space<vmem>>, %arg7: memref<64x64xf32, #tpu.memory_space<vmem>>, %arg8: memref<1x64xf32, #tpu.memory_space<vmem>>, %arg9: memref<64x64xf32, #tpu.memory_space<vmem>>, %arg10: memref<1x64xf32, #tpu.memory_space<vmem>>, %arg11: memref<1x64xf32, #tpu.memory_space<vmem>>, %arg12: memref<1x64xf32, #tpu.memory_space<vmem>>, %arg13: memref<32x64xf32, #tpu.memory_space<vmem>>) attributes {dimension_semantics = [#tpu.dimension_semantics<arbitrary>], iteration_bounds = array<i64: 1>, scalar_prefetch = 0 : i64, scratch_operands = 0 : i64, tpu.core_type = #tpu.core_type<tc>, window_params = [{pipeline_mode = #tpu.pipeline_mode<synchronous>, transform_indices = @transform_0, window_bounds = array<i64: 32, 64>}, {pipeline_mode = #tpu.pipeline_mode<synchronous>, transform_indices = @transform_1, window_bounds = array<i64: 32, 32>}, {pipeline_mode = #tpu.pipeline_mode<synchronous>, transform_indices = @transform_2, window_bounds = array<i64: 64, 192>}, {pipeline_mode = #tpu.pipeline_mode<synchronous>, transform_indices = @transform_3, window_bounds = array<i64: 2, 32, 64>}, {pipeline_mode = #tpu.pipeline_mode<synchronous>, transform_indices = @transform_4, window_bounds = array<i64: 1, 64>}, {pipeline_mode = #tpu.pipeline_mode<synchronous>, transform_indices = @transform_5, window_bounds = array<i64: 1, 64>}, {pipeline_mode = #tpu.pipeline_mode<synchronous>, transform_indices = @transform_6, window_bounds = array<i64: 64, 64>}, {pipeline_mode = #tpu.pipeline_mode<synchronous>, transform_indices = @transform_7, window_bounds = array<i64: 1, 64>}, {pipeline_mode = #tpu.pipeline_mode<synchronous>, transform_indices = @transform_8, window_bounds = array<i64: 64, 64>}, {pipeline_mode = #tpu.pipeline_mode<synchronous>, transform_indices = @transform_9, window_bounds = array<i64: 1, 64>}, {pipeline_mode = #tpu.pipeline_mode<synchronous>, transform_indices = @transform_10, window_bounds = array<i64: 1, 64>}, {pipeline_mode = #tpu.pipeline_mode<synchronous>, transform_indices = @transform_11, window_bounds = array<i64: 1, 64>}, {pipeline_mode = #tpu.pipeline_mode<synchronous>, transform_indices = @transform_12, window_bounds = array<i64: 32, 64>}]} {
    %c0 = arith.constant 0 : index
    %c0_0 = arith.constant 0 : index
    %0 = vector.load %arg1[%c0, %c0_0] : memref<32x64xf32, #tpu.memory_space<vmem>>, vector<32x64xf32>
    %c0_1 = arith.constant 0 : index
    %c0_2 = arith.constant 0 : index
    %1 = vector.load %arg2[%c0_1, %c0_2] : memref<32x32xf32, #tpu.memory_space<vmem>>, vector<32x32xf32>
    %c0_3 = arith.constant 0 : index
    %c0_4 = arith.constant 0 : index
    %2 = vector.load %arg3[%c0_3, %c0_4] : memref<64x192xf32, #tpu.memory_space<vmem>>, vector<64x192xf32>
    %cst = arith.constant dense<0.000000e+00> : vector<32x192xf32>
    %3 = tpu.matmul %0, %2, %cst {dimension_numbers = #tpu.dot_dimension_numbers<[1], [0], [0], [1], [0, 0, 1, 1], [], []>} : vector<32x64xf32>, vector<64x192xf32>, vector<32x192xf32> -> vector<32x192xf32>
    %4 = vector.extract_strided_slice %3 {offsets = [0, 0], sizes = [32, 32], strides = [1, 1]} : vector<32x192xf32> to vector<32x32xf32>
    %5 = vector.extract_strided_slice %3 {offsets = [0, 64], sizes = [32, 32], strides = [1, 1]} : vector<32x192xf32> to vector<32x32xf32>
    %6 = vector.extract_strided_slice %3 {offsets = [0, 128], sizes = [32, 32], strides = [1, 1]} : vector<32x192xf32> to vector<32x32xf32>
    %cst_5 = arith.constant dense<0.000000e+00> : vector<32x32xf32>
    %7 = tpu.matmul %4, %5, %cst_5 {dimension_numbers = #tpu.dot_dimension_numbers<[1], [1], [0], [0], [0, 0, 1, 0], [], []>} : vector<32x32xf32>, vector<32x32xf32>, vector<32x32xf32> -> vector<32x32xf32>
    %cst_6 = arith.constant 0.176776692 : f32
    %8 = vector.broadcast %cst_6 : f32 to vector<32x32xf32>
    %9 = arith.mulf %7, %8 : vector<32x32xf32>
    %10 = arith.addf %9, %1 : vector<32x32xf32>
    %cst_7 = arith.constant dense<0xFF800000> : vector<32xf32>
    %11 = vector.multi_reduction <maximumf>, %10, %cst_7 [1] : vector<32x32xf32> to vector<32xf32>
    %12 = vector.shape_cast %11 : vector<32xf32> to vector<32x1xf32>
    %13 = vector.broadcast %12 : vector<32x1xf32> to vector<32x32xf32>
    %14 = arith.subf %10, %13 : vector<32x32xf32>
    %15 = math.exp %14 : vector<32x32xf32>
    %cst_8 = arith.constant dense<0.000000e+00> : vector<32xf32>
    %16 = vector.multi_reduction <add>, %15, %cst_8 [1] : vector<32x32xf32> to vector<32xf32>
    %17 = vector.shape_cast %16 : vector<32xf32> to vector<32x1xf32>
    %18 = tpu.reciprocal %17 {approx = true} : vector<32x1xf32> -> vector<32x1xf32>
    %19 = vector.broadcast %18 : vector<32x1xf32> to vector<32x32xf32>
    %20 = arith.mulf %15, %19 : vector<32x32xf32>
    %cst_9 = arith.constant dense<0.000000e+00> : vector<32x32xf32>
    %21 = tpu.matmul %20, %6, %cst_9 {dimension_numbers = #tpu.dot_dimension_numbers<[1], [0], [0], [1], [0, 0, 1, 1], [], []>} : vector<32x32xf32>, vector<32x32xf32>, vector<32x32xf32> -> vector<32x32xf32>
    %c0_10 = arith.constant 0 : index
    %c0_11 = arith.constant 0 : index
    %c0_12 = arith.constant 0 : index
    %22 = vector.load %arg4[%c0_10, %c0_11, %c0_12] : memref<2x32x64xf32, #tpu.memory_space<vmem>>, vector<1x32x64xf32>
    %23 = vector.shape_cast %22 : vector<1x32x64xf32> to vector<32x64xf32>
    %cst_13 = arith.constant dense<0.000000e+00> : vector<32x64xf32>
    %24 = tpu.matmul %21, %23, %cst_13 {dimension_numbers = #tpu.dot_dimension_numbers<[1], [0], [0], [1], [0, 0, 1, 1], [], []>} : vector<32x32xf32>, vector<32x64xf32>, vector<32x64xf32> -> vector<32x64xf32>
    %25 = vector.extract_strided_slice %3 {offsets = [0, 32], sizes = [32, 32], strides = [1, 1]} : vector<32x192xf32> to vector<32x32xf32>
    %26 = vector.extract_strided_slice %3 {offsets = [0, 96], sizes = [32, 32], strides = [1, 1]} : vector<32x192xf32> to vector<32x32xf32>
    %27 = vector.extract_strided_slice %3 {offsets = [0, 160], sizes = [32, 32], strides = [1, 1]} : vector<32x192xf32> to vector<32x32xf32>
    %cst_14 = arith.constant dense<0.000000e+00> : vector<32x32xf32>
    %28 = tpu.matmul %25, %26, %cst_14 {dimension_numbers = #tpu.dot_dimension_numbers<[1], [1], [0], [0], [0, 0, 1, 0], [], []>} : vector<32x32xf32>, vector<32x32xf32>, vector<32x32xf32> -> vector<32x32xf32>
    %cst_15 = arith.constant 0.176776692 : f32
    %29 = vector.broadcast %cst_15 : f32 to vector<32x32xf32>
    %30 = arith.mulf %28, %29 : vector<32x32xf32>
    %31 = arith.addf %30, %1 : vector<32x32xf32>
    %cst_16 = arith.constant dense<0xFF800000> : vector<32xf32>
    %32 = vector.multi_reduction <maximumf>, %31, %cst_16 [1] : vector<32x32xf32> to vector<32xf32>
    %33 = vector.shape_cast %32 : vector<32xf32> to vector<32x1xf32>
    %34 = vector.broadcast %33 : vector<32x1xf32> to vector<32x32xf32>
    %35 = arith.subf %31, %34 : vector<32x32xf32>
    %36 = math.exp %35 : vector<32x32xf32>
    %cst_17 = arith.constant dense<0.000000e+00> : vector<32xf32>
    %37 = vector.multi_reduction <add>, %36, %cst_17 [1] : vector<32x32xf32> to vector<32xf32>
    %38 = vector.shape_cast %37 : vector<32xf32> to vector<32x1xf32>
    %39 = tpu.reciprocal %38 {approx = true} : vector<32x1xf32> -> vector<32x1xf32>
    %40 = vector.broadcast %39 : vector<32x1xf32> to vector<32x32xf32>
    %41 = arith.mulf %36, %40 : vector<32x32xf32>
    %cst_18 = arith.constant dense<0.000000e+00> : vector<32x32xf32>
    %42 = tpu.matmul %41, %27, %cst_18 {dimension_numbers = #tpu.dot_dimension_numbers<[1], [0], [0], [1], [0, 0, 1, 1], [], []>} : vector<32x32xf32>, vector<32x32xf32>, vector<32x32xf32> -> vector<32x32xf32>
    %c1 = arith.constant 1 : index
    %c0_19 = arith.constant 0 : index
    %c0_20 = arith.constant 0 : index
    %43 = vector.load %arg4[%c1, %c0_19, %c0_20] : memref<2x32x64xf32, #tpu.memory_space<vmem>>, vector<1x32x64xf32>
    %44 = vector.shape_cast %43 : vector<1x32x64xf32> to vector<32x64xf32>
    %cst_21 = arith.constant dense<0.000000e+00> : vector<32x64xf32>
    %45 = tpu.matmul %42, %44, %cst_21 {dimension_numbers = #tpu.dot_dimension_numbers<[1], [0], [0], [1], [0, 0, 1, 1], [], []>} : vector<32x32xf32>, vector<32x64xf32>, vector<32x64xf32> -> vector<32x64xf32>
    %46 = arith.addf %24, %45 : vector<32x64xf32>
    %c0_22 = arith.constant 0 : index
    %c0_23 = arith.constant 0 : index
    %47 = vector.load %arg5[%c0_22, %c0_23] : memref<1x64xf32, #tpu.memory_space<vmem>>, vector<1x64xf32>
    %c0_24 = arith.constant 0 : index
    %c0_25 = arith.constant 0 : index
    %48 = vector.load %arg6[%c0_24, %c0_25] : memref<1x64xf32, #tpu.memory_space<vmem>>, vector<1x64xf32>
    %cst_26 = arith.constant dense<0.000000e+00> : vector<64xf32>
    %49 = vector.multi_reduction <add>, %46, %cst_26 [0] : vector<32x64xf32> to vector<64xf32>
    %50 = vector.shape_cast %49 : vector<64xf32> to vector<1x64xf32>
    %cst_27 = arith.constant 3.200000e+01 : f32
    %51 = vector.broadcast %cst_27 : f32 to vector<1x64xf32>
    %52 = arith.divf %50, %51 : vector<1x64xf32>
    %53 = vector.broadcast %52 : vector<1x64xf32> to vector<32x64xf32>
    %54 = arith.subf %46, %53 : vector<32x64xf32>
    %55 = vector.broadcast %52 : vector<1x64xf32> to vector<32x64xf32>
    %56 = arith.subf %46, %55 : vector<32x64xf32>
    %57 = arith.mulf %54, %56 : vector<32x64xf32>
    %cst_28 = arith.constant dense<0.000000e+00> : vector<64xf32>
    %58 = vector.multi_reduction <add>, %57, %cst_28 [0] : vector<32x64xf32> to vector<64xf32>
    %59 = vector.shape_cast %58 : vector<64xf32> to vector<1x64xf32>
    %cst_29 = arith.constant 3.200000e+01 : f32
    %60 = vector.broadcast %cst_29 : f32 to vector<1x64xf32>
    %61 = arith.divf %59, %60 : vector<1x64xf32>
    %62 = vector.broadcast %52 : vector<1x64xf32> to vector<32x64xf32>
    %63 = arith.subf %46, %62 : vector<32x64xf32>
    %cst_30 = arith.constant 9.99999974E-6 : f32
    %64 = vector.broadcast %cst_30 : f32 to vector<1x64xf32>
    %65 = arith.addf %61, %64 : vector<1x64xf32>
    %66 = math.rsqrt %65 : vector<1x64xf32>
    %67 = vector.broadcast %66 : vector<1x64xf32> to vector<32x64xf32>
    %68 = arith.mulf %63, %67 : vector<32x64xf32>
    %69 = vector.broadcast %47 : vector<1x64xf32> to vector<32x64xf32>
    %70 = arith.mulf %68, %69 : vector<32x64xf32>
    %71 = vector.broadcast %48 : vector<1x64xf32> to vector<32x64xf32>
    %72 = arith.addf %70, %71 : vector<32x64xf32>
    %73 = arith.addf %0, %72 : vector<32x64xf32>
    %c0_31 = arith.constant 0 : index
    %c0_32 = arith.constant 0 : index
    %74 = vector.load %arg7[%c0_31, %c0_32] : memref<64x64xf32, #tpu.memory_space<vmem>>, vector<64x64xf32>
    %cst_33 = arith.constant dense<0.000000e+00> : vector<32x64xf32>
    %75 = tpu.matmul %73, %74, %cst_33 {dimension_numbers = #tpu.dot_dimension_numbers<[1], [0], [0], [1], [0, 0, 1, 1], [], []>} : vector<32x64xf32>, vector<64x64xf32>, vector<32x64xf32> -> vector<32x64xf32>
    %c0_34 = arith.constant 0 : index
    %c0_35 = arith.constant 0 : index
    %76 = vector.load %arg8[%c0_34, %c0_35] : memref<1x64xf32, #tpu.memory_space<vmem>>, vector<1x64xf32>
    %77 = vector.broadcast %76 : vector<1x64xf32> to vector<32x64xf32>
    %78 = arith.addf %75, %77 : vector<32x64xf32>
    %cst_36 = arith.constant 0.000000e+00 : f32
    %79 = vector.broadcast %cst_36 : f32 to vector<32x64xf32>
    %80 = arith.maximumf %78, %79 : vector<32x64xf32>
    %c0_37 = arith.constant 0 : index
    %c0_38 = arith.constant 0 : index
    %81 = vector.load %arg9[%c0_37, %c0_38] : memref<64x64xf32, #tpu.memory_space<vmem>>, vector<64x64xf32>
    %cst_39 = arith.constant dense<0.000000e+00> : vector<32x64xf32>
    %82 = tpu.matmul %80, %81, %cst_39 {dimension_numbers = #tpu.dot_dimension_numbers<[1], [0], [0], [1], [0, 0, 1, 1], [], []>} : vector<32x64xf32>, vector<64x64xf32>, vector<32x64xf32> -> vector<32x64xf32>
    %83 = arith.addf %73, %82 : vector<32x64xf32>
    %c0_40 = arith.constant 0 : index
    %c0_41 = arith.constant 0 : index
    %84 = vector.load %arg10[%c0_40, %c0_41] : memref<1x64xf32, #tpu.memory_space<vmem>>, vector<1x64xf32>
    %85 = vector.broadcast %84 : vector<1x64xf32> to vector<32x64xf32>
    %86 = arith.addf %83, %85 : vector<32x64xf32>
    %c0_42 = arith.constant 0 : index
    %c0_43 = arith.constant 0 : index
    %87 = vector.load %arg11[%c0_42, %c0_43] : memref<1x64xf32, #tpu.memory_space<vmem>>, vector<1x64xf32>
    %c0_44 = arith.constant 0 : index
    %c0_45 = arith.constant 0 : index
    %88 = vector.load %arg12[%c0_44, %c0_45] : memref<1x64xf32, #tpu.memory_space<vmem>>, vector<1x64xf32>
    %cst_46 = arith.constant dense<0.000000e+00> : vector<64xf32>
    %89 = vector.multi_reduction <add>, %86, %cst_46 [0] : vector<32x64xf32> to vector<64xf32>
    %90 = vector.shape_cast %89 : vector<64xf32> to vector<1x64xf32>
    %cst_47 = arith.constant 3.200000e+01 : f32
    %91 = vector.broadcast %cst_47 : f32 to vector<1x64xf32>
    %92 = arith.divf %90, %91 : vector<1x64xf32>
    %93 = vector.broadcast %92 : vector<1x64xf32> to vector<32x64xf32>
    %94 = arith.subf %86, %93 : vector<32x64xf32>
    %95 = vector.broadcast %92 : vector<1x64xf32> to vector<32x64xf32>
    %96 = arith.subf %86, %95 : vector<32x64xf32>
    %97 = arith.mulf %94, %96 : vector<32x64xf32>
    %cst_48 = arith.constant dense<0.000000e+00> : vector<64xf32>
    %98 = vector.multi_reduction <add>, %97, %cst_48 [0] : vector<32x64xf32> to vector<64xf32>
    %99 = vector.shape_cast %98 : vector<64xf32> to vector<1x64xf32>
    %cst_49 = arith.constant 3.200000e+01 : f32
    %100 = vector.broadcast %cst_49 : f32 to vector<1x64xf32>
    %101 = arith.divf %99, %100 : vector<1x64xf32>
    %102 = vector.broadcast %92 : vector<1x64xf32> to vector<32x64xf32>
    %103 = arith.subf %86, %102 : vector<32x64xf32>
    %cst_50 = arith.constant 9.99999974E-6 : f32
    %104 = vector.broadcast %cst_50 : f32 to vector<1x64xf32>
    %105 = arith.addf %101, %104 : vector<1x64xf32>
    %106 = math.rsqrt %105 : vector<1x64xf32>
    %107 = vector.broadcast %106 : vector<1x64xf32> to vector<32x64xf32>
    %108 = arith.mulf %103, %107 : vector<32x64xf32>
    %109 = vector.broadcast %87 : vector<1x64xf32> to vector<32x64xf32>
    %110 = arith.mulf %108, %109 : vector<32x64xf32>
    %111 = vector.broadcast %88 : vector<1x64xf32> to vector<32x64xf32>
    %112 = arith.addf %110, %111 : vector<32x64xf32>
    %c0_51 = arith.constant 0 : index
    %c0_52 = arith.constant 0 : index
    %113 = vector.load %arg13[%c0_51, %c0_52] : memref<32x64xf32, #tpu.memory_space<vmem>>, vector<32x64xf32>
    tpu.vector_store %arg13[%c0_51, %c0_52], %112 {strides = array<i32>} : memref<32x64xf32, #tpu.memory_space<vmem>>, vector<32x64xf32>,
    return
  }
  func.func @transform_0(%arg0: i32) -> (i32, i32) {
    %c0_i32 = arith.constant 0 : i32
    %c0_i32_0 = arith.constant 0 : i32
    %c0_i32_1 = arith.constant 0 : i32
    return %c0_i32, %c0_i32_0 : i32, i32
  }
  func.func @transform_1(%arg0: i32) -> (i32, i32) {
    %c0_i32 = arith.constant 0 : i32
    %c0_i32_0 = arith.constant 0 : i32
    %c0_i32_1 = arith.constant 0 : i32
    return %c0_i32, %c0_i32_0 : i32, i32
  }
  func.func @transform_2(%arg0: i32) -> (i32, i32) {
    %c0_i32 = arith.constant 0 : i32
    %c0_i32_0 = arith.constant 0 : i32
    %c0_i32_1 = arith.constant 0 : i32
    return %c0_i32, %c0_i32_0 : i32, i32
  }
  func.func @transform_3(%arg0: i32) -> (i32, i32, i32) {
    %c0_i32 = arith.constant 0 : i32
    %c0_i32_0 = arith.constant 0 : i32
    %c0_i32_1 = arith.constant 0 : i32
    %c0_i32_2 = arith.constant 0 : i32
    return %c0_i32, %c0_i32_0, %c0_i32_1 : i32, i32, i32
  }
  func.func @transform_4(%arg0: i32) -> (i32, i32) {
    %c0_i32 = arith.constant 0 : i32
    %c0_i32_0 = arith.constant 0 : i32
    %c0_i32_1 = arith.constant 0 : i32
    return %c0_i32, %c0_i32_0 : i32, i32
  }
  func.func @transform_5(%arg0: i32) -> (i32, i32) {
    %c0_i32 = arith.constant 0 : i32
    %c0_i32_0 = arith.constant 0 : i32
    %c0_i32_1 = arith.constant 0 : i32
    return %c0_i32, %c0_i32_0 : i32, i32
  }
  func.func @transform_6(%arg0: i32) -> (i32, i32) {
    %c0_i32 = arith.constant 0 : i32
    %c0_i32_0 = arith.constant 0 : i32
    %c0_i32_1 = arith.constant 0 : i32
    return %c0_i32, %c0_i32_0 : i32, i32
  }
  func.func @transform_7(%arg0: i32) -> (i32, i32) {
    %c0_i32 = arith.constant 0 : i32
    %c0_i32_0 = arith.constant 0 : i32
    %c0_i32_1 = arith.constant 0 : i32
    return %c0_i32, %c0_i32_0 : i32, i32
  }
  func.func @transform_8(%arg0: i32) -> (i32, i32) {
    %c0_i32 = arith.constant 0 : i32
    %c0_i32_0 = arith.constant 0 : i32
    %c0_i32_1 = arith.constant 0 : i32
    return %c0_i32, %c0_i32_0 : i32, i32
  }
  func.func @transform_9(%arg0: i32) -> (i32, i32) {
    %c0_i32 = arith.constant 0 : i32
    %c0_i32_0 = arith.constant 0 : i32
    %c0_i32_1 = arith.constant 0 : i32
    return %c0_i32, %c0_i32_0 : i32, i32
  }
  func.func @transform_10(%arg0: i32) -> (i32, i32) {
    %c0_i32 = arith.constant 0 : i32
    %c0_i32_0 = arith.constant 0 : i32
    %c0_i32_1 = arith.constant 0 : i32
    return %c0_i32, %c0_i32_0 : i32, i32
  }
  func.func @transform_11(%arg0: i32) -> (i32, i32) {
    %c0_i32 = arith.constant 0 : i32
    %c0_i32_0 = arith.constant 0 : i32
    %c0_i32_1 = arith.constant 0 : i32
    return %c0_i32, %c0_i32_0 : i32, i32
  }
  func.func @transform_12(%arg0: i32) -> (i32, i32) {
    %c0_i32 = arith.constant 0 : i32
    %c0_i32_0 = arith.constant 0 : i32
    %c0_i32_1 = arith.constant 0 : i32
    return %c0_i32, %c0_i32_0 : i32, i32
  }
}

module attributes {stable_mosaic.version = 11 : i64} {
  func.func @_fused_mha_block_kernel(%arg0: i32, %arg1: memref<4x512xf32, #tpu.memory_space<vmem>>, %arg2: memref<4x4xf32, #tpu.memory_space<vmem>>, %arg3: memref<512x1536xf32, #tpu.memory_space<vmem>>, %arg4: memref<2x256x512xf32, #tpu.memory_space<vmem>>, %arg5: memref<1x512xf32, #tpu.memory_space<vmem>>, %arg6: memref<1x512xf32, #tpu.memory_space<vmem>>, %arg7: memref<512x512xf32, #tpu.memory_space<vmem>>, %arg8: memref<1x512xf32, #tpu.memory_space<vmem>>, %arg9: memref<512x512xf32, #tpu.memory_space<vmem>>, %arg10: memref<1x512xf32, #tpu.memory_space<vmem>>, %arg11: memref<1x512xf32, #tpu.memory_space<vmem>>, %arg12: memref<1x512xf32, #tpu.memory_space<vmem>>, %arg13: memref<4x512xf32, #tpu.memory_space<vmem>>) attributes {dimension_semantics = [#tpu.dimension_semantics<arbitrary>], iteration_bounds = array<i64: 1>, scalar_prefetch = 0 : i64, scratch_operands = 0 : i64, tpu.core_type = #tpu.core_type<tc>, window_params = [{pipeline_mode = #tpu.pipeline_mode<synchronous>, transform_indices = @transform_0, window_bounds = array<i64: 4, 512>}, {pipeline_mode = #tpu.pipeline_mode<synchronous>, transform_indices = @transform_1, window_bounds = array<i64: 4, 4>}, {pipeline_mode = #tpu.pipeline_mode<synchronous>, transform_indices = @transform_2, window_bounds = array<i64: 512, 1536>}, {pipeline_mode = #tpu.pipeline_mode<synchronous>, transform_indices = @transform_3, window_bounds = array<i64: 2, 256, 512>}, {pipeline_mode = #tpu.pipeline_mode<synchronous>, transform_indices = @transform_4, window_bounds = array<i64: 1, 512>}, {pipeline_mode = #tpu.pipeline_mode<synchronous>, transform_indices = @transform_5, window_bounds = array<i64: 1, 512>}, {pipeline_mode = #tpu.pipeline_mode<synchronous>, transform_indices = @transform_6, window_bounds = array<i64: 512, 512>}, {pipeline_mode = #tpu.pipeline_mode<synchronous>, transform_indices = @transform_7, window_bounds = array<i64: 1, 512>}, {pipeline_mode = #tpu.pipeline_mode<synchronous>, transform_indices = @transform_8, window_bounds = array<i64: 512, 512>}, {pipeline_mode = #tpu.pipeline_mode<synchronous>, transform_indices = @transform_9, window_bounds = array<i64: 1, 512>}, {pipeline_mode = #tpu.pipeline_mode<synchronous>, transform_indices = @transform_10, window_bounds = array<i64: 1, 512>}, {pipeline_mode = #tpu.pipeline_mode<synchronous>, transform_indices = @transform_11, window_bounds = array<i64: 1, 512>}, {pipeline_mode = #tpu.pipeline_mode<synchronous>, transform_indices = @transform_12, window_bounds = array<i64: 4, 512>}]} {
    %c0 = arith.constant 0 : index
    %c0_0 = arith.constant 0 : index
    %0 = vector.load %arg1[%c0, %c0_0] : memref<4x512xf32, #tpu.memory_space<vmem>>, vector<4x512xf32>
    %c0_1 = arith.constant 0 : index
    %c0_2 = arith.constant 0 : index
    %1 = vector.load %arg2[%c0_1, %c0_2] : memref<4x4xf32, #tpu.memory_space<vmem>>, vector<4x4xf32>
    %c0_3 = arith.constant 0 : index
    %c0_4 = arith.constant 0 : index
    %2 = vector.load %arg3[%c0_3, %c0_4] : memref<512x1536xf32, #tpu.memory_space<vmem>>, vector<512x1536xf32>
    %cst = arith.constant dense<0.000000e+00> : vector<4x1536xf32>
    %3 = tpu.matmul %0, %2, %cst {dimension_numbers = #tpu.dot_dimension_numbers<[1], [0], [0], [1], [0, 0, 1, 1], [], []>} : vector<4x512xf32>, vector<512x1536xf32>, vector<4x1536xf32> -> vector<4x1536xf32>
    %4 = vector.extract_strided_slice %3 {offsets = [0, 0], sizes = [4, 256], strides = [1, 1]} : vector<4x1536xf32> to vector<4x256xf32>
    %5 = vector.extract_strided_slice %3 {offsets = [0, 512], sizes = [4, 256], strides = [1, 1]} : vector<4x1536xf32> to vector<4x256xf32>
    %6 = vector.extract_strided_slice %3 {offsets = [0, 1024], sizes = [4, 256], strides = [1, 1]} : vector<4x1536xf32> to vector<4x256xf32>
    %cst_5 = arith.constant dense<0.000000e+00> : vector<4x4xf32>
    %7 = tpu.matmul %4, %5, %cst_5 {dimension_numbers = #tpu.dot_dimension_numbers<[1], [1], [0], [0], [0, 0, 1, 0], [], []>} : vector<4x256xf32>, vector<4x256xf32>, vector<4x4xf32> -> vector<4x4xf32>
    %cst_6 = arith.constant 6.250000e-02 : f32
    %8 = vector.broadcast %cst_6 : f32 to vector<4x4xf32>
    %9 = arith.mulf %7, %8 : vector<4x4xf32>
    %10 = arith.addf %9, %1 : vector<4x4xf32>
    %cst_7 = arith.constant dense<0xFF800000> : vector<4xf32>
    %11 = vector.multi_reduction <maximumf>, %10, %cst_7 [1] : vector<4x4xf32> to vector<4xf32>
    %12 = vector.shape_cast %11 : vector<4xf32> to vector<4x1xf32>
    %13 = vector.broadcast %12 : vector<4x1xf32> to vector<4x4xf32>
    %14 = arith.subf %10, %13 : vector<4x4xf32>
    %15 = math.exp %14 : vector<4x4xf32>
    %cst_8 = arith.constant dense<0.000000e+00> : vector<4xf32>
    %16 = vector.multi_reduction <add>, %15, %cst_8 [1] : vector<4x4xf32> to vector<4xf32>
    %17 = vector.shape_cast %16 : vector<4xf32> to vector<4x1xf32>
    %18 = tpu.reciprocal %17 {approx = true} : vector<4x1xf32> -> vector<4x1xf32>
    %19 = vector.broadcast %18 : vector<4x1xf32> to vector<4x4xf32>
    %20 = arith.mulf %15, %19 : vector<4x4xf32>
    %cst_9 = arith.constant dense<0.000000e+00> : vector<4x256xf32>
    %21 = tpu.matmul %20, %6, %cst_9 {dimension_numbers = #tpu.dot_dimension_numbers<[1], [0], [0], [1], [0, 0, 1, 1], [], []>} : vector<4x4xf32>, vector<4x256xf32>, vector<4x256xf32> -> vector<4x256xf32>
    %c0_10 = arith.constant 0 : index
    %c0_11 = arith.constant 0 : index
    %c0_12 = arith.constant 0 : index
    %22 = vector.load %arg4[%c0_10, %c0_11, %c0_12] : memref<2x256x512xf32, #tpu.memory_space<vmem>>, vector<1x256x512xf32>
    %23 = vector.shape_cast %22 : vector<1x256x512xf32> to vector<256x512xf32>
    %cst_13 = arith.constant dense<0.000000e+00> : vector<4x512xf32>
    %24 = tpu.matmul %21, %23, %cst_13 {dimension_numbers = #tpu.dot_dimension_numbers<[1], [0], [0], [1], [0, 0, 1, 1], [], []>} : vector<4x256xf32>, vector<256x512xf32>, vector<4x512xf32> -> vector<4x512xf32>
    %25 = vector.extract_strided_slice %3 {offsets = [0, 256], sizes = [4, 256], strides = [1, 1]} : vector<4x1536xf32> to vector<4x256xf32>
    %26 = vector.extract_strided_slice %3 {offsets = [0, 768], sizes = [4, 256], strides = [1, 1]} : vector<4x1536xf32> to vector<4x256xf32>
    %27 = vector.extract_strided_slice %3 {offsets = [0, 1280], sizes = [4, 256], strides = [1, 1]} : vector<4x1536xf32> to vector<4x256xf32>
    %cst_14 = arith.constant dense<0.000000e+00> : vector<4x4xf32>
    %28 = tpu.matmul %25, %26, %cst_14 {dimension_numbers = #tpu.dot_dimension_numbers<[1], [1], [0], [0], [0, 0, 1, 0], [], []>} : vector<4x256xf32>, vector<4x256xf32>, vector<4x4xf32> -> vector<4x4xf32>
    %cst_15 = arith.constant 6.250000e-02 : f32
    %29 = vector.broadcast %cst_15 : f32 to vector<4x4xf32>
    %30 = arith.mulf %28, %29 : vector<4x4xf32>
    %31 = arith.addf %30, %1 : vector<4x4xf32>
    %cst_16 = arith.constant dense<0xFF800000> : vector<4xf32>
    %32 = vector.multi_reduction <maximumf>, %31, %cst_16 [1] : vector<4x4xf32> to vector<4xf32>
    %33 = vector.shape_cast %32 : vector<4xf32> to vector<4x1xf32>
    %34 = vector.broadcast %33 : vector<4x1xf32> to vector<4x4xf32>
    %35 = arith.subf %31, %34 : vector<4x4xf32>
    %36 = math.exp %35 : vector<4x4xf32>
    %cst_17 = arith.constant dense<0.000000e+00> : vector<4xf32>
    %37 = vector.multi_reduction <add>, %36, %cst_17 [1] : vector<4x4xf32> to vector<4xf32>
    %38 = vector.shape_cast %37 : vector<4xf32> to vector<4x1xf32>
    %39 = tpu.reciprocal %38 {approx = true} : vector<4x1xf32> -> vector<4x1xf32>
    %40 = vector.broadcast %39 : vector<4x1xf32> to vector<4x4xf32>
    %41 = arith.mulf %36, %40 : vector<4x4xf32>
    %cst_18 = arith.constant dense<0.000000e+00> : vector<4x256xf32>
    %42 = tpu.matmul %41, %27, %cst_18 {dimension_numbers = #tpu.dot_dimension_numbers<[1], [0], [0], [1], [0, 0, 1, 1], [], []>} : vector<4x4xf32>, vector<4x256xf32>, vector<4x256xf32> -> vector<4x256xf32>
    %c1 = arith.constant 1 : index
    %c0_19 = arith.constant 0 : index
    %c0_20 = arith.constant 0 : index
    %43 = vector.load %arg4[%c1, %c0_19, %c0_20] : memref<2x256x512xf32, #tpu.memory_space<vmem>>, vector<1x256x512xf32>
    %44 = vector.shape_cast %43 : vector<1x256x512xf32> to vector<256x512xf32>
    %cst_21 = arith.constant dense<0.000000e+00> : vector<4x512xf32>
    %45 = tpu.matmul %42, %44, %cst_21 {dimension_numbers = #tpu.dot_dimension_numbers<[1], [0], [0], [1], [0, 0, 1, 1], [], []>} : vector<4x256xf32>, vector<256x512xf32>, vector<4x512xf32> -> vector<4x512xf32>
    %46 = arith.addf %24, %45 : vector<4x512xf32>
    %c0_22 = arith.constant 0 : index
    %c0_23 = arith.constant 0 : index
    %47 = vector.load %arg5[%c0_22, %c0_23] : memref<1x512xf32, #tpu.memory_space<vmem>>, vector<1x512xf32>
    %c0_24 = arith.constant 0 : index
    %c0_25 = arith.constant 0 : index
    %48 = vector.load %arg6[%c0_24, %c0_25] : memref<1x512xf32, #tpu.memory_space<vmem>>, vector<1x512xf32>
    %cst_26 = arith.constant dense<0.000000e+00> : vector<512xf32>
    %49 = vector.multi_reduction <add>, %46, %cst_26 [0] : vector<4x512xf32> to vector<512xf32>
    %50 = vector.shape_cast %49 : vector<512xf32> to vector<1x512xf32>
    %cst_27 = arith.constant 4.000000e+00 : f32
    %51 = vector.broadcast %cst_27 : f32 to vector<1x512xf32>
    %52 = arith.divf %50, %51 : vector<1x512xf32>
    %53 = vector.broadcast %52 : vector<1x512xf32> to vector<4x512xf32>
    %54 = arith.subf %46, %53 : vector<4x512xf32>
    %55 = vector.broadcast %52 : vector<1x512xf32> to vector<4x512xf32>
    %56 = arith.subf %46, %55 : vector<4x512xf32>
    %57 = arith.mulf %54, %56 : vector<4x512xf32>
    %cst_28 = arith.constant dense<0.000000e+00> : vector<512xf32>
    %58 = vector.multi_reduction <add>, %57, %cst_28 [0] : vector<4x512xf32> to vector<512xf32>
    %59 = vector.shape_cast %58 : vector<512xf32> to vector<1x512xf32>
    %cst_29 = arith.constant 4.000000e+00 : f32
    %60 = vector.broadcast %cst_29 : f32 to vector<1x512xf32>
    %61 = arith.divf %59, %60 : vector<1x512xf32>
    %62 = vector.broadcast %52 : vector<1x512xf32> to vector<4x512xf32>
    %63 = arith.subf %46, %62 : vector<4x512xf32>
    %cst_30 = arith.constant 9.99999974E-6 : f32
    %64 = vector.broadcast %cst_30 : f32 to vector<1x512xf32>
    %65 = arith.addf %61, %64 : vector<1x512xf32>
    %66 = math.rsqrt %65 : vector<1x512xf32>
    %67 = vector.broadcast %66 : vector<1x512xf32> to vector<4x512xf32>
    %68 = arith.mulf %63, %67 : vector<4x512xf32>
    %69 = vector.broadcast %47 : vector<1x512xf32> to vector<4x512xf32>
    %70 = arith.mulf %68, %69 : vector<4x512xf32>
    %71 = vector.broadcast %48 : vector<1x512xf32> to vector<4x512xf32>
    %72 = arith.addf %70, %71 : vector<4x512xf32>
    %73 = arith.addf %0, %72 : vector<4x512xf32>
    %c0_31 = arith.constant 0 : index
    %c0_32 = arith.constant 0 : index
    %74 = vector.load %arg7[%c0_31, %c0_32] : memref<512x512xf32, #tpu.memory_space<vmem>>, vector<512x512xf32>
    %cst_33 = arith.constant dense<0.000000e+00> : vector<4x512xf32>
    %75 = tpu.matmul %73, %74, %cst_33 {dimension_numbers = #tpu.dot_dimension_numbers<[1], [0], [0], [1], [0, 0, 1, 1], [], []>} : vector<4x512xf32>, vector<512x512xf32>, vector<4x512xf32> -> vector<4x512xf32>
    %c0_34 = arith.constant 0 : index
    %c0_35 = arith.constant 0 : index
    %76 = vector.load %arg8[%c0_34, %c0_35] : memref<1x512xf32, #tpu.memory_space<vmem>>, vector<1x512xf32>
    %77 = vector.broadcast %76 : vector<1x512xf32> to vector<4x512xf32>
    %78 = arith.addf %75, %77 : vector<4x512xf32>
    %cst_36 = arith.constant 0.000000e+00 : f32
    %79 = vector.broadcast %cst_36 : f32 to vector<4x512xf32>
    %80 = arith.maximumf %78, %79 : vector<4x512xf32>
    %c0_37 = arith.constant 0 : index
    %c0_38 = arith.constant 0 : index
    %81 = vector.load %arg9[%c0_37, %c0_38] : memref<512x512xf32, #tpu.memory_space<vmem>>, vector<512x512xf32>
    %cst_39 = arith.constant dense<0.000000e+00> : vector<4x512xf32>
    %82 = tpu.matmul %80, %81, %cst_39 {dimension_numbers = #tpu.dot_dimension_numbers<[1], [0], [0], [1], [0, 0, 1, 1], [], []>} : vector<4x512xf32>, vector<512x512xf32>, vector<4x512xf32> -> vector<4x512xf32>
    %83 = arith.addf %73, %82 : vector<4x512xf32>
    %c0_40 = arith.constant 0 : index
    %c0_41 = arith.constant 0 : index
    %84 = vector.load %arg10[%c0_40, %c0_41] : memref<1x512xf32, #tpu.memory_space<vmem>>, vector<1x512xf32>
    %85 = vector.broadcast %84 : vector<1x512xf32> to vector<4x512xf32>
    %86 = arith.addf %83, %85 : vector<4x512xf32>
    %c0_42 = arith.constant 0 : index
    %c0_43 = arith.constant 0 : index
    %87 = vector.load %arg11[%c0_42, %c0_43] : memref<1x512xf32, #tpu.memory_space<vmem>>, vector<1x512xf32>
    %c0_44 = arith.constant 0 : index
    %c0_45 = arith.constant 0 : index
    %88 = vector.load %arg12[%c0_44, %c0_45] : memref<1x512xf32, #tpu.memory_space<vmem>>, vector<1x512xf32>
    %cst_46 = arith.constant dense<0.000000e+00> : vector<512xf32>
    %89 = vector.multi_reduction <add>, %86, %cst_46 [0] : vector<4x512xf32> to vector<512xf32>
    %90 = vector.shape_cast %89 : vector<512xf32> to vector<1x512xf32>
    %cst_47 = arith.constant 4.000000e+00 : f32
    %91 = vector.broadcast %cst_47 : f32 to vector<1x512xf32>
    %92 = arith.divf %90, %91 : vector<1x512xf32>
    %93 = vector.broadcast %92 : vector<1x512xf32> to vector<4x512xf32>
    %94 = arith.subf %86, %93 : vector<4x512xf32>
    %95 = vector.broadcast %92 : vector<1x512xf32> to vector<4x512xf32>
    %96 = arith.subf %86, %95 : vector<4x512xf32>
    %97 = arith.mulf %94, %96 : vector<4x512xf32>
    %cst_48 = arith.constant dense<0.000000e+00> : vector<512xf32>
    %98 = vector.multi_reduction <add>, %97, %cst_48 [0] : vector<4x512xf32> to vector<512xf32>
    %99 = vector.shape_cast %98 : vector<512xf32> to vector<1x512xf32>
    %cst_49 = arith.constant 4.000000e+00 : f32
    %100 = vector.broadcast %cst_49 : f32 to vector<1x512xf32>
    %101 = arith.divf %99, %100 : vector<1x512xf32>
    %102 = vector.broadcast %92 : vector<1x512xf32> to vector<4x512xf32>
    %103 = arith.subf %86, %102 : vector<4x512xf32>
    %cst_50 = arith.constant 9.99999974E-6 : f32
    %104 = vector.broadcast %cst_50 : f32 to vector<1x512xf32>
    %105 = arith.addf %101, %104 : vector<1x512xf32>
    %106 = math.rsqrt %105 : vector<1x512xf32>
    %107 = vector.broadcast %106 : vector<1x512xf32> to vector<4x512xf32>
    %108 = arith.mulf %103, %107 : vector<4x512xf32>
    %109 = vector.broadcast %87 : vector<1x512xf32> to vector<4x512xf32>
    %110 = arith.mulf %108, %109 : vector<4x512xf32>
    %111 = vector.broadcast %88 : vector<1x512xf32> to vector<4x512xf32>
    %112 = arith.addf %110, %111 : vector<4x512xf32>
    %c0_51 = arith.constant 0 : index
    %c0_52 = arith.constant 0 : index
    %113 = vector.load %arg13[%c0_51, %c0_52] : memref<4x512xf32, #tpu.memory_space<vmem>>, vector<4x512xf32>
    tpu.vector_store %arg13[%c0_51, %c0_52], %112 {strides = array<i32>} : memref<4x512xf32, #tpu.memory_space<vmem>>, vector<4x512xf32>,
    return
  }
  func.func @transform_0(%arg0: i32) -> (i32, i32) {
    %c0_i32 = arith.constant 0 : i32
    %c0_i32_0 = arith.constant 0 : i32
    %c0_i32_1 = arith.constant 0 : i32
    return %c0_i32, %c0_i32_0 : i32, i32
  }
  func.func @transform_1(%arg0: i32) -> (i32, i32) {
    %c0_i32 = arith.constant 0 : i32
    %c0_i32_0 = arith.constant 0 : i32
    %c0_i32_1 = arith.constant 0 : i32
    return %c0_i32, %c0_i32_0 : i32, i32
  }
  func.func @transform_2(%arg0: i32) -> (i32, i32) {
    %c0_i32 = arith.constant 0 : i32
    %c0_i32_0 = arith.constant 0 : i32
    %c0_i32_1 = arith.constant 0 : i32
    return %c0_i32, %c0_i32_0 : i32, i32
  }
  func.func @transform_3(%arg0: i32) -> (i32, i32, i32) {
    %c0_i32 = arith.constant 0 : i32
    %c0_i32_0 = arith.constant 0 : i32
    %c0_i32_1 = arith.constant 0 : i32
    %c0_i32_2 = arith.constant 0 : i32
    return %c0_i32, %c0_i32_0, %c0_i32_1 : i32, i32, i32
  }
  func.func @transform_4(%arg0: i32) -> (i32, i32) {
    %c0_i32 = arith.constant 0 : i32
    %c0_i32_0 = arith.constant 0 : i32
    %c0_i32_1 = arith.constant 0 : i32
    return %c0_i32, %c0_i32_0 : i32, i32
  }
  func.func @transform_5(%arg0: i32) -> (i32, i32) {
    %c0_i32 = arith.constant 0 : i32
    %c0_i32_0 = arith.constant 0 : i32
    %c0_i32_1 = arith.constant 0 : i32
    return %c0_i32, %c0_i32_0 : i32, i32
  }
  func.func @transform_6(%arg0: i32) -> (i32, i32) {
    %c0_i32 = arith.constant 0 : i32
    %c0_i32_0 = arith.constant 0 : i32
    %c0_i32_1 = arith.constant 0 : i32
    return %c0_i32, %c0_i32_0 : i32, i32
  }
  func.func @transform_7(%arg0: i32) -> (i32, i32) {
    %c0_i32 = arith.constant 0 : i32
    %c0_i32_0 = arith.constant 0 : i32
    %c0_i32_1 = arith.constant 0 : i32
    return %c0_i32, %c0_i32_0 : i32, i32
  }
  func.func @transform_8(%arg0: i32) -> (i32, i32) {
    %c0_i32 = arith.constant 0 : i32
    %c0_i32_0 = arith.constant 0 : i32
    %c0_i32_1 = arith.constant 0 : i32
    return %c0_i32, %c0_i32_0 : i32, i32
  }
  func.func @transform_9(%arg0: i32) -> (i32, i32) {
    %c0_i32 = arith.constant 0 : i32
    %c0_i32_0 = arith.constant 0 : i32
    %c0_i32_1 = arith.constant 0 : i32
    return %c0_i32, %c0_i32_0 : i32, i32
  }
  func.func @transform_10(%arg0: i32) -> (i32, i32) {
    %c0_i32 = arith.constant 0 : i32
    %c0_i32_0 = arith.constant 0 : i32
    %c0_i32_1 = arith.constant 0 : i32
    return %c0_i32, %c0_i32_0 : i32, i32
  }
  func.func @transform_11(%arg0: i32) -> (i32, i32) {
    %c0_i32 = arith.constant 0 : i32
    %c0_i32_0 = arith.constant 0 : i32
    %c0_i32_1 = arith.constant 0 : i32
    return %c0_i32, %c0_i32_0 : i32, i32
  }
  func.func @transform_12(%arg0: i32) -> (i32, i32) {
    %c0_i32 = arith.constant 0 : i32
    %c0_i32_0 = arith.constant 0 : i32
    %c0_i32_1 = arith.constant 0 : i32
    return %c0_i32, %c0_i32_0 : i32, i32
  }
}

module attributes {stable_mosaic.version = 11 : i64} {
  func.func @_fused_mha_block_kernel(%arg0: i32, %arg1: memref<12x64xf32, #tpu.memory_space<vmem>>, %arg2: memref<12x12xf32, #tpu.memory_space<vmem>>, %arg3: memref<64x192xf32, #tpu.memory_space<vmem>>, %arg4: memref<2x32x64xf32, #tpu.memory_space<vmem>>, %arg5: memref<1x64xf32, #tpu.memory_space<vmem>>, %arg6: memref<1x64xf32, #tpu.memory_space<vmem>>, %arg7: memref<64x64xf32, #tpu.memory_space<vmem>>, %arg8: memref<1x64xf32, #tpu.memory_space<vmem>>, %arg9: memref<64x64xf32, #tpu.memory_space<vmem>>, %arg10: memref<1x64xf32, #tpu.memory_space<vmem>>, %arg11: memref<1x64xf32, #tpu.memory_space<vmem>>, %arg12: memref<1x64xf32, #tpu.memory_space<vmem>>, %arg13: memref<12x64xf32, #tpu.memory_space<vmem>>) attributes {dimension_semantics = [#tpu.dimension_semantics<arbitrary>], iteration_bounds = array<i64: 1>, scalar_prefetch = 0 : i64, scratch_operands = 0 : i64, tpu.core_type = #tpu.core_type<tc>, window_params = [{pipeline_mode = #tpu.pipeline_mode<synchronous>, transform_indices = @transform_0, window_bounds = array<i64: 12, 64>}, {pipeline_mode = #tpu.pipeline_mode<synchronous>, transform_indices = @transform_1, window_bounds = array<i64: 12, 12>}, {pipeline_mode = #tpu.pipeline_mode<synchronous>, transform_indices = @transform_2, window_bounds = array<i64: 64, 192>}, {pipeline_mode = #tpu.pipeline_mode<synchronous>, transform_indices = @transform_3, window_bounds = array<i64: 2, 32, 64>}, {pipeline_mode = #tpu.pipeline_mode<synchronous>, transform_indices = @transform_4, window_bounds = array<i64: 1, 64>}, {pipeline_mode = #tpu.pipeline_mode<synchronous>, transform_indices = @transform_5, window_bounds = array<i64: 1, 64>}, {pipeline_mode = #tpu.pipeline_mode<synchronous>, transform_indices = @transform_6, window_bounds = array<i64: 64, 64>}, {pipeline_mode = #tpu.pipeline_mode<synchronous>, transform_indices = @transform_7, window_bounds = array<i64: 1, 64>}, {pipeline_mode = #tpu.pipeline_mode<synchronous>, transform_indices = @transform_8, window_bounds = array<i64: 64, 64>}, {pipeline_mode = #tpu.pipeline_mode<synchronous>, transform_indices = @transform_9, window_bounds = array<i64: 1, 64>}, {pipeline_mode = #tpu.pipeline_mode<synchronous>, transform_indices = @transform_10, window_bounds = array<i64: 1, 64>}, {pipeline_mode = #tpu.pipeline_mode<synchronous>, transform_indices = @transform_11, window_bounds = array<i64: 1, 64>}, {pipeline_mode = #tpu.pipeline_mode<synchronous>, transform_indices = @transform_12, window_bounds = array<i64: 12, 64>}]} {
    %c0 = arith.constant 0 : index
    %c0_0 = arith.constant 0 : index
    %0 = vector.load %arg1[%c0, %c0_0] : memref<12x64xf32, #tpu.memory_space<vmem>>, vector<12x64xf32>
    %c0_1 = arith.constant 0 : index
    %c0_2 = arith.constant 0 : index
    %1 = vector.load %arg2[%c0_1, %c0_2] : memref<12x12xf32, #tpu.memory_space<vmem>>, vector<12x12xf32>
    %c0_3 = arith.constant 0 : index
    %c0_4 = arith.constant 0 : index
    %2 = vector.load %arg3[%c0_3, %c0_4] : memref<64x192xf32, #tpu.memory_space<vmem>>, vector<64x192xf32>
    %cst = arith.constant dense<0.000000e+00> : vector<12x192xf32>
    %3 = tpu.matmul %0, %2, %cst {dimension_numbers = #tpu.dot_dimension_numbers<[1], [0], [0], [1], [0, 0, 1, 1], [], []>} : vector<12x64xf32>, vector<64x192xf32>, vector<12x192xf32> -> vector<12x192xf32>
    %4 = vector.extract_strided_slice %3 {offsets = [0, 0], sizes = [12, 32], strides = [1, 1]} : vector<12x192xf32> to vector<12x32xf32>
    %5 = vector.extract_strided_slice %3 {offsets = [0, 64], sizes = [12, 32], strides = [1, 1]} : vector<12x192xf32> to vector<12x32xf32>
    %6 = vector.extract_strided_slice %3 {offsets = [0, 128], sizes = [12, 32], strides = [1, 1]} : vector<12x192xf32> to vector<12x32xf32>
    %cst_5 = arith.constant dense<0.000000e+00> : vector<12x12xf32>
    %7 = tpu.matmul %4, %5, %cst_5 {dimension_numbers = #tpu.dot_dimension_numbers<[1], [1], [0], [0], [0, 0, 1, 0], [], []>} : vector<12x32xf32>, vector<12x32xf32>, vector<12x12xf32> -> vector<12x12xf32>
    %cst_6 = arith.constant 0.176776692 : f32
    %8 = vector.broadcast %cst_6 : f32 to vector<12x12xf32>
    %9 = arith.mulf %7, %8 : vector<12x12xf32>
    %10 = arith.addf %9, %1 : vector<12x12xf32>
    %cst_7 = arith.constant dense<0xFF800000> : vector<12xf32>
    %11 = vector.multi_reduction <maximumf>, %10, %cst_7 [1] : vector<12x12xf32> to vector<12xf32>
    %12 = vector.shape_cast %11 : vector<12xf32> to vector<12x1xf32>
    %13 = vector.broadcast %12 : vector<12x1xf32> to vector<12x12xf32>
    %14 = arith.subf %10, %13 : vector<12x12xf32>
    %15 = math.exp %14 : vector<12x12xf32>
    %cst_8 = arith.constant dense<0.000000e+00> : vector<12xf32>
    %16 = vector.multi_reduction <add>, %15, %cst_8 [1] : vector<12x12xf32> to vector<12xf32>
    %17 = vector.shape_cast %16 : vector<12xf32> to vector<12x1xf32>
    %18 = tpu.reciprocal %17 {approx = true} : vector<12x1xf32> -> vector<12x1xf32>
    %19 = vector.broadcast %18 : vector<12x1xf32> to vector<12x12xf32>
    %20 = arith.mulf %15, %19 : vector<12x12xf32>
    %cst_9 = arith.constant dense<0.000000e+00> : vector<12x32xf32>
    %21 = tpu.matmul %20, %6, %cst_9 {dimension_numbers = #tpu.dot_dimension_numbers<[1], [0], [0], [1], [0, 0, 1, 1], [], []>} : vector<12x12xf32>, vector<12x32xf32>, vector<12x32xf32> -> vector<12x32xf32>
    %c0_10 = arith.constant 0 : index
    %c0_11 = arith.constant 0 : index
    %c0_12 = arith.constant 0 : index
    %22 = vector.load %arg4[%c0_10, %c0_11, %c0_12] : memref<2x32x64xf32, #tpu.memory_space<vmem>>, vector<1x32x64xf32>
    %23 = vector.shape_cast %22 : vector<1x32x64xf32> to vector<32x64xf32>
    %cst_13 = arith.constant dense<0.000000e+00> : vector<12x64xf32>
    %24 = tpu.matmul %21, %23, %cst_13 {dimension_numbers = #tpu.dot_dimension_numbers<[1], [0], [0], [1], [0, 0, 1, 1], [], []>} : vector<12x32xf32>, vector<32x64xf32>, vector<12x64xf32> -> vector<12x64xf32>
    %25 = vector.extract_strided_slice %3 {offsets = [0, 32], sizes = [12, 32], strides = [1, 1]} : vector<12x192xf32> to vector<12x32xf32>
    %26 = vector.extract_strided_slice %3 {offsets = [0, 96], sizes = [12, 32], strides = [1, 1]} : vector<12x192xf32> to vector<12x32xf32>
    %27 = vector.extract_strided_slice %3 {offsets = [0, 160], sizes = [12, 32], strides = [1, 1]} : vector<12x192xf32> to vector<12x32xf32>
    %cst_14 = arith.constant dense<0.000000e+00> : vector<12x12xf32>
    %28 = tpu.matmul %25, %26, %cst_14 {dimension_numbers = #tpu.dot_dimension_numbers<[1], [1], [0], [0], [0, 0, 1, 0], [], []>} : vector<12x32xf32>, vector<12x32xf32>, vector<12x12xf32> -> vector<12x12xf32>
    %cst_15 = arith.constant 0.176776692 : f32
    %29 = vector.broadcast %cst_15 : f32 to vector<12x12xf32>
    %30 = arith.mulf %28, %29 : vector<12x12xf32>
    %31 = arith.addf %30, %1 : vector<12x12xf32>
    %cst_16 = arith.constant dense<0xFF800000> : vector<12xf32>
    %32 = vector.multi_reduction <maximumf>, %31, %cst_16 [1] : vector<12x12xf32> to vector<12xf32>
    %33 = vector.shape_cast %32 : vector<12xf32> to vector<12x1xf32>
    %34 = vector.broadcast %33 : vector<12x1xf32> to vector<12x12xf32>
    %35 = arith.subf %31, %34 : vector<12x12xf32>
    %36 = math.exp %35 : vector<12x12xf32>
    %cst_17 = arith.constant dense<0.000000e+00> : vector<12xf32>
    %37 = vector.multi_reduction <add>, %36, %cst_17 [1] : vector<12x12xf32> to vector<12xf32>
    %38 = vector.shape_cast %37 : vector<12xf32> to vector<12x1xf32>
    %39 = tpu.reciprocal %38 {approx = true} : vector<12x1xf32> -> vector<12x1xf32>
    %40 = vector.broadcast %39 : vector<12x1xf32> to vector<12x12xf32>
    %41 = arith.mulf %36, %40 : vector<12x12xf32>
    %cst_18 = arith.constant dense<0.000000e+00> : vector<12x32xf32>
    %42 = tpu.matmul %41, %27, %cst_18 {dimension_numbers = #tpu.dot_dimension_numbers<[1], [0], [0], [1], [0, 0, 1, 1], [], []>} : vector<12x12xf32>, vector<12x32xf32>, vector<12x32xf32> -> vector<12x32xf32>
    %c1 = arith.constant 1 : index
    %c0_19 = arith.constant 0 : index
    %c0_20 = arith.constant 0 : index
    %43 = vector.load %arg4[%c1, %c0_19, %c0_20] : memref<2x32x64xf32, #tpu.memory_space<vmem>>, vector<1x32x64xf32>
    %44 = vector.shape_cast %43 : vector<1x32x64xf32> to vector<32x64xf32>
    %cst_21 = arith.constant dense<0.000000e+00> : vector<12x64xf32>
    %45 = tpu.matmul %42, %44, %cst_21 {dimension_numbers = #tpu.dot_dimension_numbers<[1], [0], [0], [1], [0, 0, 1, 1], [], []>} : vector<12x32xf32>, vector<32x64xf32>, vector<12x64xf32> -> vector<12x64xf32>
    %46 = arith.addf %24, %45 : vector<12x64xf32>
    %c0_22 = arith.constant 0 : index
    %c0_23 = arith.constant 0 : index
    %47 = vector.load %arg5[%c0_22, %c0_23] : memref<1x64xf32, #tpu.memory_space<vmem>>, vector<1x64xf32>
    %c0_24 = arith.constant 0 : index
    %c0_25 = arith.constant 0 : index
    %48 = vector.load %arg6[%c0_24, %c0_25] : memref<1x64xf32, #tpu.memory_space<vmem>>, vector<1x64xf32>
    %cst_26 = arith.constant dense<0.000000e+00> : vector<64xf32>
    %49 = vector.multi_reduction <add>, %46, %cst_26 [0] : vector<12x64xf32> to vector<64xf32>
    %50 = vector.shape_cast %49 : vector<64xf32> to vector<1x64xf32>
    %cst_27 = arith.constant 1.200000e+01 : f32
    %51 = vector.broadcast %cst_27 : f32 to vector<1x64xf32>
    %52 = arith.divf %50, %51 : vector<1x64xf32>
    %53 = vector.broadcast %52 : vector<1x64xf32> to vector<12x64xf32>
    %54 = arith.subf %46, %53 : vector<12x64xf32>
    %55 = vector.broadcast %52 : vector<1x64xf32> to vector<12x64xf32>
    %56 = arith.subf %46, %55 : vector<12x64xf32>
    %57 = arith.mulf %54, %56 : vector<12x64xf32>
    %cst_28 = arith.constant dense<0.000000e+00> : vector<64xf32>
    %58 = vector.multi_reduction <add>, %57, %cst_28 [0] : vector<12x64xf32> to vector<64xf32>
    %59 = vector.shape_cast %58 : vector<64xf32> to vector<1x64xf32>
    %cst_29 = arith.constant 1.200000e+01 : f32
    %60 = vector.broadcast %cst_29 : f32 to vector<1x64xf32>
    %61 = arith.divf %59, %60 : vector<1x64xf32>
    %62 = vector.broadcast %52 : vector<1x64xf32> to vector<12x64xf32>
    %63 = arith.subf %46, %62 : vector<12x64xf32>
    %cst_30 = arith.constant 9.99999974E-6 : f32
    %64 = vector.broadcast %cst_30 : f32 to vector<1x64xf32>
    %65 = arith.addf %61, %64 : vector<1x64xf32>
    %66 = math.rsqrt %65 : vector<1x64xf32>
    %67 = vector.broadcast %66 : vector<1x64xf32> to vector<12x64xf32>
    %68 = arith.mulf %63, %67 : vector<12x64xf32>
    %69 = vector.broadcast %47 : vector<1x64xf32> to vector<12x64xf32>
    %70 = arith.mulf %68, %69 : vector<12x64xf32>
    %71 = vector.broadcast %48 : vector<1x64xf32> to vector<12x64xf32>
    %72 = arith.addf %70, %71 : vector<12x64xf32>
    %73 = arith.addf %0, %72 : vector<12x64xf32>
    %c0_31 = arith.constant 0 : index
    %c0_32 = arith.constant 0 : index
    %74 = vector.load %arg7[%c0_31, %c0_32] : memref<64x64xf32, #tpu.memory_space<vmem>>, vector<64x64xf32>
    %cst_33 = arith.constant dense<0.000000e+00> : vector<12x64xf32>
    %75 = tpu.matmul %73, %74, %cst_33 {dimension_numbers = #tpu.dot_dimension_numbers<[1], [0], [0], [1], [0, 0, 1, 1], [], []>} : vector<12x64xf32>, vector<64x64xf32>, vector<12x64xf32> -> vector<12x64xf32>
    %c0_34 = arith.constant 0 : index
    %c0_35 = arith.constant 0 : index
    %76 = vector.load %arg8[%c0_34, %c0_35] : memref<1x64xf32, #tpu.memory_space<vmem>>, vector<1x64xf32>
    %77 = vector.broadcast %76 : vector<1x64xf32> to vector<12x64xf32>
    %78 = arith.addf %75, %77 : vector<12x64xf32>
    %cst_36 = arith.constant 0.000000e+00 : f32
    %79 = vector.broadcast %cst_36 : f32 to vector<12x64xf32>
    %80 = arith.maximumf %78, %79 : vector<12x64xf32>
    %c0_37 = arith.constant 0 : index
    %c0_38 = arith.constant 0 : index
    %81 = vector.load %arg9[%c0_37, %c0_38] : memref<64x64xf32, #tpu.memory_space<vmem>>, vector<64x64xf32>
    %cst_39 = arith.constant dense<0.000000e+00> : vector<12x64xf32>
    %82 = tpu.matmul %80, %81, %cst_39 {dimension_numbers = #tpu.dot_dimension_numbers<[1], [0], [0], [1], [0, 0, 1, 1], [], []>} : vector<12x64xf32>, vector<64x64xf32>, vector<12x64xf32> -> vector<12x64xf32>
    %83 = arith.addf %73, %82 : vector<12x64xf32>
    %c0_40 = arith.constant 0 : index
    %c0_41 = arith.constant 0 : index
    %84 = vector.load %arg10[%c0_40, %c0_41] : memref<1x64xf32, #tpu.memory_space<vmem>>, vector<1x64xf32>
    %85 = vector.broadcast %84 : vector<1x64xf32> to vector<12x64xf32>
    %86 = arith.addf %83, %85 : vector<12x64xf32>
    %c0_42 = arith.constant 0 : index
    %c0_43 = arith.constant 0 : index
    %87 = vector.load %arg11[%c0_42, %c0_43] : memref<1x64xf32, #tpu.memory_space<vmem>>, vector<1x64xf32>
    %c0_44 = arith.constant 0 : index
    %c0_45 = arith.constant 0 : index
    %88 = vector.load %arg12[%c0_44, %c0_45] : memref<1x64xf32, #tpu.memory_space<vmem>>, vector<1x64xf32>
    %cst_46 = arith.constant dense<0.000000e+00> : vector<64xf32>
    %89 = vector.multi_reduction <add>, %86, %cst_46 [0] : vector<12x64xf32> to vector<64xf32>
    %90 = vector.shape_cast %89 : vector<64xf32> to vector<1x64xf32>
    %cst_47 = arith.constant 1.200000e+01 : f32
    %91 = vector.broadcast %cst_47 : f32 to vector<1x64xf32>
    %92 = arith.divf %90, %91 : vector<1x64xf32>
    %93 = vector.broadcast %92 : vector<1x64xf32> to vector<12x64xf32>
    %94 = arith.subf %86, %93 : vector<12x64xf32>
    %95 = vector.broadcast %92 : vector<1x64xf32> to vector<12x64xf32>
    %96 = arith.subf %86, %95 : vector<12x64xf32>
    %97 = arith.mulf %94, %96 : vector<12x64xf32>
    %cst_48 = arith.constant dense<0.000000e+00> : vector<64xf32>
    %98 = vector.multi_reduction <add>, %97, %cst_48 [0] : vector<12x64xf32> to vector<64xf32>
    %99 = vector.shape_cast %98 : vector<64xf32> to vector<1x64xf32>
    %cst_49 = arith.constant 1.200000e+01 : f32
    %100 = vector.broadcast %cst_49 : f32 to vector<1x64xf32>
    %101 = arith.divf %99, %100 : vector<1x64xf32>
    %102 = vector.broadcast %92 : vector<1x64xf32> to vector<12x64xf32>
    %103 = arith.subf %86, %102 : vector<12x64xf32>
    %cst_50 = arith.constant 9.99999974E-6 : f32
    %104 = vector.broadcast %cst_50 : f32 to vector<1x64xf32>
    %105 = arith.addf %101, %104 : vector<1x64xf32>
    %106 = math.rsqrt %105 : vector<1x64xf32>
    %107 = vector.broadcast %106 : vector<1x64xf32> to vector<12x64xf32>
    %108 = arith.mulf %103, %107 : vector<12x64xf32>
    %109 = vector.broadcast %87 : vector<1x64xf32> to vector<12x64xf32>
    %110 = arith.mulf %108, %109 : vector<12x64xf32>
    %111 = vector.broadcast %88 : vector<1x64xf32> to vector<12x64xf32>
    %112 = arith.addf %110, %111 : vector<12x64xf32>
    %c0_51 = arith.constant 0 : index
    %c0_52 = arith.constant 0 : index
    %113 = vector.load %arg13[%c0_51, %c0_52] : memref<12x64xf32, #tpu.memory_space<vmem>>, vector<12x64xf32>
    tpu.vector_store %arg13[%c0_51, %c0_52], %112 {strides = array<i32>} : memref<12x64xf32, #tpu.memory_space<vmem>>, vector<12x64xf32>,
    return
  }
  func.func @transform_0(%arg0: i32) -> (i32, i32) {
    %c0_i32 = arith.constant 0 : i32
    %c0_i32_0 = arith.constant 0 : i32
    %c0_i32_1 = arith.constant 0 : i32
    return %c0_i32, %c0_i32_0 : i32, i32
  }
  func.func @transform_1(%arg0: i32) -> (i32, i32) {
    %c0_i32 = arith.constant 0 : i32
    %c0_i32_0 = arith.constant 0 : i32
    %c0_i32_1 = arith.constant 0 : i32
    return %c0_i32, %c0_i32_0 : i32, i32
  }
  func.func @transform_2(%arg0: i32) -> (i32, i32) {
    %c0_i32 = arith.constant 0 : i32
    %c0_i32_0 = arith.constant 0 : i32
    %c0_i32_1 = arith.constant 0 : i32
    return %c0_i32, %c0_i32_0 : i32, i32
  }
  func.func @transform_3(%arg0: i32) -> (i32, i32, i32) {
    %c0_i32 = arith.constant 0 : i32
    %c0_i32_0 = arith.constant 0 : i32
    %c0_i32_1 = arith.constant 0 : i32
    %c0_i32_2 = arith.constant 0 : i32
    return %c0_i32, %c0_i32_0, %c0_i32_1 : i32, i32, i32
  }
  func.func @transform_4(%arg0: i32) -> (i32, i32) {
    %c0_i32 = arith.constant 0 : i32
    %c0_i32_0 = arith.constant 0 : i32
    %c0_i32_1 = arith.constant 0 : i32
    return %c0_i32, %c0_i32_0 : i32, i32
  }
  func.func @transform_5(%arg0: i32) -> (i32, i32) {
    %c0_i32 = arith.constant 0 : i32
    %c0_i32_0 = arith.constant 0 : i32
    %c0_i32_1 = arith.constant 0 : i32
    return %c0_i32, %c0_i32_0 : i32, i32
  }
  func.func @transform_6(%arg0: i32) -> (i32, i32) {
    %c0_i32 = arith.constant 0 : i32
    %c0_i32_0 = arith.constant 0 : i32
    %c0_i32_1 = arith.constant 0 : i32
    return %c0_i32, %c0_i32_0 : i32, i32
  }
  func.func @transform_7(%arg0: i32) -> (i32, i32) {
    %c0_i32 = arith.constant 0 : i32
    %c0_i32_0 = arith.constant 0 : i32
    %c0_i32_1 = arith.constant 0 : i32
    return %c0_i32, %c0_i32_0 : i32, i32
  }
  func.func @transform_8(%arg0: i32) -> (i32, i32) {
    %c0_i32 = arith.constant 0 : i32
    %c0_i32_0 = arith.constant 0 : i32
    %c0_i32_1 = arith.constant 0 : i32
    return %c0_i32, %c0_i32_0 : i32, i32
  }
  func.func @transform_9(%arg0: i32) -> (i32, i32) {
    %c0_i32 = arith.constant 0 : i32
    %c0_i32_0 = arith.constant 0 : i32
    %c0_i32_1 = arith.constant 0 : i32
    return %c0_i32, %c0_i32_0 : i32, i32
  }
  func.func @transform_10(%arg0: i32) -> (i32, i32) {
    %c0_i32 = arith.constant 0 : i32
    %c0_i32_0 = arith.constant 0 : i32
    %c0_i32_1 = arith.constant 0 : i32
    return %c0_i32, %c0_i32_0 : i32, i32
  }
  func.func @transform_11(%arg0: i32) -> (i32, i32) {
    %c0_i32 = arith.constant 0 : i32
    %c0_i32_0 = arith.constant 0 : i32
    %c0_i32_1 = arith.constant 0 : i32
    return %c0_i32, %c0_i32_0 : i32, i32
  }
  func.func @transform_12(%arg0: i32) -> (i32, i32) {
    %c0_i32 = arith.constant 0 : i32
    %c0_i32_0 = arith.constant 0 : i32
    %c0_i32_1 = arith.constant 0 : i32
    return %c0_i32, %c0_i32_0 : i32, i32
  }
}

module attributes {stable_mosaic.version = 11 : i64} {
  func.func @_fused_mha_block_kernel(%arg0: i32, %arg1: memref<4x192xf32, #tpu.memory_space<vmem>>, %arg2: memref<4x4xf32, #tpu.memory_space<vmem>>, %arg3: memref<192x576xf32, #tpu.memory_space<vmem>>, %arg4: memref<2x96x192xf32, #tpu.memory_space<vmem>>, %arg5: memref<1x192xf32, #tpu.memory_space<vmem>>, %arg6: memref<1x192xf32, #tpu.memory_space<vmem>>, %arg7: memref<192x192xf32, #tpu.memory_space<vmem>>, %arg8: memref<1x192xf32, #tpu.memory_space<vmem>>, %arg9: memref<192x192xf32, #tpu.memory_space<vmem>>, %arg10: memref<1x192xf32, #tpu.memory_space<vmem>>, %arg11: memref<1x192xf32, #tpu.memory_space<vmem>>, %arg12: memref<1x192xf32, #tpu.memory_space<vmem>>, %arg13: memref<4x192xf32, #tpu.memory_space<vmem>>) attributes {dimension_semantics = [#tpu.dimension_semantics<arbitrary>], iteration_bounds = array<i64: 1>, scalar_prefetch = 0 : i64, scratch_operands = 0 : i64, tpu.core_type = #tpu.core_type<tc>, window_params = [{pipeline_mode = #tpu.pipeline_mode<synchronous>, transform_indices = @transform_0, window_bounds = array<i64: 4, 192>}, {pipeline_mode = #tpu.pipeline_mode<synchronous>, transform_indices = @transform_1, window_bounds = array<i64: 4, 4>}, {pipeline_mode = #tpu.pipeline_mode<synchronous>, transform_indices = @transform_2, window_bounds = array<i64: 192, 576>}, {pipeline_mode = #tpu.pipeline_mode<synchronous>, transform_indices = @transform_3, window_bounds = array<i64: 2, 96, 192>}, {pipeline_mode = #tpu.pipeline_mode<synchronous>, transform_indices = @transform_4, window_bounds = array<i64: 1, 192>}, {pipeline_mode = #tpu.pipeline_mode<synchronous>, transform_indices = @transform_5, window_bounds = array<i64: 1, 192>}, {pipeline_mode = #tpu.pipeline_mode<synchronous>, transform_indices = @transform_6, window_bounds = array<i64: 192, 192>}, {pipeline_mode = #tpu.pipeline_mode<synchronous>, transform_indices = @transform_7, window_bounds = array<i64: 1, 192>}, {pipeline_mode = #tpu.pipeline_mode<synchronous>, transform_indices = @transform_8, window_bounds = array<i64: 192, 192>}, {pipeline_mode = #tpu.pipeline_mode<synchronous>, transform_indices = @transform_9, window_bounds = array<i64: 1, 192>}, {pipeline_mode = #tpu.pipeline_mode<synchronous>, transform_indices = @transform_10, window_bounds = array<i64: 1, 192>}, {pipeline_mode = #tpu.pipeline_mode<synchronous>, transform_indices = @transform_11, window_bounds = array<i64: 1, 192>}, {pipeline_mode = #tpu.pipeline_mode<synchronous>, transform_indices = @transform_12, window_bounds = array<i64: 4, 192>}]} {
    %c0 = arith.constant 0 : index
    %c0_0 = arith.constant 0 : index
    %0 = vector.load %arg1[%c0, %c0_0] : memref<4x192xf32, #tpu.memory_space<vmem>>, vector<4x192xf32>
    %c0_1 = arith.constant 0 : index
    %c0_2 = arith.constant 0 : index
    %1 = vector.load %arg2[%c0_1, %c0_2] : memref<4x4xf32, #tpu.memory_space<vmem>>, vector<4x4xf32>
    %c0_3 = arith.constant 0 : index
    %c0_4 = arith.constant 0 : index
    %2 = vector.load %arg3[%c0_3, %c0_4] : memref<192x576xf32, #tpu.memory_space<vmem>>, vector<192x576xf32>
    %cst = arith.constant dense<0.000000e+00> : vector<4x576xf32>
    %3 = tpu.matmul %0, %2, %cst {dimension_numbers = #tpu.dot_dimension_numbers<[1], [0], [0], [1], [0, 0, 1, 1], [], []>} : vector<4x192xf32>, vector<192x576xf32>, vector<4x576xf32> -> vector<4x576xf32>
    %4 = vector.extract_strided_slice %3 {offsets = [0, 0], sizes = [4, 96], strides = [1, 1]} : vector<4x576xf32> to vector<4x96xf32>
    %5 = vector.extract_strided_slice %3 {offsets = [0, 192], sizes = [4, 96], strides = [1, 1]} : vector<4x576xf32> to vector<4x96xf32>
    %6 = vector.extract_strided_slice %3 {offsets = [0, 384], sizes = [4, 96], strides = [1, 1]} : vector<4x576xf32> to vector<4x96xf32>
    %cst_5 = arith.constant dense<0.000000e+00> : vector<4x4xf32>
    %7 = tpu.matmul %4, %5, %cst_5 {dimension_numbers = #tpu.dot_dimension_numbers<[1], [1], [0], [0], [0, 0, 1, 0], [], []>} : vector<4x96xf32>, vector<4x96xf32>, vector<4x4xf32> -> vector<4x4xf32>
    %cst_6 = arith.constant 0.102062076 : f32
    %8 = vector.broadcast %cst_6 : f32 to vector<4x4xf32>
    %9 = arith.mulf %7, %8 : vector<4x4xf32>
    %10 = arith.addf %9, %1 : vector<4x4xf32>
    %cst_7 = arith.constant dense<0xFF800000> : vector<4xf32>
    %11 = vector.multi_reduction <maximumf>, %10, %cst_7 [1] : vector<4x4xf32> to vector<4xf32>
    %12 = vector.shape_cast %11 : vector<4xf32> to vector<4x1xf32>
    %13 = vector.broadcast %12 : vector<4x1xf32> to vector<4x4xf32>
    %14 = arith.subf %10, %13 : vector<4x4xf32>
    %15 = math.exp %14 : vector<4x4xf32>
    %cst_8 = arith.constant dense<0.000000e+00> : vector<4xf32>
    %16 = vector.multi_reduction <add>, %15, %cst_8 [1] : vector<4x4xf32> to vector<4xf32>
    %17 = vector.shape_cast %16 : vector<4xf32> to vector<4x1xf32>
    %18 = tpu.reciprocal %17 {approx = true} : vector<4x1xf32> -> vector<4x1xf32>
    %19 = vector.broadcast %18 : vector<4x1xf32> to vector<4x4xf32>
    %20 = arith.mulf %15, %19 : vector<4x4xf32>
    %cst_9 = arith.constant dense<0.000000e+00> : vector<4x96xf32>
    %21 = tpu.matmul %20, %6, %cst_9 {dimension_numbers = #tpu.dot_dimension_numbers<[1], [0], [0], [1], [0, 0, 1, 1], [], []>} : vector<4x4xf32>, vector<4x96xf32>, vector<4x96xf32> -> vector<4x96xf32>
    %c0_10 = arith.constant 0 : index
    %c0_11 = arith.constant 0 : index
    %c0_12 = arith.constant 0 : index
    %22 = vector.load %arg4[%c0_10, %c0_11, %c0_12] : memref<2x96x192xf32, #tpu.memory_space<vmem>>, vector<1x96x192xf32>
    %23 = vector.shape_cast %22 : vector<1x96x192xf32> to vector<96x192xf32>
    %cst_13 = arith.constant dense<0.000000e+00> : vector<4x192xf32>
    %24 = tpu.matmul %21, %23, %cst_13 {dimension_numbers = #tpu.dot_dimension_numbers<[1], [0], [0], [1], [0, 0, 1, 1], [], []>} : vector<4x96xf32>, vector<96x192xf32>, vector<4x192xf32> -> vector<4x192xf32>
    %25 = vector.extract_strided_slice %3 {offsets = [0, 96], sizes = [4, 96], strides = [1, 1]} : vector<4x576xf32> to vector<4x96xf32>
    %26 = vector.extract_strided_slice %3 {offsets = [0, 288], sizes = [4, 96], strides = [1, 1]} : vector<4x576xf32> to vector<4x96xf32>
    %27 = vector.extract_strided_slice %3 {offsets = [0, 480], sizes = [4, 96], strides = [1, 1]} : vector<4x576xf32> to vector<4x96xf32>
    %cst_14 = arith.constant dense<0.000000e+00> : vector<4x4xf32>
    %28 = tpu.matmul %25, %26, %cst_14 {dimension_numbers = #tpu.dot_dimension_numbers<[1], [1], [0], [0], [0, 0, 1, 0], [], []>} : vector<4x96xf32>, vector<4x96xf32>, vector<4x4xf32> -> vector<4x4xf32>
    %cst_15 = arith.constant 0.102062076 : f32
    %29 = vector.broadcast %cst_15 : f32 to vector<4x4xf32>
    %30 = arith.mulf %28, %29 : vector<4x4xf32>
    %31 = arith.addf %30, %1 : vector<4x4xf32>
    %cst_16 = arith.constant dense<0xFF800000> : vector<4xf32>
    %32 = vector.multi_reduction <maximumf>, %31, %cst_16 [1] : vector<4x4xf32> to vector<4xf32>
    %33 = vector.shape_cast %32 : vector<4xf32> to vector<4x1xf32>
    %34 = vector.broadcast %33 : vector<4x1xf32> to vector<4x4xf32>
    %35 = arith.subf %31, %34 : vector<4x4xf32>
    %36 = math.exp %35 : vector<4x4xf32>
    %cst_17 = arith.constant dense<0.000000e+00> : vector<4xf32>
    %37 = vector.multi_reduction <add>, %36, %cst_17 [1] : vector<4x4xf32> to vector<4xf32>
    %38 = vector.shape_cast %37 : vector<4xf32> to vector<4x1xf32>
    %39 = tpu.reciprocal %38 {approx = true} : vector<4x1xf32> -> vector<4x1xf32>
    %40 = vector.broadcast %39 : vector<4x1xf32> to vector<4x4xf32>
    %41 = arith.mulf %36, %40 : vector<4x4xf32>
    %cst_18 = arith.constant dense<0.000000e+00> : vector<4x96xf32>
    %42 = tpu.matmul %41, %27, %cst_18 {dimension_numbers = #tpu.dot_dimension_numbers<[1], [0], [0], [1], [0, 0, 1, 1], [], []>} : vector<4x4xf32>, vector<4x96xf32>, vector<4x96xf32> -> vector<4x96xf32>
    %c1 = arith.constant 1 : index
    %c0_19 = arith.constant 0 : index
    %c0_20 = arith.constant 0 : index
    %43 = vector.load %arg4[%c1, %c0_19, %c0_20] : memref<2x96x192xf32, #tpu.memory_space<vmem>>, vector<1x96x192xf32>
    %44 = vector.shape_cast %43 : vector<1x96x192xf32> to vector<96x192xf32>
    %cst_21 = arith.constant dense<0.000000e+00> : vector<4x192xf32>
    %45 = tpu.matmul %42, %44, %cst_21 {dimension_numbers = #tpu.dot_dimension_numbers<[1], [0], [0], [1], [0, 0, 1, 1], [], []>} : vector<4x96xf32>, vector<96x192xf32>, vector<4x192xf32> -> vector<4x192xf32>
    %46 = arith.addf %24, %45 : vector<4x192xf32>
    %c0_22 = arith.constant 0 : index
    %c0_23 = arith.constant 0 : index
    %47 = vector.load %arg5[%c0_22, %c0_23] : memref<1x192xf32, #tpu.memory_space<vmem>>, vector<1x192xf32>
    %c0_24 = arith.constant 0 : index
    %c0_25 = arith.constant 0 : index
    %48 = vector.load %arg6[%c0_24, %c0_25] : memref<1x192xf32, #tpu.memory_space<vmem>>, vector<1x192xf32>
    %cst_26 = arith.constant dense<0.000000e+00> : vector<192xf32>
    %49 = vector.multi_reduction <add>, %46, %cst_26 [0] : vector<4x192xf32> to vector<192xf32>
    %50 = vector.shape_cast %49 : vector<192xf32> to vector<1x192xf32>
    %cst_27 = arith.constant 4.000000e+00 : f32
    %51 = vector.broadcast %cst_27 : f32 to vector<1x192xf32>
    %52 = arith.divf %50, %51 : vector<1x192xf32>
    %53 = vector.broadcast %52 : vector<1x192xf32> to vector<4x192xf32>
    %54 = arith.subf %46, %53 : vector<4x192xf32>
    %55 = vector.broadcast %52 : vector<1x192xf32> to vector<4x192xf32>
    %56 = arith.subf %46, %55 : vector<4x192xf32>
    %57 = arith.mulf %54, %56 : vector<4x192xf32>
    %cst_28 = arith.constant dense<0.000000e+00> : vector<192xf32>
    %58 = vector.multi_reduction <add>, %57, %cst_28 [0] : vector<4x192xf32> to vector<192xf32>
    %59 = vector.shape_cast %58 : vector<192xf32> to vector<1x192xf32>
    %cst_29 = arith.constant 4.000000e+00 : f32
    %60 = vector.broadcast %cst_29 : f32 to vector<1x192xf32>
    %61 = arith.divf %59, %60 : vector<1x192xf32>
    %62 = vector.broadcast %52 : vector<1x192xf32> to vector<4x192xf32>
    %63 = arith.subf %46, %62 : vector<4x192xf32>
    %cst_30 = arith.constant 9.99999974E-6 : f32
    %64 = vector.broadcast %cst_30 : f32 to vector<1x192xf32>
    %65 = arith.addf %61, %64 : vector<1x192xf32>
    %66 = math.rsqrt %65 : vector<1x192xf32>
    %67 = vector.broadcast %66 : vector<1x192xf32> to vector<4x192xf32>
    %68 = arith.mulf %63, %67 : vector<4x192xf32>
    %69 = vector.broadcast %47 : vector<1x192xf32> to vector<4x192xf32>
    %70 = arith.mulf %68, %69 : vector<4x192xf32>
    %71 = vector.broadcast %48 : vector<1x192xf32> to vector<4x192xf32>
    %72 = arith.addf %70, %71 : vector<4x192xf32>
    %73 = arith.addf %0, %72 : vector<4x192xf32>
    %c0_31 = arith.constant 0 : index
    %c0_32 = arith.constant 0 : index
    %74 = vector.load %arg7[%c0_31, %c0_32] : memref<192x192xf32, #tpu.memory_space<vmem>>, vector<192x192xf32>
    %cst_33 = arith.constant dense<0.000000e+00> : vector<4x192xf32>
    %75 = tpu.matmul %73, %74, %cst_33 {dimension_numbers = #tpu.dot_dimension_numbers<[1], [0], [0], [1], [0, 0, 1, 1], [], []>} : vector<4x192xf32>, vector<192x192xf32>, vector<4x192xf32> -> vector<4x192xf32>
    %c0_34 = arith.constant 0 : index
    %c0_35 = arith.constant 0 : index
    %76 = vector.load %arg8[%c0_34, %c0_35] : memref<1x192xf32, #tpu.memory_space<vmem>>, vector<1x192xf32>
    %77 = vector.broadcast %76 : vector<1x192xf32> to vector<4x192xf32>
    %78 = arith.addf %75, %77 : vector<4x192xf32>
    %cst_36 = arith.constant 0.000000e+00 : f32
    %79 = vector.broadcast %cst_36 : f32 to vector<4x192xf32>
    %80 = arith.maximumf %78, %79 : vector<4x192xf32>
    %c0_37 = arith.constant 0 : index
    %c0_38 = arith.constant 0 : index
    %81 = vector.load %arg9[%c0_37, %c0_38] : memref<192x192xf32, #tpu.memory_space<vmem>>, vector<192x192xf32>
    %cst_39 = arith.constant dense<0.000000e+00> : vector<4x192xf32>
    %82 = tpu.matmul %80, %81, %cst_39 {dimension_numbers = #tpu.dot_dimension_numbers<[1], [0], [0], [1], [0, 0, 1, 1], [], []>} : vector<4x192xf32>, vector<192x192xf32>, vector<4x192xf32> -> vector<4x192xf32>
    %83 = arith.addf %73, %82 : vector<4x192xf32>
    %c0_40 = arith.constant 0 : index
    %c0_41 = arith.constant 0 : index
    %84 = vector.load %arg10[%c0_40, %c0_41] : memref<1x192xf32, #tpu.memory_space<vmem>>, vector<1x192xf32>
    %85 = vector.broadcast %84 : vector<1x192xf32> to vector<4x192xf32>
    %86 = arith.addf %83, %85 : vector<4x192xf32>
    %c0_42 = arith.constant 0 : index
    %c0_43 = arith.constant 0 : index
    %87 = vector.load %arg11[%c0_42, %c0_43] : memref<1x192xf32, #tpu.memory_space<vmem>>, vector<1x192xf32>
    %c0_44 = arith.constant 0 : index
    %c0_45 = arith.constant 0 : index
    %88 = vector.load %arg12[%c0_44, %c0_45] : memref<1x192xf32, #tpu.memory_space<vmem>>, vector<1x192xf32>
    %cst_46 = arith.constant dense<0.000000e+00> : vector<192xf32>
    %89 = vector.multi_reduction <add>, %86, %cst_46 [0] : vector<4x192xf32> to vector<192xf32>
    %90 = vector.shape_cast %89 : vector<192xf32> to vector<1x192xf32>
    %cst_47 = arith.constant 4.000000e+00 : f32
    %91 = vector.broadcast %cst_47 : f32 to vector<1x192xf32>
    %92 = arith.divf %90, %91 : vector<1x192xf32>
    %93 = vector.broadcast %92 : vector<1x192xf32> to vector<4x192xf32>
    %94 = arith.subf %86, %93 : vector<4x192xf32>
    %95 = vector.broadcast %92 : vector<1x192xf32> to vector<4x192xf32>
    %96 = arith.subf %86, %95 : vector<4x192xf32>
    %97 = arith.mulf %94, %96 : vector<4x192xf32>
    %cst_48 = arith.constant dense<0.000000e+00> : vector<192xf32>
    %98 = vector.multi_reduction <add>, %97, %cst_48 [0] : vector<4x192xf32> to vector<192xf32>
    %99 = vector.shape_cast %98 : vector<192xf32> to vector<1x192xf32>
    %cst_49 = arith.constant 4.000000e+00 : f32
    %100 = vector.broadcast %cst_49 : f32 to vector<1x192xf32>
    %101 = arith.divf %99, %100 : vector<1x192xf32>
    %102 = vector.broadcast %92 : vector<1x192xf32> to vector<4x192xf32>
    %103 = arith.subf %86, %102 : vector<4x192xf32>
    %cst_50 = arith.constant 9.99999974E-6 : f32
    %104 = vector.broadcast %cst_50 : f32 to vector<1x192xf32>
    %105 = arith.addf %101, %104 : vector<1x192xf32>
    %106 = math.rsqrt %105 : vector<1x192xf32>
    %107 = vector.broadcast %106 : vector<1x192xf32> to vector<4x192xf32>
    %108 = arith.mulf %103, %107 : vector<4x192xf32>
    %109 = vector.broadcast %87 : vector<1x192xf32> to vector<4x192xf32>
    %110 = arith.mulf %108, %109 : vector<4x192xf32>
    %111 = vector.broadcast %88 : vector<1x192xf32> to vector<4x192xf32>
    %112 = arith.addf %110, %111 : vector<4x192xf32>
    %c0_51 = arith.constant 0 : index
    %c0_52 = arith.constant 0 : index
    %113 = vector.load %arg13[%c0_51, %c0_52] : memref<4x192xf32, #tpu.memory_space<vmem>>, vector<4x192xf32>
    tpu.vector_store %arg13[%c0_51, %c0_52], %112 {strides = array<i32>} : memref<4x192xf32, #tpu.memory_space<vmem>>, vector<4x192xf32>,
    return
  }
  func.func @transform_0(%arg0: i32) -> (i32, i32) {
    %c0_i32 = arith.constant 0 : i32
    %c0_i32_0 = arith.constant 0 : i32
    %c0_i32_1 = arith.constant 0 : i32
    return %c0_i32, %c0_i32_0 : i32, i32
  }
  func.func @transform_1(%arg0: i32) -> (i32, i32) {
    %c0_i32 = arith.constant 0 : i32
    %c0_i32_0 = arith.constant 0 : i32
    %c0_i32_1 = arith.constant 0 : i32
    return %c0_i32, %c0_i32_0 : i32, i32
  }
  func.func @transform_2(%arg0: i32) -> (i32, i32) {
    %c0_i32 = arith.constant 0 : i32
    %c0_i32_0 = arith.constant 0 : i32
    %c0_i32_1 = arith.constant 0 : i32
    return %c0_i32, %c0_i32_0 : i32, i32
  }
  func.func @transform_3(%arg0: i32) -> (i32, i32, i32) {
    %c0_i32 = arith.constant 0 : i32
    %c0_i32_0 = arith.constant 0 : i32
    %c0_i32_1 = arith.constant 0 : i32
    %c0_i32_2 = arith.constant 0 : i32
    return %c0_i32, %c0_i32_0, %c0_i32_1 : i32, i32, i32
  }
  func.func @transform_4(%arg0: i32) -> (i32, i32) {
    %c0_i32 = arith.constant 0 : i32
    %c0_i32_0 = arith.constant 0 : i32
    %c0_i32_1 = arith.constant 0 : i32
    return %c0_i32, %c0_i32_0 : i32, i32
  }
  func.func @transform_5(%arg0: i32) -> (i32, i32) {
    %c0_i32 = arith.constant 0 : i32
    %c0_i32_0 = arith.constant 0 : i32
    %c0_i32_1 = arith.constant 0 : i32
    return %c0_i32, %c0_i32_0 : i32, i32
  }
  func.func @transform_6(%arg0: i32) -> (i32, i32) {
    %c0_i32 = arith.constant 0 : i32
    %c0_i32_0 = arith.constant 0 : i32
    %c0_i32_1 = arith.constant 0 : i32
    return %c0_i32, %c0_i32_0 : i32, i32
  }
  func.func @transform_7(%arg0: i32) -> (i32, i32) {
    %c0_i32 = arith.constant 0 : i32
    %c0_i32_0 = arith.constant 0 : i32
    %c0_i32_1 = arith.constant 0 : i32
    return %c0_i32, %c0_i32_0 : i32, i32
  }
  func.func @transform_8(%arg0: i32) -> (i32, i32) {
    %c0_i32 = arith.constant 0 : i32
    %c0_i32_0 = arith.constant 0 : i32
    %c0_i32_1 = arith.constant 0 : i32
    return %c0_i32, %c0_i32_0 : i32, i32
  }
  func.func @transform_9(%arg0: i32) -> (i32, i32) {
    %c0_i32 = arith.constant 0 : i32
    %c0_i32_0 = arith.constant 0 : i32
    %c0_i32_1 = arith.constant 0 : i32
    return %c0_i32, %c0_i32_0 : i32, i32
  }
  func.func @transform_10(%arg0: i32) -> (i32, i32) {
    %c0_i32 = arith.constant 0 : i32
    %c0_i32_0 = arith.constant 0 : i32
    %c0_i32_1 = arith.constant 0 : i32
    return %c0_i32, %c0_i32_0 : i32, i32
  }
  func.func @transform_11(%arg0: i32) -> (i32, i32) {
    %c0_i32 = arith.constant 0 : i32
    %c0_i32_0 = arith.constant 0 : i32
    %c0_i32_1 = arith.constant 0 : i32
    return %c0_i32, %c0_i32_0 : i32, i32
  }
  func.func @transform_12(%arg0: i32) -> (i32, i32) {
    %c0_i32 = arith.constant 0 : i32
    %c0_i32_0 = arith.constant 0 : i32
    %c0_i32_1 = arith.constant 0 : i32
    return %c0_i32, %c0_i32_0 : i32, i32
  }
}

</mosaic_0001>

<llo_original>
// kernel: _forward.4
$region0: #{_forward.4}
  #allocation0 [shape = 'u32[]', space=smem, size = 0x4, offset = 0x4, fixed_abs, tag = 'smem constant byte address 0x4 - core index']
  #allocation1 [shape = 'u32[144,128]{1,0:T(1,128)}', space=vmem, size = 0x12000, scoped, tag = 'internal scratch']
  %s0 = inlined_call_operand.vmem [shape: f32[32,64], index: 0, kind: input, shape index: {}]
  %s1 = inlined_call_operand.hbm [shape: f32[32,32], index: 1, kind: input, shape index: {}]
  %s2 = inlined_call_operand.hbm [shape: f32[64,192], index: 2, kind: input, shape index: {}]
  %s3 = inlined_call_operand.hbm [shape: f32[2,32,64], index: 3, kind: input, shape index: {}]
  %s4 = inlined_call_operand.vmem [shape: f32[1,64], index: 4, kind: input, shape index: {}, may-alias: {4,10}]
  %s5 = inlined_call_operand.vmem [shape: f32[1,64], index: 5, kind: input, shape index: {}, may-alias: {5,11}]
  %s6 = inlined_call_operand.hbm [shape: f32[64,64], index: 6, kind: input, shape index: {}]
  %s7 = inlined_call_operand.hbm [shape: f32[1,64], index: 7, kind: input, shape index: {}]
  %s8 = inlined_call_operand.hbm [shape: f32[64,64], index: 8, kind: input, shape index: {}]
  %s9 = inlined_call_operand.hbm [shape: f32[1,64], index: 9, kind: input, shape index: {}]
  %s10 = inlined_call_operand.vmem [shape: f32[1,64], index: 10, kind: input, shape index: {}, may-alias: {4,10}]
  %s11 = inlined_call_operand.vmem [shape: f32[1,64], index: 11, kind: input, shape index: {}, may-alias: {5,11}]
  %s12 = inlined_call_operand.vmem [shape: f32[32,64], index: 12, kind: output, shape index: {}]
  %s13 = sld [smem:[#allocation0]]
  $region86: #{_forward.4} parent=0
    _
  %s15 = ssub.s32 1, %s13
  %s16 = scalar_select 0, %s15, %s13
  $region1: #{_forward.4} parent=0
    #allocation2 [shape = 'u8[16384]{0}', space=vmem, size = 0x4000, scoped, tag = 'input window, operand 1, single buffered']
    #allocation3 [shape = 's32[1]{0}', space=sflag, size = 0x4, scoped, tag = 'scoped memory for _forward.4']
    #allocation4 [shape = 'u8[65536]{0}', space=vmem, size = 0x10000, scoped, tag = 'input window, operand 2, single buffered']
    #allocation5 [shape = 's32[1]{0}', space=sflag, size = 0x4, scoped, tag = 'scoped memory for _forward.4']
    #allocation6 [shape = 'u8[32768]{0}', space=vmem, size = 0x8000, scoped, tag = 'input window, operand 3, single buffered']
    #allocation7 [shape = 'u8[32768]{0}', space=vmem, size = 0x8000, scoped, tag = 'input window, operand 6, single buffered']
    #allocation8 [shape = 's32[1]{0}', space=sflag, size = 0x4, scoped, tag = 'scoped memory for _forward.4']
    #allocation9 [shape = 'u8[512]{0}', space=vmem, size = 0x400, scoped, tag = 'input window, operand 7, single buffered']
    #allocation10 [shape = 'u8[32768]{0}', space=vmem, size = 0x8000, scoped, tag = 'input window, operand 8, single buffered']
    #allocation11 [shape = 's32[1]{0}', space=sflag, size = 0x4, scoped, tag = 'scoped memory for _forward.4']
    #allocation12 [shape = 'u8[512]{0}', space=vmem, size = 0x400, scoped, tag = 'input window, operand 9, single buffered']
    %17 = vsyncpa [#allocation3], 0
    %18 = vsyncpa [#allocation5], 0
    %19 = vsyncpa [#allocation8], 0
    %20 = vsyncpa [#allocation11], 0
    // Predicated region
    $region2: #{_forward.4} parent=1 // pred_check
      _
    $region3: #{_forward.4} parent=1 // pred_check_branch
      %22 = sbr.rel (0) target = $region5
    $region4: #{_forward.4} parent=1 // pred_region
      _
    $region5: #{_forward.4} parent=1 // pred_fallthru
      _
    // Predicated region
    $region6: #{_forward.4} parent=1 // pred_check
      _
    $region7: #{_forward.4} parent=1 // pred_check_branch
      %24 = sbr.rel (0) target = $region9
    $region8: #{_forward.4} parent=1 // pred_region
      %s26 = ssub.s32 512, 512
      %27 = vsyncadd [#allocation3], %s26
      %s28 = sshll.u32 [#allocation2], 4
      %s29 = int_to_ptr.vmem [resolvable:$true] %s28
      %34 = dma.hbm_to_vmem [thread:$0]  %s1, 512, %s29, [#allocation3], 128, 128, 8
    $region9: #{_forward.4} parent=1 // pred_fallthru
      _
    // Predicated region
    $region10: #{_forward.4} parent=1 // pred_check
      _
    $region11: #{_forward.4} parent=1 // pred_check_branch
      %36 = sbr.rel (0) target = $region13
    $region12: #{_forward.4} parent=1 // pred_region
      %s38 = ssub.s32 2048, 2048
      %39 = vsyncadd [#allocation5], %s38
      %s40 = sshll.u32 [#allocation4], 4
      %s41 = int_to_ptr.vmem [resolvable:$true] %s40
      %46 = dma.hbm_to_vmem [thread:$0]  %s2, 2048, %s41, [#allocation5], 256, 256, 16
    $region13: #{_forward.4} parent=1 // pred_fallthru
      _
    // Predicated region
    $region14: #{_forward.4} parent=1 // pred_check
      _
    $region15: #{_forward.4} parent=1 // pred_check_branch
      %48 = sbr.rel (0) target = $region17
    $region16: #{_forward.4} parent=1 // pred_region
      %s50 = ssub.s32 1024, 1024
      %51 = vsyncadd [#allocation5], %s50
      %s52 = sshll.u32 [#allocation6], 4
      %s53 = int_to_ptr.vmem [resolvable:$true] %s52
      %58 = dma.hbm_to_vmem [thread:$0]  %s3, 1024, %s53, [#allocation5], 128, 128, 8
    $region17: #{_forward.4} parent=1 // pred_fallthru
      _
    // Predicated region
    $region18: #{_forward.4} parent=1 // pred_check
      _
    $region19: #{_forward.4} parent=1 // pred_check_branch
      %60 = sbr.rel (0) target = $region21
    $region20: #{_forward.4} parent=1 // pred_region
      _
    $region21: #{_forward.4} parent=1 // pred_fallthru
      _
    // Predicated region
    $region22: #{_forward.4} parent=1 // pred_check
      _
    $region23: #{_forward.4} parent=1 // pred_check_branch
      %62 = sbr.rel (0) target = $region25
    $region24: #{_forward.4} parent=1 // pred_region
      _
    $region25: #{_forward.4} parent=1 // pred_fallthru
      _
    // Predicated region
    $region26: #{_forward.4} parent=1 // pred_check
      _
    $region27: #{_forward.4} parent=1 // pred_check_branch
      %64 = sbr.rel (0) target = $region29
    $region28: #{_forward.4} parent=1 // pred_region
      %s66 = ssub.s32 1024, 1024
      %67 = vsyncadd [#allocation8], %s66
      %s68 = sshll.u32 [#allocation7], 4
      %s69 = int_to_ptr.vmem [resolvable:$true] %s68
      %74 = dma.hbm_to_vmem [thread:$0]  %s6, 1024, %s69, [#allocation8], 128, 128, 8
    $region29: #{_forward.4} parent=1 // pred_fallthru
      _
    // Predicated region
    $region30: #{_forward.4} parent=1 // pred_check
      _
    $region31: #{_forward.4} parent=1 // pred_check_branch
      %76 = sbr.rel (0) target = $region33
    $region32: #{_forward.4} parent=1 // pred_region
      %s78 = ssub.s32 16, 16
      %79 = vsyncadd [#allocation8], %s78
      %s81 = sshll.u32 [#allocation9], 4
      %s82 = int_to_ptr.vmem [resolvable:$true] %s81
      %84 = dma.hbm_to_vmem [thread:$0]  %s7, 16, %s82, [#allocation8]
    $region33: #{_forward.4} parent=1 // pred_fallthru
      _
    // Predicated region
    $region34: #{_forward.4} parent=1 // pred_check
      _
    $region35: #{_forward.4} parent=1 // pred_check_branch
      %86 = sbr.rel (0) target = $region37
    $region36: #{_forward.4} parent=1 // pred_region
      %s88 = ssub.s32 1024, 1024
      %89 = vsyncadd [#allocation11], %s88
      %s90 = sshll.u32 [#allocation10], 4
      %s91 = int_to_ptr.vmem [resolvable:$true] %s90
      %96 = dma.hbm_to_vmem [thread:$0]  %s8, 1024, %s91, [#allocation11], 128, 128, 8
    $region37: #{_forward.4} parent=1 // pred_fallthru
      _
    // Predicated region
    $region38: #{_forward.4} parent=1 // pred_check
      _
    $region39: #{_forward.4} parent=1 // pred_check_branch
      %98 = sbr.rel (0) target = $region41
    $region40: #{_forward.4} parent=1 // pred_region
      %s100 = ssub.s32 16, 16
      %101 = vsyncadd [#allocation11], %s100
      %s103 = sshll.u32 [#allocation12], 4
      %s104 = int_to_ptr.vmem [resolvable:$true] %s103
      %106 = dma.hbm_to_vmem [thread:$0]  %s9, 16, %s104, [#allocation11]
    $region41: #{_forward.4} parent=1 // pred_fallthru
      _
    // Predicated region
    $region42: #{_forward.4} parent=1 // pred_check
      _
    $region43: #{_forward.4} parent=1 // pred_check_branch
      %108 = sbr.rel (0) target = $region45
    $region44: #{_forward.4} parent=1 // pred_region
      _
    $region45: #{_forward.4} parent=1 // pred_fallthru
      _
    // Predicated region
    $region46: #{_forward.4} parent=1 // pred_check
      _
    $region47: #{_forward.4} parent=1 // pred_check_branch
      %110 = sbr.rel (0) target = $region49
    $region48: #{_forward.4} parent=1 // pred_region
      _
    $region49: #{_forward.4} parent=1 // pred_fallthru
      _
    // Predicated region
    $region50: #{_forward.4} parent=1 // pred_check
      _
    $region51: #{_forward.4} parent=1 // pred_check_branch
      %112 = sbr.rel (0) target = $region53
    $region52: #{_forward.4} parent=1 // pred_region
      %113 = dma.done [#allocation3], 512
    $region53: #{_forward.4} parent=1 // pred_fallthru
      _
    // Predicated region
    $region54: #{_forward.4} parent=1 // pred_check
      _
    $region55: #{_forward.4} parent=1 // pred_check_branch
      %115 = sbr.rel (0) target = $region57
    $region56: #{_forward.4} parent=1 // pred_region
      %116 = dma.done [#allocation5], 2048
    $region57: #{_forward.4} parent=1 // pred_fallthru
      _
    // Predicated region
    $region58: #{_forward.4} parent=1 // pred_check
      _
    $region59: #{_forward.4} parent=1 // pred_check_branch
      %118 = sbr.rel (0) target = $region61
    $region60: #{_forward.4} parent=1 // pred_region
      %119 = dma.done [#allocation5], 1024
    $region61: #{_forward.4} parent=1 // pred_fallthru
      _
    // Predicated region
    $region62: #{_forward.4} parent=1 // pred_check
      _
    $region63: #{_forward.4} parent=1 // pred_check_branch
      %121 = sbr.rel (0) target = $region65
    $region64: #{_forward.4} parent=1 // pred_region
      %122 = dma.done [#allocation8], 1024
    $region65: #{_forward.4} parent=1 // pred_fallthru
      _
    // Predicated region
    $region66: #{_forward.4} parent=1 // pred_check
      _
    $region67: #{_forward.4} parent=1 // pred_check_branch
      %124 = sbr.rel (0) target = $region69
    $region68: #{_forward.4} parent=1 // pred_region
      %125 = dma.done [#allocation8], 16
    $region69: #{_forward.4} parent=1 // pred_fallthru
      _
    // Predicated region
    $region70: #{_forward.4} parent=1 // pred_check
      _
    $region71: #{_forward.4} parent=1 // pred_check_branch
      %127 = sbr.rel (0) target = $region73
    $region72: #{_forward.4} parent=1 // pred_region
      %128 = dma.done [#allocation11], 1024
    $region73: #{_forward.4} parent=1 // pred_fallthru
      _
    // Predicated region
    $region74: #{_forward.4} parent=1 // pred_check
      _
    $region75: #{_forward.4} parent=1 // pred_check_branch
      %130 = sbr.rel (0) target = $region77
    $region76: #{_forward.4} parent=1 // pred_region
      %131 = dma.done [#allocation11], 16
    $region77: #{_forward.4} parent=1 // pred_fallthru
      _
    %v132 = vld [vmem:[%s0] sm:$0xff]
    %v133 = vld [vmem:[%s0 + $0x8] sm:$0xff]
    %v134 = vld [vmem:[%s0 + $0x10] sm:$0xff]
    %v135 = vld [vmem:[%s0 + $0x18] sm:$0xff]
    %v136 = vld [vmem:[#allocation2] sm:$0xff]
    %v137 = vld [vmem:[#allocation2 + $0x8] sm:$0xff]
    %v138 = vld [vmem:[#allocation2 + $0x10] sm:$0xff]
    %v139 = vld [vmem:[#allocation2 + $0x18] sm:$0xff]
    %v140 = vld [vmem:[#allocation4] sm:$0xff]
    %v141 = vld [vmem:[#allocation4 + $0x8] sm:$0xff]
    %v142 = vld [vmem:[#allocation4 + $0x10] sm:$0xff]
    %v143 = vld [vmem:[#allocation4 + $0x18] sm:$0xff]
    %v144 = vld [vmem:[#allocation4 + $0x20] sm:$0xff]
    %v145 = vld [vmem:[#allocation4 + $0x28] sm:$0xff]
    %v146 = vld [vmem:[#allocation4 + $0x30] sm:$0xff]
    %v147 = vld [vmem:[#allocation4 + $0x38] sm:$0xff]
    %v148 = vld [vmem:[#allocation4 + $0x40] sm:$0xff]
    %v149 = vld [vmem:[#allocation4 + $0x48] sm:$0xff]
    %v150 = vld [vmem:[#allocation4 + $0x50] sm:$0xff]
    %v151 = vld [vmem:[#allocation4 + $0x58] sm:$0xff]
    %v152 = vld [vmem:[#allocation4 + $0x60] sm:$0xff]
    %v153 = vld [vmem:[#allocation4 + $0x68] sm:$0xff]
    %v154 = vld [vmem:[#allocation4 + $0x70] sm:$0xff]
    %v155 = vld [vmem:[#allocation4 + $0x78] sm:$0xff]
    %vm156 = vcmask 523264
    %v158 = vsel %vm156, %v132, 0
    %v161 = vsel %vm156, %v133, 0
    %v164 = vsel %vm156, %v134, 0
    %v167 = vsel %vm156, %v135, 0
    %169 = vmatprep.subr.mxu0 0.0
    %170 = vmatpush1.msra.mxu0 0.0
    %171 = vmatprep.subr.mxu0 0.0
    %172 = vmatpush1.msra.mxu0 0.0
    %173 = vmatprep.subr.mxu0 0.0
    %174 = vmatpush1.msra.mxu0 0.0
    %175 = vmatprep.subr.mxu0 0.0
    %176 = vmatpush1.msra.mxu0 0.0
    %177 = vmatprep.subr.mxu0 0.0
    %178 = vmatpush1.msra.mxu0 0.0
    %179 = vmatprep.subr.mxu0 0.0
    %180 = vmatpush1.msra.mxu0 0.0
    %181 = vmatprep.subr.mxu0 0.0
    %182 = vmatpush1.msra.mxu0 0.0
    %183 = vmatprep.subr.mxu0 0.0
    %184 = vmatpush1.msra.mxu0 0.0
    %185 = vmatprep.subr.mxu0 %v155
    %186 = vmatpush1.msra.mxu0 %v154
    %187 = vmatprep.subr.mxu0 %v153
    %188 = vmatpush1.msra.mxu0 %v152
    %189 = vmatprep.subr.mxu0 %v151
    %190 = vmatpush1.msra.mxu0 %v150
    %191 = vmatprep.subr.mxu0 %v149
    %192 = vmatpush1.msra.mxu0 %v148
    %193 = vmatprep.subr.mxu0 %v147
    %194 = vmatpush1.msra.mxu0 %v146
    %195 = vmatprep.subr.mxu0 %v145
    %196 = vmatpush1.msra.mxu0 %v144
    %197 = vmatprep.subr.mxu0 %v143
    %198 = vmatpush1.msra.mxu0 %v142
    %199 = vmatprep.subr.mxu0 %v141
    %200 = vmatpush1.msra.mxu0 %v140
    %201 = vmatprep.subr.mxu0 0.0
    %202 = vmatpush2.msra.mxu0 0.0
    %203 = vmatprep.subr.mxu0 0.0
    %204 = vmatpush2.msra.mxu0 0.0
    %205 = vmatprep.subr.mxu0 0.0
    %206 = vmatpush2.msra.mxu0 0.0
    %207 = vmatprep.subr.mxu0 0.0
    %208 = vmatpush2.msra.mxu0 0.0
    %209 = vmatprep.subr.mxu0 0.0
    %210 = vmatpush2.msra.mxu0 0.0
    %211 = vmatprep.subr.mxu0 0.0
    %212 = vmatpush2.msra.mxu0 0.0
    %213 = vmatprep.subr.mxu0 0.0
    %214 = vmatpush2.msra.mxu0 0.0
    %215 = vmatprep.subr.mxu0 0.0
    %216 = vmatpush2.msra.mxu0 0.0
    %217 = vmatprep.subr.mxu0 0.0
    %218 = vmatpush2.msra.mxu0 0.0
    %219 = vmatprep.subr.mxu0 0.0
    %220 = vmatpush2.msra.mxu0 0.0
    %221 = vmatprep.subr.mxu0 0.0
    %222 = vmatpush2.msra.mxu0 0.0
    %223 = vmatprep.subr.mxu0 0.0
    %224 = vmatpush2.msra.mxu0 0.0
    %225 = vmatprep.subr.mxu0 0.0
    %226 = vmatpush2.msra.mxu0 0.0
    %227 = vmatprep.subr.mxu0 0.0
    %228 = vmatpush2.msra.mxu0 0.0
    %229 = vmatprep.subr.mxu0 0.0
    %230 = vmatpush2.msra.mxu0 0.0
    %231 = vmatprep.subr.mxu0 0.0
    %232 = vmatpush2.msra.mxu0 0.0
    %233 = vmatprep.mubr.f32.mxu0 0.0
    %234 = vmatmul.mubr.f32.gmra.mxu0 %v158
    %v235 = vpop.f32.mrf.mxu0
    %v236 = vadd.f32 0.0, %v235
    %v237 = vpop.f32.mrf.mxu0
    %v238 = vadd.f32 0.0, %v237
    %239 = vmatprep.mubr.f32.mxu0 0.0
    %240 = vmatmul.mubr.f32.gmra.mxu0 %v161
    %v241 = vpop.f32.mrf.mxu0
    %v242 = vadd.f32 0.0, %v241
    %v243 = vpop.f32.mrf.mxu0
    %v244 = vadd.f32 0.0, %v243
    %245 = vmatprep.mubr.f32.mxu0 0.0
    %246 = vmatmul.mubr.f32.gmra.mxu0 %v164
    %v247 = vpop.f32.mrf.mxu0
    %v248 = vadd.f32 0.0, %v247
    %v249 = vpop.f32.mrf.mxu0
    %v250 = vadd.f32 0.0, %v249
    %251 = vmatprep.mubr.f32.mxu0 0.0
    %252 = vmatmul.mubr.f32.gmra.mxu0 %v167
    %v253 = vpop.f32.mrf.mxu0
    %v254 = vadd.f32 0.0, %v253
    %v255 = vpop.f32.mrf.mxu0
    %v256 = vadd.f32 0.0, %v255
    %257 = vdwg.mxu0
    %262 = vrot.lane.b32.xlu0 %v236, 64
    %v263 = vpop.permute.xlu0 %262
    %264 = vrot.lane.b32.xlu0 %v242, 64
    %v265 = vpop.permute.xlu0 %264
    %266 = vrot.lane.b32.xlu0 %v248, 64
    %v267 = vpop.permute.xlu0 %266
    %268 = vrot.lane.b32.xlu0 %v254, 64
    %v269 = vpop.permute.xlu0 %268
    %vm270 = vcmask 261120
    %v271 = vsel %vm270, %v236, 0
    %v273 = vsel %vm270, %v242, 0
    %v275 = vsel %vm270, %v248, 0
    %v277 = vsel %vm270, %v254, 0
    %v279 = vsel %vm270, %v263, 0
    %v281 = vsel %vm270, %v265, 0
    %v283 = vsel %vm270, %v267, 0
    %v285 = vsel %vm270, %v269, 0
    %287 = vmatprep.subr.mxu0 0.0
    %288 = vmatpush1.xpose.msra.mxu0 0.0
    %289 = vmatprep.subr.mxu0 0.0
    %290 = vmatpush1.xpose.msra.mxu0 0.0
    %291 = vmatprep.subr.mxu0 0.0
    %292 = vmatpush1.xpose.msra.mxu0 0.0
    %293 = vmatprep.subr.mxu0 0.0
    %294 = vmatpush1.xpose.msra.mxu0 0.0
    %295 = vmatprep.subr.mxu0 0.0
    %296 = vmatpush1.xpose.msra.mxu0 0.0
    %297 = vmatprep.subr.mxu0 0.0
    %298 = vmatpush1.xpose.msra.mxu0 0.0
    %299 = vmatprep.subr.mxu0 0.0
    %300 = vmatpush1.xpose.msra.mxu0 0.0
    %301 = vmatprep.subr.mxu0 0.0
    %302 = vmatpush1.xpose.msra.mxu0 0.0
    %303 = vmatprep.subr.mxu0 0.0
    %304 = vmatpush1.xpose.msra.mxu0 0.0
    %305 = vmatprep.subr.mxu0 0.0
    %306 = vmatpush1.xpose.msra.mxu0 0.0
    %307 = vmatprep.subr.mxu0 0.0
    %308 = vmatpush1.xpose.msra.mxu0 0.0
    %309 = vmatprep.subr.mxu0 0.0
    %310 = vmatpush1.xpose.msra.mxu0 0.0
    %311 = vmatprep.subr.mxu0 0.0
    %312 = vmatpush1.xpose.msra.mxu0 %v285
    %313 = vmatprep.subr.mxu0 0.0
    %314 = vmatpush1.xpose.msra.mxu0 %v283
    %315 = vmatprep.subr.mxu0 0.0
    %316 = vmatpush1.xpose.msra.mxu0 %v281
    %317 = vmatprep.subr.mxu0 0.0
    %318 = vmatpush1.xpose.msra.mxu0 %v279
    %319 = vmatprep.subr.mxu0 0.0
    %320 = vmatpush2.xpose.msra.mxu0 0.0
    %321 = vmatprep.subr.mxu0 0.0
    %322 = vmatpush2.xpose.msra.mxu0 0.0
    %323 = vmatprep.subr.mxu0 0.0
    %324 = vmatpush2.xpose.msra.mxu0 0.0
    %325 = vmatprep.subr.mxu0 0.0
    %326 = vmatpush2.xpose.msra.mxu0 0.0
    %327 = vmatprep.subr.mxu0 0.0
    %328 = vmatpush2.xpose.msra.mxu0 0.0
    %329 = vmatprep.subr.mxu0 0.0
    %330 = vmatpush2.xpose.msra.mxu0 0.0
    %331 = vmatprep.subr.mxu0 0.0
    %332 = vmatpush2.xpose.msra.mxu0 0.0
    %333 = vmatprep.subr.mxu0 0.0
    %334 = vmatpush2.xpose.msra.mxu0 0.0
    %335 = vmatprep.subr.mxu0 0.0
    %336 = vmatpush2.xpose.msra.mxu0 0.0
    %337 = vmatprep.subr.mxu0 0.0
    %338 = vmatpush2.xpose.msra.mxu0 0.0
    %339 = vmatprep.subr.mxu0 0.0
    %340 = vmatpush2.xpose.msra.mxu0 0.0
    %341 = vmatprep.subr.mxu0 0.0
    %342 = vmatpush2.xpose.msra.mxu0 0.0
    %343 = vmatprep.subr.mxu0 0.0
    %344 = vmatpush2.xpose.msra.mxu0 0.0
    %345 = vmatprep.subr.mxu0 0.0
    %346 = vmatpush2.xpose.msra.mxu0 0.0
    %347 = vmatprep.subr.mxu0 0.0
    %348 = vmatpush2.xpose.msra.mxu0 0.0
    %349 = vmatprep.subr.mxu0 0.0
    %350 = vmatpush2.xpose.msra.mxu0 0.0
    %351 = vmatprep.mubr.f32.mxu0 0.0
    %352 = vmatmul.mubr.f32.gmra.mxu0 %v271
    %v353 = vpop.f32.mrf.mxu0
    %v354 = vadd.f32 0.0, %v353
    %v355 = vpop.f32.mrf.mxu0
    %356 = vmatprep.mubr.f32.mxu0 0.0
    %357 = vmatmul.mubr.f32.gmra.mxu0 %v273
    %v358 = vpop.f32.mrf.mxu0
    %v359 = vadd.f32 0.0, %v358
    %v360 = vpop.f32.mrf.mxu0
    %361 = vmatprep.mubr.f32.mxu0 0.0
    %362 = vmatmul.mubr.f32.gmra.mxu0 %v275
    %v363 = vpop.f32.mrf.mxu0
    %v364 = vadd.f32 0.0, %v363
    %v365 = vpop.f32.mrf.mxu0
    %366 = vmatprep.mubr.f32.mxu0 0.0
    %367 = vmatmul.mubr.f32.gmra.mxu0 %v277
    %v368 = vpop.f32.mrf.mxu0
    %v369 = vadd.f32 0.0, %v368
    %v370 = vpop.f32.mrf.mxu0
    %371 = vdwg.mxu0
    %v372 = vmul.f32 %v354, 0.17677669
    %v373 = vmul.f32 %v359, 0.17677669
    %v374 = vmul.f32 %v364, 0.17677669
    %v375 = vmul.f32 %v369, 0.17677669
    %v376 = vadd.f32 %v372, %v136
    %v377 = vadd.f32 %v373, %v137
    %v378 = vadd.f32 %v374, %v138
    %v379 = vadd.f32 %v375, %v139
    %v380 = vsel %vm270, %v376, -inf
    %381 = vmax.xlane.f32.xlu0 %v380
    %v382 = vpop.xlane.xlu0 %381
    %v383 = vsel %vm270, %v377, -inf
    %384 = vmax.xlane.f32.xlu0 %v383
    %v385 = vpop.xlane.xlu0 %384
    %v386 = vsel %vm270, %v378, -inf
    %387 = vmax.xlane.f32.xlu0 %v386
    %v388 = vpop.xlane.xlu0 %387
    %v389 = vsel %vm270, %v379, -inf
    %390 = vmax.xlane.f32.xlu0 %v389
    %v391 = vpop.xlane.xlu0 %390
    %v392 = vsub.f32 %v376, %v382
    %v393 = vsub.f32 %v377, %v385
    %v394 = vsub.f32 %v378, %v388
    %v395 = vsub.f32 %v379, %v391
    %v396 = vmul.f32 %v392, 1.442695
    %v397 = vpow.pop %v396
    %v398 = vmul.f32 %v393, 1.442695
    %v399 = vpow.pop %v398
    %v400 = vmul.f32 %v394, 1.442695
    %v401 = vpow.pop %v400
    %v402 = vmul.f32 %v395, 1.442695
    %v403 = vpow.pop %v402
    %v404 = vsel %vm270, %v397, 0.0
    %405 = vadd.xlane.f32.xlu0 %v404
    %v406 = vpop.xlane.xlu0 %405
    %v407 = vsel %vm270, %v399, 0.0
    %408 = vadd.xlane.f32.xlu0 %v407
    %v409 = vpop.xlane.xlu0 %408
    %v410 = vsel %vm270, %v401, 0.0
    %411 = vadd.xlane.f32.xlu0 %v410
    %v412 = vpop.xlane.xlu0 %411
    %v413 = vsel %vm270, %v403, 0.0
    %414 = vadd.xlane.f32.xlu0 %v413
    %v415 = vpop.xlane.xlu0 %414
    %v416 = vrcp.pop %v406
    %v417 = vrcp.pop %v409
    %v418 = vrcp.pop %v412
    %v419 = vrcp.pop %v415
    %v420 = vmul.f32 %v397, %v416
    %v421 = vmul.f32 %v399, %v417
    %v422 = vmul.f32 %v401, %v418
    %v423 = vmul.f32 %v403, %v419
    %v425 = vsel %vm270, %v420, 0
    %v428 = vsel %vm270, %v421, 0
    %v431 = vsel %vm270, %v422, 0
    %v434 = vsel %vm270, %v423, 0
    %436 = vmatprep.subr.mxu0 0.0
    %437 = vmatpush1.msra.mxu0 0.0
    %438 = vmatprep.subr.mxu0 0.0
    %439 = vmatpush1.msra.mxu0 0.0
    %440 = vmatprep.subr.mxu0 0.0
    %441 = vmatpush1.msra.mxu0 0.0
    %442 = vmatprep.subr.mxu0 0.0
    %443 = vmatpush1.msra.mxu0 0.0
    %444 = vmatprep.subr.mxu0 0.0
    %445 = vmatpush1.msra.mxu0 0.0
    %446 = vmatprep.subr.mxu0 0.0
    %447 = vmatpush1.msra.mxu0 0.0
    %448 = vmatprep.subr.mxu0 0.0
    %449 = vmatpush1.msra.mxu0 0.0
    %450 = vmatprep.subr.mxu0 0.0
    %451 = vmatpush1.msra.mxu0 0.0
    %452 = vmatprep.subr.mxu0 0.0
    %453 = vmatpush1.msra.mxu0 0.0
    %454 = vmatprep.subr.mxu0 0.0
    %455 = vmatpush1.msra.mxu0 0.0
    %456 = vmatprep.subr.mxu0 0.0
    %457 = vmatpush1.msra.mxu0 0.0
    %458 = vmatprep.subr.mxu0 0.0
    %459 = vmatpush1.msra.mxu0 0.0
    %460 = vmatprep.subr.mxu0 0.0
    %461 = vmatpush1.msra.mxu0 %v256
    %462 = vmatprep.subr.mxu0 0.0
    %463 = vmatpush1.msra.mxu0 %v250
    %464 = vmatprep.subr.mxu0 0.0
    %465 = vmatpush1.msra.mxu0 %v244
    %466 = vmatprep.subr.mxu0 0.0
    %467 = vmatpush1.msra.mxu0 %v238
    %468 = vmatprep.subr.mxu0 0.0
    %469 = vmatpush2.msra.mxu0 0.0
    %470 = vmatprep.subr.mxu0 0.0
    %471 = vmatpush2.msra.mxu0 0.0
    %472 = vmatprep.subr.mxu0 0.0
    %473 = vmatpush2.msra.mxu0 0.0
    %474 = vmatprep.subr.mxu0 0.0
    %475 = vmatpush2.msra.mxu0 0.0
    %476 = vmatprep.subr.mxu0 0.0
    %477 = vmatpush2.msra.mxu0 0.0
    %478 = vmatprep.subr.mxu0 0.0
    %479 = vmatpush2.msra.mxu0 0.0
    %480 = vmatprep.subr.mxu0 0.0
    %481 = vmatpush2.msra.mxu0 0.0
    %482 = vmatprep.subr.mxu0 0.0
    %483 = vmatpush2.msra.mxu0 0.0
    %484 = vmatprep.subr.mxu0 0.0
    %485 = vmatpush2.msra.mxu0 0.0
    %486 = vmatprep.subr.mxu0 0.0
    %487 = vmatpush2.msra.mxu0 0.0
    %488 = vmatprep.subr.mxu0 0.0
    %489 = vmatpush2.msra.mxu0 0.0
    %490 = vmatprep.subr.mxu0 0.0
    %491 = vmatpush2.msra.mxu0 0.0
    %492 = vmatprep.subr.mxu0 0.0
    %493 = vmatpush2.msra.mxu0 0.0
    %494 = vmatprep.subr.mxu0 0.0
    %495 = vmatpush2.msra.mxu0 0.0
    %496 = vmatprep.subr.mxu0 0.0
    %497 = vmatpush2.msra.mxu0 0.0
    %498 = vmatprep.subr.mxu0 0.0
    %499 = vmatpush2.msra.mxu0 0.0
    %500 = vmatprep.mubr.f32.mxu0 0.0
    %501 = vmatmul.mubr.f32.gmra.mxu0 %v425
    %v502 = vpop.f32.mrf.mxu0
    %v503 = vadd.f32 0.0, %v502
    %v504 = vpop.f32.mrf.mxu0
    %505 = vmatprep.mubr.f32.mxu0 0.0
    %506 = vmatmul.mubr.f32.gmra.mxu0 %v428
    %v507 = vpop.f32.mrf.mxu0
    %v508 = vadd.f32 0.0, %v507
    %v509 = vpop.f32.mrf.mxu0
    %510 = vmatprep.mubr.f32.mxu0 0.0
    %511 = vmatmul.mubr.f32.gmra.mxu0 %v431
    %v512 = vpop.f32.mrf.mxu0
    %v513 = vadd.f32 0.0, %v512
    %v514 = vpop.f32.mrf.mxu0
    %515 = vmatprep.mubr.f32.mxu0 0.0
    %516 = vmatmul.mubr.f32.gmra.mxu0 %v434
    %v517 = vpop.f32.mrf.mxu0
    %v518 = vadd.f32 0.0, %v517
    %v519 = vpop.f32.mrf.mxu0
    %520 = vdwg.mxu0
    %v521 = vld [vmem:[#allocation6] sm:$0xff]
    %v522 = vld [vmem:[#allocation6 + $0x8] sm:$0xff]
    %v523 = vld [vmem:[#allocation6 + $0x10] sm:$0xff]
    %v524 = vld [vmem:[#allocation6 + $0x18] sm:$0xff]
    %525 = vrot.lane.b32.xlu0 %v236, 96
    %v526 = vpop.permute.xlu0 %525
    %527 = vrot.lane.b32.xlu0 %v242, 96
    %v528 = vpop.permute.xlu0 %527
    %529 = vrot.lane.b32.xlu0 %v248, 96
    %v530 = vpop.permute.xlu0 %529
    %531 = vrot.lane.b32.xlu0 %v254, 96
    %v532 = vpop.permute.xlu0 %531
    %533 = vrot.lane.b32.xlu0 %v236, 32
    %v534 = vpop.permute.xlu0 %533
    %535 = vrot.lane.b32.xlu0 %v242, 32
    %v536 = vpop.permute.xlu0 %535
    %537 = vrot.lane.b32.xlu0 %v248, 32
    %v538 = vpop.permute.xlu0 %537
    %539 = vrot.lane.b32.xlu0 %v254, 32
    %v540 = vpop.permute.xlu0 %539
    %v541 = vsel %vm270, %v526, 0
    %v543 = vsel %vm270, %v528, 0
    %v545 = vsel %vm270, %v530, 0
    %v547 = vsel %vm270, %v532, 0
    %v549 = vsel %vm270, %v534, 0
    %v551 = vsel %vm270, %v536, 0
    %v553 = vsel %vm270, %v538, 0
    %v555 = vsel %vm270, %v540, 0
    %557 = vmatprep.subr.mxu0 0.0
    %558 = vmatpush1.xpose.msra.mxu0 0.0
    %559 = vmatprep.subr.mxu0 0.0
    %560 = vmatpush1.xpose.msra.mxu0 0.0
    %561 = vmatprep.subr.mxu0 0.0
    %562 = vmatpush1.xpose.msra.mxu0 0.0
    %563 = vmatprep.subr.mxu0 0.0
    %564 = vmatpush1.xpose.msra.mxu0 0.0
    %565 = vmatprep.subr.mxu0 0.0
    %566 = vmatpush1.xpose.msra.mxu0 0.0
    %567 = vmatprep.subr.mxu0 0.0
    %568 = vmatpush1.xpose.msra.mxu0 0.0
    %569 = vmatprep.subr.mxu0 0.0
    %570 = vmatpush1.xpose.msra.mxu0 0.0
    %571 = vmatprep.subr.mxu0 0.0
    %572 = vmatpush1.xpose.msra.mxu0 0.0
    %573 = vmatprep.subr.mxu0 0.0
    %574 = vmatpush1.xpose.msra.mxu0 0.0
    %575 = vmatprep.subr.mxu0 0.0
    %576 = vmatpush1.xpose.msra.mxu0 0.0
    %577 = vmatprep.subr.mxu0 0.0
    %578 = vmatpush1.xpose.msra.mxu0 0.0
    %579 = vmatprep.subr.mxu0 0.0
    %580 = vmatpush1.xpose.msra.mxu0 0.0
    %581 = vmatprep.subr.mxu0 0.0
    %582 = vmatpush1.xpose.msra.mxu0 %v555
    %583 = vmatprep.subr.mxu0 0.0
    %584 = vmatpush1.xpose.msra.mxu0 %v553
    %585 = vmatprep.subr.mxu0 0.0
    %586 = vmatpush1.xpose.msra.mxu0 %v551
    %587 = vmatprep.subr.mxu0 0.0
    %588 = vmatpush1.xpose.msra.mxu0 %v549
    %589 = vmatprep.subr.mxu0 0.0
    %590 = vmatpush2.xpose.msra.mxu0 0.0
    %591 = vmatprep.subr.mxu0 0.0
    %592 = vmatpush2.xpose.msra.mxu0 0.0
    %593 = vmatprep.subr.mxu0 0.0
    %594 = vmatpush2.xpose.msra.mxu0 0.0
    %595 = vmatprep.subr.mxu0 0.0
    %596 = vmatpush2.xpose.msra.mxu0 0.0
    %597 = vmatprep.subr.mxu0 0.0
    %598 = vmatpush2.xpose.msra.mxu0 0.0
    %599 = vmatprep.subr.mxu0 0.0
    %600 = vmatpush2.xpose.msra.mxu0 0.0
    %601 = vmatprep.subr.mxu0 0.0
    %602 = vmatpush2.xpose.msra.mxu0 0.0
    %603 = vmatprep.subr.mxu0 0.0
    %604 = vmatpush2.xpose.msra.mxu0 0.0
    %605 = vmatprep.subr.mxu0 0.0
    %606 = vmatpush2.xpose.msra.mxu0 0.0
    %607 = vmatprep.subr.mxu0 0.0
    %608 = vmatpush2.xpose.msra.mxu0 0.0
    %609 = vmatprep.subr.mxu0 0.0
    %610 = vmatpush2.xpose.msra.mxu0 0.0
    %611 = vmatprep.subr.mxu0 0.0
    %612 = vmatpush2.xpose.msra.mxu0 0.0
    %613 = vmatprep.subr.mxu0 0.0
    %614 = vmatpush2.xpose.msra.mxu0 0.0
    %615 = vmatprep.subr.mxu0 0.0
    %616 = vmatpush2.xpose.msra.mxu0 0.0
    %617 = vmatprep.subr.mxu0 0.0
    %618 = vmatpush2.xpose.msra.mxu0 0.0
    %619 = vmatprep.subr.mxu0 0.0
    %620 = vmatpush2.xpose.msra.mxu0 0.0
    %621 = vmatprep.mubr.f32.mxu0 0.0
    %622 = vmatmul.mubr.f32.gmra.mxu0 %v541
    %v623 = vpop.f32.mrf.mxu0
    %v624 = vadd.f32 0.0, %v623
    %v625 = vpop.f32.mrf.mxu0
    %626 = vmatprep.mubr.f32.mxu0 0.0
    %627 = vmatmul.mubr.f32.gmra.mxu0 %v543
    %v628 = vpop.f32.mrf.mxu0
    %v629 = vadd.f32 0.0, %v628
    %v630 = vpop.f32.mrf.mxu0
    %631 = vmatprep.mubr.f32.mxu0 0.0
    %632 = vmatmul.mubr.f32.gmra.mxu0 %v545
    %v633 = vpop.f32.mrf.mxu0
    %v634 = vadd.f32 0.0, %v633
    %v635 = vpop.f32.mrf.mxu0
    %636 = vmatprep.mubr.f32.mxu0 0.0
    %637 = vmatmul.mubr.f32.gmra.mxu0 %v547
    %v638 = vpop.f32.mrf.mxu0
    %v639 = vadd.f32 0.0, %v638
    %v640 = vpop.f32.mrf.mxu0
    %641 = vdwg.mxu0
    %v642 = vmul.f32 %v624, 0.17677669
    %v643 = vmul.f32 %v629, 0.17677669
    %v644 = vmul.f32 %v634, 0.17677669
    %v645 = vmul.f32 %v639, 0.17677669
    %v646 = vadd.f32 %v642, %v136
    %v647 = vadd.f32 %v643, %v137
    %v648 = vadd.f32 %v644, %v138
    %v649 = vadd.f32 %v645, %v139
    %v650 = vsel %vm270, %v646, -inf
    %651 = vmax.xlane.f32.xlu0 %v650
    %v652 = vpop.xlane.xlu0 %651
    %v653 = vsel %vm270, %v647, -inf
    %654 = vmax.xlane.f32.xlu0 %v653
    %v655 = vpop.xlane.xlu0 %654
    %v656 = vsel %vm270, %v648, -inf
    %657 = vmax.xlane.f32.xlu0 %v656
    %v658 = vpop.xlane.xlu0 %657
    %v659 = vsel %vm270, %v649, -inf
    %660 = vmax.xlane.f32.xlu0 %v659
    %v661 = vpop.xlane.xlu0 %660
    %v662 = vsub.f32 %v646, %v652
    %v663 = vsub.f32 %v647, %v655
    %v664 = vsub.f32 %v648, %v658
    %v665 = vsub.f32 %v649, %v661
    %v666 = vmul.f32 %v662, 1.442695
    %v667 = vpow.pop %v666
    %v668 = vmul.f32 %v663, 1.442695
    %v669 = vpow.pop %v668
    %v670 = vmul.f32 %v664, 1.442695
    %v671 = vpow.pop %v670
    %v672 = vmul.f32 %v665, 1.442695
    %v673 = vpow.pop %v672
    %v674 = vsel %vm270, %v667, 0.0
    %675 = vadd.xlane.f32.xlu0 %v674
    %v676 = vpop.xlane.xlu0 %675
    %v677 = vsel %vm270, %v669, 0.0
    %678 = vadd.xlane.f32.xlu0 %v677
    %v679 = vpop.xlane.xlu0 %678
    %v680 = vsel %vm270, %v671, 0.0
    %681 = vadd.xlane.f32.xlu0 %v680
    %v682 = vpop.xlane.xlu0 %681
    %v683 = vsel %vm270, %v673, 0.0
    %684 = vadd.xlane.f32.xlu0 %v683
    %v685 = vpop.xlane.xlu0 %684
    %v686 = vrcp.pop %v676
    %v687 = vrcp.pop %v679
    %v688 = vrcp.pop %v682
    %v689 = vrcp.pop %v685
    %v690 = vmul.f32 %v667, %v686
    %v691 = vmul.f32 %v669, %v687
    %v692 = vmul.f32 %v671, %v688
    %v693 = vmul.f32 %v673, %v689
    %698 = vrot.lane.b32.xlu0 %v238, 96
    %v699 = vpop.permute.xlu0 %698
    %700 = vrot.lane.b32.xlu0 %v244, 96
    %v701 = vpop.permute.xlu0 %700
    %702 = vrot.lane.b32.xlu0 %v250, 96
    %v703 = vpop.permute.xlu0 %702
    %704 = vrot.lane.b32.xlu0 %v256, 96
    %v705 = vpop.permute.xlu0 %704
    %v711 = vsel %vm270, %v690, 0
    %v714 = vsel %vm270, %v691, 0
    %v717 = vsel %vm270, %v692, 0
    %v720 = vsel %vm270, %v693, 0
    %722 = vmatprep.subr.mxu0 0.0
    %723 = vmatpush1.msra.mxu0 0.0
    %724 = vmatprep.subr.mxu0 0.0
    %725 = vmatpush1.msra.mxu0 0.0
    %726 = vmatprep.subr.mxu0 0.0
    %727 = vmatpush1.msra.mxu0 0.0
    %728 = vmatprep.subr.mxu0 0.0
    %729 = vmatpush1.msra.mxu0 0.0
    %730 = vmatprep.subr.mxu0 0.0
    %731 = vmatpush1.msra.mxu0 0.0
    %732 = vmatprep.subr.mxu0 0.0
    %733 = vmatpush1.msra.mxu0 0.0
    %734 = vmatprep.subr.mxu0 0.0
    %735 = vmatpush1.msra.mxu0 0.0
    %736 = vmatprep.subr.mxu0 0.0
    %737 = vmatpush1.msra.mxu0 0.0
    %738 = vmatprep.subr.mxu0 0.0
    %739 = vmatpush1.msra.mxu0 0.0
    %740 = vmatprep.subr.mxu0 0.0
    %741 = vmatpush1.msra.mxu0 0.0
    %742 = vmatprep.subr.mxu0 0.0
    %743 = vmatpush1.msra.mxu0 0.0
    %744 = vmatprep.subr.mxu0 0.0
    %745 = vmatpush1.msra.mxu0 0.0
    %746 = vmatprep.subr.mxu0 0.0
    %747 = vmatpush1.msra.mxu0 %v705
    %748 = vmatprep.subr.mxu0 0.0
    %749 = vmatpush1.msra.mxu0 %v703
    %750 = vmatprep.subr.mxu0 0.0
    %751 = vmatpush1.msra.mxu0 %v701
    %752 = vmatprep.subr.mxu0 0.0
    %753 = vmatpush1.msra.mxu0 %v699
    %754 = vmatprep.subr.mxu0 0.0
    %755 = vmatpush2.msra.mxu0 0.0
    %756 = vmatprep.subr.mxu0 0.0
    %757 = vmatpush2.msra.mxu0 0.0
    %758 = vmatprep.subr.mxu0 0.0
    %759 = vmatpush2.msra.mxu0 0.0
    %760 = vmatprep.subr.mxu0 0.0
    %761 = vmatpush2.msra.mxu0 0.0
    %762 = vmatprep.subr.mxu0 0.0
    %763 = vmatpush2.msra.mxu0 0.0
    %764 = vmatprep.subr.mxu0 0.0
    %765 = vmatpush2.msra.mxu0 0.0
    %766 = vmatprep.subr.mxu0 0.0
    %767 = vmatpush2.msra.mxu0 0.0
    %768 = vmatprep.subr.mxu0 0.0
    %769 = vmatpush2.msra.mxu0 0.0
    %770 = vmatprep.subr.mxu0 0.0
    %771 = vmatpush2.msra.mxu0 0.0
    %772 = vmatprep.subr.mxu0 0.0
    %773 = vmatpush2.msra.mxu0 0.0
    %774 = vmatprep.subr.mxu0 0.0
    %775 = vmatpush2.msra.mxu0 0.0
    %776 = vmatprep.subr.mxu0 0.0
    %777 = vmatpush2.msra.mxu0 0.0
    %778 = vmatprep.subr.mxu0 0.0
    %779 = vmatpush2.msra.mxu0 0.0
    %780 = vmatprep.subr.mxu0 0.0
    %781 = vmatpush2.msra.mxu0 0.0
    %782 = vmatprep.subr.mxu0 0.0
    %783 = vmatpush2.msra.mxu0 0.0
    %784 = vmatprep.subr.mxu0 0.0
    %785 = vmatpush2.msra.mxu0 0.0
    %786 = vmatprep.mubr.f32.mxu0 0.0
    %787 = vmatmul.mubr.f32.gmra.mxu0 %v711
    %v788 = vpop.f32.mrf.mxu0
    %v789 = vadd.f32 0.0, %v788
    %v790 = vpop.f32.mrf.mxu0
    %791 = vmatprep.mubr.f32.mxu0 0.0
    %792 = vmatmul.mubr.f32.gmra.mxu0 %v714
    %v793 = vpop.f32.mrf.mxu0
    %v794 = vadd.f32 0.0, %v793
    %v795 = vpop.f32.mrf.mxu0
    %796 = vmatprep.mubr.f32.mxu0 0.0
    %797 = vmatmul.mubr.f32.gmra.mxu0 %v717
    %v798 = vpop.f32.mrf.mxu0
    %v799 = vadd.f32 0.0, %v798
    %v800 = vpop.f32.mrf.mxu0
    %801 = vmatprep.mubr.f32.mxu0 0.0
    %802 = vmatmul.mubr.f32.gmra.mxu0 %v720
    %v803 = vpop.f32.mrf.mxu0
    %v804 = vadd.f32 0.0, %v803
    %v805 = vpop.f32.mrf.mxu0
    %806 = vdwg.mxu0
    %s807 = scalar_lea.vmem [#allocation6], 32
    %v808 = vld [vmem:[%s807] sm:$0xff]
    %v809 = vld [vmem:[%s807 + $0x8] sm:$0xff]
    %v810 = vld [vmem:[%s807 + $0x10] sm:$0xff]
    %v811 = vld [vmem:[%s807 + $0x18] sm:$0xff]
    %v813 = vsel %vm270, %v789, 0
    %v816 = vsel %vm270, %v794, 0
    %v819 = vsel %vm270, %v799, 0
    %v822 = vsel %vm270, %v804, 0
    %824 = vmatprep.subr.mxu0 0.0
    %825 = vmatpush1.msra.mxu0 0.0
    %826 = vmatprep.subr.mxu0 0.0
    %827 = vmatpush1.msra.mxu0 0.0
    %828 = vmatprep.subr.mxu0 0.0
    %829 = vmatpush1.msra.mxu0 0.0
    %830 = vmatprep.subr.mxu0 0.0
    %831 = vmatpush1.msra.mxu0 0.0
    %832 = vmatprep.subr.mxu0 0.0
    %833 = vmatpush1.msra.mxu0 0.0
    %834 = vmatprep.subr.mxu0 0.0
    %835 = vmatpush1.msra.mxu0 0.0
    %836 = vmatprep.subr.mxu0 0.0
    %837 = vmatpush1.msra.mxu0 0.0
    %838 = vmatprep.subr.mxu0 0.0
    %839 = vmatpush1.msra.mxu0 0.0
    %840 = vmatprep.subr.mxu0 0.0
    %841 = vmatpush1.msra.mxu0 0.0
    %842 = vmatprep.subr.mxu0 0.0
    %843 = vmatpush1.msra.mxu0 0.0
    %844 = vmatprep.subr.mxu0 0.0
    %845 = vmatpush1.msra.mxu0 0.0
    %846 = vmatprep.subr.mxu0 0.0
    %847 = vmatpush1.msra.mxu0 0.0
    %848 = vmatprep.subr.mxu0 0.0
    %849 = vmatpush1.msra.mxu0 %v811
    %850 = vmatprep.subr.mxu0 0.0
    %851 = vmatpush1.msra.mxu0 %v810
    %852 = vmatprep.subr.mxu0 0.0
    %853 = vmatpush1.msra.mxu0 %v809
    %854 = vmatprep.subr.mxu0 0.0
    %855 = vmatpush1.msra.mxu0 %v808
    %856 = vmatprep.subr.mxu0 0.0
    %857 = vmatpush2.msra.mxu0 0.0
    %858 = vmatprep.subr.mxu0 0.0
    %859 = vmatpush2.msra.mxu0 0.0
    %860 = vmatprep.subr.mxu0 0.0
    %861 = vmatpush2.msra.mxu0 0.0
    %862 = vmatprep.subr.mxu0 0.0
    %863 = vmatpush2.msra.mxu0 0.0
    %864 = vmatprep.subr.mxu0 0.0
    %865 = vmatpush2.msra.mxu0 0.0
    %866 = vmatprep.subr.mxu0 0.0
    %867 = vmatpush2.msra.mxu0 0.0
    %868 = vmatprep.subr.mxu0 0.0
    %869 = vmatpush2.msra.mxu0 0.0
    %870 = vmatprep.subr.mxu0 0.0
    %871 = vmatpush2.msra.mxu0 0.0
    %872 = vmatprep.subr.mxu0 0.0
    %873 = vmatpush2.msra.mxu0 0.0
    %874 = vmatprep.subr.mxu0 0.0
    %875 = vmatpush2.msra.mxu0 0.0
    %876 = vmatprep.subr.mxu0 0.0
    %877 = vmatpush2.msra.mxu0 0.0
    %878 = vmatprep.subr.mxu0 0.0
    %879 = vmatpush2.msra.mxu0 0.0
    %880 = vmatprep.subr.mxu0 0.0
    %881 = vmatpush2.msra.mxu0 0.0
    %882 = vmatprep.subr.mxu0 0.0
    %883 = vmatpush2.msra.mxu0 0.0
    %884 = vmatprep.subr.mxu0 0.0
    %885 = vmatpush2.msra.mxu0 0.0
    %886 = vmatprep.subr.mxu0 0.0
    %887 = vmatpush2.msra.mxu0 0.0
    %888 = vmatprep.mubr.f32.mxu0 0.0
    %889 = vmatmul.mubr.f32.gmra.mxu0 %v813
    %v890 = vpop.f32.mrf.mxu0
    %v891 = vadd.f32 0.0, %v890
    %v892 = vpop.f32.mrf.mxu0
    %893 = vmatprep.mubr.f32.mxu0 0.0
    %894 = vmatmul.mubr.f32.gmra.mxu0 %v816
    %v895 = vpop.f32.mrf.mxu0
    %v896 = vadd.f32 0.0, %v895
    %v897 = vpop.f32.mrf.mxu0
    %898 = vmatprep.mubr.f32.mxu0 0.0
    %899 = vmatmul.mubr.f32.gmra.mxu0 %v819
    %v900 = vpop.f32.mrf.mxu0
    %v901 = vadd.f32 0.0, %v900
    %v902 = vpop.f32.mrf.mxu0
    %903 = vmatprep.mubr.f32.mxu0 0.0
    %904 = vmatmul.mubr.f32.gmra.mxu0 %v822
    %v905 = vpop.f32.mrf.mxu0
    %v906 = vadd.f32 0.0, %v905
    %v907 = vpop.f32.mrf.mxu0
    %908 = vdwg.mxu0
    %v910 = vsel %vm270, %v503, 0
    %v913 = vsel %vm270, %v508, 0
    %v916 = vsel %vm270, %v513, 0
    %v919 = vsel %vm270, %v518, 0
    %921 = vmatprep.subr.mxu0 0.0
    %922 = vmatpush1.msra.mxu0 0.0
    %923 = vmatprep.subr.mxu0 0.0
    %924 = vmatpush1.msra.mxu0 0.0
    %925 = vmatprep.subr.mxu0 0.0
    %926 = vmatpush1.msra.mxu0 0.0
    %927 = vmatprep.subr.mxu0 0.0
    %928 = vmatpush1.msra.mxu0 0.0
    %929 = vmatprep.subr.mxu0 0.0
    %930 = vmatpush1.msra.mxu0 0.0
    %931 = vmatprep.subr.mxu0 0.0
    %932 = vmatpush1.msra.mxu0 0.0
    %933 = vmatprep.subr.mxu0 0.0
    %934 = vmatpush1.msra.mxu0 0.0
    %935 = vmatprep.subr.mxu0 0.0
    %936 = vmatpush1.msra.mxu0 0.0
    %937 = vmatprep.subr.mxu0 0.0
    %938 = vmatpush1.msra.mxu0 0.0
    %939 = vmatprep.subr.mxu0 0.0
    %940 = vmatpush1.msra.mxu0 0.0
    %941 = vmatprep.subr.mxu0 0.0
    %942 = vmatpush1.msra.mxu0 0.0
    %943 = vmatprep.subr.mxu0 0.0
    %944 = vmatpush1.msra.mxu0 0.0
    %945 = vmatprep.subr.mxu0 0.0
    %946 = vmatpush1.msra.mxu0 %v524
    %947 = vmatprep.subr.mxu0 0.0
    %948 = vmatpush1.msra.mxu0 %v523
    %949 = vmatprep.subr.mxu0 0.0
    %950 = vmatpush1.msra.mxu0 %v522
    %951 = vmatprep.subr.mxu0 0.0
    %952 = vmatpush1.msra.mxu0 %v521
    %953 = vmatprep.subr.mxu0 0.0
    %954 = vmatpush2.msra.mxu0 0.0
    %955 = vmatprep.subr.mxu0 0.0
    %956 = vmatpush2.msra.mxu0 0.0
    %957 = vmatprep.subr.mxu0 0.0
    %958 = vmatpush2.msra.mxu0 0.0
    %959 = vmatprep.subr.mxu0 0.0
    %960 = vmatpush2.msra.mxu0 0.0
    %961 = vmatprep.subr.mxu0 0.0
    %962 = vmatpush2.msra.mxu0 0.0
    %963 = vmatprep.subr.mxu0 0.0
    %964 = vmatpush2.msra.mxu0 0.0
    %965 = vmatprep.subr.mxu0 0.0
    %966 = vmatpush2.msra.mxu0 0.0
    %967 = vmatprep.subr.mxu0 0.0
    %968 = vmatpush2.msra.mxu0 0.0
    %969 = vmatprep.subr.mxu0 0.0
    %970 = vmatpush2.msra.mxu0 0.0
    %971 = vmatprep.subr.mxu0 0.0
    %972 = vmatpush2.msra.mxu0 0.0
    %973 = vmatprep.subr.mxu0 0.0
    %974 = vmatpush2.msra.mxu0 0.0
    %975 = vmatprep.subr.mxu0 0.0
    %976 = vmatpush2.msra.mxu0 0.0
    %977 = vmatprep.subr.mxu0 0.0
    %978 = vmatpush2.msra.mxu0 0.0
    %979 = vmatprep.subr.mxu0 0.0
    %980 = vmatpush2.msra.mxu0 0.0
    %981 = vmatprep.subr.mxu0 0.0
    %982 = vmatpush2.msra.mxu0 0.0
    %983 = vmatprep.subr.mxu0 0.0
    %984 = vmatpush2.msra.mxu0 0.0
    %985 = vmatprep.mubr.f32.mxu0 0.0
    %986 = vmatmul.mubr.f32.gmra.mxu0 %v910
    %v987 = vpop.f32.mrf.mxu0
    %v988 = vadd.f32 %v891, %v987
    %v989 = vpop.f32.mrf.mxu0
    %990 = vmatprep.mubr.f32.mxu0 0.0
    %991 = vmatmul.mubr.f32.gmra.mxu0 %v913
    %v992 = vpop.f32.mrf.mxu0
    %v993 = vadd.f32 %v896, %v992
    %v994 = vpop.f32.mrf.mxu0
    %995 = vmatprep.mubr.f32.mxu0 0.0
    %996 = vmatmul.mubr.f32.gmra.mxu0 %v916
    %v997 = vpop.f32.mrf.mxu0
    %v998 = vadd.f32 %v901, %v997
    %v999 = vpop.f32.mrf.mxu0
    %1000 = vmatprep.mubr.f32.mxu0 0.0
    %1001 = vmatmul.mubr.f32.gmra.mxu0 %v919
    %v1002 = vpop.f32.mrf.mxu0
    %v1003 = vadd.f32 %v906, %v1002
    %v1004 = vpop.f32.mrf.mxu0
    %1005 = vdwg.mxu0
    %v1006 = vld [vmem:[%s4] sm:$0x1]
    %v1007 = vld [vmem:[%s5] sm:$0x1]
    %v1008 = vsel %vm156, %v988, 0.0
    %v1009 = vsel %vm156, %v993, 0.0
    %v1010 = vadd.f32 %v1008, %v1009
    %v1011 = vsel %vm156, %v998, 0.0
    %v1012 = vadd.f32 %v1010, %v1011
    %v1013 = vsel %vm156, %v1003, 0.0
    %v1014 = vadd.f32 %v1012, %v1013
    %v1015 = vrot.slane %v1014, 4
    %v1016 = vadd.f32 %v1014, %v1015
    %v1017 = vrot.slane %v1016, 2
    %v1018 = vadd.f32 %v1016, %v1017
    %v1019 = vrot.slane %v1018, 1
    %v1020 = vadd.f32 %v1018, %v1019
    %v1021 = vrcp.pop 32.0
    %v1022 = vmul.f32 %v1020, %v1021
    %v1023 = vsub.f32 %v988, %v1022
    %v1024 = vsub.f32 %v993, %v1022
    %v1025 = vsub.f32 %v998, %v1022
    %v1026 = vsub.f32 %v1003, %v1022
    %v1027 = vmul.f32 %v1023, %v1023
    %v1028 = vmul.f32 %v1024, %v1024
    %v1029 = vmul.f32 %v1025, %v1025
    %v1030 = vmul.f32 %v1026, %v1026
    %v1031 = vsel %vm156, %v1027, 0.0
    %v1032 = vsel %vm156, %v1028, 0.0
    %v1033 = vadd.f32 %v1031, %v1032
    %v1034 = vsel %vm156, %v1029, 0.0
    %v1035 = vadd.f32 %v1033, %v1034
    %v1036 = vsel %vm156, %v1030, 0.0
    %v1037 = vadd.f32 %v1035, %v1036
    %v1038 = vrot.slane %v1037, 4
    %v1039 = vadd.f32 %v1037, %v1038
    %v1040 = vrot.slane %v1039, 2
    %v1041 = vadd.f32 %v1039, %v1040
    %v1042 = vrot.slane %v1041, 1
    %v1043 = vadd.f32 %v1041, %v1042
    %v1044 = vmul.f32 %v1043, %v1021
    %v1045 = vadd.f32 %v1044, 1e-05
    %v1046 = vrsqrt.pop %v1045
    %v1047 = vmul.f32 %v1023, %v1046
    %v1048 = vmul.f32 %v1024, %v1046
    %v1049 = vmul.f32 %v1025, %v1046
    %v1050 = vmul.f32 %v1026, %v1046
    %v1052 = vlaneseq
    %v1053 = vshrl.u32 %v1052, 7
    %v1054 = vsub.s32 0, %v1053
    %v1055 = vrot.slane %v1006, %v1054
    %v1057 = vmul.f32 %v1047, %v1055
    %v1058 = vmul.f32 %v1048, %v1055
    %v1059 = vmul.f32 %v1049, %v1055
    %v1060 = vmul.f32 %v1050, %v1055
    %v1062 = vlaneseq
    %v1063 = vshrl.u32 %v1062, 7
    %v1064 = vsub.s32 0, %v1063
    %v1065 = vrot.slane %v1007, %v1064
    %v1067 = vadd.f32 %v1057, %v1065
    %v1068 = vadd.f32 %v1058, %v1065
    %v1069 = vadd.f32 %v1059, %v1065
    %v1070 = vadd.f32 %v1060, %v1065
    %v1071 = vadd.f32 %v132, %v1067
    %v1072 = vadd.f32 %v133, %v1068
    %v1073 = vadd.f32 %v134, %v1069
    %v1074 = vadd.f32 %v135, %v1070
    %v1075 = vld [vmem:[#allocation7] sm:$0xff]
    %v1076 = vld [vmem:[#allocation7 + $0x8] sm:$0xff]
    %v1077 = vld [vmem:[#allocation7 + $0x10] sm:$0xff]
    %v1078 = vld [vmem:[#allocation7 + $0x18] sm:$0xff]
    %v1079 = vld [vmem:[#allocation7 + $0x20] sm:$0xff]
    %v1080 = vld [vmem:[#allocation7 + $0x28] sm:$0xff]
    %v1081 = vld [vmem:[#allocation7 + $0x30] sm:$0xff]
    %v1082 = vld [vmem:[#allocation7 + $0x38] sm:$0xff]
    %v1083 = vld [vmem:[#allocation9] sm:$0x1]
    %v1085 = vlaneseq
    %v1086 = vshrl.u32 %v1085, 7
    %v1087 = vsub.s32 0, %v1086
    %v1088 = vrot.slane %v1083, %v1087
    %v1091 = vsel %vm156, %v1071, 0
    %v1094 = vsel %vm156, %v1072, 0
    %v1097 = vsel %vm156, %v1073, 0
    %v1100 = vsel %vm156, %v1074, 0
    %1102 = vmatprep.subr.mxu0 0.0
    %1103 = vmatpush1.msra.mxu0 0.0
    %1104 = vmatprep.subr.mxu0 0.0
    %1105 = vmatpush1.msra.mxu0 0.0
    %1106 = vmatprep.subr.mxu0 0.0
    %1107 = vmatpush1.msra.mxu0 0.0
    %1108 = vmatprep.subr.mxu0 0.0
    %1109 = vmatpush1.msra.mxu0 0.0
    %1110 = vmatprep.subr.mxu0 0.0
    %1111 = vmatpush1.msra.mxu0 0.0
    %1112 = vmatprep.subr.mxu0 0.0
    %1113 = vmatpush1.msra.mxu0 0.0
    %1114 = vmatprep.subr.mxu0 0.0
    %1115 = vmatpush1.msra.mxu0 0.0
    %1116 = vmatprep.subr.mxu0 0.0
    %1117 = vmatpush1.msra.mxu0 0.0
    %1118 = vmatprep.subr.mxu0 0.0
    %1119 = vmatpush1.msra.mxu0 %v1082
    %1120 = vmatprep.subr.mxu0 0.0
    %1121 = vmatpush1.msra.mxu0 %v1081
    %1122 = vmatprep.subr.mxu0 0.0
    %1123 = vmatpush1.msra.mxu0 %v1080
    %1124 = vmatprep.subr.mxu0 0.0
    %1125 = vmatpush1.msra.mxu0 %v1079
    %1126 = vmatprep.subr.mxu0 0.0
    %1127 = vmatpush1.msra.mxu0 %v1078
    %1128 = vmatprep.subr.mxu0 0.0
    %1129 = vmatpush1.msra.mxu0 %v1077
    %1130 = vmatprep.subr.mxu0 0.0
    %1131 = vmatpush1.msra.mxu0 %v1076
    %1132 = vmatprep.subr.mxu0 0.0
    %1133 = vmatpush1.msra.mxu0 %v1075
    %1134 = vmatprep.subr.mxu0 0.0
    %1135 = vmatpush2.msra.mxu0 0.0
    %1136 = vmatprep.subr.mxu0 0.0
    %1137 = vmatpush2.msra.mxu0 0.0
    %1138 = vmatprep.subr.mxu0 0.0
    %1139 = vmatpush2.msra.mxu0 0.0
    %1140 = vmatprep.subr.mxu0 0.0
    %1141 = vmatpush2.msra.mxu0 0.0
    %1142 = vmatprep.subr.mxu0 0.0
    %1143 = vmatpush2.msra.mxu0 0.0
    %1144 = vmatprep.subr.mxu0 0.0
    %1145 = vmatpush2.msra.mxu0 0.0
    %1146 = vmatprep.subr.mxu0 0.0
    %1147 = vmatpush2.msra.mxu0 0.0
    %1148 = vmatprep.subr.mxu0 0.0
    %1149 = vmatpush2.msra.mxu0 0.0
    %1150 = vmatprep.subr.mxu0 0.0
    %1151 = vmatpush2.msra.mxu0 0.0
    %1152 = vmatprep.subr.mxu0 0.0
    %1153 = vmatpush2.msra.mxu0 0.0
    %1154 = vmatprep.subr.mxu0 0.0
    %1155 = vmatpush2.msra.mxu0 0.0
    %1156 = vmatprep.subr.mxu0 0.0
    %1157 = vmatpush2.msra.mxu0 0.0
    %1158 = vmatprep.subr.mxu0 0.0
    %1159 = vmatpush2.msra.mxu0 0.0
    %1160 = vmatprep.subr.mxu0 0.0
    %1161 = vmatpush2.msra.mxu0 0.0
    %1162 = vmatprep.subr.mxu0 0.0
    %1163 = vmatpush2.msra.mxu0 0.0
    %1164 = vmatprep.subr.mxu0 0.0
    %1165 = vmatpush2.msra.mxu0 0.0
    %1166 = vmatprep.mubr.f32.mxu0 0.0
    %1167 = vmatmul.mubr.f32.gmra.mxu0 %v1091
    %v1168 = vpop.f32.mrf.mxu0
    %v1169 = vadd.f32 %v1088, %v1168
    %v1170 = vpop.f32.mrf.mxu0
    %1171 = vmatprep.mubr.f32.mxu0 0.0
    %1172 = vmatmul.mubr.f32.gmra.mxu0 %v1094
    %v1173 = vpop.f32.mrf.mxu0
    %v1174 = vadd.f32 %v1088, %v1173
    %v1175 = vpop.f32.mrf.mxu0
    %1176 = vmatprep.mubr.f32.mxu0 0.0
    %1177 = vmatmul.mubr.f32.gmra.mxu0 %v1097
    %v1178 = vpop.f32.mrf.mxu0
    %v1179 = vadd.f32 %v1088, %v1178
    %v1180 = vpop.f32.mrf.mxu0
    %1181 = vmatprep.mubr.f32.mxu0 0.0
    %1182 = vmatmul.mubr.f32.gmra.mxu0 %v1100
    %v1183 = vpop.f32.mrf.mxu0
    %v1184 = vadd.f32 %v1088, %v1183
    %v1185 = vpop.f32.mrf.mxu0
    %1186 = vdwg.mxu0
    %v1187 = vmax.f32 %v1169, 0.0
    %v1188 = vmax.f32 %v1174, 0.0
    %v1189 = vmax.f32 %v1179, 0.0
    %v1190 = vmax.f32 %v1184, 0.0
    %v1191 = vld [vmem:[#allocation10] sm:$0xff]
    %v1192 = vld [vmem:[#allocation10 + $0x8] sm:$0xff]
    %v1193 = vld [vmem:[#allocation10 + $0x10] sm:$0xff]
    %v1194 = vld [vmem:[#allocation10 + $0x18] sm:$0xff]
    %v1195 = vld [vmem:[#allocation10 + $0x20] sm:$0xff]
    %v1196 = vld [vmem:[#allocation10 + $0x28] sm:$0xff]
    %v1197 = vld [vmem:[#allocation10 + $0x30] sm:$0xff]
    %v1198 = vld [vmem:[#allocation10 + $0x38] sm:$0xff]
    %v1200 = vsel %vm156, %v1187, 0
    %v1203 = vsel %vm156, %v1188, 0
    %v1206 = vsel %vm156, %v1189, 0
    %v1209 = vsel %vm156, %v1190, 0
    %1211 = vmatprep.subr.mxu0 0.0
    %1212 = vmatpush1.msra.mxu0 0.0
    %1213 = vmatprep.subr.mxu0 0.0
    %1214 = vmatpush1.msra.mxu0 0.0
    %1215 = vmatprep.subr.mxu0 0.0
    %1216 = vmatpush1.msra.mxu0 0.0
    %1217 = vmatprep.subr.mxu0 0.0
    %1218 = vmatpush1.msra.mxu0 0.0
    %1219 = vmatprep.subr.mxu0 0.0
    %1220 = vmatpush1.msra.mxu0 0.0
    %1221 = vmatprep.subr.mxu0 0.0
    %1222 = vmatpush1.msra.mxu0 0.0
    %1223 = vmatprep.subr.mxu0 0.0
    %1224 = vmatpush1.msra.mxu0 0.0
    %1225 = vmatprep.subr.mxu0 0.0
    %1226 = vmatpush1.msra.mxu0 0.0
    %1227 = vmatprep.subr.mxu0 0.0
    %1228 = vmatpush1.msra.mxu0 %v1198
    %1229 = vmatprep.subr.mxu0 0.0
    %1230 = vmatpush1.msra.mxu0 %v1197
    %1231 = vmatprep.subr.mxu0 0.0
    %1232 = vmatpush1.msra.mxu0 %v1196
    %1233 = vmatprep.subr.mxu0 0.0
    %1234 = vmatpush1.msra.mxu0 %v1195
    %1235 = vmatprep.subr.mxu0 0.0
    %1236 = vmatpush1.msra.mxu0 %v1194
    %1237 = vmatprep.subr.mxu0 0.0
    %1238 = vmatpush1.msra.mxu0 %v1193
    %1239 = vmatprep.subr.mxu0 0.0
    %1240 = vmatpush1.msra.mxu0 %v1192
    %1241 = vmatprep.subr.mxu0 0.0
    %1242 = vmatpush1.msra.mxu0 %v1191
    %1243 = vmatprep.subr.mxu0 0.0
    %1244 = vmatpush2.msra.mxu0 0.0
    %1245 = vmatprep.subr.mxu0 0.0
    %1246 = vmatpush2.msra.mxu0 0.0
    %1247 = vmatprep.subr.mxu0 0.0
    %1248 = vmatpush2.msra.mxu0 0.0
    %1249 = vmatprep.subr.mxu0 0.0
    %1250 = vmatpush2.msra.mxu0 0.0
    %1251 = vmatprep.subr.mxu0 0.0
    %1252 = vmatpush2.msra.mxu0 0.0
    %1253 = vmatprep.subr.mxu0 0.0
    %1254 = vmatpush2.msra.mxu0 0.0
    %1255 = vmatprep.subr.mxu0 0.0
    %1256 = vmatpush2.msra.mxu0 0.0
    %1257 = vmatprep.subr.mxu0 0.0
    %1258 = vmatpush2.msra.mxu0 0.0
    %1259 = vmatprep.subr.mxu0 0.0
    %1260 = vmatpush2.msra.mxu0 0.0
    %1261 = vmatprep.subr.mxu0 0.0
    %1262 = vmatpush2.msra.mxu0 0.0
    %1263 = vmatprep.subr.mxu0 0.0
    %1264 = vmatpush2.msra.mxu0 0.0
    %1265 = vmatprep.subr.mxu0 0.0
    %1266 = vmatpush2.msra.mxu0 0.0
    %1267 = vmatprep.subr.mxu0 0.0
    %1268 = vmatpush2.msra.mxu0 0.0
    %1269 = vmatprep.subr.mxu0 0.0
    %1270 = vmatpush2.msra.mxu0 0.0
    %1271 = vmatprep.subr.mxu0 0.0
    %1272 = vmatpush2.msra.mxu0 0.0
    %1273 = vmatprep.subr.mxu0 0.0
    %1274 = vmatpush2.msra.mxu0 0.0
    %1275 = vmatprep.mubr.f32.mxu0 0.0
    %1276 = vmatmul.mubr.f32.gmra.mxu0 %v1200
    %v1277 = vpop.f32.mrf.mxu0
    %v1278 = vadd.f32 0.0, %v1277
    %v1279 = vpop.f32.mrf.mxu0
    %1280 = vmatprep.mubr.f32.mxu0 0.0
    %1281 = vmatmul.mubr.f32.gmra.mxu0 %v1203
    %v1282 = vpop.f32.mrf.mxu0
    %v1283 = vadd.f32 0.0, %v1282
    %v1284 = vpop.f32.mrf.mxu0
    %1285 = vmatprep.mubr.f32.mxu0 0.0
    %1286 = vmatmul.mubr.f32.gmra.mxu0 %v1206
    %v1287 = vpop.f32.mrf.mxu0
    %v1288 = vadd.f32 0.0, %v1287
    %v1289 = vpop.f32.mrf.mxu0
    %1290 = vmatprep.mubr.f32.mxu0 0.0
    %1291 = vmatmul.mubr.f32.gmra.mxu0 %v1209
    %v1292 = vpop.f32.mrf.mxu0
    %v1293 = vadd.f32 0.0, %v1292
    %v1294 = vpop.f32.mrf.mxu0
    %1295 = vdwg.mxu0
    %v1296 = vadd.f32 %v1071, %v1278
    %v1297 = vadd.f32 %v1072, %v1283
    %v1298 = vadd.f32 %v1073, %v1288
    %v1299 = vadd.f32 %v1074, %v1293
    %v1300 = vld [vmem:[#allocation12] sm:$0x1]
    %v1302 = vlaneseq
    %v1303 = vshrl.u32 %v1302, 7
    %v1304 = vsub.s32 0, %v1303
    %v1305 = vrot.slane %v1300, %v1304
    %v1307 = vadd.f32 %v1296, %v1305
    %v1308 = vadd.f32 %v1297, %v1305
    %v1309 = vadd.f32 %v1298, %v1305
    %v1310 = vadd.f32 %v1299, %v1305
    %v1311 = vld [vmem:[%s10] sm:$0x1]
    %v1312 = vld [vmem:[%s11] sm:$0x1]
    %v1313 = vsel %vm156, %v1307, 0.0
    %v1314 = vsel %vm156, %v1308, 0.0
    %v1315 = vadd.f32 %v1313, %v1314
    %v1316 = vsel %vm156, %v1309, 0.0
    %v1317 = vadd.f32 %v1315, %v1316
    %v1318 = vsel %vm156, %v1310, 0.0
    %v1319 = vadd.f32 %v1317, %v1318
    %v1320 = vrot.slane %v1319, 4
    %v1321 = vadd.f32 %v1319, %v1320
    %v1322 = vrot.slane %v1321, 2
    %v1323 = vadd.f32 %v1321, %v1322
    %v1324 = vrot.slane %v1323, 1
    %v1325 = vadd.f32 %v1323, %v1324
    %v1326 = vmul.f32 %v1325, %v1021
    %v1327 = vsub.f32 %v1307, %v1326
    %v1328 = vsub.f32 %v1308, %v1326
    %v1329 = vsub.f32 %v1309, %v1326
    %v1330 = vsub.f32 %v1310, %v1326
    %v1331 = vmul.f32 %v1327, %v1327
    %v1332 = vmul.f32 %v1328, %v1328
    %v1333 = vmul.f32 %v1329, %v1329
    %v1334 = vmul.f32 %v1330, %v1330
    %v1335 = vsel %vm156, %v1331, 0.0
    %v1336 = vsel %vm156, %v1332, 0.0
    %v1337 = vadd.f32 %v1335, %v1336
    %v1338 = vsel %vm156, %v1333, 0.0
    %v1339 = vadd.f32 %v1337, %v1338
    %v1340 = vsel %vm156, %v1334, 0.0
    %v1341 = vadd.f32 %v1339, %v1340
    %v1342 = vrot.slane %v1341, 4
    %v1343 = vadd.f32 %v1341, %v1342
    %v1344 = vrot.slane %v1343, 2
    %v1345 = vadd.f32 %v1343, %v1344
    %v1346 = vrot.slane %v1345, 1
    %v1347 = vadd.f32 %v1345, %v1346
    %v1348 = vmul.f32 %v1347, %v1021
    %v1349 = vadd.f32 %v1348, 1e-05
    %v1350 = vrsqrt.pop %v1349
    %v1351 = vmul.f32 %v1327, %v1350
    %v1352 = vmul.f32 %v1328, %v1350
    %v1353 = vmul.f32 %v1329, %v1350
    %v1354 = vmul.f32 %v1330, %v1350
    %v1356 = vlaneseq
    %v1357 = vshrl.u32 %v1356, 7
    %v1358 = vsub.s32 0, %v1357
    %v1359 = vrot.slane %v1311, %v1358
    %v1361 = vmul.f32 %v1351, %v1359
    %v1362 = vmul.f32 %v1352, %v1359
    %v1363 = vmul.f32 %v1353, %v1359
    %v1364 = vmul.f32 %v1354, %v1359
    %v1366 = vlaneseq
    %v1367 = vshrl.u32 %v1366, 7
    %v1368 = vsub.s32 0, %v1367
    %v1369 = vrot.slane %v1312, %v1368
    %v1371 = vadd.f32 %v1361, %v1369
    %v1372 = vadd.f32 %v1362, %v1369
    %v1373 = vadd.f32 %v1363, %v1369
    %v1374 = vadd.f32 %v1364, %v1369
    %1375 = vst.msk [vmem:[%s12] sm:$0xff] %vm156, %v1371
    %1376 = vst.msk [vmem:[%s12 + $0x8] sm:$0xff] %vm156, %v1372
    %1377 = vst.msk [vmem:[%s12 + $0x10] sm:$0xff] %vm156, %v1373
    %1378 = vst.msk [vmem:[%s12 + $0x18] sm:$0xff] %vm156, %v1374
    // Predicated region
    $region78: #{_forward.4} parent=1 // pred_check
      _
    $region79: #{_forward.4} parent=1 // pred_check_branch
      %1380 = sbr.rel (0) target = $region81
    $region80: #{_forward.4} parent=1 // pred_region
      _
    $region81: #{_forward.4} parent=1 // pred_fallthru
      _
    // Predicated region
    $region82: #{_forward.4} parent=1 // pred_check
      _
    $region83: #{_forward.4} parent=1 // pred_check_branch
      %1382 = sbr.rel (0) target = $region85
    $region84: #{_forward.4} parent=1 // pred_region
      _
    $region85: #{_forward.4} parent=1 // pred_fallthru
      _
    %1383 = vsyncpa [#allocation3], 1
    %1384 = vsyncpa [#allocation5], 1
    %1385 = vsyncpa [#allocation8], 1
    %1386 = vsyncpa [#allocation11], 1

// kernel: _forward.6
$region0: #{_forward.6}
  #allocation0 [shape = 'u32[]', space=smem, size = 0x4, offset = 0x4, fixed_abs, tag = 'smem constant byte address 0x4 - core index']
  #allocation1 [shape = 'u32[144,128]{1,0:T(1,128)}', space=vmem, size = 0x12000, scoped, tag = 'internal scratch']
  %s0 = inlined_call_operand.vmem [shape: f32[12,64], index: 0, kind: input, shape index: {}]
  %s1 = inlined_call_operand.vmem [shape: f32[12,12], index: 1, kind: input, shape index: {}]
  %s2 = inlined_call_operand.vmem [shape: f32[64,192], index: 2, kind: input, shape index: {}]
  %s3 = inlined_call_operand.vmem [shape: f32[2,32,64], index: 3, kind: input, shape index: {}]
  %s4 = inlined_call_operand.vmem [shape: f32[1,64], index: 4, kind: input, shape index: {}, may-alias: {4,10}]
  %s5 = inlined_call_operand.vmem [shape: f32[1,64], index: 5, kind: input, shape index: {}, may-alias: {5,11}]
  %s6 = inlined_call_operand.vmem [shape: f32[64,64], index: 6, kind: input, shape index: {}]
  %s7 = inlined_call_operand.vmem [shape: f32[1,64], index: 7, kind: input, shape index: {}]
  %s8 = inlined_call_operand.vmem [shape: f32[64,64], index: 8, kind: input, shape index: {}]
  %s9 = inlined_call_operand.vmem [shape: f32[1,64], index: 9, kind: input, shape index: {}]
  %s10 = inlined_call_operand.vmem [shape: f32[1,64], index: 10, kind: input, shape index: {}, may-alias: {4,10}]
  %s11 = inlined_call_operand.vmem [shape: f32[1,64], index: 11, kind: input, shape index: {}, may-alias: {5,11}]
  %s12 = inlined_call_operand.vmem [shape: f32[12,64], index: 12, kind: output, shape index: {}]
  %s13 = sld [smem:[#allocation0]]
  $region58: #{_forward.6} parent=0
    _
  %s15 = ssub.s32 1, %s13
  %s16 = scalar_select 0, %s15, %s13
  // Predicated region
  $region2: #{_forward.6} parent=0 // pred_check
    _
  $region3: #{_forward.6} parent=0 // pred_check_branch
    %18 = sbr.rel (0) target = $region5
  $region4: #{_forward.6} parent=0 // pred_region
    _
  $region5: #{_forward.6} parent=0 // pred_fallthru
    _
  // Predicated region
  $region6: #{_forward.6} parent=0 // pred_check
    _
  $region7: #{_forward.6} parent=0 // pred_check_branch
    %20 = sbr.rel (0) target = $region9
  $region8: #{_forward.6} parent=0 // pred_region
    _
  $region9: #{_forward.6} parent=0 // pred_fallthru
    _
  // Predicated region
  $region10: #{_forward.6} parent=0 // pred_check
    _
  $region11: #{_forward.6} parent=0 // pred_check_branch
    %22 = sbr.rel (0) target = $region13
  $region12: #{_forward.6} parent=0 // pred_region
    _
  $region13: #{_forward.6} parent=0 // pred_fallthru
    _
  // Predicated region
  $region14: #{_forward.6} parent=0 // pred_check
    _
  $region15: #{_forward.6} parent=0 // pred_check_branch
    %24 = sbr.rel (0) target = $region17
  $region16: #{_forward.6} parent=0 // pred_region
    _
  $region17: #{_forward.6} parent=0 // pred_fallthru
    _
  // Predicated region
  $region18: #{_forward.6} parent=0 // pred_check
    _
  $region19: #{_forward.6} parent=0 // pred_check_branch
    %26 = sbr.rel (0) target = $region21
  $region20: #{_forward.6} parent=0 // pred_region
    _
  $region21: #{_forward.6} parent=0 // pred_fallthru
    _
  // Predicated region
  $region22: #{_forward.6} parent=0 // pred_check
    _
  $region23: #{_forward.6} parent=0 // pred_check_branch
    %28 = sbr.rel (0) target = $region25
  $region24: #{_forward.6} parent=0 // pred_region
    _
  $region25: #{_forward.6} parent=0 // pred_fallthru
    _
  // Predicated region
  $region26: #{_forward.6} parent=0 // pred_check
    _
  $region27: #{_forward.6} parent=0 // pred_check_branch
    %30 = sbr.rel (0) target = $region29
  $region28: #{_forward.6} parent=0 // pred_region
    _
  $region29: #{_forward.6} parent=0 // pred_fallthru
    _
  // Predicated region
  $region30: #{_forward.6} parent=0 // pred_check
    _
  $region31: #{_forward.6} parent=0 // pred_check_branch
    %32 = sbr.rel (0) target = $region33
  $region32: #{_forward.6} parent=0 // pred_region
    _
  $region33: #{_forward.6} parent=0 // pred_fallthru
    _
  // Predicated region
  $region34: #{_forward.6} parent=0 // pred_check
    _
  $region35: #{_forward.6} parent=0 // pred_check_branch
    %34 = sbr.rel (0) target = $region37
  $region36: #{_forward.6} parent=0 // pred_region
    _
  $region37: #{_forward.6} parent=0 // pred_fallthru
    _
  // Predicated region
  $region38: #{_forward.6} parent=0 // pred_check
    _
  $region39: #{_forward.6} parent=0 // pred_check_branch
    %36 = sbr.rel (0) target = $region41
  $region40: #{_forward.6} parent=0 // pred_region
    _
  $region41: #{_forward.6} parent=0 // pred_fallthru
    _
  // Predicated region
  $region42: #{_forward.6} parent=0 // pred_check
    _
  $region43: #{_forward.6} parent=0 // pred_check_branch
    %38 = sbr.rel (0) target = $region45
  $region44: #{_forward.6} parent=0 // pred_region
    _
  $region45: #{_forward.6} parent=0 // pred_fallthru
    _
  // Predicated region
  $region46: #{_forward.6} parent=0 // pred_check
    _
  $region47: #{_forward.6} parent=0 // pred_check_branch
    %40 = sbr.rel (0) target = $region49
  $region48: #{_forward.6} parent=0 // pred_region
    _
  $region49: #{_forward.6} parent=0 // pred_fallthru
    _
  %v41 = vld [vmem:[%s0] sm:$0xff]
  %v42 = vld [vmem:[%s0 + $0x8] sm:$0xf]
  %v43 = vld [vmem:[%s1] sm:$0xff]
  %v44 = vld [vmem:[%s1 + $0x8] sm:$0xf]
  %v45 = vld [vmem:[%s2] sm:$0xff]
  %v46 = vld [vmem:[%s2 + $0x8] sm:$0xff]
  %v47 = vld [vmem:[%s2 + $0x10] sm:$0xff]
  %v48 = vld [vmem:[%s2 + $0x18] sm:$0xff]
  %v49 = vld [vmem:[%s2 + $0x20] sm:$0xff]
  %v50 = vld [vmem:[%s2 + $0x28] sm:$0xff]
  %v51 = vld [vmem:[%s2 + $0x30] sm:$0xff]
  %v52 = vld [vmem:[%s2 + $0x38] sm:$0xff]
  %v53 = vld [vmem:[%s2 + $0x40] sm:$0xff]
  %v54 = vld [vmem:[%s2 + $0x48] sm:$0xff]
  %v55 = vld [vmem:[%s2 + $0x50] sm:$0xff]
  %v56 = vld [vmem:[%s2 + $0x58] sm:$0xff]
  %v57 = vld [vmem:[%s2 + $0x60] sm:$0xff]
  %v58 = vld [vmem:[%s2 + $0x68] sm:$0xff]
  %v59 = vld [vmem:[%s2 + $0x70] sm:$0xff]
  %v60 = vld [vmem:[%s2 + $0x78] sm:$0xff]
  %vm61 = vcmask 523264
  %v63 = vsel %vm61, %v41, 0
  %v66 = vsel %vm61, %v42, 0
  %68 = vmatprep.subr.mxu0 0.0
  %69 = vmatpush1.msra.mxu0 0.0
  %70 = vmatprep.subr.mxu0 0.0
  %71 = vmatpush1.msra.mxu0 0.0
  %72 = vmatprep.subr.mxu0 0.0
  %73 = vmatpush1.msra.mxu0 0.0
  %74 = vmatprep.subr.mxu0 0.0
  %75 = vmatpush1.msra.mxu0 0.0
  %76 = vmatprep.subr.mxu0 0.0
  %77 = vmatpush1.msra.mxu0 0.0
  %78 = vmatprep.subr.mxu0 0.0
  %79 = vmatpush1.msra.mxu0 0.0
  %80 = vmatprep.subr.mxu0 0.0
  %81 = vmatpush1.msra.mxu0 0.0
  %82 = vmatprep.subr.mxu0 0.0
  %83 = vmatpush1.msra.mxu0 0.0
  %84 = vmatprep.subr.mxu0 %v60
  %85 = vmatpush1.msra.mxu0 %v59
  %86 = vmatprep.subr.mxu0 %v58
  %87 = vmatpush1.msra.mxu0 %v57
  %88 = vmatprep.subr.mxu0 %v56
  %89 = vmatpush1.msra.mxu0 %v55
  %90 = vmatprep.subr.mxu0 %v54
  %91 = vmatpush1.msra.mxu0 %v53
  %92 = vmatprep.subr.mxu0 %v52
  %93 = vmatpush1.msra.mxu0 %v51
  %94 = vmatprep.subr.mxu0 %v50
  %95 = vmatpush1.msra.mxu0 %v49
  %96 = vmatprep.subr.mxu0 %v48
  %97 = vmatpush1.msra.mxu0 %v47
  %98 = vmatprep.subr.mxu0 %v46
  %99 = vmatpush1.msra.mxu0 %v45
  %100 = vmatprep.subr.mxu0 0.0
  %101 = vmatpush2.msra.mxu0 0.0
  %102 = vmatprep.subr.mxu0 0.0
  %103 = vmatpush2.msra.mxu0 0.0
  %104 = vmatprep.subr.mxu0 0.0
  %105 = vmatpush2.msra.mxu0 0.0
  %106 = vmatprep.subr.mxu0 0.0
  %107 = vmatpush2.msra.mxu0 0.0
  %108 = vmatprep.subr.mxu0 0.0
  %109 = vmatpush2.msra.mxu0 0.0
  %110 = vmatprep.subr.mxu0 0.0
  %111 = vmatpush2.msra.mxu0 0.0
  %112 = vmatprep.subr.mxu0 0.0
  %113 = vmatpush2.msra.mxu0 0.0
  %114 = vmatprep.subr.mxu0 0.0
  %115 = vmatpush2.msra.mxu0 0.0
  %116 = vmatprep.subr.mxu0 0.0
  %117 = vmatpush2.msra.mxu0 0.0
  %118 = vmatprep.subr.mxu0 0.0
  %119 = vmatpush2.msra.mxu0 0.0
  %120 = vmatprep.subr.mxu0 0.0
  %121 = vmatpush2.msra.mxu0 0.0
  %122 = vmatprep.subr.mxu0 0.0
  %123 = vmatpush2.msra.mxu0 0.0
  %124 = vmatprep.subr.mxu0 0.0
  %125 = vmatpush2.msra.mxu0 0.0
  %126 = vmatprep.subr.mxu0 0.0
  %127 = vmatpush2.msra.mxu0 0.0
  %128 = vmatprep.subr.mxu0 0.0
  %129 = vmatpush2.msra.mxu0 0.0
  %130 = vmatprep.subr.mxu0 0.0
  %131 = vmatpush2.msra.mxu0 0.0
  %132 = vmatprep.mubr.f32.mxu0 0.0
  %133 = vmatmul.mubr.f32.gmra.mxu0 %v63
  %v134 = vpop.f32.mrf.mxu0
  %v135 = vadd.f32 0.0, %v134
  %v136 = vpop.f32.mrf.mxu0
  %v137 = vadd.f32 0.0, %v136
  %138 = vmatprep.mubr.f32.mxu0 0.0
  %139 = vmatmul.mubr.f32.gmra.mxu0 %v66
  %v140 = vpop.f32.mrf.mxu0
  %v141 = vadd.f32 0.0, %v140
  %v142 = vpop.f32.mrf.mxu0
  %v143 = vadd.f32 0.0, %v142
  %144 = vdwg.mxu0
  %147 = vrot.lane.b32.xlu0 %v135, 64
  %v148 = vpop.permute.xlu0 %147
  %149 = vrot.lane.b32.xlu0 %v141, 64
  %v150 = vpop.permute.xlu0 %149
  %vm151 = vcmask 261120
  %v152 = vsel %vm151, %v135, 0
  %v154 = vsel %vm151, %v141, 0
  %v156 = vsel %vm151, %v148, 0
  %v158 = vsel %vm151, %v150, 0
  %160 = vmatprep.subr.mxu0 0.0
  %161 = vmatpush1.xpose.msra.mxu0 0.0
  %162 = vmatprep.subr.mxu0 0.0
  %163 = vmatpush1.xpose.msra.mxu0 0.0
  %164 = vmatprep.subr.mxu0 0.0
  %165 = vmatpush1.xpose.msra.mxu0 0.0
  %166 = vmatprep.subr.mxu0 0.0
  %167 = vmatpush1.xpose.msra.mxu0 0.0
  %168 = vmatprep.subr.mxu0 0.0
  %169 = vmatpush1.xpose.msra.mxu0 0.0
  %170 = vmatprep.subr.mxu0 0.0
  %171 = vmatpush1.xpose.msra.mxu0 0.0
  %172 = vmatprep.subr.mxu0 0.0
  %173 = vmatpush1.xpose.msra.mxu0 0.0
  %174 = vmatprep.subr.mxu0 0.0
  %175 = vmatpush1.xpose.msra.mxu0 0.0
  %176 = vmatprep.subr.mxu0 0.0
  %177 = vmatpush1.xpose.msra.mxu0 0.0
  %178 = vmatprep.subr.mxu0 0.0
  %179 = vmatpush1.xpose.msra.mxu0 0.0
  %180 = vmatprep.subr.mxu0 0.0
  %181 = vmatpush1.xpose.msra.mxu0 0.0
  %182 = vmatprep.subr.mxu0 0.0
  %183 = vmatpush1.xpose.msra.mxu0 0.0
  %184 = vmatprep.subr.mxu0 0.0
  %185 = vmatpush1.xpose.msra.mxu0 0.0
  %186 = vmatprep.subr.mxu0 0.0
  %187 = vmatpush1.xpose.msra.mxu0 0.0
  %188 = vmatprep.subr.mxu0 0.0
  %189 = vmatpush1.xpose.msra.mxu0 %v158
  %190 = vmatprep.subr.mxu0 0.0
  %191 = vmatpush1.xpose.msra.mxu0 %v156
  %192 = vmatprep.subr.mxu0 0.0
  %193 = vmatpush2.xpose.msra.mxu0 0.0
  %194 = vmatprep.subr.mxu0 0.0
  %195 = vmatpush2.xpose.msra.mxu0 0.0
  %196 = vmatprep.subr.mxu0 0.0
  %197 = vmatpush2.xpose.msra.mxu0 0.0
  %198 = vmatprep.subr.mxu0 0.0
  %199 = vmatpush2.xpose.msra.mxu0 0.0
  %200 = vmatprep.subr.mxu0 0.0
  %201 = vmatpush2.xpose.msra.mxu0 0.0
  %202 = vmatprep.subr.mxu0 0.0
  %203 = vmatpush2.xpose.msra.mxu0 0.0
  %204 = vmatprep.subr.mxu0 0.0
  %205 = vmatpush2.xpose.msra.mxu0 0.0
  %206 = vmatprep.subr.mxu0 0.0
  %207 = vmatpush2.xpose.msra.mxu0 0.0
  %208 = vmatprep.subr.mxu0 0.0
  %209 = vmatpush2.xpose.msra.mxu0 0.0
  %210 = vmatprep.subr.mxu0 0.0
  %211 = vmatpush2.xpose.msra.mxu0 0.0
  %212 = vmatprep.subr.mxu0 0.0
  %213 = vmatpush2.xpose.msra.mxu0 0.0
  %214 = vmatprep.subr.mxu0 0.0
  %215 = vmatpush2.xpose.msra.mxu0 0.0
  %216 = vmatprep.subr.mxu0 0.0
  %217 = vmatpush2.xpose.msra.mxu0 0.0
  %218 = vmatprep.subr.mxu0 0.0
  %219 = vmatpush2.xpose.msra.mxu0 0.0
  %220 = vmatprep.subr.mxu0 0.0
  %221 = vmatpush2.xpose.msra.mxu0 0.0
  %222 = vmatprep.subr.mxu0 0.0
  %223 = vmatpush2.xpose.msra.mxu0 0.0
  %224 = vmatprep.mubr.f32.mxu0 0.0
  %225 = vmatmul.mubr.f32.gmra.mxu0 %v152
  %v226 = vpop.f32.mrf.mxu0
  %v227 = vadd.f32 0.0, %v226
  %v228 = vpop.f32.mrf.mxu0
  %229 = vmatprep.mubr.f32.mxu0 0.0
  %230 = vmatmul.mubr.f32.gmra.mxu0 %v154
  %v231 = vpop.f32.mrf.mxu0
  %v232 = vadd.f32 0.0, %v231
  %v233 = vpop.f32.mrf.mxu0
  %234 = vdwg.mxu0
  %v235 = vmul.f32 %v227, 0.17677669
  %v236 = vmul.f32 %v232, 0.17677669
  %v237 = vadd.f32 %v235, %v43
  %v238 = vadd.f32 %v236, %v44
  %vm239 = vcmask 97280
  %v240 = vsel %vm239, %v237, -inf
  %241 = vmax.xlane.f32.xlu0 %v240
  %v242 = vpop.xlane.xlu0 %241
  %vm243 = vcmask 93184
  %v244 = vsel %vm243, %v238, -inf
  %245 = vmax.xlane.f32.xlu0 %v244
  %v246 = vpop.xlane.xlu0 %245
  %v247 = vsub.f32 %v237, %v242
  %v248 = vsub.f32 %v238, %v246
  %v249 = vmul.f32 %v247, 1.442695
  %v250 = vpow.pop %v249
  %v251 = vmul.f32 %v248, 1.442695
  %v252 = vpow.pop %v251
  %v253 = vsel %vm239, %v250, 0.0
  %254 = vadd.xlane.f32.xlu0 %v253
  %v255 = vpop.xlane.xlu0 %254
  %v256 = vsel %vm243, %v252, 0.0
  %257 = vadd.xlane.f32.xlu0 %v256
  %v258 = vpop.xlane.xlu0 %257
  %v259 = vrcp.pop %v255
  %v260 = vrcp.pop %v258
  %v261 = vmul.f32 %v250, %v259
  %v262 = vmul.f32 %v252, %v260
  %v264 = vsel %vm239, %v261, 0
  %v267 = vsel %vm239, %v262, 0
  %vm269 = vcmask 1043456
  %v271 = vsel %vm269, %v143, 0
  %273 = vmatprep.subr.mxu0 0.0
  %274 = vmatpush1.msra.mxu0 0.0
  %275 = vmatprep.subr.mxu0 0.0
  %276 = vmatpush1.msra.mxu0 0.0
  %277 = vmatprep.subr.mxu0 0.0
  %278 = vmatpush1.msra.mxu0 0.0
  %279 = vmatprep.subr.mxu0 0.0
  %280 = vmatpush1.msra.mxu0 0.0
  %281 = vmatprep.subr.mxu0 0.0
  %282 = vmatpush1.msra.mxu0 0.0
  %283 = vmatprep.subr.mxu0 0.0
  %284 = vmatpush1.msra.mxu0 0.0
  %285 = vmatprep.subr.mxu0 0.0
  %286 = vmatpush1.msra.mxu0 0.0
  %287 = vmatprep.subr.mxu0 0.0
  %288 = vmatpush1.msra.mxu0 0.0
  %289 = vmatprep.subr.mxu0 0.0
  %290 = vmatpush1.msra.mxu0 0.0
  %291 = vmatprep.subr.mxu0 0.0
  %292 = vmatpush1.msra.mxu0 0.0
  %293 = vmatprep.subr.mxu0 0.0
  %294 = vmatpush1.msra.mxu0 0.0
  %295 = vmatprep.subr.mxu0 0.0
  %296 = vmatpush1.msra.mxu0 0.0
  %297 = vmatprep.subr.mxu0 0.0
  %298 = vmatpush1.msra.mxu0 0.0
  %299 = vmatprep.subr.mxu0 0.0
  %300 = vmatpush1.msra.mxu0 0.0
  %301 = vmatprep.subr.mxu0 0.0
  %302 = vmatpush1.msra.mxu0 %v271
  %303 = vmatprep.subr.mxu0 0.0
  %304 = vmatpush1.msra.mxu0 %v137
  %305 = vmatprep.subr.mxu0 0.0
  %306 = vmatpush2.msra.mxu0 0.0
  %307 = vmatprep.subr.mxu0 0.0
  %308 = vmatpush2.msra.mxu0 0.0
  %309 = vmatprep.subr.mxu0 0.0
  %310 = vmatpush2.msra.mxu0 0.0
  %311 = vmatprep.subr.mxu0 0.0
  %312 = vmatpush2.msra.mxu0 0.0
  %313 = vmatprep.subr.mxu0 0.0
  %314 = vmatpush2.msra.mxu0 0.0
  %315 = vmatprep.subr.mxu0 0.0
  %316 = vmatpush2.msra.mxu0 0.0
  %317 = vmatprep.subr.mxu0 0.0
  %318 = vmatpush2.msra.mxu0 0.0
  %319 = vmatprep.subr.mxu0 0.0
  %320 = vmatpush2.msra.mxu0 0.0
  %321 = vmatprep.subr.mxu0 0.0
  %322 = vmatpush2.msra.mxu0 0.0
  %323 = vmatprep.subr.mxu0 0.0
  %324 = vmatpush2.msra.mxu0 0.0
  %325 = vmatprep.subr.mxu0 0.0
  %326 = vmatpush2.msra.mxu0 0.0
  %327 = vmatprep.subr.mxu0 0.0
  %328 = vmatpush2.msra.mxu0 0.0
  %329 = vmatprep.subr.mxu0 0.0
  %330 = vmatpush2.msra.mxu0 0.0
  %331 = vmatprep.subr.mxu0 0.0
  %332 = vmatpush2.msra.mxu0 0.0
  %333 = vmatprep.subr.mxu0 0.0
  %334 = vmatpush2.msra.mxu0 0.0
  %335 = vmatprep.subr.mxu0 0.0
  %336 = vmatpush2.msra.mxu0 0.0
  %337 = vmatprep.mubr.f32.mxu0 0.0
  %338 = vmatmul.mubr.f32.gmra.mxu0 %v264
  %v339 = vpop.f32.mrf.mxu0
  %v340 = vadd.f32 0.0, %v339
  %v341 = vpop.f32.mrf.mxu0
  %342 = vmatprep.mubr.f32.mxu0 0.0
  %343 = vmatmul.mubr.f32.gmra.mxu0 %v267
  %v344 = vpop.f32.mrf.mxu0
  %v345 = vadd.f32 0.0, %v344
  %v346 = vpop.f32.mrf.mxu0
  %347 = vdwg.mxu0
  %v348 = vld [vmem:[%s3] sm:$0xff]
  %v349 = vld [vmem:[%s3 + $0x8] sm:$0xff]
  %v350 = vld [vmem:[%s3 + $0x10] sm:$0xff]
  %v351 = vld [vmem:[%s3 + $0x18] sm:$0xff]
  %352 = vrot.lane.b32.xlu0 %v135, 96
  %v353 = vpop.permute.xlu0 %352
  %354 = vrot.lane.b32.xlu0 %v141, 96
  %v355 = vpop.permute.xlu0 %354
  %356 = vrot.lane.b32.xlu0 %v135, 32
  %v357 = vpop.permute.xlu0 %356
  %358 = vrot.lane.b32.xlu0 %v141, 32
  %v359 = vpop.permute.xlu0 %358
  %v360 = vsel %vm151, %v353, 0
  %v362 = vsel %vm151, %v355, 0
  %v364 = vsel %vm151, %v357, 0
  %v366 = vsel %vm151, %v359, 0
  %368 = vmatprep.subr.mxu0 0.0
  %369 = vmatpush1.xpose.msra.mxu0 0.0
  %370 = vmatprep.subr.mxu0 0.0
  %371 = vmatpush1.xpose.msra.mxu0 0.0
  %372 = vmatprep.subr.mxu0 0.0
  %373 = vmatpush1.xpose.msra.mxu0 0.0
  %374 = vmatprep.subr.mxu0 0.0
  %375 = vmatpush1.xpose.msra.mxu0 0.0
  %376 = vmatprep.subr.mxu0 0.0
  %377 = vmatpush1.xpose.msra.mxu0 0.0
  %378 = vmatprep.subr.mxu0 0.0
  %379 = vmatpush1.xpose.msra.mxu0 0.0
  %380 = vmatprep.subr.mxu0 0.0
  %381 = vmatpush1.xpose.msra.mxu0 0.0
  %382 = vmatprep.subr.mxu0 0.0
  %383 = vmatpush1.xpose.msra.mxu0 0.0
  %384 = vmatprep.subr.mxu0 0.0
  %385 = vmatpush1.xpose.msra.mxu0 0.0
  %386 = vmatprep.subr.mxu0 0.0
  %387 = vmatpush1.xpose.msra.mxu0 0.0
  %388 = vmatprep.subr.mxu0 0.0
  %389 = vmatpush1.xpose.msra.mxu0 0.0
  %390 = vmatprep.subr.mxu0 0.0
  %391 = vmatpush1.xpose.msra.mxu0 0.0
  %392 = vmatprep.subr.mxu0 0.0
  %393 = vmatpush1.xpose.msra.mxu0 0.0
  %394 = vmatprep.subr.mxu0 0.0
  %395 = vmatpush1.xpose.msra.mxu0 0.0
  %396 = vmatprep.subr.mxu0 0.0
  %397 = vmatpush1.xpose.msra.mxu0 %v366
  %398 = vmatprep.subr.mxu0 0.0
  %399 = vmatpush1.xpose.msra.mxu0 %v364
  %400 = vmatprep.subr.mxu0 0.0
  %401 = vmatpush2.xpose.msra.mxu0 0.0
  %402 = vmatprep.subr.mxu0 0.0
  %403 = vmatpush2.xpose.msra.mxu0 0.0
  %404 = vmatprep.subr.mxu0 0.0
  %405 = vmatpush2.xpose.msra.mxu0 0.0
  %406 = vmatprep.subr.mxu0 0.0
  %407 = vmatpush2.xpose.msra.mxu0 0.0
  %408 = vmatprep.subr.mxu0 0.0
  %409 = vmatpush2.xpose.msra.mxu0 0.0
  %410 = vmatprep.subr.mxu0 0.0
  %411 = vmatpush2.xpose.msra.mxu0 0.0
  %412 = vmatprep.subr.mxu0 0.0
  %413 = vmatpush2.xpose.msra.mxu0 0.0
  %414 = vmatprep.subr.mxu0 0.0
  %415 = vmatpush2.xpose.msra.mxu0 0.0
  %416 = vmatprep.subr.mxu0 0.0
  %417 = vmatpush2.xpose.msra.mxu0 0.0
  %418 = vmatprep.subr.mxu0 0.0
  %419 = vmatpush2.xpose.msra.mxu0 0.0
  %420 = vmatprep.subr.mxu0 0.0
  %421 = vmatpush2.xpose.msra.mxu0 0.0
  %422 = vmatprep.subr.mxu0 0.0
  %423 = vmatpush2.xpose.msra.mxu0 0.0
  %424 = vmatprep.subr.mxu0 0.0
  %425 = vmatpush2.xpose.msra.mxu0 0.0
  %426 = vmatprep.subr.mxu0 0.0
  %427 = vmatpush2.xpose.msra.mxu0 0.0
  %428 = vmatprep.subr.mxu0 0.0
  %429 = vmatpush2.xpose.msra.mxu0 0.0
  %430 = vmatprep.subr.mxu0 0.0
  %431 = vmatpush2.xpose.msra.mxu0 0.0
  %432 = vmatprep.mubr.f32.mxu0 0.0
  %433 = vmatmul.mubr.f32.gmra.mxu0 %v360
  %v434 = vpop.f32.mrf.mxu0
  %v435 = vadd.f32 0.0, %v434
  %v436 = vpop.f32.mrf.mxu0
  %437 = vmatprep.mubr.f32.mxu0 0.0
  %438 = vmatmul.mubr.f32.gmra.mxu0 %v362
  %v439 = vpop.f32.mrf.mxu0
  %v440 = vadd.f32 0.0, %v439
  %v441 = vpop.f32.mrf.mxu0
  %442 = vdwg.mxu0
  %v443 = vmul.f32 %v435, 0.17677669
  %v444 = vmul.f32 %v440, 0.17677669
  %v445 = vadd.f32 %v443, %v43
  %v446 = vadd.f32 %v444, %v44
  %v447 = vsel %vm239, %v445, -inf
  %448 = vmax.xlane.f32.xlu0 %v447
  %v449 = vpop.xlane.xlu0 %448
  %v450 = vsel %vm243, %v446, -inf
  %451 = vmax.xlane.f32.xlu0 %v450
  %v452 = vpop.xlane.xlu0 %451
  %v453 = vsub.f32 %v445, %v449
  %v454 = vsub.f32 %v446, %v452
  %v455 = vmul.f32 %v453, 1.442695
  %v456 = vpow.pop %v455
  %v457 = vmul.f32 %v454, 1.442695
  %v458 = vpow.pop %v457
  %v459 = vsel %vm239, %v456, 0.0
  %460 = vadd.xlane.f32.xlu0 %v459
  %v461 = vpop.xlane.xlu0 %460
  %v462 = vsel %vm243, %v458, 0.0
  %463 = vadd.xlane.f32.xlu0 %v462
  %v464 = vpop.xlane.xlu0 %463
  %v465 = vrcp.pop %v461
  %v466 = vrcp.pop %v464
  %v467 = vmul.f32 %v456, %v465
  %v468 = vmul.f32 %v458, %v466
  %470 = vrot.lane.b32.xlu0 %v137, 96
  %v471 = vpop.permute.xlu0 %470
  %472 = vrot.lane.b32.xlu0 %v143, 96
  %v473 = vpop.permute.xlu0 %472
  %v476 = vsel %vm239, %v467, 0
  %v479 = vsel %vm239, %v468, 0
  %v481 = vsel %vm269, %v473, 0
  %483 = vmatprep.subr.mxu0 0.0
  %484 = vmatpush1.msra.mxu0 0.0
  %485 = vmatprep.subr.mxu0 0.0
  %486 = vmatpush1.msra.mxu0 0.0
  %487 = vmatprep.subr.mxu0 0.0
  %488 = vmatpush1.msra.mxu0 0.0
  %489 = vmatprep.subr.mxu0 0.0
  %490 = vmatpush1.msra.mxu0 0.0
  %491 = vmatprep.subr.mxu0 0.0
  %492 = vmatpush1.msra.mxu0 0.0
  %493 = vmatprep.subr.mxu0 0.0
  %494 = vmatpush1.msra.mxu0 0.0
  %495 = vmatprep.subr.mxu0 0.0
  %496 = vmatpush1.msra.mxu0 0.0
  %497 = vmatprep.subr.mxu0 0.0
  %498 = vmatpush1.msra.mxu0 0.0
  %499 = vmatprep.subr.mxu0 0.0
  %500 = vmatpush1.msra.mxu0 0.0
  %501 = vmatprep.subr.mxu0 0.0
  %502 = vmatpush1.msra.mxu0 0.0
  %503 = vmatprep.subr.mxu0 0.0
  %504 = vmatpush1.msra.mxu0 0.0
  %505 = vmatprep.subr.mxu0 0.0
  %506 = vmatpush1.msra.mxu0 0.0
  %507 = vmatprep.subr.mxu0 0.0
  %508 = vmatpush1.msra.mxu0 0.0
  %509 = vmatprep.subr.mxu0 0.0
  %510 = vmatpush1.msra.mxu0 0.0
  %511 = vmatprep.subr.mxu0 0.0
  %512 = vmatpush1.msra.mxu0 %v481
  %513 = vmatprep.subr.mxu0 0.0
  %514 = vmatpush1.msra.mxu0 %v471
  %515 = vmatprep.subr.mxu0 0.0
  %516 = vmatpush2.msra.mxu0 0.0
  %517 = vmatprep.subr.mxu0 0.0
  %518 = vmatpush2.msra.mxu0 0.0
  %519 = vmatprep.subr.mxu0 0.0
  %520 = vmatpush2.msra.mxu0 0.0
  %521 = vmatprep.subr.mxu0 0.0
  %522 = vmatpush2.msra.mxu0 0.0
  %523 = vmatprep.subr.mxu0 0.0
  %524 = vmatpush2.msra.mxu0 0.0
  %525 = vmatprep.subr.mxu0 0.0
  %526 = vmatpush2.msra.mxu0 0.0
  %527 = vmatprep.subr.mxu0 0.0
  %528 = vmatpush2.msra.mxu0 0.0
  %529 = vmatprep.subr.mxu0 0.0
  %530 = vmatpush2.msra.mxu0 0.0
  %531 = vmatprep.subr.mxu0 0.0
  %532 = vmatpush2.msra.mxu0 0.0
  %533 = vmatprep.subr.mxu0 0.0
  %534 = vmatpush2.msra.mxu0 0.0
  %535 = vmatprep.subr.mxu0 0.0
  %536 = vmatpush2.msra.mxu0 0.0
  %537 = vmatprep.subr.mxu0 0.0
  %538 = vmatpush2.msra.mxu0 0.0
  %539 = vmatprep.subr.mxu0 0.0
  %540 = vmatpush2.msra.mxu0 0.0
  %541 = vmatprep.subr.mxu0 0.0
  %542 = vmatpush2.msra.mxu0 0.0
  %543 = vmatprep.subr.mxu0 0.0
  %544 = vmatpush2.msra.mxu0 0.0
  %545 = vmatprep.subr.mxu0 0.0
  %546 = vmatpush2.msra.mxu0 0.0
  %547 = vmatprep.mubr.f32.mxu0 0.0
  %548 = vmatmul.mubr.f32.gmra.mxu0 %v476
  %v549 = vpop.f32.mrf.mxu0
  %v550 = vadd.f32 0.0, %v549
  %v551 = vpop.f32.mrf.mxu0
  %552 = vmatprep.mubr.f32.mxu0 0.0
  %553 = vmatmul.mubr.f32.gmra.mxu0 %v479
  %v554 = vpop.f32.mrf.mxu0
  %v555 = vadd.f32 0.0, %v554
  %v556 = vpop.f32.mrf.mxu0
  %557 = vdwg.mxu0
  %s558 = scalar_lea.vmem %s3, 32
  %v559 = vld [vmem:[%s558] sm:$0xff]
  %v560 = vld [vmem:[%s558 + $0x8] sm:$0xff]
  %v561 = vld [vmem:[%s558 + $0x10] sm:$0xff]
  %v562 = vld [vmem:[%s558 + $0x18] sm:$0xff]
  %v564 = vsel %vm151, %v550, 0
  %v567 = vsel %vm151, %v555, 0
  %569 = vmatprep.subr.mxu0 0.0
  %570 = vmatpush1.msra.mxu0 0.0
  %571 = vmatprep.subr.mxu0 0.0
  %572 = vmatpush1.msra.mxu0 0.0
  %573 = vmatprep.subr.mxu0 0.0
  %574 = vmatpush1.msra.mxu0 0.0
  %575 = vmatprep.subr.mxu0 0.0
  %576 = vmatpush1.msra.mxu0 0.0
  %577 = vmatprep.subr.mxu0 0.0
  %578 = vmatpush1.msra.mxu0 0.0
  %579 = vmatprep.subr.mxu0 0.0
  %580 = vmatpush1.msra.mxu0 0.0
  %581 = vmatprep.subr.mxu0 0.0
  %582 = vmatpush1.msra.mxu0 0.0
  %583 = vmatprep.subr.mxu0 0.0
  %584 = vmatpush1.msra.mxu0 0.0
  %585 = vmatprep.subr.mxu0 0.0
  %586 = vmatpush1.msra.mxu0 0.0
  %587 = vmatprep.subr.mxu0 0.0
  %588 = vmatpush1.msra.mxu0 0.0
  %589 = vmatprep.subr.mxu0 0.0
  %590 = vmatpush1.msra.mxu0 0.0
  %591 = vmatprep.subr.mxu0 0.0
  %592 = vmatpush1.msra.mxu0 0.0
  %593 = vmatprep.subr.mxu0 0.0
  %594 = vmatpush1.msra.mxu0 %v562
  %595 = vmatprep.subr.mxu0 0.0
  %596 = vmatpush1.msra.mxu0 %v561
  %597 = vmatprep.subr.mxu0 0.0
  %598 = vmatpush1.msra.mxu0 %v560
  %599 = vmatprep.subr.mxu0 0.0
  %600 = vmatpush1.msra.mxu0 %v559
  %601 = vmatprep.subr.mxu0 0.0
  %602 = vmatpush2.msra.mxu0 0.0
  %603 = vmatprep.subr.mxu0 0.0
  %604 = vmatpush2.msra.mxu0 0.0
  %605 = vmatprep.subr.mxu0 0.0
  %606 = vmatpush2.msra.mxu0 0.0
  %607 = vmatprep.subr.mxu0 0.0
  %608 = vmatpush2.msra.mxu0 0.0
  %609 = vmatprep.subr.mxu0 0.0
  %610 = vmatpush2.msra.mxu0 0.0
  %611 = vmatprep.subr.mxu0 0.0
  %612 = vmatpush2.msra.mxu0 0.0
  %613 = vmatprep.subr.mxu0 0.0
  %614 = vmatpush2.msra.mxu0 0.0
  %615 = vmatprep.subr.mxu0 0.0
  %616 = vmatpush2.msra.mxu0 0.0
  %617 = vmatprep.subr.mxu0 0.0
  %618 = vmatpush2.msra.mxu0 0.0
  %619 = vmatprep.subr.mxu0 0.0
  %620 = vmatpush2.msra.mxu0 0.0
  %621 = vmatprep.subr.mxu0 0.0
  %622 = vmatpush2.msra.mxu0 0.0
  %623 = vmatprep.subr.mxu0 0.0
  %624 = vmatpush2.msra.mxu0 0.0
  %625 = vmatprep.subr.mxu0 0.0
  %626 = vmatpush2.msra.mxu0 0.0
  %627 = vmatprep.subr.mxu0 0.0
  %628 = vmatpush2.msra.mxu0 0.0
  %629 = vmatprep.subr.mxu0 0.0
  %630 = vmatpush2.msra.mxu0 0.0
  %631 = vmatprep.subr.mxu0 0.0
  %632 = vmatpush2.msra.mxu0 0.0
  %633 = vmatprep.mubr.f32.mxu0 0.0
  %634 = vmatmul.mubr.f32.gmra.mxu0 %v564
  %v635 = vpop.f32.mrf.mxu0
  %v636 = vadd.f32 0.0, %v635
  %v637 = vpop.f32.mrf.mxu0
  %638 = vmatprep.mubr.f32.mxu0 0.0
  %639 = vmatmul.mubr.f32.gmra.mxu0 %v567
  %v640 = vpop.f32.mrf.mxu0
  %v641 = vadd.f32 0.0, %v640
  %v642 = vpop.f32.mrf.mxu0
  %643 = vdwg.mxu0
  %v645 = vsel %vm151, %v340, 0
  %v648 = vsel %vm151, %v345, 0
  %650 = vmatprep.subr.mxu0 0.0
  %651 = vmatpush1.msra.mxu0 0.0
  %652 = vmatprep.subr.mxu0 0.0
  %653 = vmatpush1.msra.mxu0 0.0
  %654 = vmatprep.subr.mxu0 0.0
  %655 = vmatpush1.msra.mxu0 0.0
  %656 = vmatprep.subr.mxu0 0.0
  %657 = vmatpush1.msra.mxu0 0.0
  %658 = vmatprep.subr.mxu0 0.0
  %659 = vmatpush1.msra.mxu0 0.0
  %660 = vmatprep.subr.mxu0 0.0
  %661 = vmatpush1.msra.mxu0 0.0
  %662 = vmatprep.subr.mxu0 0.0
  %663 = vmatpush1.msra.mxu0 0.0
  %664 = vmatprep.subr.mxu0 0.0
  %665 = vmatpush1.msra.mxu0 0.0
  %666 = vmatprep.subr.mxu0 0.0
  %667 = vmatpush1.msra.mxu0 0.0
  %668 = vmatprep.subr.mxu0 0.0
  %669 = vmatpush1.msra.mxu0 0.0
  %670 = vmatprep.subr.mxu0 0.0
  %671 = vmatpush1.msra.mxu0 0.0
  %672 = vmatprep.subr.mxu0 0.0
  %673 = vmatpush1.msra.mxu0 0.0
  %674 = vmatprep.subr.mxu0 0.0
  %675 = vmatpush1.msra.mxu0 %v351
  %676 = vmatprep.subr.mxu0 0.0
  %677 = vmatpush1.msra.mxu0 %v350
  %678 = vmatprep.subr.mxu0 0.0
  %679 = vmatpush1.msra.mxu0 %v349
  %680 = vmatprep.subr.mxu0 0.0
  %681 = vmatpush1.msra.mxu0 %v348
  %682 = vmatprep.subr.mxu0 0.0
  %683 = vmatpush2.msra.mxu0 0.0
  %684 = vmatprep.subr.mxu0 0.0
  %685 = vmatpush2.msra.mxu0 0.0
  %686 = vmatprep.subr.mxu0 0.0
  %687 = vmatpush2.msra.mxu0 0.0
  %688 = vmatprep.subr.mxu0 0.0
  %689 = vmatpush2.msra.mxu0 0.0
  %690 = vmatprep.subr.mxu0 0.0
  %691 = vmatpush2.msra.mxu0 0.0
  %692 = vmatprep.subr.mxu0 0.0
  %693 = vmatpush2.msra.mxu0 0.0
  %694 = vmatprep.subr.mxu0 0.0
  %695 = vmatpush2.msra.mxu0 0.0
  %696 = vmatprep.subr.mxu0 0.0
  %697 = vmatpush2.msra.mxu0 0.0
  %698 = vmatprep.subr.mxu0 0.0
  %699 = vmatpush2.msra.mxu0 0.0
  %700 = vmatprep.subr.mxu0 0.0
  %701 = vmatpush2.msra.mxu0 0.0
  %702 = vmatprep.subr.mxu0 0.0
  %703 = vmatpush2.msra.mxu0 0.0
  %704 = vmatprep.subr.mxu0 0.0
  %705 = vmatpush2.msra.mxu0 0.0
  %706 = vmatprep.subr.mxu0 0.0
  %707 = vmatpush2.msra.mxu0 0.0
  %708 = vmatprep.subr.mxu0 0.0
  %709 = vmatpush2.msra.mxu0 0.0
  %710 = vmatprep.subr.mxu0 0.0
  %711 = vmatpush2.msra.mxu0 0.0
  %712 = vmatprep.subr.mxu0 0.0
  %713 = vmatpush2.msra.mxu0 0.0
  %714 = vmatprep.mubr.f32.mxu0 0.0
  %715 = vmatmul.mubr.f32.gmra.mxu0 %v645
  %v716 = vpop.f32.mrf.mxu0
  %v717 = vadd.f32 %v636, %v716
  %v718 = vpop.f32.mrf.mxu0
  %719 = vmatprep.mubr.f32.mxu0 0.0
  %720 = vmatmul.mubr.f32.gmra.mxu0 %v648
  %v721 = vpop.f32.mrf.mxu0
  %v722 = vadd.f32 %v641, %v721
  %v723 = vpop.f32.mrf.mxu0
  %724 = vdwg.mxu0
  %v725 = vld [vmem:[%s4] sm:$0x1]
  %v726 = vld [vmem:[%s5] sm:$0x1]
  %v727 = vsel %vm61, %v717, 0.0
  %vm728 = vcmask 519168
  %v729 = vsel %vm728, %v722, 0.0
  %v730 = vadd.f32 %v727, %v729
  %v731 = vrot.slane %v730, 4
  %v732 = vadd.f32 %v730, %v731
  %v733 = vrot.slane %v732, 2
  %v734 = vadd.f32 %v732, %v733
  %v735 = vrot.slane %v734, 1
  %v736 = vadd.f32 %v734, %v735
  %v737 = vrcp.pop 12.0
  %v738 = vmul.f32 %v736, %v737
  %v739 = vsub.f32 %v717, %v738
  %v740 = vsub.f32 %v722, %v738
  %v741 = vmul.f32 %v739, %v739
  %v742 = vmul.f32 %v740, %v740
  %v743 = vsel %vm61, %v741, 0.0
  %v744 = vsel %vm728, %v742, 0.0
  %v745 = vadd.f32 %v743, %v744
  %v746 = vrot.slane %v745, 4
  %v747 = vadd.f32 %v745, %v746
  %v748 = vrot.slane %v747, 2
  %v749 = vadd.f32 %v747, %v748
  %v750 = vrot.slane %v749, 1
  %v751 = vadd.f32 %v749, %v750
  %v752 = vmul.f32 %v751, %v737
  %v753 = vadd.f32 %v752, 1e-05
  %v754 = vrsqrt.pop %v753
  %v755 = vmul.f32 %v739, %v754
  %v756 = vmul.f32 %v740, %v754
  %v758 = vlaneseq
  %v759 = vshrl.u32 %v758, 7
  %v760 = vsub.s32 0, %v759
  %v761 = vrot.slane %v725, %v760
  %v763 = vmul.f32 %v755, %v761
  %v764 = vmul.f32 %v756, %v761
  %v766 = vlaneseq
  %v767 = vshrl.u32 %v766, 7
  %v768 = vsub.s32 0, %v767
  %v769 = vrot.slane %v726, %v768
  %v771 = vadd.f32 %v763, %v769
  %v772 = vadd.f32 %v764, %v769
  %v773 = vadd.f32 %v41, %v771
  %v774 = vadd.f32 %v42, %v772
  %v775 = vld [vmem:[%s6] sm:$0xff]
  %v776 = vld [vmem:[%s6 + $0x8] sm:$0xff]
  %v777 = vld [vmem:[%s6 + $0x10] sm:$0xff]
  %v778 = vld [vmem:[%s6 + $0x18] sm:$0xff]
  %v779 = vld [vmem:[%s6 + $0x20] sm:$0xff]
  %v780 = vld [vmem:[%s6 + $0x28] sm:$0xff]
  %v781 = vld [vmem:[%s6 + $0x30] sm:$0xff]
  %v782 = vld [vmem:[%s6 + $0x38] sm:$0xff]
  %v783 = vld [vmem:[%s7] sm:$0x1]
  %v785 = vlaneseq
  %v786 = vshrl.u32 %v785, 7
  %v787 = vsub.s32 0, %v786
  %v788 = vrot.slane %v783, %v787
  %v791 = vsel %vm61, %v773, 0
  %v794 = vsel %vm61, %v774, 0
  %796 = vmatprep.subr.mxu0 0.0
  %797 = vmatpush1.msra.mxu0 0.0
  %798 = vmatprep.subr.mxu0 0.0
  %799 = vmatpush1.msra.mxu0 0.0
  %800 = vmatprep.subr.mxu0 0.0
  %801 = vmatpush1.msra.mxu0 0.0
  %802 = vmatprep.subr.mxu0 0.0
  %803 = vmatpush1.msra.mxu0 0.0
  %804 = vmatprep.subr.mxu0 0.0
  %805 = vmatpush1.msra.mxu0 0.0
  %806 = vmatprep.subr.mxu0 0.0
  %807 = vmatpush1.msra.mxu0 0.0
  %808 = vmatprep.subr.mxu0 0.0
  %809 = vmatpush1.msra.mxu0 0.0
  %810 = vmatprep.subr.mxu0 0.0
  %811 = vmatpush1.msra.mxu0 0.0
  %812 = vmatprep.subr.mxu0 0.0
  %813 = vmatpush1.msra.mxu0 %v782
  %814 = vmatprep.subr.mxu0 0.0
  %815 = vmatpush1.msra.mxu0 %v781
  %816 = vmatprep.subr.mxu0 0.0
  %817 = vmatpush1.msra.mxu0 %v780
  %818 = vmatprep.subr.mxu0 0.0
  %819 = vmatpush1.msra.mxu0 %v779
  %820 = vmatprep.subr.mxu0 0.0
  %821 = vmatpush1.msra.mxu0 %v778
  %822 = vmatprep.subr.mxu0 0.0
  %823 = vmatpush1.msra.mxu0 %v777
  %824 = vmatprep.subr.mxu0 0.0
  %825 = vmatpush1.msra.mxu0 %v776
  %826 = vmatprep.subr.mxu0 0.0
  %827 = vmatpush1.msra.mxu0 %v775
  %828 = vmatprep.subr.mxu0 0.0
  %829 = vmatpush2.msra.mxu0 0.0
  %830 = vmatprep.subr.mxu0 0.0
  %831 = vmatpush2.msra.mxu0 0.0
  %832 = vmatprep.subr.mxu0 0.0
  %833 = vmatpush2.msra.mxu0 0.0
  %834 = vmatprep.subr.mxu0 0.0
  %835 = vmatpush2.msra.mxu0 0.0
  %836 = vmatprep.subr.mxu0 0.0
  %837 = vmatpush2.msra.mxu0 0.0
  %838 = vmatprep.subr.mxu0 0.0
  %839 = vmatpush2.msra.mxu0 0.0
  %840 = vmatprep.subr.mxu0 0.0
  %841 = vmatpush2.msra.mxu0 0.0
  %842 = vmatprep.subr.mxu0 0.0
  %843 = vmatpush2.msra.mxu0 0.0
  %844 = vmatprep.subr.mxu0 0.0
  %845 = vmatpush2.msra.mxu0 0.0
  %846 = vmatprep.subr.mxu0 0.0
  %847 = vmatpush2.msra.mxu0 0.0
  %848 = vmatprep.subr.mxu0 0.0
  %849 = vmatpush2.msra.mxu0 0.0
  %850 = vmatprep.subr.mxu0 0.0
  %851 = vmatpush2.msra.mxu0 0.0
  %852 = vmatprep.subr.mxu0 0.0
  %853 = vmatpush2.msra.mxu0 0.0
  %854 = vmatprep.subr.mxu0 0.0
  %855 = vmatpush2.msra.mxu0 0.0
  %856 = vmatprep.subr.mxu0 0.0
  %857 = vmatpush2.msra.mxu0 0.0
  %858 = vmatprep.subr.mxu0 0.0
  %859 = vmatpush2.msra.mxu0 0.0
  %860 = vmatprep.mubr.f32.mxu0 0.0
  %861 = vmatmul.mubr.f32.gmra.mxu0 %v791
  %v862 = vpop.f32.mrf.mxu0
  %v863 = vadd.f32 %v788, %v862
  %v864 = vpop.f32.mrf.mxu0
  %865 = vmatprep.mubr.f32.mxu0 0.0
  %866 = vmatmul.mubr.f32.gmra.mxu0 %v794
  %v867 = vpop.f32.mrf.mxu0
  %v868 = vadd.f32 %v788, %v867
  %v869 = vpop.f32.mrf.mxu0
  %870 = vdwg.mxu0
  %v871 = vmax.f32 %v863, 0.0
  %v872 = vmax.f32 %v868, 0.0
  %v873 = vld [vmem:[%s8] sm:$0xff]
  %v874 = vld [vmem:[%s8 + $0x8] sm:$0xff]
  %v875 = vld [vmem:[%s8 + $0x10] sm:$0xff]
  %v876 = vld [vmem:[%s8 + $0x18] sm:$0xff]
  %v877 = vld [vmem:[%s8 + $0x20] sm:$0xff]
  %v878 = vld [vmem:[%s8 + $0x28] sm:$0xff]
  %v879 = vld [vmem:[%s8 + $0x30] sm:$0xff]
  %v880 = vld [vmem:[%s8 + $0x38] sm:$0xff]
  %v882 = vsel %vm61, %v871, 0
  %v885 = vsel %vm61, %v872, 0
  %887 = vmatprep.subr.mxu0 0.0
  %888 = vmatpush1.msra.mxu0 0.0
  %889 = vmatprep.subr.mxu0 0.0
  %890 = vmatpush1.msra.mxu0 0.0
  %891 = vmatprep.subr.mxu0 0.0
  %892 = vmatpush1.msra.mxu0 0.0
  %893 = vmatprep.subr.mxu0 0.0
  %894 = vmatpush1.msra.mxu0 0.0
  %895 = vmatprep.subr.mxu0 0.0
  %896 = vmatpush1.msra.mxu0 0.0
  %897 = vmatprep.subr.mxu0 0.0
  %898 = vmatpush1.msra.mxu0 0.0
  %899 = vmatprep.subr.mxu0 0.0
  %900 = vmatpush1.msra.mxu0 0.0
  %901 = vmatprep.subr.mxu0 0.0
  %902 = vmatpush1.msra.mxu0 0.0
  %903 = vmatprep.subr.mxu0 0.0
  %904 = vmatpush1.msra.mxu0 %v880
  %905 = vmatprep.subr.mxu0 0.0
  %906 = vmatpush1.msra.mxu0 %v879
  %907 = vmatprep.subr.mxu0 0.0
  %908 = vmatpush1.msra.mxu0 %v878
  %909 = vmatprep.subr.mxu0 0.0
  %910 = vmatpush1.msra.mxu0 %v877
  %911 = vmatprep.subr.mxu0 0.0
  %912 = vmatpush1.msra.mxu0 %v876
  %913 = vmatprep.subr.mxu0 0.0
  %914 = vmatpush1.msra.mxu0 %v875
  %915 = vmatprep.subr.mxu0 0.0
  %916 = vmatpush1.msra.mxu0 %v874
  %917 = vmatprep.subr.mxu0 0.0
  %918 = vmatpush1.msra.mxu0 %v873
  %919 = vmatprep.subr.mxu0 0.0
  %920 = vmatpush2.msra.mxu0 0.0
  %921 = vmatprep.subr.mxu0 0.0
  %922 = vmatpush2.msra.mxu0 0.0
  %923 = vmatprep.subr.mxu0 0.0
  %924 = vmatpush2.msra.mxu0 0.0
  %925 = vmatprep.subr.mxu0 0.0
  %926 = vmatpush2.msra.mxu0 0.0
  %927 = vmatprep.subr.mxu0 0.0
  %928 = vmatpush2.msra.mxu0 0.0
  %929 = vmatprep.subr.mxu0 0.0
  %930 = vmatpush2.msra.mxu0 0.0
  %931 = vmatprep.subr.mxu0 0.0
  %932 = vmatpush2.msra.mxu0 0.0
  %933 = vmatprep.subr.mxu0 0.0
  %934 = vmatpush2.msra.mxu0 0.0
  %935 = vmatprep.subr.mxu0 0.0
  %936 = vmatpush2.msra.mxu0 0.0
  %937 = vmatprep.subr.mxu0 0.0
  %938 = vmatpush2.msra.mxu0 0.0
  %939 = vmatprep.subr.mxu0 0.0
  %940 = vmatpush2.msra.mxu0 0.0
  %941 = vmatprep.subr.mxu0 0.0
  %942 = vmatpush2.msra.mxu0 0.0
  %943 = vmatprep.subr.mxu0 0.0
  %944 = vmatpush2.msra.mxu0 0.0
  %945 = vmatprep.subr.mxu0 0.0
  %946 = vmatpush2.msra.mxu0 0.0
  %947 = vmatprep.subr.mxu0 0.0
  %948 = vmatpush2.msra.mxu0 0.0
  %949 = vmatprep.subr.mxu0 0.0
  %950 = vmatpush2.msra.mxu0 0.0
  %951 = vmatprep.mubr.f32.mxu0 0.0
  %952 = vmatmul.mubr.f32.gmra.mxu0 %v882
  %v953 = vpop.f32.mrf.mxu0
  %v954 = vadd.f32 0.0, %v953
  %v955 = vpop.f32.mrf.mxu0
  %956 = vmatprep.mubr.f32.mxu0 0.0
  %957 = vmatmul.mubr.f32.gmra.mxu0 %v885
  %v958 = vpop.f32.mrf.mxu0
  %v959 = vadd.f32 0.0, %v958
  %v960 = vpop.f32.mrf.mxu0
  %961 = vdwg.mxu0
  %v962 = vadd.f32 %v773, %v954
  %v963 = vadd.f32 %v774, %v959
  %v964 = vld [vmem:[%s9] sm:$0x1]
  %v966 = vlaneseq
  %v967 = vshrl.u32 %v966, 7
  %v968 = vsub.s32 0, %v967
  %v969 = vrot.slane %v964, %v968
  %v971 = vadd.f32 %v962, %v969
  %v972 = vadd.f32 %v963, %v969
  %v973 = vld [vmem:[%s10] sm:$0x1]
  %v974 = vld [vmem:[%s11] sm:$0x1]
  %v975 = vsel %vm61, %v971, 0.0
  %v976 = vsel %vm728, %v972, 0.0
  %v977 = vadd.f32 %v975, %v976
  %v978 = vrot.slane %v977, 4
  %v979 = vadd.f32 %v977, %v978
  %v980 = vrot.slane %v979, 2
  %v981 = vadd.f32 %v979, %v980
  %v982 = vrot.slane %v981, 1
  %v983 = vadd.f32 %v981, %v982
  %v984 = vmul.f32 %v983, %v737
  %v985 = vsub.f32 %v971, %v984
  %v986 = vsub.f32 %v972, %v984
  %v987 = vmul.f32 %v985, %v985
  %v988 = vmul.f32 %v986, %v986
  %v989 = vsel %vm61, %v987, 0.0
  %v990 = vsel %vm728, %v988, 0.0
  %v991 = vadd.f32 %v989, %v990
  %v992 = vrot.slane %v991, 4
  %v993 = vadd.f32 %v991, %v992
  %v994 = vrot.slane %v993, 2
  %v995 = vadd.f32 %v993, %v994
  %v996 = vrot.slane %v995, 1
  %v997 = vadd.f32 %v995, %v996
  %v998 = vmul.f32 %v997, %v737
  %v999 = vadd.f32 %v998, 1e-05
  %v1000 = vrsqrt.pop %v999
  %v1001 = vmul.f32 %v985, %v1000
  %v1002 = vmul.f32 %v986, %v1000
  %v1004 = vlaneseq
  %v1005 = vshrl.u32 %v1004, 7
  %v1006 = vsub.s32 0, %v1005
  %v1007 = vrot.slane %v973, %v1006
  %v1009 = vmul.f32 %v1001, %v1007
  %v1010 = vmul.f32 %v1002, %v1007
  %v1012 = vlaneseq
  %v1013 = vshrl.u32 %v1012, 7
  %v1014 = vsub.s32 0, %v1013
  %v1015 = vrot.slane %v974, %v1014
  %v1017 = vadd.f32 %v1009, %v1015
  %v1018 = vadd.f32 %v1010, %v1015
  %1019 = vst.msk [vmem:[%s12] sm:$0xff] %vm61, %v1017
  %1020 = vst.msk [vmem:[%s12 + $0x8] sm:$0xf] %vm728, %v1018
  // Predicated region
  $region50: #{_forward.6} parent=0 // pred_check
    _
  $region51: #{_forward.6} parent=0 // pred_check_branch
    %1022 = sbr.rel (0) target = $region53
  $region52: #{_forward.6} parent=0 // pred_region
    _
  $region53: #{_forward.6} parent=0 // pred_fallthru
    _
  // Predicated region
  $region54: #{_forward.6} parent=0 // pred_check
    _
  $region55: #{_forward.6} parent=0 // pred_check_branch
    %1024 = sbr.rel (0) target = $region57
  $region56: #{_forward.6} parent=0 // pred_region
    _
  $region57: #{_forward.6} parent=0 // pred_fallthru
    _

// kernel: _forward.7
$region0: #{_forward.7}
  #allocation0 [shape = 'u32[]', space=smem, size = 0x4, offset = 0x4, fixed_abs, tag = 'smem constant byte address 0x4 - core index']
  #allocation1 [shape = 'u32[144,128]{1,0:T(1,128)}', space=vmem, size = 0x12000, scoped, tag = 'internal scratch']
  %s0 = inlined_call_operand.vmem [shape: f32[4,192], index: 0, kind: input, shape index: {}]
  %s1 = inlined_call_operand.vmem [shape: f32[4,4], index: 1, kind: input, shape index: {}]
  %s2 = inlined_call_operand.vmem [shape: f32[192,576], index: 2, kind: input, shape index: {}]
  %s3 = inlined_call_operand.vmem [shape: f32[2,96,192], index: 3, kind: input, shape index: {}]
  %s4 = inlined_call_operand.vmem [shape: f32[1,192], index: 4, kind: input, shape index: {}, may-alias: {4,10}]
  %s5 = inlined_call_operand.vmem [shape: f32[1,192], index: 5, kind: input, shape index: {}, may-alias: {5,11}]
  %s6 = inlined_call_operand.vmem [shape: f32[192,192], index: 6, kind: input, shape index: {}]
  %s7 = inlined_call_operand.vmem [shape: f32[1,192], index: 7, kind: input, shape index: {}]
  %s8 = inlined_call_operand.vmem [shape: f32[192,192], index: 8, kind: input, shape index: {}]
  %s9 = inlined_call_operand.vmem [shape: f32[1,192], index: 9, kind: input, shape index: {}]
  %s10 = inlined_call_operand.vmem [shape: f32[1,192], index: 10, kind: input, shape index: {}, may-alias: {4,10}]
  %s11 = inlined_call_operand.vmem [shape: f32[1,192], index: 11, kind: input, shape index: {}, may-alias: {5,11}]
  %s12 = inlined_call_operand.vmem [shape: f32[4,192], index: 12, kind: output, shape index: {}]
  %s13 = sld [smem:[#allocation0]]
  $region58: #{_forward.7} parent=0
    _
  %s15 = ssub.s32 1, %s13
  %s16 = scalar_select 0, %s15, %s13
  // Predicated region
  $region2: #{_forward.7} parent=0 // pred_check
    _
  $region3: #{_forward.7} parent=0 // pred_check_branch
    %18 = sbr.rel (0) target = $region5
  $region4: #{_forward.7} parent=0 // pred_region
    _
  $region5: #{_forward.7} parent=0 // pred_fallthru
    _
  // Predicated region
  $region6: #{_forward.7} parent=0 // pred_check
    _
  $region7: #{_forward.7} parent=0 // pred_check_branch
    %20 = sbr.rel (0) target = $region9
  $region8: #{_forward.7} parent=0 // pred_region
    _
  $region9: #{_forward.7} parent=0 // pred_fallthru
    _
  // Predicated region
  $region10: #{_forward.7} parent=0 // pred_check
    _
  $region11: #{_forward.7} parent=0 // pred_check_branch
    %22 = sbr.rel (0) target = $region13
  $region12: #{_forward.7} parent=0 // pred_region
    _
  $region13: #{_forward.7} parent=0 // pred_fallthru
    _
  // Predicated region
  $region14: #{_forward.7} parent=0 // pred_check
    _
  $region15: #{_forward.7} parent=0 // pred_check_branch
    %24 = sbr.rel (0) target = $region17
  $region16: #{_forward.7} parent=0 // pred_region
    _
  $region17: #{_forward.7} parent=0 // pred_fallthru
    _
  // Predicated region
  $region18: #{_forward.7} parent=0 // pred_check
    _
  $region19: #{_forward.7} parent=0 // pred_check_branch
    %26 = sbr.rel (0) target = $region21
  $region20: #{_forward.7} parent=0 // pred_region
    _
  $region21: #{_forward.7} parent=0 // pred_fallthru
    _
  // Predicated region
  $region22: #{_forward.7} parent=0 // pred_check
    _
  $region23: #{_forward.7} parent=0 // pred_check_branch
    %28 = sbr.rel (0) target = $region25
  $region24: #{_forward.7} parent=0 // pred_region
    _
  $region25: #{_forward.7} parent=0 // pred_fallthru
    _
  // Predicated region
  $region26: #{_forward.7} parent=0 // pred_check
    _
  $region27: #{_forward.7} parent=0 // pred_check_branch
    %30 = sbr.rel (0) target = $region29
  $region28: #{_forward.7} parent=0 // pred_region
    _
  $region29: #{_forward.7} parent=0 // pred_fallthru
    _
  // Predicated region
  $region30: #{_forward.7} parent=0 // pred_check
    _
  $region31: #{_forward.7} parent=0 // pred_check_branch
    %32 = sbr.rel (0) target = $region33
  $region32: #{_forward.7} parent=0 // pred_region
    _
  $region33: #{_forward.7} parent=0 // pred_fallthru
    _
  // Predicated region
  $region34: #{_forward.7} parent=0 // pred_check
    _
  $region35: #{_forward.7} parent=0 // pred_check_branch
    %34 = sbr.rel (0) target = $region37
  $region36: #{_forward.7} parent=0 // pred_region
    _
  $region37: #{_forward.7} parent=0 // pred_fallthru
    _
  // Predicated region
  $region38: #{_forward.7} parent=0 // pred_check
    _
  $region39: #{_forward.7} parent=0 // pred_check_branch
    %36 = sbr.rel (0) target = $region41
  $region40: #{_forward.7} parent=0 // pred_region
    _
  $region41: #{_forward.7} parent=0 // pred_fallthru
    _
  // Predicated region
  $region42: #{_forward.7} parent=0 // pred_check
    _
  $region43: #{_forward.7} parent=0 // pred_check_branch
    %38 = sbr.rel (0) target = $region45
  $region44: #{_forward.7} parent=0 // pred_region
    _
  $region45: #{_forward.7} parent=0 // pred_fallthru
    _
  // Predicated region
  $region46: #{_forward.7} parent=0 // pred_check
    _
  $region47: #{_forward.7} parent=0 // pred_check_branch
    %40 = sbr.rel (0) target = $region49
  $region48: #{_forward.7} parent=0 // pred_region
    _
  $region49: #{_forward.7} parent=0 // pred_fallthru
    _
  %v41 = vld [vmem:[%s0] sm:$0xff]
  %v42 = vld [vmem:[%s1] sm:$0xf]
  %v43 = vld [vmem:[%s2] sm:$0xff]
  %v44 = vld [vmem:[%s2 + $0x8] sm:$0xff]
  %v45 = vld [vmem:[%s2 + $0x10] sm:$0xff]
  %v46 = vld [vmem:[%s2 + $0x18] sm:$0xff]
  %v47 = vld [vmem:[%s2 + $0x20] sm:$0xff]
  %v48 = vld [vmem:[%s2 + $0x28] sm:$0xff]
  %v49 = vld [vmem:[%s2 + $0x30] sm:$0xff]
  %v50 = vld [vmem:[%s2 + $0x38] sm:$0xff]
  %v51 = vld [vmem:[%s2 + $0x40] sm:$0xff]
  %v52 = vld [vmem:[%s2 + $0x48] sm:$0xff]
  %v53 = vld [vmem:[%s2 + $0x50] sm:$0xff]
  %v54 = vld [vmem:[%s2 + $0x58] sm:$0xff]
  %v55 = vld [vmem:[%s2 + $0x60] sm:$0xff]
  %v56 = vld [vmem:[%s2 + $0x68] sm:$0xff]
  %v57 = vld [vmem:[%s2 + $0x70] sm:$0xff]
  %v58 = vld [vmem:[%s2 + $0x78] sm:$0xff]
  %v59 = vld [vmem:[%s2 + $0x80] sm:$0xff]
  %v60 = vld [vmem:[%s2 + $0x88] sm:$0xff]
  %v61 = vld [vmem:[%s2 + $0x90] sm:$0xff]
  %v62 = vld [vmem:[%s2 + $0x98] sm:$0xff]
  %v63 = vld [vmem:[%s2 + $0xa0] sm:$0xff]
  %v64 = vld [vmem:[%s2 + $0xa8] sm:$0xff]
  %v65 = vld [vmem:[%s2 + $0xb0] sm:$0xff]
  %v66 = vld [vmem:[%s2 + $0xb8] sm:$0xff]
  %v67 = vld [vmem:[%s2 + $0xc0] sm:$0xff]
  %v68 = vld [vmem:[%s2 + $0xc8] sm:$0xff]
  %v69 = vld [vmem:[%s2 + $0xd0] sm:$0xff]
  %v70 = vld [vmem:[%s2 + $0xd8] sm:$0xff]
  %v71 = vld [vmem:[%s2 + $0xe0] sm:$0xff]
  %v72 = vld [vmem:[%s2 + $0xe8] sm:$0xff]
  %v73 = vld [vmem:[%s2 + $0xf0] sm:$0xff]
  %v74 = vld [vmem:[%s2 + $0xf8] sm:$0xff]
  %v75 = vld [vmem:[%s2 + $0x100] sm:$0xff]
  %v76 = vld [vmem:[%s2 + $0x108] sm:$0xff]
  %v77 = vld [vmem:[%s2 + $0x110] sm:$0xff]
  %v78 = vld [vmem:[%s2 + $0x118] sm:$0xff]
  %v79 = vld [vmem:[%s2 + $0x120] sm:$0xff]
  %v80 = vld [vmem:[%s2 + $0x128] sm:$0xff]
  %v81 = vld [vmem:[%s2 + $0x130] sm:$0xff]
  %v82 = vld [vmem:[%s2 + $0x138] sm:$0xff]
  %v83 = vld [vmem:[%s2 + $0x140] sm:$0xff]
  %v84 = vld [vmem:[%s2 + $0x148] sm:$0xff]
  %v85 = vld [vmem:[%s2 + $0x150] sm:$0xff]
  %v86 = vld [vmem:[%s2 + $0x158] sm:$0xff]
  %v87 = vld [vmem:[%s2 + $0x160] sm:$0xff]
  %v88 = vld [vmem:[%s2 + $0x168] sm:$0xff]
  %v89 = vld [vmem:[%s2 + $0x170] sm:$0xff]
  %v90 = vld [vmem:[%s2 + $0x178] sm:$0xff]
  %v91 = vld [vmem:[%s2 + $0x180] sm:$0xff]
  %v92 = vld [vmem:[%s2 + $0x188] sm:$0xff]
  %v93 = vld [vmem:[%s2 + $0x190] sm:$0xff]
  %v94 = vld [vmem:[%s2 + $0x198] sm:$0xff]
  %v95 = vld [vmem:[%s2 + $0x1a0] sm:$0xff]
  %v96 = vld [vmem:[%s2 + $0x1a8] sm:$0xff]
  %v97 = vld [vmem:[%s2 + $0x1b0] sm:$0xff]
  %v98 = vld [vmem:[%s2 + $0x1b8] sm:$0xff]
  %v99 = vld [vmem:[%s2 + $0x1c0] sm:$0xff]
  %v100 = vld [vmem:[%s2 + $0x1c8] sm:$0xff]
  %v101 = vld [vmem:[%s2 + $0x1d0] sm:$0xff]
  %v102 = vld [vmem:[%s2 + $0x1d8] sm:$0xff]
  %v103 = vld [vmem:[%s2 + $0x1e0] sm:$0xff]
  %v104 = vld [vmem:[%s2 + $0x1e8] sm:$0xff]
  %v105 = vld [vmem:[%s2 + $0x1f0] sm:$0xff]
  %v106 = vld [vmem:[%s2 + $0x1f8] sm:$0xff]
  %v107 = vld [vmem:[%s2 + $0x200] sm:$0xff]
  %v108 = vld [vmem:[%s2 + $0x208] sm:$0xff]
  %v109 = vld [vmem:[%s2 + $0x210] sm:$0xff]
  %v110 = vld [vmem:[%s2 + $0x218] sm:$0xff]
  %v111 = vld [vmem:[%s2 + $0x220] sm:$0xff]
  %v112 = vld [vmem:[%s2 + $0x228] sm:$0xff]
  %v113 = vld [vmem:[%s2 + $0x230] sm:$0xff]
  %v114 = vld [vmem:[%s2 + $0x238] sm:$0xff]
  %v115 = vld [vmem:[%s2 + $0x240] sm:$0xff]
  %v116 = vld [vmem:[%s2 + $0x248] sm:$0xff]
  %v117 = vld [vmem:[%s2 + $0x250] sm:$0xff]
  %v118 = vld [vmem:[%s2 + $0x258] sm:$0xff]
  %v119 = vld [vmem:[%s2 + $0x260] sm:$0xff]
  %v120 = vld [vmem:[%s2 + $0x268] sm:$0xff]
  %v121 = vld [vmem:[%s2 + $0x270] sm:$0xff]
  %v122 = vld [vmem:[%s2 + $0x278] sm:$0xff]
  %v123 = vld [vmem:[%s2 + $0x280] sm:$0xff]
  %v124 = vld [vmem:[%s2 + $0x288] sm:$0xff]
  %v125 = vld [vmem:[%s2 + $0x290] sm:$0xff]
  %v126 = vld [vmem:[%s2 + $0x298] sm:$0xff]
  %v127 = vld [vmem:[%s2 + $0x2a0] sm:$0xff]
  %v128 = vld [vmem:[%s2 + $0x2a8] sm:$0xff]
  %v129 = vld [vmem:[%s2 + $0x2b0] sm:$0xff]
  %v130 = vld [vmem:[%s2 + $0x2b8] sm:$0xff]
  %v131 = vld [vmem:[%s2 + $0x2c0] sm:$0xff]
  %v132 = vld [vmem:[%s2 + $0x2c8] sm:$0xff]
  %v133 = vld [vmem:[%s2 + $0x2d0] sm:$0xff]
  %v134 = vld [vmem:[%s2 + $0x2d8] sm:$0xff]
  %v135 = vld [vmem:[%s2 + $0x2e0] sm:$0xff]
  %v136 = vld [vmem:[%s2 + $0x2e8] sm:$0xff]
  %v137 = vld [vmem:[%s2 + $0x2f0] sm:$0xff]
  %v138 = vld [vmem:[%s2 + $0x2f8] sm:$0xff]
  %v139 = vld [vmem:[%s2 + $0x300] sm:$0xff]
  %v140 = vld [vmem:[%s2 + $0x308] sm:$0xff]
  %v141 = vld [vmem:[%s2 + $0x310] sm:$0xff]
  %v142 = vld [vmem:[%s2 + $0x318] sm:$0xff]
  %v143 = vld [vmem:[%s2 + $0x320] sm:$0xff]
  %v144 = vld [vmem:[%s2 + $0x328] sm:$0xff]
  %v145 = vld [vmem:[%s2 + $0x330] sm:$0xff]
  %v146 = vld [vmem:[%s2 + $0x338] sm:$0xff]
  %v147 = vld [vmem:[%s2 + $0x340] sm:$0xff]
  %v148 = vld [vmem:[%s2 + $0x348] sm:$0xff]
  %v149 = vld [vmem:[%s2 + $0x350] sm:$0xff]
  %v150 = vld [vmem:[%s2 + $0x358] sm:$0xff]
  %v151 = vld [vmem:[%s2 + $0x360] sm:$0xff]
  %v152 = vld [vmem:[%s2 + $0x368] sm:$0xff]
  %v153 = vld [vmem:[%s2 + $0x370] sm:$0xff]
  %v154 = vld [vmem:[%s2 + $0x378] sm:$0xff]
  %v155 = vld [vmem:[%s2 + $0x380] sm:$0xff]
  %v156 = vld [vmem:[%s2 + $0x388] sm:$0xff]
  %v157 = vld [vmem:[%s2 + $0x390] sm:$0xff]
  %v158 = vld [vmem:[%s2 + $0x398] sm:$0xff]
  %v159 = vld [vmem:[%s2 + $0x3a0] sm:$0xff]
  %v160 = vld [vmem:[%s2 + $0x3a8] sm:$0xff]
  %v161 = vld [vmem:[%s2 + $0x3b0] sm:$0xff]
  %v162 = vld [vmem:[%s2 + $0x3b8] sm:$0xff]
  %v164 = vcombine.high %v41, %v41
  %vm165 = vcmask 523264
  %v166 = vsel %vm165, %v164, 0
  %168 = vmatprep.subr.mxu0 %v119
  %169 = vmatpush1.msra.mxu0 %v118
  %170 = vmatprep.subr.mxu0 %v114
  %171 = vmatpush1.msra.mxu0 %v113
  %172 = vmatprep.subr.mxu0 %v109
  %173 = vmatpush1.msra.mxu0 %v108
  %174 = vmatprep.subr.mxu0 %v104
  %175 = vmatpush1.msra.mxu0 %v103
  %176 = vmatprep.subr.mxu0 %v99
  %177 = vmatpush1.msra.mxu0 %v98
  %178 = vmatprep.subr.mxu0 %v94
  %179 = vmatpush1.msra.mxu0 %v93
  %180 = vmatprep.subr.mxu0 %v89
  %181 = vmatpush1.msra.mxu0 %v88
  %182 = vmatprep.subr.mxu0 %v84
  %183 = vmatpush1.msra.mxu0 %v83
  %184 = vmatprep.subr.mxu0 %v79
  %185 = vmatpush1.msra.mxu0 %v78
  %186 = vmatprep.subr.mxu0 %v74
  %187 = vmatpush1.msra.mxu0 %v73
  %188 = vmatprep.subr.mxu0 %v69
  %189 = vmatpush1.msra.mxu0 %v68
  %190 = vmatprep.subr.mxu0 %v64
  %191 = vmatpush1.msra.mxu0 %v63
  %192 = vmatprep.subr.mxu0 %v59
  %193 = vmatpush1.msra.mxu0 %v58
  %194 = vmatprep.subr.mxu0 %v54
  %195 = vmatpush1.msra.mxu0 %v53
  %196 = vmatprep.subr.mxu0 %v49
  %197 = vmatpush1.msra.mxu0 %v48
  %198 = vmatprep.subr.mxu0 %v44
  %199 = vmatpush1.msra.mxu0 %v43
  %200 = vmatprep.subr.mxu0 0.0
  %201 = vmatpush2.msra.mxu0 0.0
  %202 = vmatprep.subr.mxu0 0.0
  %203 = vmatpush2.msra.mxu0 0.0
  %204 = vmatprep.subr.mxu0 0.0
  %205 = vmatpush2.msra.mxu0 0.0
  %206 = vmatprep.subr.mxu0 0.0
  %207 = vmatpush2.msra.mxu0 0.0
  %208 = vmatprep.subr.mxu0 0.0
  %209 = vmatpush2.msra.mxu0 0.0
  %210 = vmatprep.subr.mxu0 0.0
  %211 = vmatpush2.msra.mxu0 0.0
  %212 = vmatprep.subr.mxu0 0.0
  %213 = vmatpush2.msra.mxu0 0.0
  %214 = vmatprep.subr.mxu0 0.0
  %215 = vmatpush2.msra.mxu0 0.0
  %216 = vmatprep.subr.mxu0 %v159
  %217 = vmatpush2.msra.mxu0 %v158
  %218 = vmatprep.subr.mxu0 %v154
  %219 = vmatpush2.msra.mxu0 %v153
  %220 = vmatprep.subr.mxu0 %v149
  %221 = vmatpush2.msra.mxu0 %v148
  %222 = vmatprep.subr.mxu0 %v144
  %223 = vmatpush2.msra.mxu0 %v143
  %224 = vmatprep.subr.mxu0 %v139
  %225 = vmatpush2.msra.mxu0 %v138
  %226 = vmatprep.subr.mxu0 %v134
  %227 = vmatpush2.msra.mxu0 %v133
  %228 = vmatprep.subr.mxu0 %v129
  %229 = vmatpush2.msra.mxu0 %v128
  %230 = vmatprep.subr.mxu0 %v124
  %231 = vmatpush2.msra.mxu0 %v123
  %232 = vmatprep.mubr.f32.mxu0 %v166
  %233 = vmatmul.mubr.f32.gmra.mxu0 %v41
  %v234 = vpop.f32.mrf.mxu0
  %v235 = vadd.f32 0.0, %v234
  %v236 = vpop.f32.mrf.mxu0
  %v237 = vadd.f32 0.0, %v236
  %238 = vdwg.mxu0
  %239 = vmatprep.subr.mxu0 %v121
  %240 = vmatpush1.msra.mxu0 %v120
  %241 = vmatprep.subr.mxu0 %v116
  %242 = vmatpush1.msra.mxu0 %v115
  %243 = vmatprep.subr.mxu0 %v111
  %244 = vmatpush1.msra.mxu0 %v110
  %245 = vmatprep.subr.mxu0 %v106
  %246 = vmatpush1.msra.mxu0 %v105
  %247 = vmatprep.subr.mxu0 %v101
  %248 = vmatpush1.msra.mxu0 %v100
  %249 = vmatprep.subr.mxu0 %v96
  %250 = vmatpush1.msra.mxu0 %v95
  %251 = vmatprep.subr.mxu0 %v91
  %252 = vmatpush1.msra.mxu0 %v90
  %253 = vmatprep.subr.mxu0 %v86
  %254 = vmatpush1.msra.mxu0 %v85
  %255 = vmatprep.subr.mxu0 %v81
  %256 = vmatpush1.msra.mxu0 %v80
  %257 = vmatprep.subr.mxu0 %v76
  %258 = vmatpush1.msra.mxu0 %v75
  %259 = vmatprep.subr.mxu0 %v71
  %260 = vmatpush1.msra.mxu0 %v70
  %261 = vmatprep.subr.mxu0 %v66
  %262 = vmatpush1.msra.mxu0 %v65
  %263 = vmatprep.subr.mxu0 %v61
  %264 = vmatpush1.msra.mxu0 %v60
  %265 = vmatprep.subr.mxu0 %v56
  %266 = vmatpush1.msra.mxu0 %v55
  %267 = vmatprep.subr.mxu0 %v51
  %268 = vmatpush1.msra.mxu0 %v50
  %269 = vmatprep.subr.mxu0 %v46
  %270 = vmatpush1.msra.mxu0 %v45
  %271 = vmatprep.subr.mxu0 0.0
  %272 = vmatpush2.msra.mxu0 0.0
  %273 = vmatprep.subr.mxu0 0.0
  %274 = vmatpush2.msra.mxu0 0.0
  %275 = vmatprep.subr.mxu0 0.0
  %276 = vmatpush2.msra.mxu0 0.0
  %277 = vmatprep.subr.mxu0 0.0
  %278 = vmatpush2.msra.mxu0 0.0
  %279 = vmatprep.subr.mxu0 0.0
  %280 = vmatpush2.msra.mxu0 0.0
  %281 = vmatprep.subr.mxu0 0.0
  %282 = vmatpush2.msra.mxu0 0.0
  %283 = vmatprep.subr.mxu0 0.0
  %284 = vmatpush2.msra.mxu0 0.0
  %285 = vmatprep.subr.mxu0 0.0
  %286 = vmatpush2.msra.mxu0 0.0
  %287 = vmatprep.subr.mxu0 %v161
  %288 = vmatpush2.msra.mxu0 %v160
  %289 = vmatprep.subr.mxu0 %v156
  %290 = vmatpush2.msra.mxu0 %v155
  %291 = vmatprep.subr.mxu0 %v151
  %292 = vmatpush2.msra.mxu0 %v150
  %293 = vmatprep.subr.mxu0 %v146
  %294 = vmatpush2.msra.mxu0 %v145
  %295 = vmatprep.subr.mxu0 %v141
  %296 = vmatpush2.msra.mxu0 %v140
  %297 = vmatprep.subr.mxu0 %v136
  %298 = vmatpush2.msra.mxu0 %v135
  %299 = vmatprep.subr.mxu0 %v131
  %300 = vmatpush2.msra.mxu0 %v130
  %301 = vmatprep.subr.mxu0 %v126
  %302 = vmatpush2.msra.mxu0 %v125
  %303 = vmatprep.mubr.f32.mxu0 %v166
  %304 = vmatmul.mubr.f32.gmra.mxu0 %v41
  %v305 = vpop.f32.mrf.mxu0
  %v306 = vadd.f32 0.0, %v305
  %v307 = vpop.f32.mrf.mxu0
  %v308 = vadd.f32 0.0, %v307
  %309 = vdwg.mxu0
  %310 = vmatprep.subr.mxu0 0.0
  %311 = vmatpush1.msra.mxu0 %v122
  %312 = vmatprep.subr.mxu0 0.0
  %313 = vmatpush1.msra.mxu0 %v117
  %314 = vmatprep.subr.mxu0 0.0
  %315 = vmatpush1.msra.mxu0 %v112
  %316 = vmatprep.subr.mxu0 0.0
  %317 = vmatpush1.msra.mxu0 %v107
  %318 = vmatprep.subr.mxu0 0.0
  %319 = vmatpush1.msra.mxu0 %v102
  %320 = vmatprep.subr.mxu0 0.0
  %321 = vmatpush1.msra.mxu0 %v97
  %322 = vmatprep.subr.mxu0 0.0
  %323 = vmatpush1.msra.mxu0 %v92
  %324 = vmatprep.subr.mxu0 0.0
  %325 = vmatpush1.msra.mxu0 %v87
  %326 = vmatprep.subr.mxu0 0.0
  %327 = vmatpush1.msra.mxu0 %v82
  %328 = vmatprep.subr.mxu0 0.0
  %329 = vmatpush1.msra.mxu0 %v77
  %330 = vmatprep.subr.mxu0 0.0
  %331 = vmatpush1.msra.mxu0 %v72
  %332 = vmatprep.subr.mxu0 0.0
  %333 = vmatpush1.msra.mxu0 %v67
  %334 = vmatprep.subr.mxu0 0.0
  %335 = vmatpush1.msra.mxu0 %v62
  %336 = vmatprep.subr.mxu0 0.0
  %337 = vmatpush1.msra.mxu0 %v57
  %338 = vmatprep.subr.mxu0 0.0
  %339 = vmatpush1.msra.mxu0 %v52
  %340 = vmatprep.subr.mxu0 0.0
  %341 = vmatpush1.msra.mxu0 %v47
  %342 = vmatprep.subr.mxu0 0.0
  %343 = vmatpush2.msra.mxu0 0.0
  %344 = vmatprep.subr.mxu0 0.0
  %345 = vmatpush2.msra.mxu0 0.0
  %346 = vmatprep.subr.mxu0 0.0
  %347 = vmatpush2.msra.mxu0 0.0
  %348 = vmatprep.subr.mxu0 0.0
  %349 = vmatpush2.msra.mxu0 0.0
  %350 = vmatprep.subr.mxu0 0.0
  %351 = vmatpush2.msra.mxu0 0.0
  %352 = vmatprep.subr.mxu0 0.0
  %353 = vmatpush2.msra.mxu0 0.0
  %354 = vmatprep.subr.mxu0 0.0
  %355 = vmatpush2.msra.mxu0 0.0
  %356 = vmatprep.subr.mxu0 0.0
  %357 = vmatpush2.msra.mxu0 0.0
  %358 = vmatprep.subr.mxu0 0.0
  %359 = vmatpush2.msra.mxu0 %v162
  %360 = vmatprep.subr.mxu0 0.0
  %361 = vmatpush2.msra.mxu0 %v157
  %362 = vmatprep.subr.mxu0 0.0
  %363 = vmatpush2.msra.mxu0 %v152
  %364 = vmatprep.subr.mxu0 0.0
  %365 = vmatpush2.msra.mxu0 %v147
  %366 = vmatprep.subr.mxu0 0.0
  %367 = vmatpush2.msra.mxu0 %v142
  %368 = vmatprep.subr.mxu0 0.0
  %369 = vmatpush2.msra.mxu0 %v137
  %370 = vmatprep.subr.mxu0 0.0
  %371 = vmatpush2.msra.mxu0 %v132
  %372 = vmatprep.subr.mxu0 0.0
  %373 = vmatpush2.msra.mxu0 %v127
  %374 = vmatprep.mubr.f32.mxu0 %v166
  %375 = vmatmul.mubr.f32.gmra.mxu0 %v41
  %v376 = vpop.f32.mrf.mxu0
  %v377 = vadd.f32 0.0, %v376
  %v378 = vpop.f32.mrf.mxu0
  %379 = vdwg.mxu0
  %382 = vrot.lane.b32.xlu0 %v237, 64
  %v383 = vpop.permute.xlu0 %382
  %384 = vrot.lane.b32.xlu0 %v306, 64
  %v385 = vpop.permute.xlu0 %384
  %v386 = vsel %vm165, %v383, %v385
  %vm387 = vcmask 785408
  %v389 = vsel %vm387, %v235, 0
  %v391 = vsel %vm387, %v386, 0
  %393 = vmatprep.subr.mxu0 0.0
  %394 = vmatpush1.xpose.msra.mxu0 0.0
  %395 = vmatprep.subr.mxu0 0.0
  %396 = vmatpush1.xpose.msra.mxu0 0.0
  %397 = vmatprep.subr.mxu0 0.0
  %398 = vmatpush1.xpose.msra.mxu0 0.0
  %399 = vmatprep.subr.mxu0 0.0
  %400 = vmatpush1.xpose.msra.mxu0 0.0
  %401 = vmatprep.subr.mxu0 0.0
  %402 = vmatpush1.xpose.msra.mxu0 0.0
  %403 = vmatprep.subr.mxu0 0.0
  %404 = vmatpush1.xpose.msra.mxu0 0.0
  %405 = vmatprep.subr.mxu0 0.0
  %406 = vmatpush1.xpose.msra.mxu0 0.0
  %407 = vmatprep.subr.mxu0 0.0
  %408 = vmatpush1.xpose.msra.mxu0 0.0
  %409 = vmatprep.subr.mxu0 0.0
  %410 = vmatpush1.xpose.msra.mxu0 0.0
  %411 = vmatprep.subr.mxu0 0.0
  %412 = vmatpush1.xpose.msra.mxu0 0.0
  %413 = vmatprep.subr.mxu0 0.0
  %414 = vmatpush1.xpose.msra.mxu0 0.0
  %415 = vmatprep.subr.mxu0 0.0
  %416 = vmatpush1.xpose.msra.mxu0 0.0
  %417 = vmatprep.subr.mxu0 0.0
  %418 = vmatpush1.xpose.msra.mxu0 0.0
  %419 = vmatprep.subr.mxu0 0.0
  %420 = vmatpush1.xpose.msra.mxu0 0.0
  %421 = vmatprep.subr.mxu0 0.0
  %422 = vmatpush1.xpose.msra.mxu0 0.0
  %423 = vmatprep.subr.mxu0 0.0
  %424 = vmatpush1.xpose.msra.mxu0 %v391
  %425 = vmatprep.subr.mxu0 0.0
  %426 = vmatpush2.xpose.msra.mxu0 0.0
  %427 = vmatprep.subr.mxu0 0.0
  %428 = vmatpush2.xpose.msra.mxu0 0.0
  %429 = vmatprep.subr.mxu0 0.0
  %430 = vmatpush2.xpose.msra.mxu0 0.0
  %431 = vmatprep.subr.mxu0 0.0
  %432 = vmatpush2.xpose.msra.mxu0 0.0
  %433 = vmatprep.subr.mxu0 0.0
  %434 = vmatpush2.xpose.msra.mxu0 0.0
  %435 = vmatprep.subr.mxu0 0.0
  %436 = vmatpush2.xpose.msra.mxu0 0.0
  %437 = vmatprep.subr.mxu0 0.0
  %438 = vmatpush2.xpose.msra.mxu0 0.0
  %439 = vmatprep.subr.mxu0 0.0
  %440 = vmatpush2.xpose.msra.mxu0 0.0
  %441 = vmatprep.subr.mxu0 0.0
  %442 = vmatpush2.xpose.msra.mxu0 0.0
  %443 = vmatprep.subr.mxu0 0.0
  %444 = vmatpush2.xpose.msra.mxu0 0.0
  %445 = vmatprep.subr.mxu0 0.0
  %446 = vmatpush2.xpose.msra.mxu0 0.0
  %447 = vmatprep.subr.mxu0 0.0
  %448 = vmatpush2.xpose.msra.mxu0 0.0
  %449 = vmatprep.subr.mxu0 0.0
  %450 = vmatpush2.xpose.msra.mxu0 0.0
  %451 = vmatprep.subr.mxu0 0.0
  %452 = vmatpush2.xpose.msra.mxu0 0.0
  %453 = vmatprep.subr.mxu0 0.0
  %454 = vmatpush2.xpose.msra.mxu0 0.0
  %455 = vmatprep.subr.mxu0 0.0
  %456 = vmatpush2.xpose.msra.mxu0 0.0
  %457 = vmatprep.mubr.f32.mxu0 0.0
  %458 = vmatmul.mubr.f32.gmra.mxu0 %v389
  %v459 = vpop.f32.mrf.mxu0
  %v460 = vadd.f32 0.0, %v459
  %v461 = vpop.f32.mrf.mxu0
  %462 = vdwg.mxu0
  %v463 = vmul.f32 %v460, 0.10206208
  %v464 = vadd.f32 %v463, %v42
  %vm465 = vcmask 27648
  %v466 = vsel %vm465, %v464, -inf
  %467 = vmax.xlane.f32.xlu0 %v466
  %v468 = vpop.xlane.xlu0 %467
  %v469 = vsub.f32 %v464, %v468
  %v470 = vmul.f32 %v469, 1.442695
  %v471 = vpow.pop %v470
  %v472 = vsel %vm465, %v471, 0.0
  %473 = vadd.xlane.f32.xlu0 %v472
  %v474 = vpop.xlane.xlu0 %473
  %v475 = vrcp.pop %v474
  %v476 = vmul.f32 %v471, %v475
  %vm477 = vcmask 31744
  %v479 = vsel %vm477, %v476, 0
  %vm481 = vcmask 1043456
  %v483 = vsel %vm481, %v308, 0
  %485 = vmatprep.subr.mxu0 0.0
  %486 = vmatpush1.msra.mxu0 0.0
  %487 = vmatprep.subr.mxu0 0.0
  %488 = vmatpush1.msra.mxu0 0.0
  %489 = vmatprep.subr.mxu0 0.0
  %490 = vmatpush1.msra.mxu0 0.0
  %491 = vmatprep.subr.mxu0 0.0
  %492 = vmatpush1.msra.mxu0 0.0
  %493 = vmatprep.subr.mxu0 0.0
  %494 = vmatpush1.msra.mxu0 0.0
  %495 = vmatprep.subr.mxu0 0.0
  %496 = vmatpush1.msra.mxu0 0.0
  %497 = vmatprep.subr.mxu0 0.0
  %498 = vmatpush1.msra.mxu0 0.0
  %499 = vmatprep.subr.mxu0 0.0
  %500 = vmatpush1.msra.mxu0 0.0
  %501 = vmatprep.subr.mxu0 0.0
  %502 = vmatpush1.msra.mxu0 0.0
  %503 = vmatprep.subr.mxu0 0.0
  %504 = vmatpush1.msra.mxu0 0.0
  %505 = vmatprep.subr.mxu0 0.0
  %506 = vmatpush1.msra.mxu0 0.0
  %507 = vmatprep.subr.mxu0 0.0
  %508 = vmatpush1.msra.mxu0 0.0
  %509 = vmatprep.subr.mxu0 0.0
  %510 = vmatpush1.msra.mxu0 0.0
  %511 = vmatprep.subr.mxu0 0.0
  %512 = vmatpush1.msra.mxu0 0.0
  %513 = vmatprep.subr.mxu0 0.0
  %514 = vmatpush1.msra.mxu0 0.0
  %515 = vmatprep.subr.mxu0 0.0
  %516 = vmatpush1.msra.mxu0 %v483
  %517 = vmatprep.subr.mxu0 0.0
  %518 = vmatpush2.msra.mxu0 0.0
  %519 = vmatprep.subr.mxu0 0.0
  %520 = vmatpush2.msra.mxu0 0.0
  %521 = vmatprep.subr.mxu0 0.0
  %522 = vmatpush2.msra.mxu0 0.0
  %523 = vmatprep.subr.mxu0 0.0
  %524 = vmatpush2.msra.mxu0 0.0
  %525 = vmatprep.subr.mxu0 0.0
  %526 = vmatpush2.msra.mxu0 0.0
  %527 = vmatprep.subr.mxu0 0.0
  %528 = vmatpush2.msra.mxu0 0.0
  %529 = vmatprep.subr.mxu0 0.0
  %530 = vmatpush2.msra.mxu0 0.0
  %531 = vmatprep.subr.mxu0 0.0
  %532 = vmatpush2.msra.mxu0 0.0
  %533 = vmatprep.subr.mxu0 0.0
  %534 = vmatpush2.msra.mxu0 0.0
  %535 = vmatprep.subr.mxu0 0.0
  %536 = vmatpush2.msra.mxu0 0.0
  %537 = vmatprep.subr.mxu0 0.0
  %538 = vmatpush2.msra.mxu0 0.0
  %539 = vmatprep.subr.mxu0 0.0
  %540 = vmatpush2.msra.mxu0 0.0
  %541 = vmatprep.subr.mxu0 0.0
  %542 = vmatpush2.msra.mxu0 0.0
  %543 = vmatprep.subr.mxu0 0.0
  %544 = vmatpush2.msra.mxu0 0.0
  %545 = vmatprep.subr.mxu0 0.0
  %546 = vmatpush2.msra.mxu0 0.0
  %547 = vmatprep.subr.mxu0 0.0
  %548 = vmatpush2.msra.mxu0 0.0
  %549 = vmatprep.mubr.f32.mxu0 0.0
  %550 = vmatmul.mubr.f32.gmra.mxu0 %v479
  %v551 = vpop.f32.mrf.mxu0
  %v552 = vadd.f32 0.0, %v551
  %v553 = vpop.f32.mrf.mxu0
  %554 = vdwg.mxu0
  %v555 = vld [vmem:[%s3] sm:$0xff]
  %v556 = vld [vmem:[%s3 + $0x8] sm:$0xff]
  %v557 = vld [vmem:[%s3 + $0x10] sm:$0xff]
  %v558 = vld [vmem:[%s3 + $0x18] sm:$0xff]
  %v559 = vld [vmem:[%s3 + $0x20] sm:$0xff]
  %v560 = vld [vmem:[%s3 + $0x28] sm:$0xff]
  %v561 = vld [vmem:[%s3 + $0x30] sm:$0xff]
  %v562 = vld [vmem:[%s3 + $0x38] sm:$0xff]
  %v563 = vld [vmem:[%s3 + $0x40] sm:$0xff]
  %v564 = vld [vmem:[%s3 + $0x48] sm:$0xff]
  %v565 = vld [vmem:[%s3 + $0x50] sm:$0xff]
  %v566 = vld [vmem:[%s3 + $0x58] sm:$0xff]
  %v567 = vld [vmem:[%s3 + $0x60] sm:$0xff]
  %v568 = vld [vmem:[%s3 + $0x68] sm:$0xff]
  %v569 = vld [vmem:[%s3 + $0x70] sm:$0xff]
  %v570 = vld [vmem:[%s3 + $0x78] sm:$0xff]
  %v571 = vld [vmem:[%s3 + $0x80] sm:$0xff]
  %v572 = vld [vmem:[%s3 + $0x88] sm:$0xff]
  %v573 = vld [vmem:[%s3 + $0x90] sm:$0xff]
  %v574 = vld [vmem:[%s3 + $0x98] sm:$0xff]
  %v575 = vld [vmem:[%s3 + $0xa0] sm:$0xff]
  %v576 = vld [vmem:[%s3 + $0xa8] sm:$0xff]
  %v577 = vld [vmem:[%s3 + $0xb0] sm:$0xff]
  %v578 = vld [vmem:[%s3 + $0xb8] sm:$0xff]
  %579 = vrot.lane.b32.xlu0 %v235, 32
  %v580 = vpop.permute.xlu0 %579
  %581 = vrot.lane.b32.xlu0 %v237, 32
  %v582 = vpop.permute.xlu0 %581
  %vm583 = vcmask 261120
  %v584 = vsel %vm583, %v580, %v582
  %585 = vrot.lane.b32.xlu0 %v306, 96
  %v586 = vpop.permute.xlu0 %585
  %v587 = vsel %vm387, %v584, 0
  %v589 = vsel %vm387, %v586, 0
  %591 = vmatprep.subr.mxu0 0.0
  %592 = vmatpush1.xpose.msra.mxu0 0.0
  %593 = vmatprep.subr.mxu0 0.0
  %594 = vmatpush1.xpose.msra.mxu0 0.0
  %595 = vmatprep.subr.mxu0 0.0
  %596 = vmatpush1.xpose.msra.mxu0 0.0
  %597 = vmatprep.subr.mxu0 0.0
  %598 = vmatpush1.xpose.msra.mxu0 0.0
  %599 = vmatprep.subr.mxu0 0.0
  %600 = vmatpush1.xpose.msra.mxu0 0.0
  %601 = vmatprep.subr.mxu0 0.0
  %602 = vmatpush1.xpose.msra.mxu0 0.0
  %603 = vmatprep.subr.mxu0 0.0
  %604 = vmatpush1.xpose.msra.mxu0 0.0
  %605 = vmatprep.subr.mxu0 0.0
  %606 = vmatpush1.xpose.msra.mxu0 0.0
  %607 = vmatprep.subr.mxu0 0.0
  %608 = vmatpush1.xpose.msra.mxu0 0.0
  %609 = vmatprep.subr.mxu0 0.0
  %610 = vmatpush1.xpose.msra.mxu0 0.0
  %611 = vmatprep.subr.mxu0 0.0
  %612 = vmatpush1.xpose.msra.mxu0 0.0
  %613 = vmatprep.subr.mxu0 0.0
  %614 = vmatpush1.xpose.msra.mxu0 0.0
  %615 = vmatprep.subr.mxu0 0.0
  %616 = vmatpush1.xpose.msra.mxu0 0.0
  %617 = vmatprep.subr.mxu0 0.0
  %618 = vmatpush1.xpose.msra.mxu0 0.0
  %619 = vmatprep.subr.mxu0 0.0
  %620 = vmatpush1.xpose.msra.mxu0 0.0
  %621 = vmatprep.subr.mxu0 0.0
  %622 = vmatpush1.xpose.msra.mxu0 %v589
  %623 = vmatprep.subr.mxu0 0.0
  %624 = vmatpush2.xpose.msra.mxu0 0.0
  %625 = vmatprep.subr.mxu0 0.0
  %626 = vmatpush2.xpose.msra.mxu0 0.0
  %627 = vmatprep.subr.mxu0 0.0
  %628 = vmatpush2.xpose.msra.mxu0 0.0
  %629 = vmatprep.subr.mxu0 0.0
  %630 = vmatpush2.xpose.msra.mxu0 0.0
  %631 = vmatprep.subr.mxu0 0.0
  %632 = vmatpush2.xpose.msra.mxu0 0.0
  %633 = vmatprep.subr.mxu0 0.0
  %634 = vmatpush2.xpose.msra.mxu0 0.0
  %635 = vmatprep.subr.mxu0 0.0
  %636 = vmatpush2.xpose.msra.mxu0 0.0
  %637 = vmatprep.subr.mxu0 0.0
  %638 = vmatpush2.xpose.msra.mxu0 0.0
  %639 = vmatprep.subr.mxu0 0.0
  %640 = vmatpush2.xpose.msra.mxu0 0.0
  %641 = vmatprep.subr.mxu0 0.0
  %642 = vmatpush2.xpose.msra.mxu0 0.0
  %643 = vmatprep.subr.mxu0 0.0
  %644 = vmatpush2.xpose.msra.mxu0 0.0
  %645 = vmatprep.subr.mxu0 0.0
  %646 = vmatpush2.xpose.msra.mxu0 0.0
  %647 = vmatprep.subr.mxu0 0.0
  %648 = vmatpush2.xpose.msra.mxu0 0.0
  %649 = vmatprep.subr.mxu0 0.0
  %650 = vmatpush2.xpose.msra.mxu0 0.0
  %651 = vmatprep.subr.mxu0 0.0
  %652 = vmatpush2.xpose.msra.mxu0 0.0
  %653 = vmatprep.subr.mxu0 0.0
  %654 = vmatpush2.xpose.msra.mxu0 0.0
  %655 = vmatprep.mubr.f32.mxu0 0.0
  %656 = vmatmul.mubr.f32.gmra.mxu0 %v587
  %v657 = vpop.f32.mrf.mxu0
  %v658 = vadd.f32 0.0, %v657
  %v659 = vpop.f32.mrf.mxu0
  %660 = vdwg.mxu0
  %v661 = vmul.f32 %v658, 0.10206208
  %v662 = vadd.f32 %v661, %v42
  %v663 = vsel %vm465, %v662, -inf
  %664 = vmax.xlane.f32.xlu0 %v663
  %v665 = vpop.xlane.xlu0 %664
  %v666 = vsub.f32 %v662, %v665
  %v667 = vmul.f32 %v666, 1.442695
  %v668 = vpow.pop %v667
  %v669 = vsel %vm465, %v668, 0.0
  %670 = vadd.xlane.f32.xlu0 %v669
  %v671 = vpop.xlane.xlu0 %670
  %v672 = vrcp.pop %v671
  %v673 = vmul.f32 %v668, %v672
  %675 = vrot.lane.b32.xlu0 %v308, 32
  %v676 = vpop.permute.xlu0 %675
  %677 = vrot.lane.b32.xlu0 %v377, 32
  %v678 = vpop.permute.xlu0 %677
  %v679 = vsel %vm583, %v676, %v678
  %v681 = vsel %vm477, %v673, 0
  %v683 = vsel %vm481, %v679, 0
  %685 = vmatprep.subr.mxu0 0.0
  %686 = vmatpush1.msra.mxu0 0.0
  %687 = vmatprep.subr.mxu0 0.0
  %688 = vmatpush1.msra.mxu0 0.0
  %689 = vmatprep.subr.mxu0 0.0
  %690 = vmatpush1.msra.mxu0 0.0
  %691 = vmatprep.subr.mxu0 0.0
  %692 = vmatpush1.msra.mxu0 0.0
  %693 = vmatprep.subr.mxu0 0.0
  %694 = vmatpush1.msra.mxu0 0.0
  %695 = vmatprep.subr.mxu0 0.0
  %696 = vmatpush1.msra.mxu0 0.0
  %697 = vmatprep.subr.mxu0 0.0
  %698 = vmatpush1.msra.mxu0 0.0
  %699 = vmatprep.subr.mxu0 0.0
  %700 = vmatpush1.msra.mxu0 0.0
  %701 = vmatprep.subr.mxu0 0.0
  %702 = vmatpush1.msra.mxu0 0.0
  %703 = vmatprep.subr.mxu0 0.0
  %704 = vmatpush1.msra.mxu0 0.0
  %705 = vmatprep.subr.mxu0 0.0
  %706 = vmatpush1.msra.mxu0 0.0
  %707 = vmatprep.subr.mxu0 0.0
  %708 = vmatpush1.msra.mxu0 0.0
  %709 = vmatprep.subr.mxu0 0.0
  %710 = vmatpush1.msra.mxu0 0.0
  %711 = vmatprep.subr.mxu0 0.0
  %712 = vmatpush1.msra.mxu0 0.0
  %713 = vmatprep.subr.mxu0 0.0
  %714 = vmatpush1.msra.mxu0 0.0
  %715 = vmatprep.subr.mxu0 0.0
  %716 = vmatpush1.msra.mxu0 %v683
  %717 = vmatprep.subr.mxu0 0.0
  %718 = vmatpush2.msra.mxu0 0.0
  %719 = vmatprep.subr.mxu0 0.0
  %720 = vmatpush2.msra.mxu0 0.0
  %721 = vmatprep.subr.mxu0 0.0
  %722 = vmatpush2.msra.mxu0 0.0
  %723 = vmatprep.subr.mxu0 0.0
  %724 = vmatpush2.msra.mxu0 0.0
  %725 = vmatprep.subr.mxu0 0.0
  %726 = vmatpush2.msra.mxu0 0.0
  %727 = vmatprep.subr.mxu0 0.0
  %728 = vmatpush2.msra.mxu0 0.0
  %729 = vmatprep.subr.mxu0 0.0
  %730 = vmatpush2.msra.mxu0 0.0
  %731 = vmatprep.subr.mxu0 0.0
  %732 = vmatpush2.msra.mxu0 0.0
  %733 = vmatprep.subr.mxu0 0.0
  %734 = vmatpush2.msra.mxu0 0.0
  %735 = vmatprep.subr.mxu0 0.0
  %736 = vmatpush2.msra.mxu0 0.0
  %737 = vmatprep.subr.mxu0 0.0
  %738 = vmatpush2.msra.mxu0 0.0
  %739 = vmatprep.subr.mxu0 0.0
  %740 = vmatpush2.msra.mxu0 0.0
  %741 = vmatprep.subr.mxu0 0.0
  %742 = vmatpush2.msra.mxu0 0.0
  %743 = vmatprep.subr.mxu0 0.0
  %744 = vmatpush2.msra.mxu0 0.0
  %745 = vmatprep.subr.mxu0 0.0
  %746 = vmatpush2.msra.mxu0 0.0
  %747 = vmatprep.subr.mxu0 0.0
  %748 = vmatpush2.msra.mxu0 0.0
  %749 = vmatprep.mubr.f32.mxu0 0.0
  %750 = vmatmul.mubr.f32.gmra.mxu0 %v681
  %v751 = vpop.f32.mrf.mxu0
  %v752 = vadd.f32 0.0, %v751
  %v753 = vpop.f32.mrf.mxu0
  %754 = vdwg.mxu0
  %s755 = scalar_lea.vmem %s3, 192
  %v756 = vld [vmem:[%s755] sm:$0xff]
  %v757 = vld [vmem:[%s755 + $0x8] sm:$0xff]
  %v758 = vld [vmem:[%s755 + $0x10] sm:$0xff]
  %v759 = vld [vmem:[%s755 + $0x18] sm:$0xff]
  %v760 = vld [vmem:[%s755 + $0x20] sm:$0xff]
  %v761 = vld [vmem:[%s755 + $0x28] sm:$0xff]
  %v762 = vld [vmem:[%s755 + $0x30] sm:$0xff]
  %v763 = vld [vmem:[%s755 + $0x38] sm:$0xff]
  %v764 = vld [vmem:[%s755 + $0x40] sm:$0xff]
  %v765 = vld [vmem:[%s755 + $0x48] sm:$0xff]
  %v766 = vld [vmem:[%s755 + $0x50] sm:$0xff]
  %v767 = vld [vmem:[%s755 + $0x58] sm:$0xff]
  %v768 = vld [vmem:[%s755 + $0x60] sm:$0xff]
  %v769 = vld [vmem:[%s755 + $0x68] sm:$0xff]
  %v770 = vld [vmem:[%s755 + $0x70] sm:$0xff]
  %v771 = vld [vmem:[%s755 + $0x78] sm:$0xff]
  %v772 = vld [vmem:[%s755 + $0x80] sm:$0xff]
  %v773 = vld [vmem:[%s755 + $0x88] sm:$0xff]
  %v774 = vld [vmem:[%s755 + $0x90] sm:$0xff]
  %v775 = vld [vmem:[%s755 + $0x98] sm:$0xff]
  %v776 = vld [vmem:[%s755 + $0xa0] sm:$0xff]
  %v777 = vld [vmem:[%s755 + $0xa8] sm:$0xff]
  %v778 = vld [vmem:[%s755 + $0xb0] sm:$0xff]
  %v779 = vld [vmem:[%s755 + $0xb8] sm:$0xff]
  %v781 = vsel %vm387, %v752, 0
  %783 = vmatprep.subr.mxu0 0.0
  %784 = vmatpush1.msra.mxu0 0.0
  %785 = vmatprep.subr.mxu0 0.0
  %786 = vmatpush1.msra.mxu0 0.0
  %787 = vmatprep.subr.mxu0 0.0
  %788 = vmatpush1.msra.mxu0 0.0
  %789 = vmatprep.subr.mxu0 0.0
  %790 = vmatpush1.msra.mxu0 0.0
  %791 = vmatprep.subr.mxu0 %v779
  %792 = vmatpush1.msra.mxu0 %v778
  %793 = vmatprep.subr.mxu0 %v777
  %794 = vmatpush1.msra.mxu0 %v776
  %795 = vmatprep.subr.mxu0 %v775
  %796 = vmatpush1.msra.mxu0 %v774
  %797 = vmatprep.subr.mxu0 %v773
  %798 = vmatpush1.msra.mxu0 %v772
  %799 = vmatprep.subr.mxu0 %v771
  %800 = vmatpush1.msra.mxu0 %v770
  %801 = vmatprep.subr.mxu0 %v769
  %802 = vmatpush1.msra.mxu0 %v768
  %803 = vmatprep.subr.mxu0 %v767
  %804 = vmatpush1.msra.mxu0 %v766
  %805 = vmatprep.subr.mxu0 %v765
  %806 = vmatpush1.msra.mxu0 %v764
  %807 = vmatprep.subr.mxu0 %v763
  %808 = vmatpush1.msra.mxu0 %v762
  %809 = vmatprep.subr.mxu0 %v761
  %810 = vmatpush1.msra.mxu0 %v760
  %811 = vmatprep.subr.mxu0 %v759
  %812 = vmatpush1.msra.mxu0 %v758
  %813 = vmatprep.subr.mxu0 %v757
  %814 = vmatpush1.msra.mxu0 %v756
  %815 = vmatprep.subr.mxu0 0.0
  %816 = vmatpush2.msra.mxu0 0.0
  %817 = vmatprep.subr.mxu0 0.0
  %818 = vmatpush2.msra.mxu0 0.0
  %819 = vmatprep.subr.mxu0 0.0
  %820 = vmatpush2.msra.mxu0 0.0
  %821 = vmatprep.subr.mxu0 0.0
  %822 = vmatpush2.msra.mxu0 0.0
  %823 = vmatprep.subr.mxu0 0.0
  %824 = vmatpush2.msra.mxu0 0.0
  %825 = vmatprep.subr.mxu0 0.0
  %826 = vmatpush2.msra.mxu0 0.0
  %827 = vmatprep.subr.mxu0 0.0
  %828 = vmatpush2.msra.mxu0 0.0
  %829 = vmatprep.subr.mxu0 0.0
  %830 = vmatpush2.msra.mxu0 0.0
  %831 = vmatprep.subr.mxu0 0.0
  %832 = vmatpush2.msra.mxu0 0.0
  %833 = vmatprep.subr.mxu0 0.0
  %834 = vmatpush2.msra.mxu0 0.0
  %835 = vmatprep.subr.mxu0 0.0
  %836 = vmatpush2.msra.mxu0 0.0
  %837 = vmatprep.subr.mxu0 0.0
  %838 = vmatpush2.msra.mxu0 0.0
  %839 = vmatprep.subr.mxu0 0.0
  %840 = vmatpush2.msra.mxu0 0.0
  %841 = vmatprep.subr.mxu0 0.0
  %842 = vmatpush2.msra.mxu0 0.0
  %843 = vmatprep.subr.mxu0 0.0
  %844 = vmatpush2.msra.mxu0 0.0
  %845 = vmatprep.subr.mxu0 0.0
  %846 = vmatpush2.msra.mxu0 0.0
  %847 = vmatprep.mubr.f32.mxu0 0.0
  %848 = vmatmul.mubr.f32.gmra.mxu0 %v781
  %v849 = vpop.f32.mrf.mxu0
  %v850 = vadd.f32 0.0, %v849
  %v851 = vpop.f32.mrf.mxu0
  %v852 = vadd.f32 0.0, %v851
  %853 = vdwg.mxu0
  %v855 = vsel %vm387, %v552, 0
  %857 = vmatprep.subr.mxu0 0.0
  %858 = vmatpush1.msra.mxu0 0.0
  %859 = vmatprep.subr.mxu0 0.0
  %860 = vmatpush1.msra.mxu0 0.0
  %861 = vmatprep.subr.mxu0 0.0
  %862 = vmatpush1.msra.mxu0 0.0
  %863 = vmatprep.subr.mxu0 0.0
  %864 = vmatpush1.msra.mxu0 0.0
  %865 = vmatprep.subr.mxu0 %v578
  %866 = vmatpush1.msra.mxu0 %v577
  %867 = vmatprep.subr.mxu0 %v576
  %868 = vmatpush1.msra.mxu0 %v575
  %869 = vmatprep.subr.mxu0 %v574
  %870 = vmatpush1.msra.mxu0 %v573
  %871 = vmatprep.subr.mxu0 %v572
  %872 = vmatpush1.msra.mxu0 %v571
  %873 = vmatprep.subr.mxu0 %v570
  %874 = vmatpush1.msra.mxu0 %v569
  %875 = vmatprep.subr.mxu0 %v568
  %876 = vmatpush1.msra.mxu0 %v567
  %877 = vmatprep.subr.mxu0 %v566
  %878 = vmatpush1.msra.mxu0 %v565
  %879 = vmatprep.subr.mxu0 %v564
  %880 = vmatpush1.msra.mxu0 %v563
  %881 = vmatprep.subr.mxu0 %v562
  %882 = vmatpush1.msra.mxu0 %v561
  %883 = vmatprep.subr.mxu0 %v560
  %884 = vmatpush1.msra.mxu0 %v559
  %885 = vmatprep.subr.mxu0 %v558
  %886 = vmatpush1.msra.mxu0 %v557
  %887 = vmatprep.subr.mxu0 %v556
  %888 = vmatpush1.msra.mxu0 %v555
  %889 = vmatprep.subr.mxu0 0.0
  %890 = vmatpush2.msra.mxu0 0.0
  %891 = vmatprep.subr.mxu0 0.0
  %892 = vmatpush2.msra.mxu0 0.0
  %893 = vmatprep.subr.mxu0 0.0
  %894 = vmatpush2.msra.mxu0 0.0
  %895 = vmatprep.subr.mxu0 0.0
  %896 = vmatpush2.msra.mxu0 0.0
  %897 = vmatprep.subr.mxu0 0.0
  %898 = vmatpush2.msra.mxu0 0.0
  %899 = vmatprep.subr.mxu0 0.0
  %900 = vmatpush2.msra.mxu0 0.0
  %901 = vmatprep.subr.mxu0 0.0
  %902 = vmatpush2.msra.mxu0 0.0
  %903 = vmatprep.subr.mxu0 0.0
  %904 = vmatpush2.msra.mxu0 0.0
  %905 = vmatprep.subr.mxu0 0.0
  %906 = vmatpush2.msra.mxu0 0.0
  %907 = vmatprep.subr.mxu0 0.0
  %908 = vmatpush2.msra.mxu0 0.0
  %909 = vmatprep.subr.mxu0 0.0
  %910 = vmatpush2.msra.mxu0 0.0
  %911 = vmatprep.subr.mxu0 0.0
  %912 = vmatpush2.msra.mxu0 0.0
  %913 = vmatprep.subr.mxu0 0.0
  %914 = vmatpush2.msra.mxu0 0.0
  %915 = vmatprep.subr.mxu0 0.0
  %916 = vmatpush2.msra.mxu0 0.0
  %917 = vmatprep.subr.mxu0 0.0
  %918 = vmatpush2.msra.mxu0 0.0
  %919 = vmatprep.subr.mxu0 0.0
  %920 = vmatpush2.msra.mxu0 0.0
  %921 = vmatprep.mubr.f32.mxu0 0.0
  %922 = vmatmul.mubr.f32.gmra.mxu0 %v855
  %v923 = vpop.f32.mrf.mxu0
  %v924 = vadd.f32 %v850, %v923
  %v925 = vpop.f32.mrf.mxu0
  %v926 = vadd.f32 %v852, %v925
  %927 = vdwg.mxu0
  %v928 = vld [vmem:[%s4] sm:$0x3]
  %v929 = vld [vmem:[%s5] sm:$0x3]
  %v930 = vsel %vm481, %v924, 0.0
  %v931 = vrot.slane %v930, 4
  %v932 = vadd.f32 %v930, %v931
  %v933 = vrot.slane %v932, 2
  %v934 = vadd.f32 %v932, %v933
  %v935 = vrot.slane %v934, 1
  %v936 = vadd.f32 %v934, %v935
  %vm937 = vcmask 519168
  %v938 = vsel %vm937, %v926, 0.0
  %v939 = vrot.slane %v938, 4
  %v940 = vadd.f32 %v938, %v939
  %v941 = vrot.slane %v940, 2
  %v942 = vadd.f32 %v940, %v941
  %v943 = vrot.slane %v942, 1
  %v944 = vadd.f32 %v942, %v943
  %v945 = vrcp.pop 4.0
  %v946 = vmul.f32 %v936, %v945
  %v947 = vmul.f32 %v944, %v945
  %v948 = vsub.f32 %v924, %v946
  %v949 = vsub.f32 %v926, %v947
  %v950 = vmul.f32 %v948, %v948
  %v951 = vmul.f32 %v949, %v949
  %v952 = vsel %vm481, %v950, 0.0
  %v953 = vrot.slane %v952, 4
  %v954 = vadd.f32 %v952, %v953
  %v955 = vrot.slane %v954, 2
  %v956 = vadd.f32 %v954, %v955
  %v957 = vrot.slane %v956, 1
  %v958 = vadd.f32 %v956, %v957
  %v959 = vsel %vm937, %v951, 0.0
  %v960 = vrot.slane %v959, 4
  %v961 = vadd.f32 %v959, %v960
  %v962 = vrot.slane %v961, 2
  %v963 = vadd.f32 %v961, %v962
  %v964 = vrot.slane %v963, 1
  %v965 = vadd.f32 %v963, %v964
  %v966 = vmul.f32 %v958, %v945
  %v967 = vmul.f32 %v965, %v945
  %v968 = vadd.f32 %v966, 1e-05
  %v969 = vadd.f32 %v967, 1e-05
  %v970 = vrsqrt.pop %v968
  %v971 = vrsqrt.pop %v969
  %v972 = vmul.f32 %v948, %v970
  %v973 = vmul.f32 %v949, %v971
  %v975 = vlaneseq
  %v976 = vshrl.u32 %v975, 7
  %v977 = vsub.s32 0, %v976
  %v978 = vrot.slane %v928, %v977
  %v979 = vlaneseq
  %v980 = vshrl.u32 %v979, 7
  %v981 = vsub.s32 1, %v980
  %v982 = vrot.slane %v928, %v981
  %v985 = vmul.f32 %v972, %v978
  %v986 = vmul.f32 %v973, %v982
  %v988 = vlaneseq
  %v989 = vshrl.u32 %v988, 7
  %v990 = vsub.s32 0, %v989
  %v991 = vrot.slane %v929, %v990
  %v992 = vlaneseq
  %v993 = vshrl.u32 %v992, 7
  %v994 = vsub.s32 1, %v993
  %v995 = vrot.slane %v929, %v994
  %v998 = vadd.f32 %v985, %v991
  %v999 = vadd.f32 %v986, %v995
  %v1002 = vcombine.low %v998, %v999
  %v1004 = vadd.f32 %v41, %v1002
  %v1005 = vld [vmem:[%s6] sm:$0xff]
  %v1006 = vld [vmem:[%s6 + $0x8] sm:$0xff]
  %v1007 = vld [vmem:[%s6 + $0x10] sm:$0xff]
  %v1008 = vld [vmem:[%s6 + $0x18] sm:$0xff]
  %v1009 = vld [vmem:[%s6 + $0x20] sm:$0xff]
  %v1010 = vld [vmem:[%s6 + $0x28] sm:$0xff]
  %v1011 = vld [vmem:[%s6 + $0x30] sm:$0xff]
  %v1012 = vld [vmem:[%s6 + $0x38] sm:$0xff]
  %v1013 = vld [vmem:[%s6 + $0x40] sm:$0xff]
  %v1014 = vld [vmem:[%s6 + $0x48] sm:$0xff]
  %v1015 = vld [vmem:[%s6 + $0x50] sm:$0xff]
  %v1016 = vld [vmem:[%s6 + $0x58] sm:$0xff]
  %v1017 = vld [vmem:[%s6 + $0x60] sm:$0xff]
  %v1018 = vld [vmem:[%s6 + $0x68] sm:$0xff]
  %v1019 = vld [vmem:[%s6 + $0x70] sm:$0xff]
  %v1020 = vld [vmem:[%s6 + $0x78] sm:$0xff]
  %v1021 = vld [vmem:[%s6 + $0x80] sm:$0xff]
  %v1022 = vld [vmem:[%s6 + $0x88] sm:$0xff]
  %v1023 = vld [vmem:[%s6 + $0x90] sm:$0xff]
  %v1024 = vld [vmem:[%s6 + $0x98] sm:$0xff]
  %v1025 = vld [vmem:[%s6 + $0xa0] sm:$0xff]
  %v1026 = vld [vmem:[%s6 + $0xa8] sm:$0xff]
  %v1027 = vld [vmem:[%s6 + $0xb0] sm:$0xff]
  %v1028 = vld [vmem:[%s6 + $0xb8] sm:$0xff]
  %v1029 = vld [vmem:[%s6 + $0xc0] sm:$0xff]
  %v1030 = vld [vmem:[%s6 + $0xc8] sm:$0xff]
  %v1031 = vld [vmem:[%s6 + $0xd0] sm:$0xff]
  %v1032 = vld [vmem:[%s6 + $0xd8] sm:$0xff]
  %v1033 = vld [vmem:[%s6 + $0xe0] sm:$0xff]
  %v1034 = vld [vmem:[%s6 + $0xe8] sm:$0xff]
  %v1035 = vld [vmem:[%s6 + $0xf0] sm:$0xff]
  %v1036 = vld [vmem:[%s6 + $0xf8] sm:$0xff]
  %v1037 = vld [vmem:[%s6 + $0x100] sm:$0xff]
  %v1038 = vld [vmem:[%s6 + $0x108] sm:$0xff]
  %v1039 = vld [vmem:[%s6 + $0x110] sm:$0xff]
  %v1040 = vld [vmem:[%s6 + $0x118] sm:$0xff]
  %v1041 = vld [vmem:[%s6 + $0x120] sm:$0xff]
  %v1042 = vld [vmem:[%s6 + $0x128] sm:$0xff]
  %v1043 = vld [vmem:[%s6 + $0x130] sm:$0xff]
  %v1044 = vld [vmem:[%s6 + $0x138] sm:$0xff]
  %v1045 = vld [vmem:[%s6 + $0x140] sm:$0xff]
  %v1046 = vld [vmem:[%s6 + $0x148] sm:$0xff]
  %v1047 = vld [vmem:[%s6 + $0x150] sm:$0xff]
  %v1048 = vld [vmem:[%s6 + $0x158] sm:$0xff]
  %v1049 = vld [vmem:[%s6 + $0x160] sm:$0xff]
  %v1050 = vld [vmem:[%s6 + $0x168] sm:$0xff]
  %v1051 = vld [vmem:[%s6 + $0x170] sm:$0xff]
  %v1052 = vld [vmem:[%s6 + $0x178] sm:$0xff]
  %v1053 = vld [vmem:[%s7] sm:$0x3]
  %v1055 = vlaneseq
  %v1056 = vshrl.u32 %v1055, 7
  %v1057 = vsub.s32 0, %v1056
  %v1058 = vrot.slane %v1053, %v1057
  %v1059 = vlaneseq
  %v1060 = vshrl.u32 %v1059, 7
  %v1061 = vsub.s32 1, %v1060
  %v1062 = vrot.slane %v1053, %v1061
  %v1066 = vcombine.high %v1004, %v1004
  %v1067 = vsel %vm165, %v1066, 0
  %1069 = vmatprep.subr.mxu0 %v1036
  %1070 = vmatpush1.msra.mxu0 %v1035
  %1071 = vmatprep.subr.mxu0 %v1034
  %1072 = vmatpush1.msra.mxu0 %v1033
  %1073 = vmatprep.subr.mxu0 %v1032
  %1074 = vmatpush1.msra.mxu0 %v1031
  %1075 = vmatprep.subr.mxu0 %v1030
  %1076 = vmatpush1.msra.mxu0 %v1029
  %1077 = vmatprep.subr.mxu0 %v1028
  %1078 = vmatpush1.msra.mxu0 %v1027
  %1079 = vmatprep.subr.mxu0 %v1026
  %1080 = vmatpush1.msra.mxu0 %v1025
  %1081 = vmatprep.subr.mxu0 %v1024
  %1082 = vmatpush1.msra.mxu0 %v1023
  %1083 = vmatprep.subr.mxu0 %v1022
  %1084 = vmatpush1.msra.mxu0 %v1021
  %1085 = vmatprep.subr.mxu0 %v1020
  %1086 = vmatpush1.msra.mxu0 %v1019
  %1087 = vmatprep.subr.mxu0 %v1018
  %1088 = vmatpush1.msra.mxu0 %v1017
  %1089 = vmatprep.subr.mxu0 %v1016
  %1090 = vmatpush1.msra.mxu0 %v1015
  %1091 = vmatprep.subr.mxu0 %v1014
  %1092 = vmatpush1.msra.mxu0 %v1013
  %1093 = vmatprep.subr.mxu0 %v1012
  %1094 = vmatpush1.msra.mxu0 %v1011
  %1095 = vmatprep.subr.mxu0 %v1010
  %1096 = vmatpush1.msra.mxu0 %v1009
  %1097 = vmatprep.subr.mxu0 %v1008
  %1098 = vmatpush1.msra.mxu0 %v1007
  %1099 = vmatprep.subr.mxu0 %v1006
  %1100 = vmatpush1.msra.mxu0 %v1005
  %1101 = vmatprep.subr.mxu0 0.0
  %1102 = vmatpush2.msra.mxu0 0.0
  %1103 = vmatprep.subr.mxu0 0.0
  %1104 = vmatpush2.msra.mxu0 0.0
  %1105 = vmatprep.subr.mxu0 0.0
  %1106 = vmatpush2.msra.mxu0 0.0
  %1107 = vmatprep.subr.mxu0 0.0
  %1108 = vmatpush2.msra.mxu0 0.0
  %1109 = vmatprep.subr.mxu0 0.0
  %1110 = vmatpush2.msra.mxu0 0.0
  %1111 = vmatprep.subr.mxu0 0.0
  %1112 = vmatpush2.msra.mxu0 0.0
  %1113 = vmatprep.subr.mxu0 0.0
  %1114 = vmatpush2.msra.mxu0 0.0
  %1115 = vmatprep.subr.mxu0 0.0
  %1116 = vmatpush2.msra.mxu0 0.0
  %1117 = vmatprep.subr.mxu0 %v1052
  %1118 = vmatpush2.msra.mxu0 %v1051
  %1119 = vmatprep.subr.mxu0 %v1050
  %1120 = vmatpush2.msra.mxu0 %v1049
  %1121 = vmatprep.subr.mxu0 %v1048
  %1122 = vmatpush2.msra.mxu0 %v1047
  %1123 = vmatprep.subr.mxu0 %v1046
  %1124 = vmatpush2.msra.mxu0 %v1045
  %1125 = vmatprep.subr.mxu0 %v1044
  %1126 = vmatpush2.msra.mxu0 %v1043
  %1127 = vmatprep.subr.mxu0 %v1042
  %1128 = vmatpush2.msra.mxu0 %v1041
  %1129 = vmatprep.subr.mxu0 %v1040
  %1130 = vmatpush2.msra.mxu0 %v1039
  %1131 = vmatprep.subr.mxu0 %v1038
  %1132 = vmatpush2.msra.mxu0 %v1037
  %1133 = vmatprep.mubr.f32.mxu0 %v1067
  %1134 = vmatmul.mubr.f32.gmra.mxu0 %v1004
  %v1135 = vpop.f32.mrf.mxu0
  %v1136 = vadd.f32 %v1058, %v1135
  %v1137 = vpop.f32.mrf.mxu0
  %v1138 = vadd.f32 %v1062, %v1137
  %1139 = vdwg.mxu0
  %v1140 = vmax.f32 %v1136, 0.0
  %v1141 = vmax.f32 %v1138, 0.0
  %v1142 = vld [vmem:[%s8] sm:$0xff]
  %v1143 = vld [vmem:[%s8 + $0x8] sm:$0xff]
  %v1144 = vld [vmem:[%s8 + $0x10] sm:$0xff]
  %v1145 = vld [vmem:[%s8 + $0x18] sm:$0xff]
  %v1146 = vld [vmem:[%s8 + $0x20] sm:$0xff]
  %v1147 = vld [vmem:[%s8 + $0x28] sm:$0xff]
  %v1148 = vld [vmem:[%s8 + $0x30] sm:$0xff]
  %v1149 = vld [vmem:[%s8 + $0x38] sm:$0xff]
  %v1150 = vld [vmem:[%s8 + $0x40] sm:$0xff]
  %v1151 = vld [vmem:[%s8 + $0x48] sm:$0xff]
  %v1152 = vld [vmem:[%s8 + $0x50] sm:$0xff]
  %v1153 = vld [vmem:[%s8 + $0x58] sm:$0xff]
  %v1154 = vld [vmem:[%s8 + $0x60] sm:$0xff]
  %v1155 = vld [vmem:[%s8 + $0x68] sm:$0xff]
  %v1156 = vld [vmem:[%s8 + $0x70] sm:$0xff]
  %v1157 = vld [vmem:[%s8 + $0x78] sm:$0xff]
  %v1158 = vld [vmem:[%s8 + $0x80] sm:$0xff]
  %v1159 = vld [vmem:[%s8 + $0x88] sm:$0xff]
  %v1160 = vld [vmem:[%s8 + $0x90] sm:$0xff]
  %v1161 = vld [vmem:[%s8 + $0x98] sm:$0xff]
  %v1162 = vld [vmem:[%s8 + $0xa0] sm:$0xff]
  %v1163 = vld [vmem:[%s8 + $0xa8] sm:$0xff]
  %v1164 = vld [vmem:[%s8 + $0xb0] sm:$0xff]
  %v1165 = vld [vmem:[%s8 + $0xb8] sm:$0xff]
  %v1166 = vld [vmem:[%s8 + $0xc0] sm:$0xff]
  %v1167 = vld [vmem:[%s8 + $0xc8] sm:$0xff]
  %v1168 = vld [vmem:[%s8 + $0xd0] sm:$0xff]
  %v1169 = vld [vmem:[%s8 + $0xd8] sm:$0xff]
  %v1170 = vld [vmem:[%s8 + $0xe0] sm:$0xff]
  %v1171 = vld [vmem:[%s8 + $0xe8] sm:$0xff]
  %v1172 = vld [vmem:[%s8 + $0xf0] sm:$0xff]
  %v1173 = vld [vmem:[%s8 + $0xf8] sm:$0xff]
  %v1174 = vld [vmem:[%s8 + $0x100] sm:$0xff]
  %v1175 = vld [vmem:[%s8 + $0x108] sm:$0xff]
  %v1176 = vld [vmem:[%s8 + $0x110] sm:$0xff]
  %v1177 = vld [vmem:[%s8 + $0x118] sm:$0xff]
  %v1178 = vld [vmem:[%s8 + $0x120] sm:$0xff]
  %v1179 = vld [vmem:[%s8 + $0x128] sm:$0xff]
  %v1180 = vld [vmem:[%s8 + $0x130] sm:$0xff]
  %v1181 = vld [vmem:[%s8 + $0x138] sm:$0xff]
  %v1182 = vld [vmem:[%s8 + $0x140] sm:$0xff]
  %v1183 = vld [vmem:[%s8 + $0x148] sm:$0xff]
  %v1184 = vld [vmem:[%s8 + $0x150] sm:$0xff]
  %v1185 = vld [vmem:[%s8 + $0x158] sm:$0xff]
  %v1186 = vld [vmem:[%s8 + $0x160] sm:$0xff]
  %v1187 = vld [vmem:[%s8 + $0x168] sm:$0xff]
  %v1188 = vld [vmem:[%s8 + $0x170] sm:$0xff]
  %v1189 = vld [vmem:[%s8 + $0x178] sm:$0xff]
  %v1191 = vsel %vm165, %v1141, 0
  %1193 = vmatprep.subr.mxu0 %v1173
  %1194 = vmatpush1.msra.mxu0 %v1172
  %1195 = vmatprep.subr.mxu0 %v1171
  %1196 = vmatpush1.msra.mxu0 %v1170
  %1197 = vmatprep.subr.mxu0 %v1169
  %1198 = vmatpush1.msra.mxu0 %v1168
  %1199 = vmatprep.subr.mxu0 %v1167
  %1200 = vmatpush1.msra.mxu0 %v1166
  %1201 = vmatprep.subr.mxu0 %v1165
  %1202 = vmatpush1.msra.mxu0 %v1164
  %1203 = vmatprep.subr.mxu0 %v1163
  %1204 = vmatpush1.msra.mxu0 %v1162
  %1205 = vmatprep.subr.mxu0 %v1161
  %1206 = vmatpush1.msra.mxu0 %v1160
  %1207 = vmatprep.subr.mxu0 %v1159
  %1208 = vmatpush1.msra.mxu0 %v1158
  %1209 = vmatprep.subr.mxu0 %v1157
  %1210 = vmatpush1.msra.mxu0 %v1156
  %1211 = vmatprep.subr.mxu0 %v1155
  %1212 = vmatpush1.msra.mxu0 %v1154
  %1213 = vmatprep.subr.mxu0 %v1153
  %1214 = vmatpush1.msra.mxu0 %v1152
  %1215 = vmatprep.subr.mxu0 %v1151
  %1216 = vmatpush1.msra.mxu0 %v1150
  %1217 = vmatprep.subr.mxu0 %v1149
  %1218 = vmatpush1.msra.mxu0 %v1148
  %1219 = vmatprep.subr.mxu0 %v1147
  %1220 = vmatpush1.msra.mxu0 %v1146
  %1221 = vmatprep.subr.mxu0 %v1145
  %1222 = vmatpush1.msra.mxu0 %v1144
  %1223 = vmatprep.subr.mxu0 %v1143
  %1224 = vmatpush1.msra.mxu0 %v1142
  %1225 = vmatprep.subr.mxu0 0.0
  %1226 = vmatpush2.msra.mxu0 0.0
  %1227 = vmatprep.subr.mxu0 0.0
  %1228 = vmatpush2.msra.mxu0 0.0
  %1229 = vmatprep.subr.mxu0 0.0
  %1230 = vmatpush2.msra.mxu0 0.0
  %1231 = vmatprep.subr.mxu0 0.0
  %1232 = vmatpush2.msra.mxu0 0.0
  %1233 = vmatprep.subr.mxu0 0.0
  %1234 = vmatpush2.msra.mxu0 0.0
  %1235 = vmatprep.subr.mxu0 0.0
  %1236 = vmatpush2.msra.mxu0 0.0
  %1237 = vmatprep.subr.mxu0 0.0
  %1238 = vmatpush2.msra.mxu0 0.0
  %1239 = vmatprep.subr.mxu0 0.0
  %1240 = vmatpush2.msra.mxu0 0.0
  %1241 = vmatprep.subr.mxu0 %v1189
  %1242 = vmatpush2.msra.mxu0 %v1188
  %1243 = vmatprep.subr.mxu0 %v1187
  %1244 = vmatpush2.msra.mxu0 %v1186
  %1245 = vmatprep.subr.mxu0 %v1185
  %1246 = vmatpush2.msra.mxu0 %v1184
  %1247 = vmatprep.subr.mxu0 %v1183
  %1248 = vmatpush2.msra.mxu0 %v1182
  %1249 = vmatprep.subr.mxu0 %v1181
  %1250 = vmatpush2.msra.mxu0 %v1180
  %1251 = vmatprep.subr.mxu0 %v1179
  %1252 = vmatpush2.msra.mxu0 %v1178
  %1253 = vmatprep.subr.mxu0 %v1177
  %1254 = vmatpush2.msra.mxu0 %v1176
  %1255 = vmatprep.subr.mxu0 %v1175
  %1256 = vmatpush2.msra.mxu0 %v1174
  %1257 = vmatprep.mubr.f32.mxu0 %v1191
  %1258 = vmatmul.mubr.f32.gmra.mxu0 %v1140
  %v1259 = vpop.f32.mrf.mxu0
  %v1260 = vadd.f32 0.0, %v1259
  %v1261 = vpop.f32.mrf.mxu0
  %v1262 = vadd.f32 0.0, %v1261
  %1263 = vdwg.mxu0
  %v1266 = vcombine.low %v1260, %v1262
  %v1268 = vadd.f32 %v1004, %v1266
  %v1269 = vld [vmem:[%s9] sm:$0x3]
  %v1271 = vlaneseq
  %v1272 = vshrl.u32 %v1271, 7
  %v1273 = vsub.s32 0, %v1272
  %v1274 = vrot.slane %v1269, %v1273
  %v1275 = vlaneseq
  %v1276 = vshrl.u32 %v1275, 7
  %v1277 = vsub.s32 1, %v1276
  %v1278 = vrot.slane %v1269, %v1277
  %v1279 = vcombine.low %v1274, %v1278
  %v1281 = vadd.f32 %v1268, %v1279
  %v1282 = vld [vmem:[%s10] sm:$0x3]
  %v1283 = vld [vmem:[%s11] sm:$0x3]
  %v1285 = vcombine.high %v1281, %v1281
  %v1287 = vsel %vm481, %v1281, 0.0
  %v1288 = vrot.slane %v1287, 4
  %v1289 = vadd.f32 %v1287, %v1288
  %v1290 = vrot.slane %v1289, 2
  %v1291 = vadd.f32 %v1289, %v1290
  %v1292 = vrot.slane %v1291, 1
  %v1293 = vadd.f32 %v1291, %v1292
  %v1294 = vsel %vm937, %v1285, 0.0
  %v1295 = vrot.slane %v1294, 4
  %v1296 = vadd.f32 %v1294, %v1295
  %v1297 = vrot.slane %v1296, 2
  %v1298 = vadd.f32 %v1296, %v1297
  %v1299 = vrot.slane %v1298, 1
  %v1300 = vadd.f32 %v1298, %v1299
  %v1301 = vmul.f32 %v1293, %v945
  %v1302 = vmul.f32 %v1300, %v945
  %v1305 = vcombine.low %v1301, %v1302
  %v1307 = vsub.f32 %v1281, %v1305
  %v1308 = vmul.f32 %v1307, %v1307
  %v1310 = vcombine.high %v1308, %v1308
  %v1312 = vsel %vm481, %v1308, 0.0
  %v1313 = vrot.slane %v1312, 4
  %v1314 = vadd.f32 %v1312, %v1313
  %v1315 = vrot.slane %v1314, 2
  %v1316 = vadd.f32 %v1314, %v1315
  %v1317 = vrot.slane %v1316, 1
  %v1318 = vadd.f32 %v1316, %v1317
  %v1319 = vsel %vm937, %v1310, 0.0
  %v1320 = vrot.slane %v1319, 4
  %v1321 = vadd.f32 %v1319, %v1320
  %v1322 = vrot.slane %v1321, 2
  %v1323 = vadd.f32 %v1321, %v1322
  %v1324 = vrot.slane %v1323, 1
  %v1325 = vadd.f32 %v1323, %v1324
  %v1326 = vmul.f32 %v1318, %v945
  %v1327 = vmul.f32 %v1325, %v945
  %v1328 = vadd.f32 %v1326, 1e-05
  %v1329 = vadd.f32 %v1327, 1e-05
  %v1330 = vrsqrt.pop %v1328
  %v1331 = vrsqrt.pop %v1329
  %v1334 = vcombine.low %v1330, %v1331
  %v1336 = vmul.f32 %v1307, %v1334
  %v1338 = vlaneseq
  %v1339 = vshrl.u32 %v1338, 7
  %v1340 = vsub.s32 0, %v1339
  %v1341 = vrot.slane %v1282, %v1340
  %v1342 = vlaneseq
  %v1343 = vshrl.u32 %v1342, 7
  %v1344 = vsub.s32 1, %v1343
  %v1345 = vrot.slane %v1282, %v1344
  %v1346 = vcombine.low %v1341, %v1345
  %v1348 = vmul.f32 %v1336, %v1346
  %v1350 = vlaneseq
  %v1351 = vshrl.u32 %v1350, 7
  %v1352 = vsub.s32 0, %v1351
  %v1353 = vrot.slane %v1283, %v1352
  %v1354 = vlaneseq
  %v1355 = vshrl.u32 %v1354, 7
  %v1356 = vsub.s32 1, %v1355
  %v1357 = vrot.slane %v1283, %v1356
  %v1358 = vcombine.low %v1353, %v1357
  %v1360 = vadd.f32 %v1348, %v1358
  %vm1361 = vcmask 523268
  %vm1362 = vmor %vm1361, %vm481
  %1363 = vst.msk [vmem:[%s12] sm:$0xff] %vm1362, %v1360
  // Predicated region
  $region50: #{_forward.7} parent=0 // pred_check
    _
  $region51: #{_forward.7} parent=0 // pred_check_branch
    %1365 = sbr.rel (0) target = $region53
  $region52: #{_forward.7} parent=0 // pred_region
    _
  $region53: #{_forward.7} parent=0 // pred_fallthru
    _
  // Predicated region
  $region54: #{_forward.7} parent=0 // pred_check
    _
  $region55: #{_forward.7} parent=0 // pred_check_branch
    %1367 = sbr.rel (0) target = $region57
  $region56: #{_forward.7} parent=0 // pred_region
    _
  $region57: #{_forward.7} parent=0 // pred_fallthru
    _

// kernel: _forward.5
$region0: #{_forward.5}
  #allocation0 [shape = 'u32[]', space=smem, size = 0x4, offset = 0x4, fixed_abs, tag = 'smem constant byte address 0x4 - core index']
  #allocation1 [shape = 'u32[144,128]{1,0:T(1,128)}', space=vmem, size = 0x12000, scoped, tag = 'internal scratch']
  %s0 = inlined_call_operand.vmem [shape: f32[4,512], index: 0, kind: input, shape index: {}]
  %s1 = inlined_call_operand.hbm [shape: f32[4,4], index: 1, kind: input, shape index: {}]
  %s2 = inlined_call_operand.hbm [shape: f32[512,1536], index: 2, kind: input, shape index: {}]
  %s3 = inlined_call_operand.hbm [shape: f32[2,256,512], index: 3, kind: input, shape index: {}]
  %s4 = inlined_call_operand.vmem [shape: f32[1,512], index: 4, kind: input, shape index: {}, may-alias: {4,10}]
  %s5 = inlined_call_operand.vmem [shape: f32[1,512], index: 5, kind: input, shape index: {}, may-alias: {5,11}]
  %s6 = inlined_call_operand.hbm [shape: f32[512,512], index: 6, kind: input, shape index: {}]
  %s7 = inlined_call_operand.hbm [shape: f32[1,512], index: 7, kind: input, shape index: {}]
  %s8 = inlined_call_operand.hbm [shape: f32[512,512], index: 8, kind: input, shape index: {}]
  %s9 = inlined_call_operand.hbm [shape: f32[1,512], index: 9, kind: input, shape index: {}]
  %s10 = inlined_call_operand.vmem [shape: f32[1,512], index: 10, kind: input, shape index: {}, may-alias: {4,10}]
  %s11 = inlined_call_operand.vmem [shape: f32[1,512], index: 11, kind: input, shape index: {}, may-alias: {5,11}]
  %s12 = inlined_call_operand.vmem [shape: f32[4,512], index: 12, kind: output, shape index: {}]
  %s13 = sld [smem:[#allocation0]]
  $region86: #{_forward.5} parent=0
    _
  %s15 = ssub.s32 1, %s13
  %s16 = scalar_select 0, %s15, %s13
  $region1: #{_forward.5} parent=0
    #allocation2 [shape = 'u8[2048]{0}', space=vmem, size = 0x800, scoped, tag = 'input window, operand 1, single buffered']
    #allocation3 [shape = 's32[1]{0}', space=sflag, size = 0x4, scoped, tag = 'scoped memory for _forward.5']
    #allocation4 [shape = 'u8[3145728]{0}', space=vmem, size = 0x300000, scoped, tag = 'input window, operand 2, single buffered']
    #allocation5 [shape = 's32[1]{0}', space=sflag, size = 0x4, scoped, tag = 'scoped memory for _forward.5']
    #allocation6 [shape = 'u8[1048576]{0}', space=vmem, size = 0x100000, scoped, tag = 'input window, operand 3, single buffered']
    #allocation7 [shape = 'u8[1048576]{0}', space=vmem, size = 0x100000, scoped, tag = 'input window, operand 6, single buffered']
    #allocation8 [shape = 's32[1]{0}', space=sflag, size = 0x4, scoped, tag = 'scoped memory for _forward.5']
    #allocation9 [shape = 'u8[2048]{0}', space=vmem, size = 0x800, scoped, tag = 'input window, operand 7, single buffered']
    #allocation10 [shape = 'u8[1048576]{0}', space=vmem, size = 0x100000, scoped, tag = 'input window, operand 8, single buffered']
    #allocation11 [shape = 's32[1]{0}', space=sflag, size = 0x4, scoped, tag = 'scoped memory for _forward.5']
    #allocation12 [shape = 'u8[2048]{0}', space=vmem, size = 0x800, scoped, tag = 'input window, operand 9, single buffered']
    %17 = vsyncpa [#allocation3], 0
    %18 = vsyncpa [#allocation5], 0
    %19 = vsyncpa [#allocation8], 0
    %20 = vsyncpa [#allocation11], 0
    // Predicated region
    $region2: #{_forward.5} parent=1 // pred_check
      _
    $region3: #{_forward.5} parent=1 // pred_check_branch
      %22 = sbr.rel (0) target = $region5
    $region4: #{_forward.5} parent=1 // pred_region
      _
    $region5: #{_forward.5} parent=1 // pred_fallthru
      _
    // Predicated region
    $region6: #{_forward.5} parent=1 // pred_check
      _
    $region7: #{_forward.5} parent=1 // pred_check_branch
      %24 = sbr.rel (0) target = $region9
    $region8: #{_forward.5} parent=1 // pred_region
      %s26 = ssub.s32 64, 64
      %27 = vsyncadd [#allocation3], %s26
      %s29 = sshll.u32 [#allocation2], 4
      %s30 = int_to_ptr.vmem [resolvable:$true] %s29
      %32 = dma.hbm_to_vmem [thread:$0]  %s1, 64, %s30, [#allocation3]
    $region9: #{_forward.5} parent=1 // pred_fallthru
      _
    // Predicated region
    $region10: #{_forward.5} parent=1 // pred_check
      _
    $region11: #{_forward.5} parent=1 // pred_check_branch
      %34 = sbr.rel (0) target = $region13
    $region12: #{_forward.5} parent=1 // pred_region
      %s36 = ssub.s32 98304, 98304
      %37 = vsyncadd [#allocation5], %s36
      %s38 = sshll.u32 [#allocation4], 4
      %s39 = int_to_ptr.vmem [resolvable:$true] %s38
      %44 = dma.hbm_to_vmem [thread:$0]  %s2, 98304, %s39, [#allocation5], 1536, 1536, 96
    $region13: #{_forward.5} parent=1 // pred_fallthru
      _
    // Predicated region
    $region14: #{_forward.5} parent=1 // pred_check
      _
    $region15: #{_forward.5} parent=1 // pred_check_branch
      %46 = sbr.rel (0) target = $region17
    $region16: #{_forward.5} parent=1 // pred_region
      %s48 = ssub.s32 32768, 32768
      %49 = vsyncadd [#allocation5], %s48
      %s50 = sshll.u32 [#allocation6], 4
      %s51 = int_to_ptr.vmem [resolvable:$true] %s50
      %56 = dma.hbm_to_vmem [thread:$0]  %s3, 32768, %s51, [#allocation5], 512, 512, 32
    $region17: #{_forward.5} parent=1 // pred_fallthru
      _
    // Predicated region
    $region18: #{_forward.5} parent=1 // pred_check
      _
    $region19: #{_forward.5} parent=1 // pred_check_branch
      %58 = sbr.rel (0) target = $region21
    $region20: #{_forward.5} parent=1 // pred_region
      _
    $region21: #{_forward.5} parent=1 // pred_fallthru
      _
    // Predicated region
    $region22: #{_forward.5} parent=1 // pred_check
      _
    $region23: #{_forward.5} parent=1 // pred_check_branch
      %60 = sbr.rel (0) target = $region25
    $region24: #{_forward.5} parent=1 // pred_region
      _
    $region25: #{_forward.5} parent=1 // pred_fallthru
      _
    // Predicated region
    $region26: #{_forward.5} parent=1 // pred_check
      _
    $region27: #{_forward.5} parent=1 // pred_check_branch
      %62 = sbr.rel (0) target = $region29
    $region28: #{_forward.5} parent=1 // pred_region
      %s64 = ssub.s32 32768, 32768
      %65 = vsyncadd [#allocation8], %s64
      %s66 = sshll.u32 [#allocation7], 4
      %s67 = int_to_ptr.vmem [resolvable:$true] %s66
      %72 = dma.hbm_to_vmem [thread:$0]  %s6, 32768, %s67, [#allocation8], 512, 512, 32
    $region29: #{_forward.5} parent=1 // pred_fallthru
      _
    // Predicated region
    $region30: #{_forward.5} parent=1 // pred_check
      _
    $region31: #{_forward.5} parent=1 // pred_check_branch
      %74 = sbr.rel (0) target = $region33
    $region32: #{_forward.5} parent=1 // pred_region
      %s76 = ssub.s32 64, 64
      %77 = vsyncadd [#allocation8], %s76
      %s79 = sshll.u32 [#allocation9], 4
      %s80 = int_to_ptr.vmem [resolvable:$true] %s79
      %82 = dma.hbm_to_vmem [thread:$0]  %s7, 64, %s80, [#allocation8]
    $region33: #{_forward.5} parent=1 // pred_fallthru
      _
    // Predicated region
    $region34: #{_forward.5} parent=1 // pred_check
      _
    $region35: #{_forward.5} parent=1 // pred_check_branch
      %84 = sbr.rel (0) target = $region37
    $region36: #{_forward.5} parent=1 // pred_region
      %s86 = ssub.s32 32768, 32768
      %87 = vsyncadd [#allocation11], %s86
      %s88 = sshll.u32 [#allocation10], 4
      %s89 = int_to_ptr.vmem [resolvable:$true] %s88
      %94 = dma.hbm_to_vmem [thread:$0]  %s8, 32768, %s89, [#allocation11], 512, 512, 32
    $region37: #{_forward.5} parent=1 // pred_fallthru
      _
    // Predicated region
    $region38: #{_forward.5} parent=1 // pred_check
      _
    $region39: #{_forward.5} parent=1 // pred_check_branch
      %96 = sbr.rel (0) target = $region41
    $region40: #{_forward.5} parent=1 // pred_region
      %s98 = ssub.s32 64, 64
      %99 = vsyncadd [#allocation11], %s98
      %s101 = sshll.u32 [#allocation12], 4
      %s102 = int_to_ptr.vmem [resolvable:$true] %s101
      %104 = dma.hbm_to_vmem [thread:$0]  %s9, 64, %s102, [#allocation11]
    $region41: #{_forward.5} parent=1 // pred_fallthru
      _
    // Predicated region
    $region42: #{_forward.5} parent=1 // pred_check
      _
    $region43: #{_forward.5} parent=1 // pred_check_branch
      %106 = sbr.rel (0) target = $region45
    $region44: #{_forward.5} parent=1 // pred_region
      _
    $region45: #{_forward.5} parent=1 // pred_fallthru
      _
    // Predicated region
    $region46: #{_forward.5} parent=1 // pred_check
      _
    $region47: #{_forward.5} parent=1 // pred_check_branch
      %108 = sbr.rel (0) target = $region49
    $region48: #{_forward.5} parent=1 // pred_region
      _
    $region49: #{_forward.5} parent=1 // pred_fallthru
      _
    // Predicated region
    $region50: #{_forward.5} parent=1 // pred_check
      _
    $region51: #{_forward.5} parent=1 // pred_check_branch
      %110 = sbr.rel (0) target = $region53
    $region52: #{_forward.5} parent=1 // pred_region
      %111 = dma.done [#allocation3], 64
    $region53: #{_forward.5} parent=1 // pred_fallthru
      _
    // Predicated region
    $region54: #{_forward.5} parent=1 // pred_check
      _
    $region55: #{_forward.5} parent=1 // pred_check_branch
      %113 = sbr.rel (0) target = $region57
    $region56: #{_forward.5} parent=1 // pred_region
      %114 = dma.done [#allocation5], 98304
    $region57: #{_forward.5} parent=1 // pred_fallthru
      _
    // Predicated region
    $region58: #{_forward.5} parent=1 // pred_check
      _
    $region59: #{_forward.5} parent=1 // pred_check_branch
      %116 = sbr.rel (0) target = $region61
    $region60: #{_forward.5} parent=1 // pred_region
      %117 = dma.done [#allocation5], 32768
    $region61: #{_forward.5} parent=1 // pred_fallthru
      _
    // Predicated region
    $region62: #{_forward.5} parent=1 // pred_check
      _
    $region63: #{_forward.5} parent=1 // pred_check_branch
      %119 = sbr.rel (0) target = $region65
    $region64: #{_forward.5} parent=1 // pred_region
      %120 = dma.done [#allocation8], 32768
    $region65: #{_forward.5} parent=1 // pred_fallthru
      _
    // Predicated region
    $region66: #{_forward.5} parent=1 // pred_check
      _
    $region67: #{_forward.5} parent=1 // pred_check_branch
      %122 = sbr.rel (0) target = $region69
    $region68: #{_forward.5} parent=1 // pred_region
      %123 = dma.done [#allocation8], 64
    $region69: #{_forward.5} parent=1 // pred_fallthru
      _
    // Predicated region
    $region70: #{_forward.5} parent=1 // pred_check
      _
    $region71: #{_forward.5} parent=1 // pred_check_branch
      %125 = sbr.rel (0) target = $region73
    $region72: #{_forward.5} parent=1 // pred_region
      %126 = dma.done [#allocation11], 32768
    $region73: #{_forward.5} parent=1 // pred_fallthru
      _
    // Predicated region
    $region74: #{_forward.5} parent=1 // pred_check
      _
    $region75: #{_forward.5} parent=1 // pred_check_branch
      %128 = sbr.rel (0) target = $region77
    $region76: #{_forward.5} parent=1 // pred_region
      %129 = dma.done [#allocation11], 64
    $region77: #{_forward.5} parent=1 // pred_fallthru
      _
    %v130 = vld [vmem:[%s0] sm:$0xff]
    %v131 = vld [vmem:[%s0 + $0x8] sm:$0xff]
    %v132 = vld [vmem:[#allocation2] sm:$0xf]
    %v133 = vld [vmem:[#allocation4] sm:$0xff]
    %v134 = vld [vmem:[#allocation4 + $0x8] sm:$0xff]
    %v135 = vld [vmem:[#allocation4 + $0x10] sm:$0xff]
    %v136 = vld [vmem:[#allocation4 + $0x18] sm:$0xff]
    %v137 = vld [vmem:[#allocation4 + $0x20] sm:$0xff]
    %v138 = vld [vmem:[#allocation4 + $0x28] sm:$0xff]
    %v139 = vld [vmem:[#allocation4 + $0x30] sm:$0xff]
    %v140 = vld [vmem:[#allocation4 + $0x38] sm:$0xff]
    %v141 = vld [vmem:[#allocation4 + $0x40] sm:$0xff]
    %v142 = vld [vmem:[#allocation4 + $0x48] sm:$0xff]
    %v143 = vld [vmem:[#allocation4 + $0x50] sm:$0xff]
    %v144 = vld [vmem:[#allocation4 + $0x58] sm:$0xff]
    %v145 = vld [vmem:[#allocation4 + $0x60] sm:$0xff]
    %v146 = vld [vmem:[#allocation4 + $0x68] sm:$0xff]
    %v147 = vld [vmem:[#allocation4 + $0x70] sm:$0xff]
    %v148 = vld [vmem:[#allocation4 + $0x78] sm:$0xff]
    %v149 = vld [vmem:[#allocation4 + $0x80] sm:$0xff]
    %v150 = vld [vmem:[#allocation4 + $0x88] sm:$0xff]
    %v151 = vld [vmem:[#allocation4 + $0x90] sm:$0xff]
    %v152 = vld [vmem:[#allocation4 + $0x98] sm:$0xff]
    %v153 = vld [vmem:[#allocation4 + $0xa0] sm:$0xff]
    %v154 = vld [vmem:[#allocation4 + $0xa8] sm:$0xff]
    %v155 = vld [vmem:[#allocation4 + $0xb0] sm:$0xff]
    %v156 = vld [vmem:[#allocation4 + $0xb8] sm:$0xff]
    %v157 = vld [vmem:[#allocation4 + $0xc0] sm:$0xff]
    %v158 = vld [vmem:[#allocation4 + $0xc8] sm:$0xff]
    %v159 = vld [vmem:[#allocation4 + $0xd0] sm:$0xff]
    %v160 = vld [vmem:[#allocation4 + $0xd8] sm:$0xff]
    %v161 = vld [vmem:[#allocation4 + $0xe0] sm:$0xff]
    %v162 = vld [vmem:[#allocation4 + $0xe8] sm:$0xff]
    %v163 = vld [vmem:[#allocation4 + $0xf0] sm:$0xff]
    %v164 = vld [vmem:[#allocation4 + $0xf8] sm:$0xff]
    %v165 = vld [vmem:[#allocation4 + $0x100] sm:$0xff]
    %v166 = vld [vmem:[#allocation4 + $0x108] sm:$0xff]
    %v167 = vld [vmem:[#allocation4 + $0x110] sm:$0xff]
    %v168 = vld [vmem:[#allocation4 + $0x118] sm:$0xff]
    %v169 = vld [vmem:[#allocation4 + $0x120] sm:$0xff]
    %v170 = vld [vmem:[#allocation4 + $0x128] sm:$0xff]
    %v171 = vld [vmem:[#allocation4 + $0x130] sm:$0xff]
    %v172 = vld [vmem:[#allocation4 + $0x138] sm:$0xff]
    %v173 = vld [vmem:[#allocation4 + $0x140] sm:$0xff]
    %v174 = vld [vmem:[#allocation4 + $0x148] sm:$0xff]
    %v175 = vld [vmem:[#allocation4 + $0x150] sm:$0xff]
    %v176 = vld [vmem:[#allocation4 + $0x158] sm:$0xff]
    %v177 = vld [vmem:[#allocation4 + $0x160] sm:$0xff]
    %v178 = vld [vmem:[#allocation4 + $0x168] sm:$0xff]
    %v179 = vld [vmem:[#allocation4 + $0x170] sm:$0xff]
    %v180 = vld [vmem:[#allocation4 + $0x178] sm:$0xff]
    %v181 = vld [vmem:[#allocation4 + $0x180] sm:$0xff]
    %v182 = vld [vmem:[#allocation4 + $0x188] sm:$0xff]
    %v183 = vld [vmem:[#allocation4 + $0x190] sm:$0xff]
    %v184 = vld [vmem:[#allocation4 + $0x198] sm:$0xff]
    %v185 = vld [vmem:[#allocation4 + $0x1a0] sm:$0xff]
    %v186 = vld [vmem:[#allocation4 + $0x1a8] sm:$0xff]
    %v187 = vld [vmem:[#allocation4 + $0x1b0] sm:$0xff]
    %v188 = vld [vmem:[#allocation4 + $0x1b8] sm:$0xff]
    %v189 = vld [vmem:[#allocation4 + $0x1c0] sm:$0xff]
    %v190 = vld [vmem:[#allocation4 + $0x1c8] sm:$0xff]
    %v191 = vld [vmem:[#allocation4 + $0x1d0] sm:$0xff]
    %v192 = vld [vmem:[#allocation4 + $0x1d8] sm:$0xff]
    %v193 = vld [vmem:[#allocation4 + $0x1e0] sm:$0xff]
    %v194 = vld [vmem:[#allocation4 + $0x1e8] sm:$0xff]
    %v195 = vld [vmem:[#allocation4 + $0x1f0] sm:$0xff]
    %v196 = vld [vmem:[#allocation4 + $0x1f8] sm:$0xff]
    %v197 = vld [vmem:[#allocation4 + $0x200] sm:$0xff]
    %v198 = vld [vmem:[#allocation4 + $0x208] sm:$0xff]
    %v199 = vld [vmem:[#allocation4 + $0x210] sm:$0xff]
    %v200 = vld [vmem:[#allocation4 + $0x218] sm:$0xff]
    %v201 = vld [vmem:[#allocation4 + $0x220] sm:$0xff]
    %v202 = vld [vmem:[#allocation4 + $0x228] sm:$0xff]
    %v203 = vld [vmem:[#allocation4 + $0x230] sm:$0xff]
    %v204 = vld [vmem:[#allocation4 + $0x238] sm:$0xff]
    %v205 = vld [vmem:[#allocation4 + $0x240] sm:$0xff]
    %v206 = vld [vmem:[#allocation4 + $0x248] sm:$0xff]
    %v207 = vld [vmem:[#allocation4 + $0x250] sm:$0xff]
    %v208 = vld [vmem:[#allocation4 + $0x258] sm:$0xff]
    %v209 = vld [vmem:[#allocation4 + $0x260] sm:$0xff]
    %v210 = vld [vmem:[#allocation4 + $0x268] sm:$0xff]
    %v211 = vld [vmem:[#allocation4 + $0x270] sm:$0xff]
    %v212 = vld [vmem:[#allocation4 + $0x278] sm:$0xff]
    %v213 = vld [vmem:[#allocation4 + $0x280] sm:$0xff]
    %v214 = vld [vmem:[#allocation4 + $0x288] sm:$0xff]
    %v215 = vld [vmem:[#allocation4 + $0x290] sm:$0xff]
    %v216 = vld [vmem:[#allocation4 + $0x298] sm:$0xff]
    %v217 = vld [vmem:[#allocation4 + $0x2a0] sm:$0xff]
    %v218 = vld [vmem:[#allocation4 + $0x2a8] sm:$0xff]
    %v219 = vld [vmem:[#allocation4 + $0x2b0] sm:$0xff]
    %v220 = vld [vmem:[#allocation4 + $0x2b8] sm:$0xff]
    %v221 = vld [vmem:[#allocation4 + $0x2c0] sm:$0xff]
    %v222 = vld [vmem:[#allocation4 + $0x2c8] sm:$0xff]
    %v223 = vld [vmem:[#allocation4 + $0x2d0] sm:$0xff]
    %v224 = vld [vmem:[#allocation4 + $0x2d8] sm:$0xff]
    %v225 = vld [vmem:[#allocation4 + $0x2e0] sm:$0xff]
    %v226 = vld [vmem:[#allocation4 + $0x2e8] sm:$0xff]
    %v227 = vld [vmem:[#allocation4 + $0x2f0] sm:$0xff]
    %v228 = vld [vmem:[#allocation4 + $0x2f8] sm:$0xff]
    %v229 = vld [vmem:[#allocation4 + $0x300] sm:$0xff]
    %v230 = vld [vmem:[#allocation4 + $0x308] sm:$0xff]
    %v231 = vld [vmem:[#allocation4 + $0x310] sm:$0xff]
    %v232 = vld [vmem:[#allocation4 + $0x318] sm:$0xff]
    %v233 = vld [vmem:[#allocation4 + $0x320] sm:$0xff]
    %v234 = vld [vmem:[#allocation4 + $0x328] sm:$0xff]
    %v235 = vld [vmem:[#allocation4 + $0x330] sm:$0xff]
    %v236 = vld [vmem:[#allocation4 + $0x338] sm:$0xff]
    %v237 = vld [vmem:[#allocation4 + $0x340] sm:$0xff]
    %v238 = vld [vmem:[#allocation4 + $0x348] sm:$0xff]
    %v239 = vld [vmem:[#allocation4 + $0x350] sm:$0xff]
    %v240 = vld [vmem:[#allocation4 + $0x358] sm:$0xff]
    %v241 = vld [vmem:[#allocation4 + $0x360] sm:$0xff]
    %v242 = vld [vmem:[#allocation4 + $0x368] sm:$0xff]
    %v243 = vld [vmem:[#allocation4 + $0x370] sm:$0xff]
    %v244 = vld [vmem:[#allocation4 + $0x378] sm:$0xff]
    %v245 = vld [vmem:[#allocation4 + $0x380] sm:$0xff]
    %v246 = vld [vmem:[#allocation4 + $0x388] sm:$0xff]
    %v247 = vld [vmem:[#allocation4 + $0x390] sm:$0xff]
    %v248 = vld [vmem:[#allocation4 + $0x398] sm:$0xff]
    %v249 = vld [vmem:[#allocation4 + $0x3a0] sm:$0xff]
    %v250 = vld [vmem:[#allocation4 + $0x3a8] sm:$0xff]
    %v251 = vld [vmem:[#allocation4 + $0x3b0] sm:$0xff]
    %v252 = vld [vmem:[#allocation4 + $0x3b8] sm:$0xff]
    %v253 = vld [vmem:[#allocation4 + $0x3c0] sm:$0xff]
    %v254 = vld [vmem:[#allocation4 + $0x3c8] sm:$0xff]
    %v255 = vld [vmem:[#allocation4 + $0x3d0] sm:$0xff]
    %v256 = vld [vmem:[#allocation4 + $0x3d8] sm:$0xff]
    %v257 = vld [vmem:[#allocation4 + $0x3e0] sm:$0xff]
    %v258 = vld [vmem:[#allocation4 + $0x3e8] sm:$0xff]
    %v259 = vld [vmem:[#allocation4 + $0x3f0] sm:$0xff]
    %v260 = vld [vmem:[#allocation4 + $0x3f8] sm:$0xff]
    %v261 = vld [vmem:[#allocation4 + $0x400] sm:$0xff]
    %v262 = vld [vmem:[#allocation4 + $0x408] sm:$0xff]
    %v263 = vld [vmem:[#allocation4 + $0x410] sm:$0xff]
    %v264 = vld [vmem:[#allocation4 + $0x418] sm:$0xff]
    %v265 = vld [vmem:[#allocation4 + $0x420] sm:$0xff]
    %v266 = vld [vmem:[#allocation4 + $0x428] sm:$0xff]
    %v267 = vld [vmem:[#allocation4 + $0x430] sm:$0xff]
    %v268 = vld [vmem:[#allocation4 + $0x438] sm:$0xff]
    %v269 = vld [vmem:[#allocation4 + $0x440] sm:$0xff]
    %v270 = vld [vmem:[#allocation4 + $0x448] sm:$0xff]
    %v271 = vld [vmem:[#allocation4 + $0x450] sm:$0xff]
    %v272 = vld [vmem:[#allocation4 + $0x458] sm:$0xff]
    %v273 = vld [vmem:[#allocation4 + $0x460] sm:$0xff]
    %v274 = vld [vmem:[#allocation4 + $0x468] sm:$0xff]
    %v275 = vld [vmem:[#allocation4 + $0x470] sm:$0xff]
    %v276 = vld [vmem:[#allocation4 + $0x478] sm:$0xff]
    %v277 = vld [vmem:[#allocation4 + $0x480] sm:$0xff]
    %v278 = vld [vmem:[#allocation4 + $0x488] sm:$0xff]
    %v279 = vld [vmem:[#allocation4 + $0x490] sm:$0xff]
    %v280 = vld [vmem:[#allocation4 + $0x498] sm:$0xff]
    %v281 = vld [vmem:[#allocation4 + $0x4a0] sm:$0xff]
    %v282 = vld [vmem:[#allocation4 + $0x4a8] sm:$0xff]
    %v283 = vld [vmem:[#allocation4 + $0x4b0] sm:$0xff]
    %v284 = vld [vmem:[#allocation4 + $0x4b8] sm:$0xff]
    %v285 = vld [vmem:[#allocation4 + $0x4c0] sm:$0xff]
    %v286 = vld [vmem:[#allocation4 + $0x4c8] sm:$0xff]
    %v287 = vld [vmem:[#allocation4 + $0x4d0] sm:$0xff]
    %v288 = vld [vmem:[#allocation4 + $0x4d8] sm:$0xff]
    %v289 = vld [vmem:[#allocation4 + $0x4e0] sm:$0xff]
    %v290 = vld [vmem:[#allocation4 + $0x4e8] sm:$0xff]
    %v291 = vld [vmem:[#allocation4 + $0x4f0] sm:$0xff]
    %v292 = vld [vmem:[#allocation4 + $0x4f8] sm:$0xff]
    %v293 = vld [vmem:[#allocation4 + $0x500] sm:$0xff]
    %v294 = vld [vmem:[#allocation4 + $0x508] sm:$0xff]
    %v295 = vld [vmem:[#allocation4 + $0x510] sm:$0xff]
    %v296 = vld [vmem:[#allocation4 + $0x518] sm:$0xff]
    %v297 = vld [vmem:[#allocation4 + $0x520] sm:$0xff]
    %v298 = vld [vmem:[#allocation4 + $0x528] sm:$0xff]
    %v299 = vld [vmem:[#allocation4 + $0x530] sm:$0xff]
    %v300 = vld [vmem:[#allocation4 + $0x538] sm:$0xff]
    %v301 = vld [vmem:[#allocation4 + $0x540] sm:$0xff]
    %v302 = vld [vmem:[#allocation4 + $0x548] sm:$0xff]
    %v303 = vld [vmem:[#allocation4 + $0x550] sm:$0xff]
    %v304 = vld [vmem:[#allocation4 + $0x558] sm:$0xff]
    %v305 = vld [vmem:[#allocation4 + $0x560] sm:$0xff]
    %v306 = vld [vmem:[#allocation4 + $0x568] sm:$0xff]
    %v307 = vld [vmem:[#allocation4 + $0x570] sm:$0xff]
    %v308 = vld [vmem:[#allocation4 + $0x578] sm:$0xff]
    %v309 = vld [vmem:[#allocation4 + $0x580] sm:$0xff]
    %v310 = vld [vmem:[#allocation4 + $0x588] sm:$0xff]
    %v311 = vld [vmem:[#allocation4 + $0x590] sm:$0xff]
    %v312 = vld [vmem:[#allocation4 + $0x598] sm:$0xff]
    %v313 = vld [vmem:[#allocation4 + $0x5a0] sm:$0xff]
    %v314 = vld [vmem:[#allocation4 + $0x5a8] sm:$0xff]
    %v315 = vld [vmem:[#allocation4 + $0x5b0] sm:$0xff]
    %v316 = vld [vmem:[#allocation4 + $0x5b8] sm:$0xff]
    %v317 = vld [vmem:[#allocation4 + $0x5c0] sm:$0xff]
    %v318 = vld [vmem:[#allocation4 + $0x5c8] sm:$0xff]
    %v319 = vld [vmem:[#allocation4 + $0x5d0] sm:$0xff]
    %v320 = vld [vmem:[#allocation4 + $0x5d8] sm:$0xff]
    %v321 = vld [vmem:[#allocation4 + $0x5e0] sm:$0xff]
    %v322 = vld [vmem:[#allocation4 + $0x5e8] sm:$0xff]
    %v323 = vld [vmem:[#allocation4 + $0x5f0] sm:$0xff]
    %v324 = vld [vmem:[#allocation4 + $0x5f8] sm:$0xff]
    %v325 = vld [vmem:[#allocation4 + $0x600] sm:$0xff]
    %v326 = vld [vmem:[#allocation4 + $0x608] sm:$0xff]
    %v327 = vld [vmem:[#allocation4 + $0x610] sm:$0xff]
    %v328 = vld [vmem:[#allocation4 + $0x618] sm:$0xff]
    %v329 = vld [vmem:[#allocation4 + $0x620] sm:$0xff]
    %v330 = vld [vmem:[#allocation4 + $0x628] sm:$0xff]
    %v331 = vld [vmem:[#allocation4 + $0x630] sm:$0xff]
    %v332 = vld [vmem:[#allocation4 + $0x638] sm:$0xff]
    %v333 = vld [vmem:[#allocation4 + $0x640] sm:$0xff]
    %v334 = vld [vmem:[#allocation4 + $0x648] sm:$0xff]
    %v335 = vld [vmem:[#allocation4 + $0x650] sm:$0xff]
    %v336 = vld [vmem:[#allocation4 + $0x658] sm:$0xff]
    %v337 = vld [vmem:[#allocation4 + $0x660] sm:$0xff]
    %v338 = vld [vmem:[#allocation4 + $0x668] sm:$0xff]
    %v339 = vld [vmem:[#allocation4 + $0x670] sm:$0xff]
    %v340 = vld [vmem:[#allocation4 + $0x678] sm:$0xff]
    %v341 = vld [vmem:[#allocation4 + $0x680] sm:$0xff]
    %v342 = vld [vmem:[#allocation4 + $0x688] sm:$0xff]
    %v343 = vld [vmem:[#allocation4 + $0x690] sm:$0xff]
    %v344 = vld [vmem:[#allocation4 + $0x698] sm:$0xff]
    %v345 = vld [vmem:[#allocation4 + $0x6a0] sm:$0xff]
    %v346 = vld [vmem:[#allocation4 + $0x6a8] sm:$0xff]
    %v347 = vld [vmem:[#allocation4 + $0x6b0] sm:$0xff]
    %v348 = vld [vmem:[#allocation4 + $0x6b8] sm:$0xff]
    %v349 = vld [vmem:[#allocation4 + $0x6c0] sm:$0xff]
    %v350 = vld [vmem:[#allocation4 + $0x6c8] sm:$0xff]
    %v351 = vld [vmem:[#allocation4 + $0x6d0] sm:$0xff]
    %v352 = vld [vmem:[#allocation4 + $0x6d8] sm:$0xff]
    %v353 = vld [vmem:[#allocation4 + $0x6e0] sm:$0xff]
    %v354 = vld [vmem:[#allocation4 + $0x6e8] sm:$0xff]
    %v355 = vld [vmem:[#allocation4 + $0x6f0] sm:$0xff]
    %v356 = vld [vmem:[#allocation4 + $0x6f8] sm:$0xff]
    %v357 = vld [vmem:[#allocation4 + $0x700] sm:$0xff]
    %v358 = vld [vmem:[#allocation4 + $0x708] sm:$0xff]
    %v359 = vld [vmem:[#allocation4 + $0x710] sm:$0xff]
    %v360 = vld [vmem:[#allocation4 + $0x718] sm:$0xff]
    %v361 = vld [vmem:[#allocation4 + $0x720] sm:$0xff]
    %v362 = vld [vmem:[#allocation4 + $0x728] sm:$0xff]
    %v363 = vld [vmem:[#allocation4 + $0x730] sm:$0xff]
    %v364 = vld [vmem:[#allocation4 + $0x738] sm:$0xff]
    %v365 = vld [vmem:[#allocation4 + $0x740] sm:$0xff]
    %v366 = vld [vmem:[#allocation4 + $0x748] sm:$0xff]
    %v367 = vld [vmem:[#allocation4 + $0x750] sm:$0xff]
    %v368 = vld [vmem:[#allocation4 + $0x758] sm:$0xff]
    %v369 = vld [vmem:[#allocation4 + $0x760] sm:$0xff]
    %v370 = vld [vmem:[#allocation4 + $0x768] sm:$0xff]
    %v371 = vld [vmem:[#allocation4 + $0x770] sm:$0xff]
    %v372 = vld [vmem:[#allocation4 + $0x778] sm:$0xff]
    %v373 = vld [vmem:[#allocation4 + $0x780] sm:$0xff]
    %v374 = vld [vmem:[#allocation4 + $0x788] sm:$0xff]
    %v375 = vld [vmem:[#allocation4 + $0x790] sm:$0xff]
    %v376 = vld [vmem:[#allocation4 + $0x798] sm:$0xff]
    %v377 = vld [vmem:[#allocation4 + $0x7a0] sm:$0xff]
    %v378 = vld [vmem:[#allocation4 + $0x7a8] sm:$0xff]
    %v379 = vld [vmem:[#allocation4 + $0x7b0] sm:$0xff]
    %v380 = vld [vmem:[#allocation4 + $0x7b8] sm:$0xff]
    %v381 = vld [vmem:[#allocation4 + $0x7c0] sm:$0xff]
    %v382 = vld [vmem:[#allocation4 + $0x7c8] sm:$0xff]
    %v383 = vld [vmem:[#allocation4 + $0x7d0] sm:$0xff]
    %v384 = vld [vmem:[#allocation4 + $0x7d8] sm:$0xff]
    %v385 = vld [vmem:[#allocation4 + $0x7e0] sm:$0xff]
    %v386 = vld [vmem:[#allocation4 + $0x7e8] sm:$0xff]
    %v387 = vld [vmem:[#allocation4 + $0x7f0] sm:$0xff]
    %v388 = vld [vmem:[#allocation4 + $0x7f8] sm:$0xff]
    %v389 = vld [vmem:[#allocation4 + $0x800] sm:$0xff]
    %v390 = vld [vmem:[#allocation4 + $0x808] sm:$0xff]
    %v391 = vld [vmem:[#allocation4 + $0x810] sm:$0xff]
    %v392 = vld [vmem:[#allocation4 + $0x818] sm:$0xff]
    %v393 = vld [vmem:[#allocation4 + $0x820] sm:$0xff]
    %v394 = vld [vmem:[#allocation4 + $0x828] sm:$0xff]
    %v395 = vld [vmem:[#allocation4 + $0x830] sm:$0xff]
    %v396 = vld [vmem:[#allocation4 + $0x838] sm:$0xff]
    %v397 = vld [vmem:[#allocation4 + $0x840] sm:$0xff]
    %v398 = vld [vmem:[#allocation4 + $0x848] sm:$0xff]
    %v399 = vld [vmem:[#allocation4 + $0x850] sm:$0xff]
    %v400 = vld [vmem:[#allocation4 + $0x858] sm:$0xff]
    %v401 = vld [vmem:[#allocation4 + $0x860] sm:$0xff]
    %v402 = vld [vmem:[#allocation4 + $0x868] sm:$0xff]
    %v403 = vld [vmem:[#allocation4 + $0x870] sm:$0xff]
    %v404 = vld [vmem:[#allocation4 + $0x878] sm:$0xff]
    %v405 = vld [vmem:[#allocation4 + $0x880] sm:$0xff]
    %v406 = vld [vmem:[#allocation4 + $0x888] sm:$0xff]
    %v407 = vld [vmem:[#allocation4 + $0x890] sm:$0xff]
    %v408 = vld [vmem:[#allocation4 + $0x898] sm:$0xff]
    %v409 = vld [vmem:[#allocation4 + $0x8a0] sm:$0xff]
    %v410 = vld [vmem:[#allocation4 + $0x8a8] sm:$0xff]
    %v411 = vld [vmem:[#allocation4 + $0x8b0] sm:$0xff]
    %v412 = vld [vmem:[#allocation4 + $0x8b8] sm:$0xff]
    %v413 = vld [vmem:[#allocation4 + $0x8c0] sm:$0xff]
    %v414 = vld [vmem:[#allocation4 + $0x8c8] sm:$0xff]
    %v415 = vld [vmem:[#allocation4 + $0x8d0] sm:$0xff]
    %v416 = vld [vmem:[#allocation4 + $0x8d8] sm:$0xff]
    %v417 = vld [vmem:[#allocation4 + $0x8e0] sm:$0xff]
    %v418 = vld [vmem:[#allocation4 + $0x8e8] sm:$0xff]
    %v419 = vld [vmem:[#allocation4 + $0x8f0] sm:$0xff]
    %v420 = vld [vmem:[#allocation4 + $0x8f8] sm:$0xff]
    %v421 = vld [vmem:[#allocation4 + $0x900] sm:$0xff]
    %v422 = vld [vmem:[#allocation4 + $0x908] sm:$0xff]
    %v423 = vld [vmem:[#allocation4 + $0x910] sm:$0xff]
    %v424 = vld [vmem:[#allocation4 + $0x918] sm:$0xff]
    %v425 = vld [vmem:[#allocation4 + $0x920] sm:$0xff]
    %v426 = vld [vmem:[#allocation4 + $0x928] sm:$0xff]
    %v427 = vld [vmem:[#allocation4 + $0x930] sm:$0xff]
    %v428 = vld [vmem:[#allocation4 + $0x938] sm:$0xff]
    %v429 = vld [vmem:[#allocation4 + $0x940] sm:$0xff]
    %v430 = vld [vmem:[#allocation4 + $0x948] sm:$0xff]
    %v431 = vld [vmem:[#allocation4 + $0x950] sm:$0xff]
    %v432 = vld [vmem:[#allocation4 + $0x958] sm:$0xff]
    %v433 = vld [vmem:[#allocation4 + $0x960] sm:$0xff]
    %v434 = vld [vmem:[#allocation4 + $0x968] sm:$0xff]
    %v435 = vld [vmem:[#allocation4 + $0x970] sm:$0xff]
    %v436 = vld [vmem:[#allocation4 + $0x978] sm:$0xff]
    %v437 = vld [vmem:[#allocation4 + $0x980] sm:$0xff]
    %v438 = vld [vmem:[#allocation4 + $0x988] sm:$0xff]
    %v439 = vld [vmem:[#allocation4 + $0x990] sm:$0xff]
    %v440 = vld [vmem:[#allocation4 + $0x998] sm:$0xff]
    %v441 = vld [vmem:[#allocation4 + $0x9a0] sm:$0xff]
    %v442 = vld [vmem:[#allocation4 + $0x9a8] sm:$0xff]
    %v443 = vld [vmem:[#allocation4 + $0x9b0] sm:$0xff]
    %v444 = vld [vmem:[#allocation4 + $0x9b8] sm:$0xff]
    %v445 = vld [vmem:[#allocation4 + $0x9c0] sm:$0xff]
    %v446 = vld [vmem:[#allocation4 + $0x9c8] sm:$0xff]
    %v447 = vld [vmem:[#allocation4 + $0x9d0] sm:$0xff]
    %v448 = vld [vmem:[#allocation4 + $0x9d8] sm:$0xff]
    %v449 = vld [vmem:[#allocation4 + $0x9e0] sm:$0xff]
    %v450 = vld [vmem:[#allocation4 + $0x9e8] sm:$0xff]
    %v451 = vld [vmem:[#allocation4 + $0x9f0] sm:$0xff]
    %v452 = vld [vmem:[#allocation4 + $0x9f8] sm:$0xff]
    %v453 = vld [vmem:[#allocation4 + $0xa00] sm:$0xff]
    %v454 = vld [vmem:[#allocation4 + $0xa08] sm:$0xff]
    %v455 = vld [vmem:[#allocation4 + $0xa10] sm:$0xff]
    %v456 = vld [vmem:[#allocation4 + $0xa18] sm:$0xff]
    %v457 = vld [vmem:[#allocation4 + $0xa20] sm:$0xff]
    %v458 = vld [vmem:[#allocation4 + $0xa28] sm:$0xff]
    %v459 = vld [vmem:[#allocation4 + $0xa30] sm:$0xff]
    %v460 = vld [vmem:[#allocation4 + $0xa38] sm:$0xff]
    %v461 = vld [vmem:[#allocation4 + $0xa40] sm:$0xff]
    %v462 = vld [vmem:[#allocation4 + $0xa48] sm:$0xff]
    %v463 = vld [vmem:[#allocation4 + $0xa50] sm:$0xff]
    %v464 = vld [vmem:[#allocation4 + $0xa58] sm:$0xff]
    %v465 = vld [vmem:[#allocation4 + $0xa60] sm:$0xff]
    %v466 = vld [vmem:[#allocation4 + $0xa68] sm:$0xff]
    %v467 = vld [vmem:[#allocation4 + $0xa70] sm:$0xff]
    %v468 = vld [vmem:[#allocation4 + $0xa78] sm:$0xff]
    %v469 = vld [vmem:[#allocation4 + $0xa80] sm:$0xff]
    %v470 = vld [vmem:[#allocation4 + $0xa88] sm:$0xff]
    %v471 = vld [vmem:[#allocation4 + $0xa90] sm:$0xff]
    %v472 = vld [vmem:[#allocation4 + $0xa98] sm:$0xff]
    %v473 = vld [vmem:[#allocation4 + $0xaa0] sm:$0xff]
    %v474 = vld [vmem:[#allocation4 + $0xaa8] sm:$0xff]
    %v475 = vld [vmem:[#allocation4 + $0xab0] sm:$0xff]
    %v476 = vld [vmem:[#allocation4 + $0xab8] sm:$0xff]
    %v477 = vld [vmem:[#allocation4 + $0xac0] sm:$0xff]
    %v478 = vld [vmem:[#allocation4 + $0xac8] sm:$0xff]
    %v479 = vld [vmem:[#allocation4 + $0xad0] sm:$0xff]
    %v480 = vld [vmem:[#allocation4 + $0xad8] sm:$0xff]
    %v481 = vld [vmem:[#allocation4 + $0xae0] sm:$0xff]
    %v482 = vld [vmem:[#allocation4 + $0xae8] sm:$0xff]
    %v483 = vld [vmem:[#allocation4 + $0xaf0] sm:$0xff]
    %v484 = vld [vmem:[#allocation4 + $0xaf8] sm:$0xff]
    %v485 = vld [vmem:[#allocation4 + $0xb00] sm:$0xff]
    %v486 = vld [vmem:[#allocation4 + $0xb08] sm:$0xff]
    %v487 = vld [vmem:[#allocation4 + $0xb10] sm:$0xff]
    %v488 = vld [vmem:[#allocation4 + $0xb18] sm:$0xff]
    %v489 = vld [vmem:[#allocation4 + $0xb20] sm:$0xff]
    %v490 = vld [vmem:[#allocation4 + $0xb28] sm:$0xff]
    %v491 = vld [vmem:[#allocation4 + $0xb30] sm:$0xff]
    %v492 = vld [vmem:[#allocation4 + $0xb38] sm:$0xff]
    %v493 = vld [vmem:[#allocation4 + $0xb40] sm:$0xff]
    %v494 = vld [vmem:[#allocation4 + $0xb48] sm:$0xff]
    %v495 = vld [vmem:[#allocation4 + $0xb50] sm:$0xff]
    %v496 = vld [vmem:[#allocation4 + $0xb58] sm:$0xff]
    %v497 = vld [vmem:[#allocation4 + $0xb60] sm:$0xff]
    %v498 = vld [vmem:[#allocation4 + $0xb68] sm:$0xff]
    %v499 = vld [vmem:[#allocation4 + $0xb70] sm:$0xff]
    %v500 = vld [vmem:[#allocation4 + $0xb78] sm:$0xff]
    %v501 = vld [vmem:[#allocation4 + $0xb80] sm:$0xff]
    %v502 = vld [vmem:[#allocation4 + $0xb88] sm:$0xff]
    %v503 = vld [vmem:[#allocation4 + $0xb90] sm:$0xff]
    %v504 = vld [vmem:[#allocation4 + $0xb98] sm:$0xff]
    %v505 = vld [vmem:[#allocation4 + $0xba0] sm:$0xff]
    %v506 = vld [vmem:[#allocation4 + $0xba8] sm:$0xff]
    %v507 = vld [vmem:[#allocation4 + $0xbb0] sm:$0xff]
    %v508 = vld [vmem:[#allocation4 + $0xbb8] sm:$0xff]
    %v509 = vld [vmem:[#allocation4 + $0xbc0] sm:$0xff]
    %v510 = vld [vmem:[#allocation4 + $0xbc8] sm:$0xff]
    %v511 = vld [vmem:[#allocation4 + $0xbd0] sm:$0xff]
    %v512 = vld [vmem:[#allocation4 + $0xbd8] sm:$0xff]
    %v513 = vld [vmem:[#allocation4 + $0xbe0] sm:$0xff]
    %v514 = vld [vmem:[#allocation4 + $0xbe8] sm:$0xff]
    %v515 = vld [vmem:[#allocation4 + $0xbf0] sm:$0xff]
    %v516 = vld [vmem:[#allocation4 + $0xbf8] sm:$0xff]
    %v517 = vld [vmem:[#allocation4 + $0xc00] sm:$0xff]
    %v518 = vld [vmem:[#allocation4 + $0xc08] sm:$0xff]
    %v519 = vld [vmem:[#allocation4 + $0xc10] sm:$0xff]
    %v520 = vld [vmem:[#allocation4 + $0xc18] sm:$0xff]
    %v521 = vld [vmem:[#allocation4 + $0xc20] sm:$0xff]
    %v522 = vld [vmem:[#allocation4 + $0xc28] sm:$0xff]
    %v523 = vld [vmem:[#allocation4 + $0xc30] sm:$0xff]
    %v524 = vld [vmem:[#allocation4 + $0xc38] sm:$0xff]
    %v525 = vld [vmem:[#allocation4 + $0xc40] sm:$0xff]
    %v526 = vld [vmem:[#allocation4 + $0xc48] sm:$0xff]
    %v527 = vld [vmem:[#allocation4 + $0xc50] sm:$0xff]
    %v528 = vld [vmem:[#allocation4 + $0xc58] sm:$0xff]
    %v529 = vld [vmem:[#allocation4 + $0xc60] sm:$0xff]
    %v530 = vld [vmem:[#allocation4 + $0xc68] sm:$0xff]
    %v531 = vld [vmem:[#allocation4 + $0xc70] sm:$0xff]
    %v532 = vld [vmem:[#allocation4 + $0xc78] sm:$0xff]
    %v533 = vld [vmem:[#allocation4 + $0xc80] sm:$0xff]
    %v534 = vld [vmem:[#allocation4 + $0xc88] sm:$0xff]
    %v535 = vld [vmem:[#allocation4 + $0xc90] sm:$0xff]
    %v536 = vld [vmem:[#allocation4 + $0xc98] sm:$0xff]
    %v537 = vld [vmem:[#allocation4 + $0xca0] sm:$0xff]
    %v538 = vld [vmem:[#allocation4 + $0xca8] sm:$0xff]
    %v539 = vld [vmem:[#allocation4 + $0xcb0] sm:$0xff]
    %v540 = vld [vmem:[#allocation4 + $0xcb8] sm:$0xff]
    %v541 = vld [vmem:[#allocation4 + $0xcc0] sm:$0xff]
    %v542 = vld [vmem:[#allocation4 + $0xcc8] sm:$0xff]
    %v543 = vld [vmem:[#allocation4 + $0xcd0] sm:$0xff]
    %v544 = vld [vmem:[#allocation4 + $0xcd8] sm:$0xff]
    %v545 = vld [vmem:[#allocation4 + $0xce0] sm:$0xff]
    %v546 = vld [vmem:[#allocation4 + $0xce8] sm:$0xff]
    %v547 = vld [vmem:[#allocation4 + $0xcf0] sm:$0xff]
    %v548 = vld [vmem:[#allocation4 + $0xcf8] sm:$0xff]
    %v549 = vld [vmem:[#allocation4 + $0xd00] sm:$0xff]
    %v550 = vld [vmem:[#allocation4 + $0xd08] sm:$0xff]
    %v551 = vld [vmem:[#allocation4 + $0xd10] sm:$0xff]
    %v552 = vld [vmem:[#allocation4 + $0xd18] sm:$0xff]
    %v553 = vld [vmem:[#allocation4 + $0xd20] sm:$0xff]
    %v554 = vld [vmem:[#allocation4 + $0xd28] sm:$0xff]
    %v555 = vld [vmem:[#allocation4 + $0xd30] sm:$0xff]
    %v556 = vld [vmem:[#allocation4 + $0xd38] sm:$0xff]
    %v557 = vld [vmem:[#allocation4 + $0xd40] sm:$0xff]
    %v558 = vld [vmem:[#allocation4 + $0xd48] sm:$0xff]
    %v559 = vld [vmem:[#allocation4 + $0xd50] sm:$0xff]
    %v560 = vld [vmem:[#allocation4 + $0xd58] sm:$0xff]
    %v561 = vld [vmem:[#allocation4 + $0xd60] sm:$0xff]
    %v562 = vld [vmem:[#allocation4 + $0xd68] sm:$0xff]
    %v563 = vld [vmem:[#allocation4 + $0xd70] sm:$0xff]
    %v564 = vld [vmem:[#allocation4 + $0xd78] sm:$0xff]
    %v565 = vld [vmem:[#allocation4 + $0xd80] sm:$0xff]
    %v566 = vld [vmem:[#allocation4 + $0xd88] sm:$0xff]
    %v567 = vld [vmem:[#allocation4 + $0xd90] sm:$0xff]
    %v568 = vld [vmem:[#allocation4 + $0xd98] sm:$0xff]
    %v569 = vld [vmem:[#allocation4 + $0xda0] sm:$0xff]
    %v570 = vld [vmem:[#allocation4 + $0xda8] sm:$0xff]
    %v571 = vld [vmem:[#allocation4 + $0xdb0] sm:$0xff]
    %v572 = vld [vmem:[#allocation4 + $0xdb8] sm:$0xff]
    %v573 = vld [vmem:[#allocation4 + $0xdc0] sm:$0xff]
    %v574 = vld [vmem:[#allocation4 + $0xdc8] sm:$0xff]
    %v575 = vld [vmem:[#allocation4 + $0xdd0] sm:$0xff]
    %v576 = vld [vmem:[#allocation4 + $0xdd8] sm:$0xff]
    %v577 = vld [vmem:[#allocation4 + $0xde0] sm:$0xff]
    %v578 = vld [vmem:[#allocation4 + $0xde8] sm:$0xff]
    %v579 = vld [vmem:[#allocation4 + $0xdf0] sm:$0xff]
    %v580 = vld [vmem:[#allocation4 + $0xdf8] sm:$0xff]
    %v581 = vld [vmem:[#allocation4 + $0xe00] sm:$0xff]
    %v582 = vld [vmem:[#allocation4 + $0xe08] sm:$0xff]
    %v583 = vld [vmem:[#allocation4 + $0xe10] sm:$0xff]
    %v584 = vld [vmem:[#allocation4 + $0xe18] sm:$0xff]
    %v585 = vld [vmem:[#allocation4 + $0xe20] sm:$0xff]
    %v586 = vld [vmem:[#allocation4 + $0xe28] sm:$0xff]
    %v587 = vld [vmem:[#allocation4 + $0xe30] sm:$0xff]
    %v588 = vld [vmem:[#allocation4 + $0xe38] sm:$0xff]
    %v589 = vld [vmem:[#allocation4 + $0xe40] sm:$0xff]
    %v590 = vld [vmem:[#allocation4 + $0xe48] sm:$0xff]
    %v591 = vld [vmem:[#allocation4 + $0xe50] sm:$0xff]
    %v592 = vld [vmem:[#allocation4 + $0xe58] sm:$0xff]
    %v593 = vld [vmem:[#allocation4 + $0xe60] sm:$0xff]
    %v594 = vld [vmem:[#allocation4 + $0xe68] sm:$0xff]
    %v595 = vld [vmem:[#allocation4 + $0xe70] sm:$0xff]
    %v596 = vld [vmem:[#allocation4 + $0xe78] sm:$0xff]
    %v597 = vld [vmem:[#allocation4 + $0xe80] sm:$0xff]
    %v598 = vld [vmem:[#allocation4 + $0xe88] sm:$0xff]
    %v599 = vld [vmem:[#allocation4 + $0xe90] sm:$0xff]
    %v600 = vld [vmem:[#allocation4 + $0xe98] sm:$0xff]
    %v601 = vld [vmem:[#allocation4 + $0xea0] sm:$0xff]
    %v602 = vld [vmem:[#allocation4 + $0xea8] sm:$0xff]
    %v603 = vld [vmem:[#allocation4 + $0xeb0] sm:$0xff]
    %v604 = vld [vmem:[#allocation4 + $0xeb8] sm:$0xff]
    %v605 = vld [vmem:[#allocation4 + $0xec0] sm:$0xff]
    %v606 = vld [vmem:[#allocation4 + $0xec8] sm:$0xff]
    %v607 = vld [vmem:[#allocation4 + $0xed0] sm:$0xff]
    %v608 = vld [vmem:[#allocation4 + $0xed8] sm:$0xff]
    %v609 = vld [vmem:[#allocation4 + $0xee0] sm:$0xff]
    %v610 = vld [vmem:[#allocation4 + $0xee8] sm:$0xff]
    %v611 = vld [vmem:[#allocation4 + $0xef0] sm:$0xff]
    %v612 = vld [vmem:[#allocation4 + $0xef8] sm:$0xff]
    %v613 = vld [vmem:[#allocation4 + $0xf00] sm:$0xff]
    %v614 = vld [vmem:[#allocation4 + $0xf08] sm:$0xff]
    %v615 = vld [vmem:[#allocation4 + $0xf10] sm:$0xff]
    %v616 = vld [vmem:[#allocation4 + $0xf18] sm:$0xff]
    %v617 = vld [vmem:[#allocation4 + $0xf20] sm:$0xff]
    %v618 = vld [vmem:[#allocation4 + $0xf28] sm:$0xff]
    %v619 = vld [vmem:[#allocation4 + $0xf30] sm:$0xff]
    %v620 = vld [vmem:[#allocation4 + $0xf38] sm:$0xff]
    %v621 = vld [vmem:[#allocation4 + $0xf40] sm:$0xff]
    %v622 = vld [vmem:[#allocation4 + $0xf48] sm:$0xff]
    %v623 = vld [vmem:[#allocation4 + $0xf50] sm:$0xff]
    %v624 = vld [vmem:[#allocation4 + $0xf58] sm:$0xff]
    %v625 = vld [vmem:[#allocation4 + $0xf60] sm:$0xff]
    %v626 = vld [vmem:[#allocation4 + $0xf68] sm:$0xff]
    %v627 = vld [vmem:[#allocation4 + $0xf70] sm:$0xff]
    %v628 = vld [vmem:[#allocation4 + $0xf78] sm:$0xff]
    %v629 = vld [vmem:[#allocation4 + $0xf80] sm:$0xff]
    %v630 = vld [vmem:[#allocation4 + $0xf88] sm:$0xff]
    %v631 = vld [vmem:[#allocation4 + $0xf90] sm:$0xff]
    %v632 = vld [vmem:[#allocation4 + $0xf98] sm:$0xff]
    %v633 = vld [vmem:[#allocation4 + $0xfa0] sm:$0xff]
    %v634 = vld [vmem:[#allocation4 + $0xfa8] sm:$0xff]
    %v635 = vld [vmem:[#allocation4 + $0xfb0] sm:$0xff]
    %v636 = vld [vmem:[#allocation4 + $0xfb8] sm:$0xff]
    %v637 = vld [vmem:[#allocation4 + $0xfc0] sm:$0xff]
    %v638 = vld [vmem:[#allocation4 + $0xfc8] sm:$0xff]
    %v639 = vld [vmem:[#allocation4 + $0xfd0] sm:$0xff]
    %v640 = vld [vmem:[#allocation4 + $0xfd8] sm:$0xff]
    %v641 = vld [vmem:[#allocation4 + $0xfe0] sm:$0xff]
    %v642 = vld [vmem:[#allocation4 + $0xfe8] sm:$0xff]
    %v643 = vld [vmem:[#allocation4 + $0xff0] sm:$0xff]
    %v644 = vld [vmem:[#allocation4 + $0xff8] sm:$0xff]
    %v645 = vld [vmem:[#allocation4 + $0x1000] sm:$0xff]
    %v646 = vld [vmem:[#allocation4 + $0x1008] sm:$0xff]
    %v647 = vld [vmem:[#allocation4 + $0x1010] sm:$0xff]
    %v648 = vld [vmem:[#allocation4 + $0x1018] sm:$0xff]
    %v649 = vld [vmem:[#allocation4 + $0x1020] sm:$0xff]
    %v650 = vld [vmem:[#allocation4 + $0x1028] sm:$0xff]
    %v651 = vld [vmem:[#allocation4 + $0x1030] sm:$0xff]
    %v652 = vld [vmem:[#allocation4 + $0x1038] sm:$0xff]
    %v653 = vld [vmem:[#allocation4 + $0x1040] sm:$0xff]
    %v654 = vld [vmem:[#allocation4 + $0x1048] sm:$0xff]
    %v655 = vld [vmem:[#allocation4 + $0x1050] sm:$0xff]
    %v656 = vld [vmem:[#allocation4 + $0x1058] sm:$0xff]
    %v657 = vld [vmem:[#allocation4 + $0x1060] sm:$0xff]
    %v658 = vld [vmem:[#allocation4 + $0x1068] sm:$0xff]
    %v659 = vld [vmem:[#allocation4 + $0x1070] sm:$0xff]
    %v660 = vld [vmem:[#allocation4 + $0x1078] sm:$0xff]
    %v661 = vld [vmem:[#allocation4 + $0x1080] sm:$0xff]
    %v662 = vld [vmem:[#allocation4 + $0x1088] sm:$0xff]
    %v663 = vld [vmem:[#allocation4 + $0x1090] sm:$0xff]
    %v664 = vld [vmem:[#allocation4 + $0x1098] sm:$0xff]
    %v665 = vld [vmem:[#allocation4 + $0x10a0] sm:$0xff]
    %v666 = vld [vmem:[#allocation4 + $0x10a8] sm:$0xff]
    %v667 = vld [vmem:[#allocation4 + $0x10b0] sm:$0xff]
    %v668 = vld [vmem:[#allocation4 + $0x10b8] sm:$0xff]
    %v669 = vld [vmem:[#allocation4 + $0x10c0] sm:$0xff]
    %v670 = vld [vmem:[#allocation4 + $0x10c8] sm:$0xff]
    %v671 = vld [vmem:[#allocation4 + $0x10d0] sm:$0xff]
    %v672 = vld [vmem:[#allocation4 + $0x10d8] sm:$0xff]
    %v673 = vld [vmem:[#allocation4 + $0x10e0] sm:$0xff]
    %v674 = vld [vmem:[#allocation4 + $0x10e8] sm:$0xff]
    %v675 = vld [vmem:[#allocation4 + $0x10f0] sm:$0xff]
    %v676 = vld [vmem:[#allocation4 + $0x10f8] sm:$0xff]
    %v677 = vld [vmem:[#allocation4 + $0x1100] sm:$0xff]
    %v678 = vld [vmem:[#allocation4 + $0x1108] sm:$0xff]
    %v679 = vld [vmem:[#allocation4 + $0x1110] sm:$0xff]
    %v680 = vld [vmem:[#allocation4 + $0x1118] sm:$0xff]
    %v681 = vld [vmem:[#allocation4 + $0x1120] sm:$0xff]
    %v682 = vld [vmem:[#allocation4 + $0x1128] sm:$0xff]
    %v683 = vld [vmem:[#allocation4 + $0x1130] sm:$0xff]
    %v684 = vld [vmem:[#allocation4 + $0x1138] sm:$0xff]
    %v685 = vld [vmem:[#allocation4 + $0x1140] sm:$0xff]
    %v686 = vld [vmem:[#allocation4 + $0x1148] sm:$0xff]
    %v687 = vld [vmem:[#allocation4 + $0x1150] sm:$0xff]
    %v688 = vld [vmem:[#allocation4 + $0x1158] sm:$0xff]
    %v689 = vld [vmem:[#allocation4 + $0x1160] sm:$0xff]
    %v690 = vld [vmem:[#allocation4 + $0x1168] sm:$0xff]
    %v691 = vld [vmem:[#allocation4 + $0x1170] sm:$0xff]
    %v692 = vld [vmem:[#allocation4 + $0x1178] sm:$0xff]
    %v693 = vld [vmem:[#allocation4 + $0x1180] sm:$0xff]
    %v694 = vld [vmem:[#allocation4 + $0x1188] sm:$0xff]
    %v695 = vld [vmem:[#allocation4 + $0x1190] sm:$0xff]
    %v696 = vld [vmem:[#allocation4 + $0x1198] sm:$0xff]
    %v697 = vld [vmem:[#allocation4 + $0x11a0] sm:$0xff]
    %v698 = vld [vmem:[#allocation4 + $0x11a8] sm:$0xff]
    %v699 = vld [vmem:[#allocation4 + $0x11b0] sm:$0xff]
    %v700 = vld [vmem:[#allocation4 + $0x11b8] sm:$0xff]
    %v701 = vld [vmem:[#allocation4 + $0x11c0] sm:$0xff]
    %v702 = vld [vmem:[#allocation4 + $0x11c8] sm:$0xff]
    %v703 = vld [vmem:[#allocation4 + $0x11d0] sm:$0xff]
    %v704 = vld [vmem:[#allocation4 + $0x11d8] sm:$0xff]
    %v705 = vld [vmem:[#allocation4 + $0x11e0] sm:$0xff]
    %v706 = vld [vmem:[#allocation4 + $0x11e8] sm:$0xff]
    %v707 = vld [vmem:[#allocation4 + $0x11f0] sm:$0xff]
    %v708 = vld [vmem:[#allocation4 + $0x11f8] sm:$0xff]
    %v709 = vld [vmem:[#allocation4 + $0x1200] sm:$0xff]
    %v710 = vld [vmem:[#allocation4 + $0x1208] sm:$0xff]
    %v711 = vld [vmem:[#allocation4 + $0x1210] sm:$0xff]
    %v712 = vld [vmem:[#allocation4 + $0x1218] sm:$0xff]
    %v713 = vld [vmem:[#allocation4 + $0x1220] sm:$0xff]
    %v714 = vld [vmem:[#allocation4 + $0x1228] sm:$0xff]
    %v715 = vld [vmem:[#allocation4 + $0x1230] sm:$0xff]
    %v716 = vld [vmem:[#allocation4 + $0x1238] sm:$0xff]
    %v717 = vld [vmem:[#allocation4 + $0x1240] sm:$0xff]
    %v718 = vld [vmem:[#allocation4 + $0x1248] sm:$0xff]
    %v719 = vld [vmem:[#allocation4 + $0x1250] sm:$0xff]
    %v720 = vld [vmem:[#allocation4 + $0x1258] sm:$0xff]
    %v721 = vld [vmem:[#allocation4 + $0x1260] sm:$0xff]
    %v722 = vld [vmem:[#allocation4 + $0x1268] sm:$0xff]
    %v723 = vld [vmem:[#allocation4 + $0x1270] sm:$0xff]
    %v724 = vld [vmem:[#allocation4 + $0x1278] sm:$0xff]
    %v725 = vld [vmem:[#allocation4 + $0x1280] sm:$0xff]
    %v726 = vld [vmem:[#allocation4 + $0x1288] sm:$0xff]
    %v727 = vld [vmem:[#allocation4 + $0x1290] sm:$0xff]
    %v728 = vld [vmem:[#allocation4 + $0x1298] sm:$0xff]
    %v729 = vld [vmem:[#allocation4 + $0x12a0] sm:$0xff]
    %v730 = vld [vmem:[#allocation4 + $0x12a8] sm:$0xff]
    %v731 = vld [vmem:[#allocation4 + $0x12b0] sm:$0xff]
    %v732 = vld [vmem:[#allocation4 + $0x12b8] sm:$0xff]
    %v733 = vld [vmem:[#allocation4 + $0x12c0] sm:$0xff]
    %v734 = vld [vmem:[#allocation4 + $0x12c8] sm:$0xff]
    %v735 = vld [vmem:[#allocation4 + $0x12d0] sm:$0xff]
    %v736 = vld [vmem:[#allocation4 + $0x12d8] sm:$0xff]
    %v737 = vld [vmem:[#allocation4 + $0x12e0] sm:$0xff]
    %v738 = vld [vmem:[#allocation4 + $0x12e8] sm:$0xff]
    %v739 = vld [vmem:[#allocation4 + $0x12f0] sm:$0xff]
    %v740 = vld [vmem:[#allocation4 + $0x12f8] sm:$0xff]
    %v741 = vld [vmem:[#allocation4 + $0x1300] sm:$0xff]
    %v742 = vld [vmem:[#allocation4 + $0x1308] sm:$0xff]
    %v743 = vld [vmem:[#allocation4 + $0x1310] sm:$0xff]
    %v744 = vld [vmem:[#allocation4 + $0x1318] sm:$0xff]
    %v745 = vld [vmem:[#allocation4 + $0x1320] sm:$0xff]
    %v746 = vld [vmem:[#allocation4 + $0x1328] sm:$0xff]
    %v747 = vld [vmem:[#allocation4 + $0x1330] sm:$0xff]
    %v748 = vld [vmem:[#allocation4 + $0x1338] sm:$0xff]
    %v749 = vld [vmem:[#allocation4 + $0x1340] sm:$0xff]
    %v750 = vld [vmem:[#allocation4 + $0x1348] sm:$0xff]
    %v751 = vld [vmem:[#allocation4 + $0x1350] sm:$0xff]
    %v752 = vld [vmem:[#allocation4 + $0x1358] sm:$0xff]
    %v753 = vld [vmem:[#allocation4 + $0x1360] sm:$0xff]
    %v754 = vld [vmem:[#allocation4 + $0x1368] sm:$0xff]
    %v755 = vld [vmem:[#allocation4 + $0x1370] sm:$0xff]
    %v756 = vld [vmem:[#allocation4 + $0x1378] sm:$0xff]
    %v757 = vld [vmem:[#allocation4 + $0x1380] sm:$0xff]
    %v758 = vld [vmem:[#allocation4 + $0x1388] sm:$0xff]
    %v759 = vld [vmem:[#allocation4 + $0x1390] sm:$0xff]
    %v760 = vld [vmem:[#allocation4 + $0x1398] sm:$0xff]
    %v761 = vld [vmem:[#allocation4 + $0x13a0] sm:$0xff]
    %v762 = vld [vmem:[#allocation4 + $0x13a8] sm:$0xff]
    %v763 = vld [vmem:[#allocation4 + $0x13b0] sm:$0xff]
    %v764 = vld [vmem:[#allocation4 + $0x13b8] sm:$0xff]
    %v765 = vld [vmem:[#allocation4 + $0x13c0] sm:$0xff]
    %v766 = vld [vmem:[#allocation4 + $0x13c8] sm:$0xff]
    %v767 = vld [vmem:[#allocation4 + $0x13d0] sm:$0xff]
    %v768 = vld [vmem:[#allocation4 + $0x13d8] sm:$0xff]
    %v769 = vld [vmem:[#allocation4 + $0x13e0] sm:$0xff]
    %v770 = vld [vmem:[#allocation4 + $0x13e8] sm:$0xff]
    %v771 = vld [vmem:[#allocation4 + $0x13f0] sm:$0xff]
    %v772 = vld [vmem:[#allocation4 + $0x13f8] sm:$0xff]
    %v773 = vld [vmem:[#allocation4 + $0x1400] sm:$0xff]
    %v774 = vld [vmem:[#allocation4 + $0x1408] sm:$0xff]
    %v775 = vld [vmem:[#allocation4 + $0x1410] sm:$0xff]
    %v776 = vld [vmem:[#allocation4 + $0x1418] sm:$0xff]
    %v777 = vld [vmem:[#allocation4 + $0x1420] sm:$0xff]
    %v778 = vld [vmem:[#allocation4 + $0x1428] sm:$0xff]
    %v779 = vld [vmem:[#allocation4 + $0x1430] sm:$0xff]
    %v780 = vld [vmem:[#allocation4 + $0x1438] sm:$0xff]
    %v781 = vld [vmem:[#allocation4 + $0x1440] sm:$0xff]
    %v782 = vld [vmem:[#allocation4 + $0x1448] sm:$0xff]
    %v783 = vld [vmem:[#allocation4 + $0x1450] sm:$0xff]
    %v784 = vld [vmem:[#allocation4 + $0x1458] sm:$0xff]
    %v785 = vld [vmem:[#allocation4 + $0x1460] sm:$0xff]
    %v786 = vld [vmem:[#allocation4 + $0x1468] sm:$0xff]
    %v787 = vld [vmem:[#allocation4 + $0x1470] sm:$0xff]
    %v788 = vld [vmem:[#allocation4 + $0x1478] sm:$0xff]
    %v789 = vld [vmem:[#allocation4 + $0x1480] sm:$0xff]
    %v790 = vld [vmem:[#allocation4 + $0x1488] sm:$0xff]
    %v791 = vld [vmem:[#allocation4 + $0x1490] sm:$0xff]
    %v792 = vld [vmem:[#allocation4 + $0x1498] sm:$0xff]
    %v793 = vld [vmem:[#allocation4 + $0x14a0] sm:$0xff]
    %v794 = vld [vmem:[#allocation4 + $0x14a8] sm:$0xff]
    %v795 = vld [vmem:[#allocation4 + $0x14b0] sm:$0xff]
    %v796 = vld [vmem:[#allocation4 + $0x14b8] sm:$0xff]
    %v797 = vld [vmem:[#allocation4 + $0x14c0] sm:$0xff]
    %v798 = vld [vmem:[#allocation4 + $0x14c8] sm:$0xff]
    %v799 = vld [vmem:[#allocation4 + $0x14d0] sm:$0xff]
    %v800 = vld [vmem:[#allocation4 + $0x14d8] sm:$0xff]
    %v801 = vld [vmem:[#allocation4 + $0x14e0] sm:$0xff]
    %v802 = vld [vmem:[#allocation4 + $0x14e8] sm:$0xff]
    %v803 = vld [vmem:[#allocation4 + $0x14f0] sm:$0xff]
    %v804 = vld [vmem:[#allocation4 + $0x14f8] sm:$0xff]
    %v805 = vld [vmem:[#allocation4 + $0x1500] sm:$0xff]
    %v806 = vld [vmem:[#allocation4 + $0x1508] sm:$0xff]
    %v807 = vld [vmem:[#allocation4 + $0x1510] sm:$0xff]
    %v808 = vld [vmem:[#allocation4 + $0x1518] sm:$0xff]
    %v809 = vld [vmem:[#allocation4 + $0x1520] sm:$0xff]
    %v810 = vld [vmem:[#allocation4 + $0x1528] sm:$0xff]
    %v811 = vld [vmem:[#allocation4 + $0x1530] sm:$0xff]
    %v812 = vld [vmem:[#allocation4 + $0x1538] sm:$0xff]
    %v813 = vld [vmem:[#allocation4 + $0x1540] sm:$0xff]
    %v814 = vld [vmem:[#allocation4 + $0x1548] sm:$0xff]
    %v815 = vld [vmem:[#allocation4 + $0x1550] sm:$0xff]
    %v816 = vld [vmem:[#allocation4 + $0x1558] sm:$0xff]
    %v817 = vld [vmem:[#allocation4 + $0x1560] sm:$0xff]
    %v818 = vld [vmem:[#allocation4 + $0x1568] sm:$0xff]
    %v819 = vld [vmem:[#allocation4 + $0x1570] sm:$0xff]
    %v820 = vld [vmem:[#allocation4 + $0x1578] sm:$0xff]
    %v821 = vld [vmem:[#allocation4 + $0x1580] sm:$0xff]
    %v822 = vld [vmem:[#allocation4 + $0x1588] sm:$0xff]
    %v823 = vld [vmem:[#allocation4 + $0x1590] sm:$0xff]
    %v824 = vld [vmem:[#allocation4 + $0x1598] sm:$0xff]
    %v825 = vld [vmem:[#allocation4 + $0x15a0] sm:$0xff]
    %v826 = vld [vmem:[#allocation4 + $0x15a8] sm:$0xff]
    %v827 = vld [vmem:[#allocation4 + $0x15b0] sm:$0xff]
    %v828 = vld [vmem:[#allocation4 + $0x15b8] sm:$0xff]
    %v829 = vld [vmem:[#allocation4 + $0x15c0] sm:$0xff]
    %v830 = vld [vmem:[#allocation4 + $0x15c8] sm:$0xff]
    %v831 = vld [vmem:[#allocation4 + $0x15d0] sm:$0xff]
    %v832 = vld [vmem:[#allocation4 + $0x15d8] sm:$0xff]
    %v833 = vld [vmem:[#allocation4 + $0x15e0] sm:$0xff]
    %v834 = vld [vmem:[#allocation4 + $0x15e8] sm:$0xff]
    %v835 = vld [vmem:[#allocation4 + $0x15f0] sm:$0xff]
    %v836 = vld [vmem:[#allocation4 + $0x15f8] sm:$0xff]
    %v837 = vld [vmem:[#allocation4 + $0x1600] sm:$0xff]
    %v838 = vld [vmem:[#allocation4 + $0x1608] sm:$0xff]
    %v839 = vld [vmem:[#allocation4 + $0x1610] sm:$0xff]
    %v840 = vld [vmem:[#allocation4 + $0x1618] sm:$0xff]
    %v841 = vld [vmem:[#allocation4 + $0x1620] sm:$0xff]
    %v842 = vld [vmem:[#allocation4 + $0x1628] sm:$0xff]
    %v843 = vld [vmem:[#allocation4 + $0x1630] sm:$0xff]
    %v844 = vld [vmem:[#allocation4 + $0x1638] sm:$0xff]
    %v845 = vld [vmem:[#allocation4 + $0x1640] sm:$0xff]
    %v846 = vld [vmem:[#allocation4 + $0x1648] sm:$0xff]
    %v847 = vld [vmem:[#allocation4 + $0x1650] sm:$0xff]
    %v848 = vld [vmem:[#allocation4 + $0x1658] sm:$0xff]
    %v849 = vld [vmem:[#allocation4 + $0x1660] sm:$0xff]
    %v850 = vld [vmem:[#allocation4 + $0x1668] sm:$0xff]
    %v851 = vld [vmem:[#allocation4 + $0x1670] sm:$0xff]
    %v852 = vld [vmem:[#allocation4 + $0x1678] sm:$0xff]
    %v853 = vld [vmem:[#allocation4 + $0x1680] sm:$0xff]
    %v854 = vld [vmem:[#allocation4 + $0x1688] sm:$0xff]
    %v855 = vld [vmem:[#allocation4 + $0x1690] sm:$0xff]
    %v856 = vld [vmem:[#allocation4 + $0x1698] sm:$0xff]
    %v857 = vld [vmem:[#allocation4 + $0x16a0] sm:$0xff]
    %v858 = vld [vmem:[#allocation4 + $0x16a8] sm:$0xff]
    %v859 = vld [vmem:[#allocation4 + $0x16b0] sm:$0xff]
    %v860 = vld [vmem:[#allocation4 + $0x16b8] sm:$0xff]
    %v861 = vld [vmem:[#allocation4 + $0x16c0] sm:$0xff]
    %v862 = vld [vmem:[#allocation4 + $0x16c8] sm:$0xff]
    %v863 = vld [vmem:[#allocation4 + $0x16d0] sm:$0xff]
    %v864 = vld [vmem:[#allocation4 + $0x16d8] sm:$0xff]
    %v865 = vld [vmem:[#allocation4 + $0x16e0] sm:$0xff]
    %v866 = vld [vmem:[#allocation4 + $0x16e8] sm:$0xff]
    %v867 = vld [vmem:[#allocation4 + $0x16f0] sm:$0xff]
    %v868 = vld [vmem:[#allocation4 + $0x16f8] sm:$0xff]
    %v869 = vld [vmem:[#allocation4 + $0x1700] sm:$0xff]
    %v870 = vld [vmem:[#allocation4 + $0x1708] sm:$0xff]
    %v871 = vld [vmem:[#allocation4 + $0x1710] sm:$0xff]
    %v872 = vld [vmem:[#allocation4 + $0x1718] sm:$0xff]
    %v873 = vld [vmem:[#allocation4 + $0x1720] sm:$0xff]
    %v874 = vld [vmem:[#allocation4 + $0x1728] sm:$0xff]
    %v875 = vld [vmem:[#allocation4 + $0x1730] sm:$0xff]
    %v876 = vld [vmem:[#allocation4 + $0x1738] sm:$0xff]
    %v877 = vld [vmem:[#allocation4 + $0x1740] sm:$0xff]
    %v878 = vld [vmem:[#allocation4 + $0x1748] sm:$0xff]
    %v879 = vld [vmem:[#allocation4 + $0x1750] sm:$0xff]
    %v880 = vld [vmem:[#allocation4 + $0x1758] sm:$0xff]
    %v881 = vld [vmem:[#allocation4 + $0x1760] sm:$0xff]
    %v882 = vld [vmem:[#allocation4 + $0x1768] sm:$0xff]
    %v883 = vld [vmem:[#allocation4 + $0x1770] sm:$0xff]
    %v884 = vld [vmem:[#allocation4 + $0x1778] sm:$0xff]
    %v885 = vld [vmem:[#allocation4 + $0x1780] sm:$0xff]
    %v886 = vld [vmem:[#allocation4 + $0x1788] sm:$0xff]
    %v887 = vld [vmem:[#allocation4 + $0x1790] sm:$0xff]
    %v888 = vld [vmem:[#allocation4 + $0x1798] sm:$0xff]
    %v889 = vld [vmem:[#allocation4 + $0x17a0] sm:$0xff]
    %v890 = vld [vmem:[#allocation4 + $0x17a8] sm:$0xff]
    %v891 = vld [vmem:[#allocation4 + $0x17b0] sm:$0xff]
    %v892 = vld [vmem:[#allocation4 + $0x17b8] sm:$0xff]
    %v893 = vld [vmem:[#allocation4 + $0x17c0] sm:$0xff]
    %v894 = vld [vmem:[#allocation4 + $0x17c8] sm:$0xff]
    %v895 = vld [vmem:[#allocation4 + $0x17d0] sm:$0xff]
    %v896 = vld [vmem:[#allocation4 + $0x17d8] sm:$0xff]
    %v897 = vld [vmem:[#allocation4 + $0x17e0] sm:$0xff]
    %v898 = vld [vmem:[#allocation4 + $0x17e8] sm:$0xff]
    %v899 = vld [vmem:[#allocation4 + $0x17f0] sm:$0xff]
    %v900 = vld [vmem:[#allocation4 + $0x17f8] sm:$0xff]
    %v903 = vcombine.high %v130, %v130
    %v904 = vcombine.high %v131, %v131
    %907 = vmatprep.subr.mxu0 %v314
    %908 = vmatpush1.msra.mxu0 %v313
    %909 = vmatprep.subr.mxu0 %v302
    %910 = vmatpush1.msra.mxu0 %v301
    %911 = vmatprep.subr.mxu0 %v290
    %912 = vmatpush1.msra.mxu0 %v289
    %913 = vmatprep.subr.mxu0 %v278
    %914 = vmatpush1.msra.mxu0 %v277
    %915 = vmatprep.subr.mxu0 %v266
    %916 = vmatpush1.msra.mxu0 %v265
    %917 = vmatprep.subr.mxu0 %v254
    %918 = vmatpush1.msra.mxu0 %v253
    %919 = vmatprep.subr.mxu0 %v242
    %920 = vmatpush1.msra.mxu0 %v241
    %921 = vmatprep.subr.mxu0 %v230
    %922 = vmatpush1.msra.mxu0 %v229
    %923 = vmatprep.subr.mxu0 %v218
    %924 = vmatpush1.msra.mxu0 %v217
    %925 = vmatprep.subr.mxu0 %v206
    %926 = vmatpush1.msra.mxu0 %v205
    %927 = vmatprep.subr.mxu0 %v194
    %928 = vmatpush1.msra.mxu0 %v193
    %929 = vmatprep.subr.mxu0 %v182
    %930 = vmatpush1.msra.mxu0 %v181
    %931 = vmatprep.subr.mxu0 %v170
    %932 = vmatpush1.msra.mxu0 %v169
    %933 = vmatprep.subr.mxu0 %v158
    %934 = vmatpush1.msra.mxu0 %v157
    %935 = vmatprep.subr.mxu0 %v146
    %936 = vmatpush1.msra.mxu0 %v145
    %937 = vmatprep.subr.mxu0 %v134
    %938 = vmatpush1.msra.mxu0 %v133
    %939 = vmatprep.subr.mxu0 %v506
    %940 = vmatpush2.msra.mxu0 %v505
    %941 = vmatprep.subr.mxu0 %v494
    %942 = vmatpush2.msra.mxu0 %v493
    %943 = vmatprep.subr.mxu0 %v482
    %944 = vmatpush2.msra.mxu0 %v481
    %945 = vmatprep.subr.mxu0 %v470
    %946 = vmatpush2.msra.mxu0 %v469
    %947 = vmatprep.subr.mxu0 %v458
    %948 = vmatpush2.msra.mxu0 %v457
    %949 = vmatprep.subr.mxu0 %v446
    %950 = vmatpush2.msra.mxu0 %v445
    %951 = vmatprep.subr.mxu0 %v434
    %952 = vmatpush2.msra.mxu0 %v433
    %953 = vmatprep.subr.mxu0 %v422
    %954 = vmatpush2.msra.mxu0 %v421
    %955 = vmatprep.subr.mxu0 %v410
    %956 = vmatpush2.msra.mxu0 %v409
    %957 = vmatprep.subr.mxu0 %v398
    %958 = vmatpush2.msra.mxu0 %v397
    %959 = vmatprep.subr.mxu0 %v386
    %960 = vmatpush2.msra.mxu0 %v385
    %961 = vmatprep.subr.mxu0 %v374
    %962 = vmatpush2.msra.mxu0 %v373
    %963 = vmatprep.subr.mxu0 %v362
    %964 = vmatpush2.msra.mxu0 %v361
    %965 = vmatprep.subr.mxu0 %v350
    %966 = vmatpush2.msra.mxu0 %v349
    %967 = vmatprep.subr.mxu0 %v338
    %968 = vmatpush2.msra.mxu0 %v337
    %969 = vmatprep.subr.mxu0 %v326
    %970 = vmatpush2.msra.mxu0 %v325
    %971 = vmatprep.mubr.f32.mxu0 %v903
    %972 = vmatmul.mubr.f32.gmra.mxu0 %v130
    %v973 = vpop.f32.mrf.mxu0
    %v974 = vadd.f32 0.0, %v973
    %v975 = vpop.f32.mrf.mxu0
    %v976 = vadd.f32 0.0, %v975
    %977 = vdwg.mxu0
    %978 = vmatprep.subr.mxu0 %v698
    %979 = vmatpush1.msra.mxu0 %v697
    %980 = vmatprep.subr.mxu0 %v686
    %981 = vmatpush1.msra.mxu0 %v685
    %982 = vmatprep.subr.mxu0 %v674
    %983 = vmatpush1.msra.mxu0 %v673
    %984 = vmatprep.subr.mxu0 %v662
    %985 = vmatpush1.msra.mxu0 %v661
    %986 = vmatprep.subr.mxu0 %v650
    %987 = vmatpush1.msra.mxu0 %v649
    %988 = vmatprep.subr.mxu0 %v638
    %989 = vmatpush1.msra.mxu0 %v637
    %990 = vmatprep.subr.mxu0 %v626
    %991 = vmatpush1.msra.mxu0 %v625
    %992 = vmatprep.subr.mxu0 %v614
    %993 = vmatpush1.msra.mxu0 %v613
    %994 = vmatprep.subr.mxu0 %v602
    %995 = vmatpush1.msra.mxu0 %v601
    %996 = vmatprep.subr.mxu0 %v590
    %997 = vmatpush1.msra.mxu0 %v589
    %998 = vmatprep.subr.mxu0 %v578
    %999 = vmatpush1.msra.mxu0 %v577
    %1000 = vmatprep.subr.mxu0 %v566
    %1001 = vmatpush1.msra.mxu0 %v565
    %1002 = vmatprep.subr.mxu0 %v554
    %1003 = vmatpush1.msra.mxu0 %v553
    %1004 = vmatprep.subr.mxu0 %v542
    %1005 = vmatpush1.msra.mxu0 %v541
    %1006 = vmatprep.subr.mxu0 %v530
    %1007 = vmatpush1.msra.mxu0 %v529
    %1008 = vmatprep.subr.mxu0 %v518
    %1009 = vmatpush1.msra.mxu0 %v517
    %1010 = vmatprep.subr.mxu0 %v890
    %1011 = vmatpush2.msra.mxu0 %v889
    %1012 = vmatprep.subr.mxu0 %v878
    %1013 = vmatpush2.msra.mxu0 %v877
    %1014 = vmatprep.subr.mxu0 %v866
    %1015 = vmatpush2.msra.mxu0 %v865
    %1016 = vmatprep.subr.mxu0 %v854
    %1017 = vmatpush2.msra.mxu0 %v853
    %1018 = vmatprep.subr.mxu0 %v842
    %1019 = vmatpush2.msra.mxu0 %v841
    %1020 = vmatprep.subr.mxu0 %v830
    %1021 = vmatpush2.msra.mxu0 %v829
    %1022 = vmatprep.subr.mxu0 %v818
    %1023 = vmatpush2.msra.mxu0 %v817
    %1024 = vmatprep.subr.mxu0 %v806
    %1025 = vmatpush2.msra.mxu0 %v805
    %1026 = vmatprep.subr.mxu0 %v794
    %1027 = vmatpush2.msra.mxu0 %v793
    %1028 = vmatprep.subr.mxu0 %v782
    %1029 = vmatpush2.msra.mxu0 %v781
    %1030 = vmatprep.subr.mxu0 %v770
    %1031 = vmatpush2.msra.mxu0 %v769
    %1032 = vmatprep.subr.mxu0 %v758
    %1033 = vmatpush2.msra.mxu0 %v757
    %1034 = vmatprep.subr.mxu0 %v746
    %1035 = vmatpush2.msra.mxu0 %v745
    %1036 = vmatprep.subr.mxu0 %v734
    %1037 = vmatpush2.msra.mxu0 %v733
    %1038 = vmatprep.subr.mxu0 %v722
    %1039 = vmatpush2.msra.mxu0 %v721
    %1040 = vmatprep.subr.mxu0 %v710
    %1041 = vmatpush2.msra.mxu0 %v709
    %1042 = vmatprep.mubr.f32.mxu0 %v904
    %1043 = vmatmul.mubr.f32.gmra.mxu0 %v131
    %v1044 = vpop.f32.mrf.mxu0
    %v1045 = vadd.f32 %v974, %v1044
    %v1046 = vpop.f32.mrf.mxu0
    %v1047 = vadd.f32 %v976, %v1046
    %1048 = vdwg.mxu0
    %1049 = vmatprep.subr.mxu0 %v316
    %1050 = vmatpush1.msra.mxu0 %v315
    %1051 = vmatprep.subr.mxu0 %v304
    %1052 = vmatpush1.msra.mxu0 %v303
    %1053 = vmatprep.subr.mxu0 %v292
    %1054 = vmatpush1.msra.mxu0 %v291
    %1055 = vmatprep.subr.mxu0 %v280
    %1056 = vmatpush1.msra.mxu0 %v279
    %1057 = vmatprep.subr.mxu0 %v268
    %1058 = vmatpush1.msra.mxu0 %v267
    %1059 = vmatprep.subr.mxu0 %v256
    %1060 = vmatpush1.msra.mxu0 %v255
    %1061 = vmatprep.subr.mxu0 %v244
    %1062 = vmatpush1.msra.mxu0 %v243
    %1063 = vmatprep.subr.mxu0 %v232
    %1064 = vmatpush1.msra.mxu0 %v231
    %1065 = vmatprep.subr.mxu0 %v220
    %1066 = vmatpush1.msra.mxu0 %v219
    %1067 = vmatprep.subr.mxu0 %v208
    %1068 = vmatpush1.msra.mxu0 %v207
    %1069 = vmatprep.subr.mxu0 %v196
    %1070 = vmatpush1.msra.mxu0 %v195
    %1071 = vmatprep.subr.mxu0 %v184
    %1072 = vmatpush1.msra.mxu0 %v183
    %1073 = vmatprep.subr.mxu0 %v172
    %1074 = vmatpush1.msra.mxu0 %v171
    %1075 = vmatprep.subr.mxu0 %v160
    %1076 = vmatpush1.msra.mxu0 %v159
    %1077 = vmatprep.subr.mxu0 %v148
    %1078 = vmatpush1.msra.mxu0 %v147
    %1079 = vmatprep.subr.mxu0 %v136
    %1080 = vmatpush1.msra.mxu0 %v135
    %1081 = vmatprep.subr.mxu0 %v508
    %1082 = vmatpush2.msra.mxu0 %v507
    %1083 = vmatprep.subr.mxu0 %v496
    %1084 = vmatpush2.msra.mxu0 %v495
    %1085 = vmatprep.subr.mxu0 %v484
    %1086 = vmatpush2.msra.mxu0 %v483
    %1087 = vmatprep.subr.mxu0 %v472
    %1088 = vmatpush2.msra.mxu0 %v471
    %1089 = vmatprep.subr.mxu0 %v460
    %1090 = vmatpush2.msra.mxu0 %v459
    %1091 = vmatprep.subr.mxu0 %v448
    %1092 = vmatpush2.msra.mxu0 %v447
    %1093 = vmatprep.subr.mxu0 %v436
    %1094 = vmatpush2.msra.mxu0 %v435
    %1095 = vmatprep.subr.mxu0 %v424
    %1096 = vmatpush2.msra.mxu0 %v423
    %1097 = vmatprep.subr.mxu0 %v412
    %1098 = vmatpush2.msra.mxu0 %v411
    %1099 = vmatprep.subr.mxu0 %v400
    %1100 = vmatpush2.msra.mxu0 %v399
    %1101 = vmatprep.subr.mxu0 %v388
    %1102 = vmatpush2.msra.mxu0 %v387
    %1103 = vmatprep.subr.mxu0 %v376
    %1104 = vmatpush2.msra.mxu0 %v375
    %1105 = vmatprep.subr.mxu0 %v364
    %1106 = vmatpush2.msra.mxu0 %v363
    %1107 = vmatprep.subr.mxu0 %v352
    %1108 = vmatpush2.msra.mxu0 %v351
    %1109 = vmatprep.subr.mxu0 %v340
    %1110 = vmatpush2.msra.mxu0 %v339
    %1111 = vmatprep.subr.mxu0 %v328
    %1112 = vmatpush2.msra.mxu0 %v327
    %1113 = vmatprep.mubr.f32.mxu0 %v903
    %1114 = vmatmul.mubr.f32.gmra.mxu0 %v130
    %v1115 = vpop.f32.mrf.mxu0
    %v1116 = vadd.f32 0.0, %v1115
    %v1117 = vpop.f32.mrf.mxu0
    %v1118 = vadd.f32 0.0, %v1117
    %1119 = vdwg.mxu0
    %1120 = vmatprep.subr.mxu0 %v700
    %1121 = vmatpush1.msra.mxu0 %v699
    %1122 = vmatprep.subr.mxu0 %v688
    %1123 = vmatpush1.msra.mxu0 %v687
    %1124 = vmatprep.subr.mxu0 %v676
    %1125 = vmatpush1.msra.mxu0 %v675
    %1126 = vmatprep.subr.mxu0 %v664
    %1127 = vmatpush1.msra.mxu0 %v663
    %1128 = vmatprep.subr.mxu0 %v652
    %1129 = vmatpush1.msra.mxu0 %v651
    %1130 = vmatprep.subr.mxu0 %v640
    %1131 = vmatpush1.msra.mxu0 %v639
    %1132 = vmatprep.subr.mxu0 %v628
    %1133 = vmatpush1.msra.mxu0 %v627
    %1134 = vmatprep.subr.mxu0 %v616
    %1135 = vmatpush1.msra.mxu0 %v615
    %1136 = vmatprep.subr.mxu0 %v604
    %1137 = vmatpush1.msra.mxu0 %v603
    %1138 = vmatprep.subr.mxu0 %v592
    %1139 = vmatpush1.msra.mxu0 %v591
    %1140 = vmatprep.subr.mxu0 %v580
    %1141 = vmatpush1.msra.mxu0 %v579
    %1142 = vmatprep.subr.mxu0 %v568
    %1143 = vmatpush1.msra.mxu0 %v567
    %1144 = vmatprep.subr.mxu0 %v556
    %1145 = vmatpush1.msra.mxu0 %v555
    %1146 = vmatprep.subr.mxu0 %v544
    %1147 = vmatpush1.msra.mxu0 %v543
    %1148 = vmatprep.subr.mxu0 %v532
    %1149 = vmatpush1.msra.mxu0 %v531
    %1150 = vmatprep.subr.mxu0 %v520
    %1151 = vmatpush1.msra.mxu0 %v519
    %1152 = vmatprep.subr.mxu0 %v892
    %1153 = vmatpush2.msra.mxu0 %v891
    %1154 = vmatprep.subr.mxu0 %v880
    %1155 = vmatpush2.msra.mxu0 %v879
    %1156 = vmatprep.subr.mxu0 %v868
    %1157 = vmatpush2.msra.mxu0 %v867
    %1158 = vmatprep.subr.mxu0 %v856
    %1159 = vmatpush2.msra.mxu0 %v855
    %1160 = vmatprep.subr.mxu0 %v844
    %1161 = vmatpush2.msra.mxu0 %v843
    %1162 = vmatprep.subr.mxu0 %v832
    %1163 = vmatpush2.msra.mxu0 %v831
    %1164 = vmatprep.subr.mxu0 %v820
    %1165 = vmatpush2.msra.mxu0 %v819
    %1166 = vmatprep.subr.mxu0 %v808
    %1167 = vmatpush2.msra.mxu0 %v807
    %1168 = vmatprep.subr.mxu0 %v796
    %1169 = vmatpush2.msra.mxu0 %v795
    %1170 = vmatprep.subr.mxu0 %v784
    %1171 = vmatpush2.msra.mxu0 %v783
    %1172 = vmatprep.subr.mxu0 %v772
    %1173 = vmatpush2.msra.mxu0 %v771
    %1174 = vmatprep.subr.mxu0 %v760
    %1175 = vmatpush2.msra.mxu0 %v759
    %1176 = vmatprep.subr.mxu0 %v748
    %1177 = vmatpush2.msra.mxu0 %v747
    %1178 = vmatprep.subr.mxu0 %v736
    %1179 = vmatpush2.msra.mxu0 %v735
    %1180 = vmatprep.subr.mxu0 %v724
    %1181 = vmatpush2.msra.mxu0 %v723
    %1182 = vmatprep.subr.mxu0 %v712
    %1183 = vmatpush2.msra.mxu0 %v711
    %1184 = vmatprep.mubr.f32.mxu0 %v904
    %1185 = vmatmul.mubr.f32.gmra.mxu0 %v131
    %v1186 = vpop.f32.mrf.mxu0
    %v1187 = vadd.f32 %v1116, %v1186
    %v1188 = vpop.f32.mrf.mxu0
    %v1189 = vadd.f32 %v1118, %v1188
    %1190 = vdwg.mxu0
    %1191 = vmatprep.subr.mxu0 %v318
    %1192 = vmatpush1.msra.mxu0 %v317
    %1193 = vmatprep.subr.mxu0 %v306
    %1194 = vmatpush1.msra.mxu0 %v305
    %1195 = vmatprep.subr.mxu0 %v294
    %1196 = vmatpush1.msra.mxu0 %v293
    %1197 = vmatprep.subr.mxu0 %v282
    %1198 = vmatpush1.msra.mxu0 %v281
    %1199 = vmatprep.subr.mxu0 %v270
    %1200 = vmatpush1.msra.mxu0 %v269
    %1201 = vmatprep.subr.mxu0 %v258
    %1202 = vmatpush1.msra.mxu0 %v257
    %1203 = vmatprep.subr.mxu0 %v246
    %1204 = vmatpush1.msra.mxu0 %v245
    %1205 = vmatprep.subr.mxu0 %v234
    %1206 = vmatpush1.msra.mxu0 %v233
    %1207 = vmatprep.subr.mxu0 %v222
    %1208 = vmatpush1.msra.mxu0 %v221
    %1209 = vmatprep.subr.mxu0 %v210
    %1210 = vmatpush1.msra.mxu0 %v209
    %1211 = vmatprep.subr.mxu0 %v198
    %1212 = vmatpush1.msra.mxu0 %v197
    %1213 = vmatprep.subr.mxu0 %v186
    %1214 = vmatpush1.msra.mxu0 %v185
    %1215 = vmatprep.subr.mxu0 %v174
    %1216 = vmatpush1.msra.mxu0 %v173
    %1217 = vmatprep.subr.mxu0 %v162
    %1218 = vmatpush1.msra.mxu0 %v161
    %1219 = vmatprep.subr.mxu0 %v150
    %1220 = vmatpush1.msra.mxu0 %v149
    %1221 = vmatprep.subr.mxu0 %v138
    %1222 = vmatpush1.msra.mxu0 %v137
    %1223 = vmatprep.subr.mxu0 %v510
    %1224 = vmatpush2.msra.mxu0 %v509
    %1225 = vmatprep.subr.mxu0 %v498
    %1226 = vmatpush2.msra.mxu0 %v497
    %1227 = vmatprep.subr.mxu0 %v486
    %1228 = vmatpush2.msra.mxu0 %v485
    %1229 = vmatprep.subr.mxu0 %v474
    %1230 = vmatpush2.msra.mxu0 %v473
    %1231 = vmatprep.subr.mxu0 %v462
    %1232 = vmatpush2.msra.mxu0 %v461
    %1233 = vmatprep.subr.mxu0 %v450
    %1234 = vmatpush2.msra.mxu0 %v449
    %1235 = vmatprep.subr.mxu0 %v438
    %1236 = vmatpush2.msra.mxu0 %v437
    %1237 = vmatprep.subr.mxu0 %v426
    %1238 = vmatpush2.msra.mxu0 %v425
    %1239 = vmatprep.subr.mxu0 %v414
    %1240 = vmatpush2.msra.mxu0 %v413
    %1241 = vmatprep.subr.mxu0 %v402
    %1242 = vmatpush2.msra.mxu0 %v401
    %1243 = vmatprep.subr.mxu0 %v390
    %1244 = vmatpush2.msra.mxu0 %v389
    %1245 = vmatprep.subr.mxu0 %v378
    %1246 = vmatpush2.msra.mxu0 %v377
    %1247 = vmatprep.subr.mxu0 %v366
    %1248 = vmatpush2.msra.mxu0 %v365
    %1249 = vmatprep.subr.mxu0 %v354
    %1250 = vmatpush2.msra.mxu0 %v353
    %1251 = vmatprep.subr.mxu0 %v342
    %1252 = vmatpush2.msra.mxu0 %v341
    %1253 = vmatprep.subr.mxu0 %v330
    %1254 = vmatpush2.msra.mxu0 %v329
    %1255 = vmatprep.mubr.f32.mxu0 %v903
    %1256 = vmatmul.mubr.f32.gmra.mxu0 %v130
    %v1257 = vpop.f32.mrf.mxu0
    %v1258 = vadd.f32 0.0, %v1257
    %v1259 = vpop.f32.mrf.mxu0
    %v1260 = vadd.f32 0.0, %v1259
    %1261 = vdwg.mxu0
    %1262 = vmatprep.subr.mxu0 %v702
    %1263 = vmatpush1.msra.mxu0 %v701
    %1264 = vmatprep.subr.mxu0 %v690
    %1265 = vmatpush1.msra.mxu0 %v689
    %1266 = vmatprep.subr.mxu0 %v678
    %1267 = vmatpush1.msra.mxu0 %v677
    %1268 = vmatprep.subr.mxu0 %v666
    %1269 = vmatpush1.msra.mxu0 %v665
    %1270 = vmatprep.subr.mxu0 %v654
    %1271 = vmatpush1.msra.mxu0 %v653
    %1272 = vmatprep.subr.mxu0 %v642
    %1273 = vmatpush1.msra.mxu0 %v641
    %1274 = vmatprep.subr.mxu0 %v630
    %1275 = vmatpush1.msra.mxu0 %v629
    %1276 = vmatprep.subr.mxu0 %v618
    %1277 = vmatpush1.msra.mxu0 %v617
    %1278 = vmatprep.subr.mxu0 %v606
    %1279 = vmatpush1.msra.mxu0 %v605
    %1280 = vmatprep.subr.mxu0 %v594
    %1281 = vmatpush1.msra.mxu0 %v593
    %1282 = vmatprep.subr.mxu0 %v582
    %1283 = vmatpush1.msra.mxu0 %v581
    %1284 = vmatprep.subr.mxu0 %v570
    %1285 = vmatpush1.msra.mxu0 %v569
    %1286 = vmatprep.subr.mxu0 %v558
    %1287 = vmatpush1.msra.mxu0 %v557
    %1288 = vmatprep.subr.mxu0 %v546
    %1289 = vmatpush1.msra.mxu0 %v545
    %1290 = vmatprep.subr.mxu0 %v534
    %1291 = vmatpush1.msra.mxu0 %v533
    %1292 = vmatprep.subr.mxu0 %v522
    %1293 = vmatpush1.msra.mxu0 %v521
    %1294 = vmatprep.subr.mxu0 %v894
    %1295 = vmatpush2.msra.mxu0 %v893
    %1296 = vmatprep.subr.mxu0 %v882
    %1297 = vmatpush2.msra.mxu0 %v881
    %1298 = vmatprep.subr.mxu0 %v870
    %1299 = vmatpush2.msra.mxu0 %v869
    %1300 = vmatprep.subr.mxu0 %v858
    %1301 = vmatpush2.msra.mxu0 %v857
    %1302 = vmatprep.subr.mxu0 %v846
    %1303 = vmatpush2.msra.mxu0 %v845
    %1304 = vmatprep.subr.mxu0 %v834
    %1305 = vmatpush2.msra.mxu0 %v833
    %1306 = vmatprep.subr.mxu0 %v822
    %1307 = vmatpush2.msra.mxu0 %v821
    %1308 = vmatprep.subr.mxu0 %v810
    %1309 = vmatpush2.msra.mxu0 %v809
    %1310 = vmatprep.subr.mxu0 %v798
    %1311 = vmatpush2.msra.mxu0 %v797
    %1312 = vmatprep.subr.mxu0 %v786
    %1313 = vmatpush2.msra.mxu0 %v785
    %1314 = vmatprep.subr.mxu0 %v774
    %1315 = vmatpush2.msra.mxu0 %v773
    %1316 = vmatprep.subr.mxu0 %v762
    %1317 = vmatpush2.msra.mxu0 %v761
    %1318 = vmatprep.subr.mxu0 %v750
    %1319 = vmatpush2.msra.mxu0 %v749
    %1320 = vmatprep.subr.mxu0 %v738
    %1321 = vmatpush2.msra.mxu0 %v737
    %1322 = vmatprep.subr.mxu0 %v726
    %1323 = vmatpush2.msra.mxu0 %v725
    %1324 = vmatprep.subr.mxu0 %v714
    %1325 = vmatpush2.msra.mxu0 %v713
    %1326 = vmatprep.mubr.f32.mxu0 %v904
    %1327 = vmatmul.mubr.f32.gmra.mxu0 %v131
    %v1328 = vpop.f32.mrf.mxu0
    %v1329 = vadd.f32 %v1258, %v1328
    %v1330 = vpop.f32.mrf.mxu0
    %v1331 = vadd.f32 %v1260, %v1330
    %1332 = vdwg.mxu0
    %1333 = vmatprep.subr.mxu0 %v320
    %1334 = vmatpush1.msra.mxu0 %v319
    %1335 = vmatprep.subr.mxu0 %v308
    %1336 = vmatpush1.msra.mxu0 %v307
    %1337 = vmatprep.subr.mxu0 %v296
    %1338 = vmatpush1.msra.mxu0 %v295
    %1339 = vmatprep.subr.mxu0 %v284
    %1340 = vmatpush1.msra.mxu0 %v283
    %1341 = vmatprep.subr.mxu0 %v272
    %1342 = vmatpush1.msra.mxu0 %v271
    %1343 = vmatprep.subr.mxu0 %v260
    %1344 = vmatpush1.msra.mxu0 %v259
    %1345 = vmatprep.subr.mxu0 %v248
    %1346 = vmatpush1.msra.mxu0 %v247
    %1347 = vmatprep.subr.mxu0 %v236
    %1348 = vmatpush1.msra.mxu0 %v235
    %1349 = vmatprep.subr.mxu0 %v224
    %1350 = vmatpush1.msra.mxu0 %v223
    %1351 = vmatprep.subr.mxu0 %v212
    %1352 = vmatpush1.msra.mxu0 %v211
    %1353 = vmatprep.subr.mxu0 %v200
    %1354 = vmatpush1.msra.mxu0 %v199
    %1355 = vmatprep.subr.mxu0 %v188
    %1356 = vmatpush1.msra.mxu0 %v187
    %1357 = vmatprep.subr.mxu0 %v176
    %1358 = vmatpush1.msra.mxu0 %v175
    %1359 = vmatprep.subr.mxu0 %v164
    %1360 = vmatpush1.msra.mxu0 %v163
    %1361 = vmatprep.subr.mxu0 %v152
    %1362 = vmatpush1.msra.mxu0 %v151
    %1363 = vmatprep.subr.mxu0 %v140
    %1364 = vmatpush1.msra.mxu0 %v139
    %1365 = vmatprep.subr.mxu0 %v512
    %1366 = vmatpush2.msra.mxu0 %v511
    %1367 = vmatprep.subr.mxu0 %v500
    %1368 = vmatpush2.msra.mxu0 %v499
    %1369 = vmatprep.subr.mxu0 %v488
    %1370 = vmatpush2.msra.mxu0 %v487
    %1371 = vmatprep.subr.mxu0 %v476
    %1372 = vmatpush2.msra.mxu0 %v475
    %1373 = vmatprep.subr.mxu0 %v464
    %1374 = vmatpush2.msra.mxu0 %v463
    %1375 = vmatprep.subr.mxu0 %v452
    %1376 = vmatpush2.msra.mxu0 %v451
    %1377 = vmatprep.subr.mxu0 %v440
    %1378 = vmatpush2.msra.mxu0 %v439
    %1379 = vmatprep.subr.mxu0 %v428
    %1380 = vmatpush2.msra.mxu0 %v427
    %1381 = vmatprep.subr.mxu0 %v416
    %1382 = vmatpush2.msra.mxu0 %v415
    %1383 = vmatprep.subr.mxu0 %v404
    %1384 = vmatpush2.msra.mxu0 %v403
    %1385 = vmatprep.subr.mxu0 %v392
    %1386 = vmatpush2.msra.mxu0 %v391
    %1387 = vmatprep.subr.mxu0 %v380
    %1388 = vmatpush2.msra.mxu0 %v379
    %1389 = vmatprep.subr.mxu0 %v368
    %1390 = vmatpush2.msra.mxu0 %v367
    %1391 = vmatprep.subr.mxu0 %v356
    %1392 = vmatpush2.msra.mxu0 %v355
    %1393 = vmatprep.subr.mxu0 %v344
    %1394 = vmatpush2.msra.mxu0 %v343
    %1395 = vmatprep.subr.mxu0 %v332
    %1396 = vmatpush2.msra.mxu0 %v331
    %1397 = vmatprep.mubr.f32.mxu0 %v903
    %1398 = vmatmul.mubr.f32.gmra.mxu0 %v130
    %v1399 = vpop.f32.mrf.mxu0
    %v1400 = vadd.f32 0.0, %v1399
    %v1401 = vpop.f32.mrf.mxu0
    %v1402 = vadd.f32 0.0, %v1401
    %1403 = vdwg.mxu0
    %1404 = vmatprep.subr.mxu0 %v704
    %1405 = vmatpush1.msra.mxu0 %v703
    %1406 = vmatprep.subr.mxu0 %v692
    %1407 = vmatpush1.msra.mxu0 %v691
    %1408 = vmatprep.subr.mxu0 %v680
    %1409 = vmatpush1.msra.mxu0 %v679
    %1410 = vmatprep.subr.mxu0 %v668
    %1411 = vmatpush1.msra.mxu0 %v667
    %1412 = vmatprep.subr.mxu0 %v656
    %1413 = vmatpush1.msra.mxu0 %v655
    %1414 = vmatprep.subr.mxu0 %v644
    %1415 = vmatpush1.msra.mxu0 %v643
    %1416 = vmatprep.subr.mxu0 %v632
    %1417 = vmatpush1.msra.mxu0 %v631
    %1418 = vmatprep.subr.mxu0 %v620
    %1419 = vmatpush1.msra.mxu0 %v619
    %1420 = vmatprep.subr.mxu0 %v608
    %1421 = vmatpush1.msra.mxu0 %v607
    %1422 = vmatprep.subr.mxu0 %v596
    %1423 = vmatpush1.msra.mxu0 %v595
    %1424 = vmatprep.subr.mxu0 %v584
    %1425 = vmatpush1.msra.mxu0 %v583
    %1426 = vmatprep.subr.mxu0 %v572
    %1427 = vmatpush1.msra.mxu0 %v571
    %1428 = vmatprep.subr.mxu0 %v560
    %1429 = vmatpush1.msra.mxu0 %v559
    %1430 = vmatprep.subr.mxu0 %v548
    %1431 = vmatpush1.msra.mxu0 %v547
    %1432 = vmatprep.subr.mxu0 %v536
    %1433 = vmatpush1.msra.mxu0 %v535
    %1434 = vmatprep.subr.mxu0 %v524
    %1435 = vmatpush1.msra.mxu0 %v523
    %1436 = vmatprep.subr.mxu0 %v896
    %1437 = vmatpush2.msra.mxu0 %v895
    %1438 = vmatprep.subr.mxu0 %v884
    %1439 = vmatpush2.msra.mxu0 %v883
    %1440 = vmatprep.subr.mxu0 %v872
    %1441 = vmatpush2.msra.mxu0 %v871
    %1442 = vmatprep.subr.mxu0 %v860
    %1443 = vmatpush2.msra.mxu0 %v859
    %1444 = vmatprep.subr.mxu0 %v848
    %1445 = vmatpush2.msra.mxu0 %v847
    %1446 = vmatprep.subr.mxu0 %v836
    %1447 = vmatpush2.msra.mxu0 %v835
    %1448 = vmatprep.subr.mxu0 %v824
    %1449 = vmatpush2.msra.mxu0 %v823
    %1450 = vmatprep.subr.mxu0 %v812
    %1451 = vmatpush2.msra.mxu0 %v811
    %1452 = vmatprep.subr.mxu0 %v800
    %1453 = vmatpush2.msra.mxu0 %v799
    %1454 = vmatprep.subr.mxu0 %v788
    %1455 = vmatpush2.msra.mxu0 %v787
    %1456 = vmatprep.subr.mxu0 %v776
    %1457 = vmatpush2.msra.mxu0 %v775
    %1458 = vmatprep.subr.mxu0 %v764
    %1459 = vmatpush2.msra.mxu0 %v763
    %1460 = vmatprep.subr.mxu0 %v752
    %1461 = vmatpush2.msra.mxu0 %v751
    %1462 = vmatprep.subr.mxu0 %v740
    %1463 = vmatpush2.msra.mxu0 %v739
    %1464 = vmatprep.subr.mxu0 %v728
    %1465 = vmatpush2.msra.mxu0 %v727
    %1466 = vmatprep.subr.mxu0 %v716
    %1467 = vmatpush2.msra.mxu0 %v715
    %1468 = vmatprep.mubr.f32.mxu0 %v904
    %1469 = vmatmul.mubr.f32.gmra.mxu0 %v131
    %v1470 = vpop.f32.mrf.mxu0
    %v1471 = vadd.f32 %v1400, %v1470
    %v1472 = vpop.f32.mrf.mxu0
    %v1473 = vadd.f32 %v1402, %v1472
    %1474 = vdwg.mxu0
    %1475 = vmatprep.subr.mxu0 %v322
    %1476 = vmatpush1.msra.mxu0 %v321
    %1477 = vmatprep.subr.mxu0 %v310
    %1478 = vmatpush1.msra.mxu0 %v309
    %1479 = vmatprep.subr.mxu0 %v298
    %1480 = vmatpush1.msra.mxu0 %v297
    %1481 = vmatprep.subr.mxu0 %v286
    %1482 = vmatpush1.msra.mxu0 %v285
    %1483 = vmatprep.subr.mxu0 %v274
    %1484 = vmatpush1.msra.mxu0 %v273
    %1485 = vmatprep.subr.mxu0 %v262
    %1486 = vmatpush1.msra.mxu0 %v261
    %1487 = vmatprep.subr.mxu0 %v250
    %1488 = vmatpush1.msra.mxu0 %v249
    %1489 = vmatprep.subr.mxu0 %v238
    %1490 = vmatpush1.msra.mxu0 %v237
    %1491 = vmatprep.subr.mxu0 %v226
    %1492 = vmatpush1.msra.mxu0 %v225
    %1493 = vmatprep.subr.mxu0 %v214
    %1494 = vmatpush1.msra.mxu0 %v213
    %1495 = vmatprep.subr.mxu0 %v202
    %1496 = vmatpush1.msra.mxu0 %v201
    %1497 = vmatprep.subr.mxu0 %v190
    %1498 = vmatpush1.msra.mxu0 %v189
    %1499 = vmatprep.subr.mxu0 %v178
    %1500 = vmatpush1.msra.mxu0 %v177
    %1501 = vmatprep.subr.mxu0 %v166
    %1502 = vmatpush1.msra.mxu0 %v165
    %1503 = vmatprep.subr.mxu0 %v154
    %1504 = vmatpush1.msra.mxu0 %v153
    %1505 = vmatprep.subr.mxu0 %v142
    %1506 = vmatpush1.msra.mxu0 %v141
    %1507 = vmatprep.subr.mxu0 %v514
    %1508 = vmatpush2.msra.mxu0 %v513
    %1509 = vmatprep.subr.mxu0 %v502
    %1510 = vmatpush2.msra.mxu0 %v501
    %1511 = vmatprep.subr.mxu0 %v490
    %1512 = vmatpush2.msra.mxu0 %v489
    %1513 = vmatprep.subr.mxu0 %v478
    %1514 = vmatpush2.msra.mxu0 %v477
    %1515 = vmatprep.subr.mxu0 %v466
    %1516 = vmatpush2.msra.mxu0 %v465
    %1517 = vmatprep.subr.mxu0 %v454
    %1518 = vmatpush2.msra.mxu0 %v453
    %1519 = vmatprep.subr.mxu0 %v442
    %1520 = vmatpush2.msra.mxu0 %v441
    %1521 = vmatprep.subr.mxu0 %v430
    %1522 = vmatpush2.msra.mxu0 %v429
    %1523 = vmatprep.subr.mxu0 %v418
    %1524 = vmatpush2.msra.mxu0 %v417
    %1525 = vmatprep.subr.mxu0 %v406
    %1526 = vmatpush2.msra.mxu0 %v405
    %1527 = vmatprep.subr.mxu0 %v394
    %1528 = vmatpush2.msra.mxu0 %v393
    %1529 = vmatprep.subr.mxu0 %v382
    %1530 = vmatpush2.msra.mxu0 %v381
    %1531 = vmatprep.subr.mxu0 %v370
    %1532 = vmatpush2.msra.mxu0 %v369
    %1533 = vmatprep.subr.mxu0 %v358
    %1534 = vmatpush2.msra.mxu0 %v357
    %1535 = vmatprep.subr.mxu0 %v346
    %1536 = vmatpush2.msra.mxu0 %v345
    %1537 = vmatprep.subr.mxu0 %v334
    %1538 = vmatpush2.msra.mxu0 %v333
    %1539 = vmatprep.mubr.f32.mxu0 %v903
    %1540 = vmatmul.mubr.f32.gmra.mxu0 %v130
    %v1541 = vpop.f32.mrf.mxu0
    %v1542 = vadd.f32 0.0, %v1541
    %v1543 = vpop.f32.mrf.mxu0
    %v1544 = vadd.f32 0.0, %v1543
    %1545 = vdwg.mxu0
    %1546 = vmatprep.subr.mxu0 %v706
    %1547 = vmatpush1.msra.mxu0 %v705
    %1548 = vmatprep.subr.mxu0 %v694
    %1549 = vmatpush1.msra.mxu0 %v693
    %1550 = vmatprep.subr.mxu0 %v682
    %1551 = vmatpush1.msra.mxu0 %v681
    %1552 = vmatprep.subr.mxu0 %v670
    %1553 = vmatpush1.msra.mxu0 %v669
    %1554 = vmatprep.subr.mxu0 %v658
    %1555 = vmatpush1.msra.mxu0 %v657
    %1556 = vmatprep.subr.mxu0 %v646
    %1557 = vmatpush1.msra.mxu0 %v645
    %1558 = vmatprep.subr.mxu0 %v634
    %1559 = vmatpush1.msra.mxu0 %v633
    %1560 = vmatprep.subr.mxu0 %v622
    %1561 = vmatpush1.msra.mxu0 %v621
    %1562 = vmatprep.subr.mxu0 %v610
    %1563 = vmatpush1.msra.mxu0 %v609
    %1564 = vmatprep.subr.mxu0 %v598
    %1565 = vmatpush1.msra.mxu0 %v597
    %1566 = vmatprep.subr.mxu0 %v586
    %1567 = vmatpush1.msra.mxu0 %v585
    %1568 = vmatprep.subr.mxu0 %v574
    %1569 = vmatpush1.msra.mxu0 %v573
    %1570 = vmatprep.subr.mxu0 %v562
    %1571 = vmatpush1.msra.mxu0 %v561
    %1572 = vmatprep.subr.mxu0 %v550
    %1573 = vmatpush1.msra.mxu0 %v549
    %1574 = vmatprep.subr.mxu0 %v538
    %1575 = vmatpush1.msra.mxu0 %v537
    %1576 = vmatprep.subr.mxu0 %v526
    %1577 = vmatpush1.msra.mxu0 %v525
    %1578 = vmatprep.subr.mxu0 %v898
    %1579 = vmatpush2.msra.mxu0 %v897
    %1580 = vmatprep.subr.mxu0 %v886
    %1581 = vmatpush2.msra.mxu0 %v885
    %1582 = vmatprep.subr.mxu0 %v874
    %1583 = vmatpush2.msra.mxu0 %v873
    %1584 = vmatprep.subr.mxu0 %v862
    %1585 = vmatpush2.msra.mxu0 %v861
    %1586 = vmatprep.subr.mxu0 %v850
    %1587 = vmatpush2.msra.mxu0 %v849
    %1588 = vmatprep.subr.mxu0 %v838
    %1589 = vmatpush2.msra.mxu0 %v837
    %1590 = vmatprep.subr.mxu0 %v826
    %1591 = vmatpush2.msra.mxu0 %v825
    %1592 = vmatprep.subr.mxu0 %v814
    %1593 = vmatpush2.msra.mxu0 %v813
    %1594 = vmatprep.subr.mxu0 %v802
    %1595 = vmatpush2.msra.mxu0 %v801
    %1596 = vmatprep.subr.mxu0 %v790
    %1597 = vmatpush2.msra.mxu0 %v789
    %1598 = vmatprep.subr.mxu0 %v778
    %1599 = vmatpush2.msra.mxu0 %v777
    %1600 = vmatprep.subr.mxu0 %v766
    %1601 = vmatpush2.msra.mxu0 %v765
    %1602 = vmatprep.subr.mxu0 %v754
    %1603 = vmatpush2.msra.mxu0 %v753
    %1604 = vmatprep.subr.mxu0 %v742
    %1605 = vmatpush2.msra.mxu0 %v741
    %1606 = vmatprep.subr.mxu0 %v730
    %1607 = vmatpush2.msra.mxu0 %v729
    %1608 = vmatprep.subr.mxu0 %v718
    %1609 = vmatpush2.msra.mxu0 %v717
    %1610 = vmatprep.mubr.f32.mxu0 %v904
    %1611 = vmatmul.mubr.f32.gmra.mxu0 %v131
    %v1612 = vpop.f32.mrf.mxu0
    %v1613 = vadd.f32 %v1542, %v1612
    %v1614 = vpop.f32.mrf.mxu0
    %v1615 = vadd.f32 %v1544, %v1614
    %1616 = vdwg.mxu0
    %1617 = vmatprep.subr.mxu0 %v324
    %1618 = vmatpush1.msra.mxu0 %v323
    %1619 = vmatprep.subr.mxu0 %v312
    %1620 = vmatpush1.msra.mxu0 %v311
    %1621 = vmatprep.subr.mxu0 %v300
    %1622 = vmatpush1.msra.mxu0 %v299
    %1623 = vmatprep.subr.mxu0 %v288
    %1624 = vmatpush1.msra.mxu0 %v287
    %1625 = vmatprep.subr.mxu0 %v276
    %1626 = vmatpush1.msra.mxu0 %v275
    %1627 = vmatprep.subr.mxu0 %v264
    %1628 = vmatpush1.msra.mxu0 %v263
    %1629 = vmatprep.subr.mxu0 %v252
    %1630 = vmatpush1.msra.mxu0 %v251
    %1631 = vmatprep.subr.mxu0 %v240
    %1632 = vmatpush1.msra.mxu0 %v239
    %1633 = vmatprep.subr.mxu0 %v228
    %1634 = vmatpush1.msra.mxu0 %v227
    %1635 = vmatprep.subr.mxu0 %v216
    %1636 = vmatpush1.msra.mxu0 %v215
    %1637 = vmatprep.subr.mxu0 %v204
    %1638 = vmatpush1.msra.mxu0 %v203
    %1639 = vmatprep.subr.mxu0 %v192
    %1640 = vmatpush1.msra.mxu0 %v191
    %1641 = vmatprep.subr.mxu0 %v180
    %1642 = vmatpush1.msra.mxu0 %v179
    %1643 = vmatprep.subr.mxu0 %v168
    %1644 = vmatpush1.msra.mxu0 %v167
    %1645 = vmatprep.subr.mxu0 %v156
    %1646 = vmatpush1.msra.mxu0 %v155
    %1647 = vmatprep.subr.mxu0 %v144
    %1648 = vmatpush1.msra.mxu0 %v143
    %1649 = vmatprep.subr.mxu0 %v516
    %1650 = vmatpush2.msra.mxu0 %v515
    %1651 = vmatprep.subr.mxu0 %v504
    %1652 = vmatpush2.msra.mxu0 %v503
    %1653 = vmatprep.subr.mxu0 %v492
    %1654 = vmatpush2.msra.mxu0 %v491
    %1655 = vmatprep.subr.mxu0 %v480
    %1656 = vmatpush2.msra.mxu0 %v479
    %1657 = vmatprep.subr.mxu0 %v468
    %1658 = vmatpush2.msra.mxu0 %v467
    %1659 = vmatprep.subr.mxu0 %v456
    %1660 = vmatpush2.msra.mxu0 %v455
    %1661 = vmatprep.subr.mxu0 %v444
    %1662 = vmatpush2.msra.mxu0 %v443
    %1663 = vmatprep.subr.mxu0 %v432
    %1664 = vmatpush2.msra.mxu0 %v431
    %1665 = vmatprep.subr.mxu0 %v420
    %1666 = vmatpush2.msra.mxu0 %v419
    %1667 = vmatprep.subr.mxu0 %v408
    %1668 = vmatpush2.msra.mxu0 %v407
    %1669 = vmatprep.subr.mxu0 %v396
    %1670 = vmatpush2.msra.mxu0 %v395
    %1671 = vmatprep.subr.mxu0 %v384
    %1672 = vmatpush2.msra.mxu0 %v383
    %1673 = vmatprep.subr.mxu0 %v372
    %1674 = vmatpush2.msra.mxu0 %v371
    %1675 = vmatprep.subr.mxu0 %v360
    %1676 = vmatpush2.msra.mxu0 %v359
    %1677 = vmatprep.subr.mxu0 %v348
    %1678 = vmatpush2.msra.mxu0 %v347
    %1679 = vmatprep.subr.mxu0 %v336
    %1680 = vmatpush2.msra.mxu0 %v335
    %1681 = vmatprep.mubr.f32.mxu0 %v903
    %1682 = vmatmul.mubr.f32.gmra.mxu0 %v130
    %v1683 = vpop.f32.mrf.mxu0
    %v1684 = vadd.f32 0.0, %v1683
    %v1685 = vpop.f32.mrf.mxu0
    %v1686 = vadd.f32 0.0, %v1685
    %1687 = vdwg.mxu0
    %1688 = vmatprep.subr.mxu0 %v708
    %1689 = vmatpush1.msra.mxu0 %v707
    %1690 = vmatprep.subr.mxu0 %v696
    %1691 = vmatpush1.msra.mxu0 %v695
    %1692 = vmatprep.subr.mxu0 %v684
    %1693 = vmatpush1.msra.mxu0 %v683
    %1694 = vmatprep.subr.mxu0 %v672
    %1695 = vmatpush1.msra.mxu0 %v671
    %1696 = vmatprep.subr.mxu0 %v660
    %1697 = vmatpush1.msra.mxu0 %v659
    %1698 = vmatprep.subr.mxu0 %v648
    %1699 = vmatpush1.msra.mxu0 %v647
    %1700 = vmatprep.subr.mxu0 %v636
    %1701 = vmatpush1.msra.mxu0 %v635
    %1702 = vmatprep.subr.mxu0 %v624
    %1703 = vmatpush1.msra.mxu0 %v623
    %1704 = vmatprep.subr.mxu0 %v612
    %1705 = vmatpush1.msra.mxu0 %v611
    %1706 = vmatprep.subr.mxu0 %v600
    %1707 = vmatpush1.msra.mxu0 %v599
    %1708 = vmatprep.subr.mxu0 %v588
    %1709 = vmatpush1.msra.mxu0 %v587
    %1710 = vmatprep.subr.mxu0 %v576
    %1711 = vmatpush1.msra.mxu0 %v575
    %1712 = vmatprep.subr.mxu0 %v564
    %1713 = vmatpush1.msra.mxu0 %v563
    %1714 = vmatprep.subr.mxu0 %v552
    %1715 = vmatpush1.msra.mxu0 %v551
    %1716 = vmatprep.subr.mxu0 %v540
    %1717 = vmatpush1.msra.mxu0 %v539
    %1718 = vmatprep.subr.mxu0 %v528
    %1719 = vmatpush1.msra.mxu0 %v527
    %1720 = vmatprep.subr.mxu0 %v900
    %1721 = vmatpush2.msra.mxu0 %v899
    %1722 = vmatprep.subr.mxu0 %v888
    %1723 = vmatpush2.msra.mxu0 %v887
    %1724 = vmatprep.subr.mxu0 %v876
    %1725 = vmatpush2.msra.mxu0 %v875
    %1726 = vmatprep.subr.mxu0 %v864
    %1727 = vmatpush2.msra.mxu0 %v863
    %1728 = vmatprep.subr.mxu0 %v852
    %1729 = vmatpush2.msra.mxu0 %v851
    %1730 = vmatprep.subr.mxu0 %v840
    %1731 = vmatpush2.msra.mxu0 %v839
    %1732 = vmatprep.subr.mxu0 %v828
    %1733 = vmatpush2.msra.mxu0 %v827
    %1734 = vmatprep.subr.mxu0 %v816
    %1735 = vmatpush2.msra.mxu0 %v815
    %1736 = vmatprep.subr.mxu0 %v804
    %1737 = vmatpush2.msra.mxu0 %v803
    %1738 = vmatprep.subr.mxu0 %v792
    %1739 = vmatpush2.msra.mxu0 %v791
    %1740 = vmatprep.subr.mxu0 %v780
    %1741 = vmatpush2.msra.mxu0 %v779
    %1742 = vmatprep.subr.mxu0 %v768
    %1743 = vmatpush2.msra.mxu0 %v767
    %1744 = vmatprep.subr.mxu0 %v756
    %1745 = vmatpush2.msra.mxu0 %v755
    %1746 = vmatprep.subr.mxu0 %v744
    %1747 = vmatpush2.msra.mxu0 %v743
    %1748 = vmatprep.subr.mxu0 %v732
    %1749 = vmatpush2.msra.mxu0 %v731
    %1750 = vmatprep.subr.mxu0 %v720
    %1751 = vmatpush2.msra.mxu0 %v719
    %1752 = vmatprep.mubr.f32.mxu0 %v904
    %1753 = vmatmul.mubr.f32.gmra.mxu0 %v131
    %v1754 = vpop.f32.mrf.mxu0
    %v1755 = vadd.f32 %v1684, %v1754
    %v1756 = vpop.f32.mrf.mxu0
    %v1757 = vadd.f32 %v1686, %v1756
    %1758 = vdwg.mxu0
    %1759 = vmatprep.subr.mxu0 0.0
    %1760 = vmatpush1.xpose.msra.mxu0 0.0
    %1761 = vmatprep.subr.mxu0 0.0
    %1762 = vmatpush1.xpose.msra.mxu0 0.0
    %1763 = vmatprep.subr.mxu0 0.0
    %1764 = vmatpush1.xpose.msra.mxu0 0.0
    %1765 = vmatprep.subr.mxu0 0.0
    %1766 = vmatpush1.xpose.msra.mxu0 0.0
    %1767 = vmatprep.subr.mxu0 0.0
    %1768 = vmatpush1.xpose.msra.mxu0 0.0
    %1769 = vmatprep.subr.mxu0 0.0
    %1770 = vmatpush1.xpose.msra.mxu0 0.0
    %1771 = vmatprep.subr.mxu0 0.0
    %1772 = vmatpush1.xpose.msra.mxu0 0.0
    %1773 = vmatprep.subr.mxu0 0.0
    %1774 = vmatpush1.xpose.msra.mxu0 0.0
    %1775 = vmatprep.subr.mxu0 0.0
    %1776 = vmatpush1.xpose.msra.mxu0 0.0
    %1777 = vmatprep.subr.mxu0 0.0
    %1778 = vmatpush1.xpose.msra.mxu0 0.0
    %1779 = vmatprep.subr.mxu0 0.0
    %1780 = vmatpush1.xpose.msra.mxu0 0.0
    %1781 = vmatprep.subr.mxu0 0.0
    %1782 = vmatpush1.xpose.msra.mxu0 0.0
    %1783 = vmatprep.subr.mxu0 0.0
    %1784 = vmatpush1.xpose.msra.mxu0 0.0
    %1785 = vmatprep.subr.mxu0 0.0
    %1786 = vmatpush1.xpose.msra.mxu0 0.0
    %1787 = vmatprep.subr.mxu0 0.0
    %1788 = vmatpush1.xpose.msra.mxu0 0.0
    %1789 = vmatprep.subr.mxu0 %v1331
    %1790 = vmatpush1.xpose.msra.mxu0 %v1329
    %1791 = vmatprep.subr.mxu0 0.0
    %1792 = vmatpush2.xpose.msra.mxu0 0.0
    %1793 = vmatprep.subr.mxu0 0.0
    %1794 = vmatpush2.xpose.msra.mxu0 0.0
    %1795 = vmatprep.subr.mxu0 0.0
    %1796 = vmatpush2.xpose.msra.mxu0 0.0
    %1797 = vmatprep.subr.mxu0 0.0
    %1798 = vmatpush2.xpose.msra.mxu0 0.0
    %1799 = vmatprep.subr.mxu0 0.0
    %1800 = vmatpush2.xpose.msra.mxu0 0.0
    %1801 = vmatprep.subr.mxu0 0.0
    %1802 = vmatpush2.xpose.msra.mxu0 0.0
    %1803 = vmatprep.subr.mxu0 0.0
    %1804 = vmatpush2.xpose.msra.mxu0 0.0
    %1805 = vmatprep.subr.mxu0 0.0
    %1806 = vmatpush2.xpose.msra.mxu0 0.0
    %1807 = vmatprep.subr.mxu0 0.0
    %1808 = vmatpush2.xpose.msra.mxu0 0.0
    %1809 = vmatprep.subr.mxu0 0.0
    %1810 = vmatpush2.xpose.msra.mxu0 0.0
    %1811 = vmatprep.subr.mxu0 0.0
    %1812 = vmatpush2.xpose.msra.mxu0 0.0
    %1813 = vmatprep.subr.mxu0 0.0
    %1814 = vmatpush2.xpose.msra.mxu0 0.0
    %1815 = vmatprep.subr.mxu0 0.0
    %1816 = vmatpush2.xpose.msra.mxu0 0.0
    %1817 = vmatprep.subr.mxu0 0.0
    %1818 = vmatpush2.xpose.msra.mxu0 0.0
    %1819 = vmatprep.subr.mxu0 0.0
    %1820 = vmatpush2.xpose.msra.mxu0 0.0
    %1821 = vmatprep.subr.mxu0 0.0
    %1822 = vmatpush2.xpose.msra.mxu0 0.0
    %1823 = vmatprep.mubr.f32.mxu0 %v1047
    %1824 = vmatmul.mubr.f32.gmra.mxu0 %v1045
    %v1825 = vpop.f32.mrf.mxu0
    %v1826 = vadd.f32 0.0, %v1825
    %v1827 = vpop.f32.mrf.mxu0
    %1828 = vdwg.mxu0
    %v1829 = vmul.f32 %v1826, 0.0625
    %v1830 = vadd.f32 %v1829, %v132
    %vm1831 = vcmask 27648
    %v1832 = vsel %vm1831, %v1830, -inf
    %1833 = vmax.xlane.f32.xlu0 %v1832
    %v1834 = vpop.xlane.xlu0 %1833
    %v1835 = vsub.f32 %v1830, %v1834
    %v1836 = vmul.f32 %v1835, 1.442695
    %v1837 = vpow.pop %v1836
    %v1838 = vsel %vm1831, %v1837, 0.0
    %1839 = vadd.xlane.f32.xlu0 %v1838
    %v1840 = vpop.xlane.xlu0 %1839
    %v1841 = vrcp.pop %v1840
    %v1842 = vmul.f32 %v1837, %v1841
    %vm1843 = vcmask 31744
    %v1845 = vsel %vm1843, %v1842, 0
    %vm1847 = vcmask 1043456
    %v1849 = vsel %vm1847, %v1613, 0
    %v1852 = vsel %vm1847, %v1615, 0
    %1854 = vmatprep.subr.mxu0 0.0
    %1855 = vmatpush1.msra.mxu0 0.0
    %1856 = vmatprep.subr.mxu0 0.0
    %1857 = vmatpush1.msra.mxu0 0.0
    %1858 = vmatprep.subr.mxu0 0.0
    %1859 = vmatpush1.msra.mxu0 0.0
    %1860 = vmatprep.subr.mxu0 0.0
    %1861 = vmatpush1.msra.mxu0 0.0
    %1862 = vmatprep.subr.mxu0 0.0
    %1863 = vmatpush1.msra.mxu0 0.0
    %1864 = vmatprep.subr.mxu0 0.0
    %1865 = vmatpush1.msra.mxu0 0.0
    %1866 = vmatprep.subr.mxu0 0.0
    %1867 = vmatpush1.msra.mxu0 0.0
    %1868 = vmatprep.subr.mxu0 0.0
    %1869 = vmatpush1.msra.mxu0 0.0
    %1870 = vmatprep.subr.mxu0 0.0
    %1871 = vmatpush1.msra.mxu0 0.0
    %1872 = vmatprep.subr.mxu0 0.0
    %1873 = vmatpush1.msra.mxu0 0.0
    %1874 = vmatprep.subr.mxu0 0.0
    %1875 = vmatpush1.msra.mxu0 0.0
    %1876 = vmatprep.subr.mxu0 0.0
    %1877 = vmatpush1.msra.mxu0 0.0
    %1878 = vmatprep.subr.mxu0 0.0
    %1879 = vmatpush1.msra.mxu0 0.0
    %1880 = vmatprep.subr.mxu0 0.0
    %1881 = vmatpush1.msra.mxu0 0.0
    %1882 = vmatprep.subr.mxu0 0.0
    %1883 = vmatpush1.msra.mxu0 0.0
    %1884 = vmatprep.subr.mxu0 %v1852
    %1885 = vmatpush1.msra.mxu0 %v1849
    %1886 = vmatprep.subr.mxu0 0.0
    %1887 = vmatpush2.msra.mxu0 0.0
    %1888 = vmatprep.subr.mxu0 0.0
    %1889 = vmatpush2.msra.mxu0 0.0
    %1890 = vmatprep.subr.mxu0 0.0
    %1891 = vmatpush2.msra.mxu0 0.0
    %1892 = vmatprep.subr.mxu0 0.0
    %1893 = vmatpush2.msra.mxu0 0.0
    %1894 = vmatprep.subr.mxu0 0.0
    %1895 = vmatpush2.msra.mxu0 0.0
    %1896 = vmatprep.subr.mxu0 0.0
    %1897 = vmatpush2.msra.mxu0 0.0
    %1898 = vmatprep.subr.mxu0 0.0
    %1899 = vmatpush2.msra.mxu0 0.0
    %1900 = vmatprep.subr.mxu0 0.0
    %1901 = vmatpush2.msra.mxu0 0.0
    %1902 = vmatprep.subr.mxu0 0.0
    %1903 = vmatpush2.msra.mxu0 0.0
    %1904 = vmatprep.subr.mxu0 0.0
    %1905 = vmatpush2.msra.mxu0 0.0
    %1906 = vmatprep.subr.mxu0 0.0
    %1907 = vmatpush2.msra.mxu0 0.0
    %1908 = vmatprep.subr.mxu0 0.0
    %1909 = vmatpush2.msra.mxu0 0.0
    %1910 = vmatprep.subr.mxu0 0.0
    %1911 = vmatpush2.msra.mxu0 0.0
    %1912 = vmatprep.subr.mxu0 0.0
    %1913 = vmatpush2.msra.mxu0 0.0
    %1914 = vmatprep.subr.mxu0 0.0
    %1915 = vmatpush2.msra.mxu0 0.0
    %1916 = vmatprep.subr.mxu0 0.0
    %1917 = vmatpush2.msra.mxu0 0.0
    %1918 = vmatprep.mubr.f32.mxu0 0.0
    %1919 = vmatmul.mubr.f32.gmra.mxu0 %v1845
    %v1920 = vpop.f32.mrf.mxu0
    %v1921 = vadd.f32 0.0, %v1920
    %v1922 = vpop.f32.mrf.mxu0
    %v1923 = vadd.f32 0.0, %v1922
    %1924 = vdwg.mxu0
    %v1925 = vld [vmem:[#allocation6] sm:$0xff]
    %v1926 = vld [vmem:[#allocation6 + $0x8] sm:$0xff]
    %v1927 = vld [vmem:[#allocation6 + $0x10] sm:$0xff]
    %v1928 = vld [vmem:[#allocation6 + $0x18] sm:$0xff]
    %v1929 = vld [vmem:[#allocation6 + $0x20] sm:$0xff]
    %v1930 = vld [vmem:[#allocation6 + $0x28] sm:$0xff]
    %v1931 = vld [vmem:[#allocation6 + $0x30] sm:$0xff]
    %v1932 = vld [vmem:[#allocation6 + $0x38] sm:$0xff]
    %v1933 = vld [vmem:[#allocation6 + $0x40] sm:$0xff]
    %v1934 = vld [vmem:[#allocation6 + $0x48] sm:$0xff]
    %v1935 = vld [vmem:[#allocation6 + $0x50] sm:$0xff]
    %v1936 = vld [vmem:[#allocation6 + $0x58] sm:$0xff]
    %v1937 = vld [vmem:[#allocation6 + $0x60] sm:$0xff]
    %v1938 = vld [vmem:[#allocation6 + $0x68] sm:$0xff]
    %v1939 = vld [vmem:[#allocation6 + $0x70] sm:$0xff]
    %v1940 = vld [vmem:[#allocation6 + $0x78] sm:$0xff]
    %v1941 = vld [vmem:[#allocation6 + $0x80] sm:$0xff]
    %v1942 = vld [vmem:[#allocation6 + $0x88] sm:$0xff]
    %v1943 = vld [vmem:[#allocation6 + $0x90] sm:$0xff]
    %v1944 = vld [vmem:[#allocation6 + $0x98] sm:$0xff]
    %v1945 = vld [vmem:[#allocation6 + $0xa0] sm:$0xff]
    %v1946 = vld [vmem:[#allocation6 + $0xa8] sm:$0xff]
    %v1947 = vld [vmem:[#allocation6 + $0xb0] sm:$0xff]
    %v1948 = vld [vmem:[#allocation6 + $0xb8] sm:$0xff]
    %v1949 = vld [vmem:[#allocation6 + $0xc0] sm:$0xff]
    %v1950 = vld [vmem:[#allocation6 + $0xc8] sm:$0xff]
    %v1951 = vld [vmem:[#allocation6 + $0xd0] sm:$0xff]
    %v1952 = vld [vmem:[#allocation6 + $0xd8] sm:$0xff]
    %v1953 = vld [vmem:[#allocation6 + $0xe0] sm:$0xff]
    %v1954 = vld [vmem:[#allocation6 + $0xe8] sm:$0xff]
    %v1955 = vld [vmem:[#allocation6 + $0xf0] sm:$0xff]
    %v1956 = vld [vmem:[#allocation6 + $0xf8] sm:$0xff]
    %v1957 = vld [vmem:[#allocation6 + $0x100] sm:$0xff]
    %v1958 = vld [vmem:[#allocation6 + $0x108] sm:$0xff]
    %v1959 = vld [vmem:[#allocation6 + $0x110] sm:$0xff]
    %v1960 = vld [vmem:[#allocation6 + $0x118] sm:$0xff]
    %v1961 = vld [vmem:[#allocation6 + $0x120] sm:$0xff]
    %v1962 = vld [vmem:[#allocation6 + $0x128] sm:$0xff]
    %v1963 = vld [vmem:[#allocation6 + $0x130] sm:$0xff]
    %v1964 = vld [vmem:[#allocation6 + $0x138] sm:$0xff]
    %v1965 = vld [vmem:[#allocation6 + $0x140] sm:$0xff]
    %v1966 = vld [vmem:[#allocation6 + $0x148] sm:$0xff]
    %v1967 = vld [vmem:[#allocation6 + $0x150] sm:$0xff]
    %v1968 = vld [vmem:[#allocation6 + $0x158] sm:$0xff]
    %v1969 = vld [vmem:[#allocation6 + $0x160] sm:$0xff]
    %v1970 = vld [vmem:[#allocation6 + $0x168] sm:$0xff]
    %v1971 = vld [vmem:[#allocation6 + $0x170] sm:$0xff]
    %v1972 = vld [vmem:[#allocation6 + $0x178] sm:$0xff]
    %v1973 = vld [vmem:[#allocation6 + $0x180] sm:$0xff]
    %v1974 = vld [vmem:[#allocation6 + $0x188] sm:$0xff]
    %v1975 = vld [vmem:[#allocation6 + $0x190] sm:$0xff]
    %v1976 = vld [vmem:[#allocation6 + $0x198] sm:$0xff]
    %v1977 = vld [vmem:[#allocation6 + $0x1a0] sm:$0xff]
    %v1978 = vld [vmem:[#allocation6 + $0x1a8] sm:$0xff]
    %v1979 = vld [vmem:[#allocation6 + $0x1b0] sm:$0xff]
    %v1980 = vld [vmem:[#allocation6 + $0x1b8] sm:$0xff]
    %v1981 = vld [vmem:[#allocation6 + $0x1c0] sm:$0xff]
    %v1982 = vld [vmem:[#allocation6 + $0x1c8] sm:$0xff]
    %v1983 = vld [vmem:[#allocation6 + $0x1d0] sm:$0xff]
    %v1984 = vld [vmem:[#allocation6 + $0x1d8] sm:$0xff]
    %v1985 = vld [vmem:[#allocation6 + $0x1e0] sm:$0xff]
    %v1986 = vld [vmem:[#allocation6 + $0x1e8] sm:$0xff]
    %v1987 = vld [vmem:[#allocation6 + $0x1f0] sm:$0xff]
    %v1988 = vld [vmem:[#allocation6 + $0x1f8] sm:$0xff]
    %v1989 = vld [vmem:[#allocation6 + $0x200] sm:$0xff]
    %v1990 = vld [vmem:[#allocation6 + $0x208] sm:$0xff]
    %v1991 = vld [vmem:[#allocation6 + $0x210] sm:$0xff]
    %v1992 = vld [vmem:[#allocation6 + $0x218] sm:$0xff]
    %v1993 = vld [vmem:[#allocation6 + $0x220] sm:$0xff]
    %v1994 = vld [vmem:[#allocation6 + $0x228] sm:$0xff]
    %v1995 = vld [vmem:[#allocation6 + $0x230] sm:$0xff]
    %v1996 = vld [vmem:[#allocation6 + $0x238] sm:$0xff]
    %v1997 = vld [vmem:[#allocation6 + $0x240] sm:$0xff]
    %v1998 = vld [vmem:[#allocation6 + $0x248] sm:$0xff]
    %v1999 = vld [vmem:[#allocation6 + $0x250] sm:$0xff]
    %v2000 = vld [vmem:[#allocation6 + $0x258] sm:$0xff]
    %v2001 = vld [vmem:[#allocation6 + $0x260] sm:$0xff]
    %v2002 = vld [vmem:[#allocation6 + $0x268] sm:$0xff]
    %v2003 = vld [vmem:[#allocation6 + $0x270] sm:$0xff]
    %v2004 = vld [vmem:[#allocation6 + $0x278] sm:$0xff]
    %v2005 = vld [vmem:[#allocation6 + $0x280] sm:$0xff]
    %v2006 = vld [vmem:[#allocation6 + $0x288] sm:$0xff]
    %v2007 = vld [vmem:[#allocation6 + $0x290] sm:$0xff]
    %v2008 = vld [vmem:[#allocation6 + $0x298] sm:$0xff]
    %v2009 = vld [vmem:[#allocation6 + $0x2a0] sm:$0xff]
    %v2010 = vld [vmem:[#allocation6 + $0x2a8] sm:$0xff]
    %v2011 = vld [vmem:[#allocation6 + $0x2b0] sm:$0xff]
    %v2012 = vld [vmem:[#allocation6 + $0x2b8] sm:$0xff]
    %v2013 = vld [vmem:[#allocation6 + $0x2c0] sm:$0xff]
    %v2014 = vld [vmem:[#allocation6 + $0x2c8] sm:$0xff]
    %v2015 = vld [vmem:[#allocation6 + $0x2d0] sm:$0xff]
    %v2016 = vld [vmem:[#allocation6 + $0x2d8] sm:$0xff]
    %v2017 = vld [vmem:[#allocation6 + $0x2e0] sm:$0xff]
    %v2018 = vld [vmem:[#allocation6 + $0x2e8] sm:$0xff]
    %v2019 = vld [vmem:[#allocation6 + $0x2f0] sm:$0xff]
    %v2020 = vld [vmem:[#allocation6 + $0x2f8] sm:$0xff]
    %v2021 = vld [vmem:[#allocation6 + $0x300] sm:$0xff]
    %v2022 = vld [vmem:[#allocation6 + $0x308] sm:$0xff]
    %v2023 = vld [vmem:[#allocation6 + $0x310] sm:$0xff]
    %v2024 = vld [vmem:[#allocation6 + $0x318] sm:$0xff]
    %v2025 = vld [vmem:[#allocation6 + $0x320] sm:$0xff]
    %v2026 = vld [vmem:[#allocation6 + $0x328] sm:$0xff]
    %v2027 = vld [vmem:[#allocation6 + $0x330] sm:$0xff]
    %v2028 = vld [vmem:[#allocation6 + $0x338] sm:$0xff]
    %v2029 = vld [vmem:[#allocation6 + $0x340] sm:$0xff]
    %v2030 = vld [vmem:[#allocation6 + $0x348] sm:$0xff]
    %v2031 = vld [vmem:[#allocation6 + $0x350] sm:$0xff]
    %v2032 = vld [vmem:[#allocation6 + $0x358] sm:$0xff]
    %v2033 = vld [vmem:[#allocation6 + $0x360] sm:$0xff]
    %v2034 = vld [vmem:[#allocation6 + $0x368] sm:$0xff]
    %v2035 = vld [vmem:[#allocation6 + $0x370] sm:$0xff]
    %v2036 = vld [vmem:[#allocation6 + $0x378] sm:$0xff]
    %v2037 = vld [vmem:[#allocation6 + $0x380] sm:$0xff]
    %v2038 = vld [vmem:[#allocation6 + $0x388] sm:$0xff]
    %v2039 = vld [vmem:[#allocation6 + $0x390] sm:$0xff]
    %v2040 = vld [vmem:[#allocation6 + $0x398] sm:$0xff]
    %v2041 = vld [vmem:[#allocation6 + $0x3a0] sm:$0xff]
    %v2042 = vld [vmem:[#allocation6 + $0x3a8] sm:$0xff]
    %v2043 = vld [vmem:[#allocation6 + $0x3b0] sm:$0xff]
    %v2044 = vld [vmem:[#allocation6 + $0x3b8] sm:$0xff]
    %v2045 = vld [vmem:[#allocation6 + $0x3c0] sm:$0xff]
    %v2046 = vld [vmem:[#allocation6 + $0x3c8] sm:$0xff]
    %v2047 = vld [vmem:[#allocation6 + $0x3d0] sm:$0xff]
    %v2048 = vld [vmem:[#allocation6 + $0x3d8] sm:$0xff]
    %v2049 = vld [vmem:[#allocation6 + $0x3e0] sm:$0xff]
    %v2050 = vld [vmem:[#allocation6 + $0x3e8] sm:$0xff]
    %v2051 = vld [vmem:[#allocation6 + $0x3f0] sm:$0xff]
    %v2052 = vld [vmem:[#allocation6 + $0x3f8] sm:$0xff]
    %2053 = vmatprep.subr.mxu0 0.0
    %2054 = vmatpush1.xpose.msra.mxu0 0.0
    %2055 = vmatprep.subr.mxu0 0.0
    %2056 = vmatpush1.xpose.msra.mxu0 0.0
    %2057 = vmatprep.subr.mxu0 0.0
    %2058 = vmatpush1.xpose.msra.mxu0 0.0
    %2059 = vmatprep.subr.mxu0 0.0
    %2060 = vmatpush1.xpose.msra.mxu0 0.0
    %2061 = vmatprep.subr.mxu0 0.0
    %2062 = vmatpush1.xpose.msra.mxu0 0.0
    %2063 = vmatprep.subr.mxu0 0.0
    %2064 = vmatpush1.xpose.msra.mxu0 0.0
    %2065 = vmatprep.subr.mxu0 0.0
    %2066 = vmatpush1.xpose.msra.mxu0 0.0
    %2067 = vmatprep.subr.mxu0 0.0
    %2068 = vmatpush1.xpose.msra.mxu0 0.0
    %2069 = vmatprep.subr.mxu0 0.0
    %2070 = vmatpush1.xpose.msra.mxu0 0.0
    %2071 = vmatprep.subr.mxu0 0.0
    %2072 = vmatpush1.xpose.msra.mxu0 0.0
    %2073 = vmatprep.subr.mxu0 0.0
    %2074 = vmatpush1.xpose.msra.mxu0 0.0
    %2075 = vmatprep.subr.mxu0 0.0
    %2076 = vmatpush1.xpose.msra.mxu0 0.0
    %2077 = vmatprep.subr.mxu0 0.0
    %2078 = vmatpush1.xpose.msra.mxu0 0.0
    %2079 = vmatprep.subr.mxu0 0.0
    %2080 = vmatpush1.xpose.msra.mxu0 0.0
    %2081 = vmatprep.subr.mxu0 0.0
    %2082 = vmatpush1.xpose.msra.mxu0 0.0
    %2083 = vmatprep.subr.mxu0 %v1473
    %2084 = vmatpush1.xpose.msra.mxu0 %v1471
    %2085 = vmatprep.subr.mxu0 0.0
    %2086 = vmatpush2.xpose.msra.mxu0 0.0
    %2087 = vmatprep.subr.mxu0 0.0
    %2088 = vmatpush2.xpose.msra.mxu0 0.0
    %2089 = vmatprep.subr.mxu0 0.0
    %2090 = vmatpush2.xpose.msra.mxu0 0.0
    %2091 = vmatprep.subr.mxu0 0.0
    %2092 = vmatpush2.xpose.msra.mxu0 0.0
    %2093 = vmatprep.subr.mxu0 0.0
    %2094 = vmatpush2.xpose.msra.mxu0 0.0
    %2095 = vmatprep.subr.mxu0 0.0
    %2096 = vmatpush2.xpose.msra.mxu0 0.0
    %2097 = vmatprep.subr.mxu0 0.0
    %2098 = vmatpush2.xpose.msra.mxu0 0.0
    %2099 = vmatprep.subr.mxu0 0.0
    %2100 = vmatpush2.xpose.msra.mxu0 0.0
    %2101 = vmatprep.subr.mxu0 0.0
    %2102 = vmatpush2.xpose.msra.mxu0 0.0
    %2103 = vmatprep.subr.mxu0 0.0
    %2104 = vmatpush2.xpose.msra.mxu0 0.0
    %2105 = vmatprep.subr.mxu0 0.0
    %2106 = vmatpush2.xpose.msra.mxu0 0.0
    %2107 = vmatprep.subr.mxu0 0.0
    %2108 = vmatpush2.xpose.msra.mxu0 0.0
    %2109 = vmatprep.subr.mxu0 0.0
    %2110 = vmatpush2.xpose.msra.mxu0 0.0
    %2111 = vmatprep.subr.mxu0 0.0
    %2112 = vmatpush2.xpose.msra.mxu0 0.0
    %2113 = vmatprep.subr.mxu0 0.0
    %2114 = vmatpush2.xpose.msra.mxu0 0.0
    %2115 = vmatprep.subr.mxu0 0.0
    %2116 = vmatpush2.xpose.msra.mxu0 0.0
    %2117 = vmatprep.mubr.f32.mxu0 %v1189
    %2118 = vmatmul.mubr.f32.gmra.mxu0 %v1187
    %v2119 = vpop.f32.mrf.mxu0
    %v2120 = vadd.f32 0.0, %v2119
    %v2121 = vpop.f32.mrf.mxu0
    %2122 = vdwg.mxu0
    %v2123 = vmul.f32 %v2120, 0.0625
    %v2124 = vadd.f32 %v2123, %v132
    %v2125 = vsel %vm1831, %v2124, -inf
    %2126 = vmax.xlane.f32.xlu0 %v2125
    %v2127 = vpop.xlane.xlu0 %2126
    %v2128 = vsub.f32 %v2124, %v2127
    %v2129 = vmul.f32 %v2128, 1.442695
    %v2130 = vpow.pop %v2129
    %v2131 = vsel %vm1831, %v2130, 0.0
    %2132 = vadd.xlane.f32.xlu0 %v2131
    %v2133 = vpop.xlane.xlu0 %2132
    %v2134 = vrcp.pop %v2133
    %v2135 = vmul.f32 %v2130, %v2134
    %v2137 = vsel %vm1843, %v2135, 0
    %v2140 = vsel %vm1847, %v1755, 0
    %v2143 = vsel %vm1847, %v1757, 0
    %2145 = vmatprep.subr.mxu0 0.0
    %2146 = vmatpush1.msra.mxu0 0.0
    %2147 = vmatprep.subr.mxu0 0.0
    %2148 = vmatpush1.msra.mxu0 0.0
    %2149 = vmatprep.subr.mxu0 0.0
    %2150 = vmatpush1.msra.mxu0 0.0
    %2151 = vmatprep.subr.mxu0 0.0
    %2152 = vmatpush1.msra.mxu0 0.0
    %2153 = vmatprep.subr.mxu0 0.0
    %2154 = vmatpush1.msra.mxu0 0.0
    %2155 = vmatprep.subr.mxu0 0.0
    %2156 = vmatpush1.msra.mxu0 0.0
    %2157 = vmatprep.subr.mxu0 0.0
    %2158 = vmatpush1.msra.mxu0 0.0
    %2159 = vmatprep.subr.mxu0 0.0
    %2160 = vmatpush1.msra.mxu0 0.0
    %2161 = vmatprep.subr.mxu0 0.0
    %2162 = vmatpush1.msra.mxu0 0.0
    %2163 = vmatprep.subr.mxu0 0.0
    %2164 = vmatpush1.msra.mxu0 0.0
    %2165 = vmatprep.subr.mxu0 0.0
    %2166 = vmatpush1.msra.mxu0 0.0
    %2167 = vmatprep.subr.mxu0 0.0
    %2168 = vmatpush1.msra.mxu0 0.0
    %2169 = vmatprep.subr.mxu0 0.0
    %2170 = vmatpush1.msra.mxu0 0.0
    %2171 = vmatprep.subr.mxu0 0.0
    %2172 = vmatpush1.msra.mxu0 0.0
    %2173 = vmatprep.subr.mxu0 0.0
    %2174 = vmatpush1.msra.mxu0 0.0
    %2175 = vmatprep.subr.mxu0 %v2143
    %2176 = vmatpush1.msra.mxu0 %v2140
    %2177 = vmatprep.subr.mxu0 0.0
    %2178 = vmatpush2.msra.mxu0 0.0
    %2179 = vmatprep.subr.mxu0 0.0
    %2180 = vmatpush2.msra.mxu0 0.0
    %2181 = vmatprep.subr.mxu0 0.0
    %2182 = vmatpush2.msra.mxu0 0.0
    %2183 = vmatprep.subr.mxu0 0.0
    %2184 = vmatpush2.msra.mxu0 0.0
    %2185 = vmatprep.subr.mxu0 0.0
    %2186 = vmatpush2.msra.mxu0 0.0
    %2187 = vmatprep.subr.mxu0 0.0
    %2188 = vmatpush2.msra.mxu0 0.0
    %2189 = vmatprep.subr.mxu0 0.0
    %2190 = vmatpush2.msra.mxu0 0.0
    %2191 = vmatprep.subr.mxu0 0.0
    %2192 = vmatpush2.msra.mxu0 0.0
    %2193 = vmatprep.subr.mxu0 0.0
    %2194 = vmatpush2.msra.mxu0 0.0
    %2195 = vmatprep.subr.mxu0 0.0
    %2196 = vmatpush2.msra.mxu0 0.0
    %2197 = vmatprep.subr.mxu0 0.0
    %2198 = vmatpush2.msra.mxu0 0.0
    %2199 = vmatprep.subr.mxu0 0.0
    %2200 = vmatpush2.msra.mxu0 0.0
    %2201 = vmatprep.subr.mxu0 0.0
    %2202 = vmatpush2.msra.mxu0 0.0
    %2203 = vmatprep.subr.mxu0 0.0
    %2204 = vmatpush2.msra.mxu0 0.0
    %2205 = vmatprep.subr.mxu0 0.0
    %2206 = vmatpush2.msra.mxu0 0.0
    %2207 = vmatprep.subr.mxu0 0.0
    %2208 = vmatpush2.msra.mxu0 0.0
    %2209 = vmatprep.mubr.f32.mxu0 0.0
    %2210 = vmatmul.mubr.f32.gmra.mxu0 %v2137
    %v2211 = vpop.f32.mrf.mxu0
    %v2212 = vadd.f32 0.0, %v2211
    %v2213 = vpop.f32.mrf.mxu0
    %v2214 = vadd.f32 0.0, %v2213
    %2215 = vdwg.mxu0
    %s2216 = scalar_lea.vmem [#allocation6], 1024
    %v2217 = vld [vmem:[%s2216] sm:$0xff]
    %v2218 = vld [vmem:[%s2216 + $0x8] sm:$0xff]
    %v2219 = vld [vmem:[%s2216 + $0x10] sm:$0xff]
    %v2220 = vld [vmem:[%s2216 + $0x18] sm:$0xff]
    %v2221 = vld [vmem:[%s2216 + $0x20] sm:$0xff]
    %v2222 = vld [vmem:[%s2216 + $0x28] sm:$0xff]
    %v2223 = vld [vmem:[%s2216 + $0x30] sm:$0xff]
    %v2224 = vld [vmem:[%s2216 + $0x38] sm:$0xff]
    %v2225 = vld [vmem:[%s2216 + $0x40] sm:$0xff]
    %v2226 = vld [vmem:[%s2216 + $0x48] sm:$0xff]
    %v2227 = vld [vmem:[%s2216 + $0x50] sm:$0xff]
    %v2228 = vld [vmem:[%s2216 + $0x58] sm:$0xff]
    %v2229 = vld [vmem:[%s2216 + $0x60] sm:$0xff]
    %v2230 = vld [vmem:[%s2216 + $0x68] sm:$0xff]
    %v2231 = vld [vmem:[%s2216 + $0x70] sm:$0xff]
    %v2232 = vld [vmem:[%s2216 + $0x78] sm:$0xff]
    %v2233 = vld [vmem:[%s2216 + $0x80] sm:$0xff]
    %v2234 = vld [vmem:[%s2216 + $0x88] sm:$0xff]
    %v2235 = vld [vmem:[%s2216 + $0x90] sm:$0xff]
    %v2236 = vld [vmem:[%s2216 + $0x98] sm:$0xff]
    %v2237 = vld [vmem:[%s2216 + $0xa0] sm:$0xff]
    %v2238 = vld [vmem:[%s2216 + $0xa8] sm:$0xff]
    %v2239 = vld [vmem:[%s2216 + $0xb0] sm:$0xff]
    %v2240 = vld [vmem:[%s2216 + $0xb8] sm:$0xff]
    %v2241 = vld [vmem:[%s2216 + $0xc0] sm:$0xff]
    %v2242 = vld [vmem:[%s2216 + $0xc8] sm:$0xff]
    %v2243 = vld [vmem:[%s2216 + $0xd0] sm:$0xff]
    %v2244 = vld [vmem:[%s2216 + $0xd8] sm:$0xff]
    %v2245 = vld [vmem:[%s2216 + $0xe0] sm:$0xff]
    %v2246 = vld [vmem:[%s2216 + $0xe8] sm:$0xff]
    %v2247 = vld [vmem:[%s2216 + $0xf0] sm:$0xff]
    %v2248 = vld [vmem:[%s2216 + $0xf8] sm:$0xff]
    %v2249 = vld [vmem:[%s2216 + $0x100] sm:$0xff]
    %v2250 = vld [vmem:[%s2216 + $0x108] sm:$0xff]
    %v2251 = vld [vmem:[%s2216 + $0x110] sm:$0xff]
    %v2252 = vld [vmem:[%s2216 + $0x118] sm:$0xff]
    %v2253 = vld [vmem:[%s2216 + $0x120] sm:$0xff]
    %v2254 = vld [vmem:[%s2216 + $0x128] sm:$0xff]
    %v2255 = vld [vmem:[%s2216 + $0x130] sm:$0xff]
    %v2256 = vld [vmem:[%s2216 + $0x138] sm:$0xff]
    %v2257 = vld [vmem:[%s2216 + $0x140] sm:$0xff]
    %v2258 = vld [vmem:[%s2216 + $0x148] sm:$0xff]
    %v2259 = vld [vmem:[%s2216 + $0x150] sm:$0xff]
    %v2260 = vld [vmem:[%s2216 + $0x158] sm:$0xff]
    %v2261 = vld [vmem:[%s2216 + $0x160] sm:$0xff]
    %v2262 = vld [vmem:[%s2216 + $0x168] sm:$0xff]
    %v2263 = vld [vmem:[%s2216 + $0x170] sm:$0xff]
    %v2264 = vld [vmem:[%s2216 + $0x178] sm:$0xff]
    %v2265 = vld [vmem:[%s2216 + $0x180] sm:$0xff]
    %v2266 = vld [vmem:[%s2216 + $0x188] sm:$0xff]
    %v2267 = vld [vmem:[%s2216 + $0x190] sm:$0xff]
    %v2268 = vld [vmem:[%s2216 + $0x198] sm:$0xff]
    %v2269 = vld [vmem:[%s2216 + $0x1a0] sm:$0xff]
    %v2270 = vld [vmem:[%s2216 + $0x1a8] sm:$0xff]
    %v2271 = vld [vmem:[%s2216 + $0x1b0] sm:$0xff]
    %v2272 = vld [vmem:[%s2216 + $0x1b8] sm:$0xff]
    %v2273 = vld [vmem:[%s2216 + $0x1c0] sm:$0xff]
    %v2274 = vld [vmem:[%s2216 + $0x1c8] sm:$0xff]
    %v2275 = vld [vmem:[%s2216 + $0x1d0] sm:$0xff]
    %v2276 = vld [vmem:[%s2216 + $0x1d8] sm:$0xff]
    %v2277 = vld [vmem:[%s2216 + $0x1e0] sm:$0xff]
    %v2278 = vld [vmem:[%s2216 + $0x1e8] sm:$0xff]
    %v2279 = vld [vmem:[%s2216 + $0x1f0] sm:$0xff]
    %v2280 = vld [vmem:[%s2216 + $0x1f8] sm:$0xff]
    %v2281 = vld [vmem:[%s2216 + $0x200] sm:$0xff]
    %v2282 = vld [vmem:[%s2216 + $0x208] sm:$0xff]
    %v2283 = vld [vmem:[%s2216 + $0x210] sm:$0xff]
    %v2284 = vld [vmem:[%s2216 + $0x218] sm:$0xff]
    %v2285 = vld [vmem:[%s2216 + $0x220] sm:$0xff]
    %v2286 = vld [vmem:[%s2216 + $0x228] sm:$0xff]
    %v2287 = vld [vmem:[%s2216 + $0x230] sm:$0xff]
    %v2288 = vld [vmem:[%s2216 + $0x238] sm:$0xff]
    %v2289 = vld [vmem:[%s2216 + $0x240] sm:$0xff]
    %v2290 = vld [vmem:[%s2216 + $0x248] sm:$0xff]
    %v2291 = vld [vmem:[%s2216 + $0x250] sm:$0xff]
    %v2292 = vld [vmem:[%s2216 + $0x258] sm:$0xff]
    %v2293 = vld [vmem:[%s2216 + $0x260] sm:$0xff]
    %v2294 = vld [vmem:[%s2216 + $0x268] sm:$0xff]
    %v2295 = vld [vmem:[%s2216 + $0x270] sm:$0xff]
    %v2296 = vld [vmem:[%s2216 + $0x278] sm:$0xff]
    %v2297 = vld [vmem:[%s2216 + $0x280] sm:$0xff]
    %v2298 = vld [vmem:[%s2216 + $0x288] sm:$0xff]
    %v2299 = vld [vmem:[%s2216 + $0x290] sm:$0xff]
    %v2300 = vld [vmem:[%s2216 + $0x298] sm:$0xff]
    %v2301 = vld [vmem:[%s2216 + $0x2a0] sm:$0xff]
    %v2302 = vld [vmem:[%s2216 + $0x2a8] sm:$0xff]
    %v2303 = vld [vmem:[%s2216 + $0x2b0] sm:$0xff]
    %v2304 = vld [vmem:[%s2216 + $0x2b8] sm:$0xff]
    %v2305 = vld [vmem:[%s2216 + $0x2c0] sm:$0xff]
    %v2306 = vld [vmem:[%s2216 + $0x2c8] sm:$0xff]
    %v2307 = vld [vmem:[%s2216 + $0x2d0] sm:$0xff]
    %v2308 = vld [vmem:[%s2216 + $0x2d8] sm:$0xff]
    %v2309 = vld [vmem:[%s2216 + $0x2e0] sm:$0xff]
    %v2310 = vld [vmem:[%s2216 + $0x2e8] sm:$0xff]
    %v2311 = vld [vmem:[%s2216 + $0x2f0] sm:$0xff]
    %v2312 = vld [vmem:[%s2216 + $0x2f8] sm:$0xff]
    %v2313 = vld [vmem:[%s2216 + $0x300] sm:$0xff]
    %v2314 = vld [vmem:[%s2216 + $0x308] sm:$0xff]
    %v2315 = vld [vmem:[%s2216 + $0x310] sm:$0xff]
    %v2316 = vld [vmem:[%s2216 + $0x318] sm:$0xff]
    %v2317 = vld [vmem:[%s2216 + $0x320] sm:$0xff]
    %v2318 = vld [vmem:[%s2216 + $0x328] sm:$0xff]
    %v2319 = vld [vmem:[%s2216 + $0x330] sm:$0xff]
    %v2320 = vld [vmem:[%s2216 + $0x338] sm:$0xff]
    %v2321 = vld [vmem:[%s2216 + $0x340] sm:$0xff]
    %v2322 = vld [vmem:[%s2216 + $0x348] sm:$0xff]
    %v2323 = vld [vmem:[%s2216 + $0x350] sm:$0xff]
    %v2324 = vld [vmem:[%s2216 + $0x358] sm:$0xff]
    %v2325 = vld [vmem:[%s2216 + $0x360] sm:$0xff]
    %v2326 = vld [vmem:[%s2216 + $0x368] sm:$0xff]
    %v2327 = vld [vmem:[%s2216 + $0x370] sm:$0xff]
    %v2328 = vld [vmem:[%s2216 + $0x378] sm:$0xff]
    %v2329 = vld [vmem:[%s2216 + $0x380] sm:$0xff]
    %v2330 = vld [vmem:[%s2216 + $0x388] sm:$0xff]
    %v2331 = vld [vmem:[%s2216 + $0x390] sm:$0xff]
    %v2332 = vld [vmem:[%s2216 + $0x398] sm:$0xff]
    %v2333 = vld [vmem:[%s2216 + $0x3a0] sm:$0xff]
    %v2334 = vld [vmem:[%s2216 + $0x3a8] sm:$0xff]
    %v2335 = vld [vmem:[%s2216 + $0x3b0] sm:$0xff]
    %v2336 = vld [vmem:[%s2216 + $0x3b8] sm:$0xff]
    %v2337 = vld [vmem:[%s2216 + $0x3c0] sm:$0xff]
    %v2338 = vld [vmem:[%s2216 + $0x3c8] sm:$0xff]
    %v2339 = vld [vmem:[%s2216 + $0x3d0] sm:$0xff]
    %v2340 = vld [vmem:[%s2216 + $0x3d8] sm:$0xff]
    %v2341 = vld [vmem:[%s2216 + $0x3e0] sm:$0xff]
    %v2342 = vld [vmem:[%s2216 + $0x3e8] sm:$0xff]
    %v2343 = vld [vmem:[%s2216 + $0x3f0] sm:$0xff]
    %v2344 = vld [vmem:[%s2216 + $0x3f8] sm:$0xff]
    %2345 = vmatprep.subr.mxu0 %v2278
    %2346 = vmatpush1.msra.mxu0 %v2277
    %2347 = vmatprep.subr.mxu0 %v2274
    %2348 = vmatpush1.msra.mxu0 %v2273
    %2349 = vmatprep.subr.mxu0 %v2270
    %2350 = vmatpush1.msra.mxu0 %v2269
    %2351 = vmatprep.subr.mxu0 %v2266
    %2352 = vmatpush1.msra.mxu0 %v2265
    %2353 = vmatprep.subr.mxu0 %v2262
    %2354 = vmatpush1.msra.mxu0 %v2261
    %2355 = vmatprep.subr.mxu0 %v2258
    %2356 = vmatpush1.msra.mxu0 %v2257
    %2357 = vmatprep.subr.mxu0 %v2254
    %2358 = vmatpush1.msra.mxu0 %v2253
    %2359 = vmatprep.subr.mxu0 %v2250
    %2360 = vmatpush1.msra.mxu0 %v2249
    %2361 = vmatprep.subr.mxu0 %v2246
    %2362 = vmatpush1.msra.mxu0 %v2245
    %2363 = vmatprep.subr.mxu0 %v2242
    %2364 = vmatpush1.msra.mxu0 %v2241
    %2365 = vmatprep.subr.mxu0 %v2238
    %2366 = vmatpush1.msra.mxu0 %v2237
    %2367 = vmatprep.subr.mxu0 %v2234
    %2368 = vmatpush1.msra.mxu0 %v2233
    %2369 = vmatprep.subr.mxu0 %v2230
    %2370 = vmatpush1.msra.mxu0 %v2229
    %2371 = vmatprep.subr.mxu0 %v2226
    %2372 = vmatpush1.msra.mxu0 %v2225
    %2373 = vmatprep.subr.mxu0 %v2222
    %2374 = vmatpush1.msra.mxu0 %v2221
    %2375 = vmatprep.subr.mxu0 %v2218
    %2376 = vmatpush1.msra.mxu0 %v2217
    %2377 = vmatprep.subr.mxu0 %v2342
    %2378 = vmatpush2.msra.mxu0 %v2341
    %2379 = vmatprep.subr.mxu0 %v2338
    %2380 = vmatpush2.msra.mxu0 %v2337
    %2381 = vmatprep.subr.mxu0 %v2334
    %2382 = vmatpush2.msra.mxu0 %v2333
    %2383 = vmatprep.subr.mxu0 %v2330
    %2384 = vmatpush2.msra.mxu0 %v2329
    %2385 = vmatprep.subr.mxu0 %v2326
    %2386 = vmatpush2.msra.mxu0 %v2325
    %2387 = vmatprep.subr.mxu0 %v2322
    %2388 = vmatpush2.msra.mxu0 %v2321
    %2389 = vmatprep.subr.mxu0 %v2318
    %2390 = vmatpush2.msra.mxu0 %v2317
    %2391 = vmatprep.subr.mxu0 %v2314
    %2392 = vmatpush2.msra.mxu0 %v2313
    %2393 = vmatprep.subr.mxu0 %v2310
    %2394 = vmatpush2.msra.mxu0 %v2309
    %2395 = vmatprep.subr.mxu0 %v2306
    %2396 = vmatpush2.msra.mxu0 %v2305
    %2397 = vmatprep.subr.mxu0 %v2302
    %2398 = vmatpush2.msra.mxu0 %v2301
    %2399 = vmatprep.subr.mxu0 %v2298
    %2400 = vmatpush2.msra.mxu0 %v2297
    %2401 = vmatprep.subr.mxu0 %v2294
    %2402 = vmatpush2.msra.mxu0 %v2293
    %2403 = vmatprep.subr.mxu0 %v2290
    %2404 = vmatpush2.msra.mxu0 %v2289
    %2405 = vmatprep.subr.mxu0 %v2286
    %2406 = vmatpush2.msra.mxu0 %v2285
    %2407 = vmatprep.subr.mxu0 %v2282
    %2408 = vmatpush2.msra.mxu0 %v2281
    %2409 = vmatprep.mubr.f32.mxu0 %v2214
    %2410 = vmatmul.mubr.f32.gmra.mxu0 %v2212
    %v2411 = vpop.f32.mrf.mxu0
    %v2412 = vadd.f32 0.0, %v2411
    %v2413 = vpop.f32.mrf.mxu0
    %v2414 = vadd.f32 0.0, %v2413
    %2415 = vdwg.mxu0
    %2416 = vmatprep.subr.mxu0 %v2280
    %2417 = vmatpush1.msra.mxu0 %v2279
    %2418 = vmatprep.subr.mxu0 %v2276
    %2419 = vmatpush1.msra.mxu0 %v2275
    %2420 = vmatprep.subr.mxu0 %v2272
    %2421 = vmatpush1.msra.mxu0 %v2271
    %2422 = vmatprep.subr.mxu0 %v2268
    %2423 = vmatpush1.msra.mxu0 %v2267
    %2424 = vmatprep.subr.mxu0 %v2264
    %2425 = vmatpush1.msra.mxu0 %v2263
    %2426 = vmatprep.subr.mxu0 %v2260
    %2427 = vmatpush1.msra.mxu0 %v2259
    %2428 = vmatprep.subr.mxu0 %v2256
    %2429 = vmatpush1.msra.mxu0 %v2255
    %2430 = vmatprep.subr.mxu0 %v2252
    %2431 = vmatpush1.msra.mxu0 %v2251
    %2432 = vmatprep.subr.mxu0 %v2248
    %2433 = vmatpush1.msra.mxu0 %v2247
    %2434 = vmatprep.subr.mxu0 %v2244
    %2435 = vmatpush1.msra.mxu0 %v2243
    %2436 = vmatprep.subr.mxu0 %v2240
    %2437 = vmatpush1.msra.mxu0 %v2239
    %2438 = vmatprep.subr.mxu0 %v2236
    %2439 = vmatpush1.msra.mxu0 %v2235
    %2440 = vmatprep.subr.mxu0 %v2232
    %2441 = vmatpush1.msra.mxu0 %v2231
    %2442 = vmatprep.subr.mxu0 %v2228
    %2443 = vmatpush1.msra.mxu0 %v2227
    %2444 = vmatprep.subr.mxu0 %v2224
    %2445 = vmatpush1.msra.mxu0 %v2223
    %2446 = vmatprep.subr.mxu0 %v2220
    %2447 = vmatpush1.msra.mxu0 %v2219
    %2448 = vmatprep.subr.mxu0 %v2344
    %2449 = vmatpush2.msra.mxu0 %v2343
    %2450 = vmatprep.subr.mxu0 %v2340
    %2451 = vmatpush2.msra.mxu0 %v2339
    %2452 = vmatprep.subr.mxu0 %v2336
    %2453 = vmatpush2.msra.mxu0 %v2335
    %2454 = vmatprep.subr.mxu0 %v2332
    %2455 = vmatpush2.msra.mxu0 %v2331
    %2456 = vmatprep.subr.mxu0 %v2328
    %2457 = vmatpush2.msra.mxu0 %v2327
    %2458 = vmatprep.subr.mxu0 %v2324
    %2459 = vmatpush2.msra.mxu0 %v2323
    %2460 = vmatprep.subr.mxu0 %v2320
    %2461 = vmatpush2.msra.mxu0 %v2319
    %2462 = vmatprep.subr.mxu0 %v2316
    %2463 = vmatpush2.msra.mxu0 %v2315
    %2464 = vmatprep.subr.mxu0 %v2312
    %2465 = vmatpush2.msra.mxu0 %v2311
    %2466 = vmatprep.subr.mxu0 %v2308
    %2467 = vmatpush2.msra.mxu0 %v2307
    %2468 = vmatprep.subr.mxu0 %v2304
    %2469 = vmatpush2.msra.mxu0 %v2303
    %2470 = vmatprep.subr.mxu0 %v2300
    %2471 = vmatpush2.msra.mxu0 %v2299
    %2472 = vmatprep.subr.mxu0 %v2296
    %2473 = vmatpush2.msra.mxu0 %v2295
    %2474 = vmatprep.subr.mxu0 %v2292
    %2475 = vmatpush2.msra.mxu0 %v2291
    %2476 = vmatprep.subr.mxu0 %v2288
    %2477 = vmatpush2.msra.mxu0 %v2287
    %2478 = vmatprep.subr.mxu0 %v2284
    %2479 = vmatpush2.msra.mxu0 %v2283
    %2480 = vmatprep.mubr.f32.mxu0 %v2214
    %2481 = vmatmul.mubr.f32.gmra.mxu0 %v2212
    %v2482 = vpop.f32.mrf.mxu0
    %v2483 = vadd.f32 0.0, %v2482
    %v2484 = vpop.f32.mrf.mxu0
    %v2485 = vadd.f32 0.0, %v2484
    %2486 = vdwg.mxu0
    %2487 = vmatprep.subr.mxu0 %v1986
    %2488 = vmatpush1.msra.mxu0 %v1985
    %2489 = vmatprep.subr.mxu0 %v1982
    %2490 = vmatpush1.msra.mxu0 %v1981
    %2491 = vmatprep.subr.mxu0 %v1978
    %2492 = vmatpush1.msra.mxu0 %v1977
    %2493 = vmatprep.subr.mxu0 %v1974
    %2494 = vmatpush1.msra.mxu0 %v1973
    %2495 = vmatprep.subr.mxu0 %v1970
    %2496 = vmatpush1.msra.mxu0 %v1969
    %2497 = vmatprep.subr.mxu0 %v1966
    %2498 = vmatpush1.msra.mxu0 %v1965
    %2499 = vmatprep.subr.mxu0 %v1962
    %2500 = vmatpush1.msra.mxu0 %v1961
    %2501 = vmatprep.subr.mxu0 %v1958
    %2502 = vmatpush1.msra.mxu0 %v1957
    %2503 = vmatprep.subr.mxu0 %v1954
    %2504 = vmatpush1.msra.mxu0 %v1953
    %2505 = vmatprep.subr.mxu0 %v1950
    %2506 = vmatpush1.msra.mxu0 %v1949
    %2507 = vmatprep.subr.mxu0 %v1946
    %2508 = vmatpush1.msra.mxu0 %v1945
    %2509 = vmatprep.subr.mxu0 %v1942
    %2510 = vmatpush1.msra.mxu0 %v1941
    %2511 = vmatprep.subr.mxu0 %v1938
    %2512 = vmatpush1.msra.mxu0 %v1937
    %2513 = vmatprep.subr.mxu0 %v1934
    %2514 = vmatpush1.msra.mxu0 %v1933
    %2515 = vmatprep.subr.mxu0 %v1930
    %2516 = vmatpush1.msra.mxu0 %v1929
    %2517 = vmatprep.subr.mxu0 %v1926
    %2518 = vmatpush1.msra.mxu0 %v1925
    %2519 = vmatprep.subr.mxu0 %v2050
    %2520 = vmatpush2.msra.mxu0 %v2049
    %2521 = vmatprep.subr.mxu0 %v2046
    %2522 = vmatpush2.msra.mxu0 %v2045
    %2523 = vmatprep.subr.mxu0 %v2042
    %2524 = vmatpush2.msra.mxu0 %v2041
    %2525 = vmatprep.subr.mxu0 %v2038
    %2526 = vmatpush2.msra.mxu0 %v2037
    %2527 = vmatprep.subr.mxu0 %v2034
    %2528 = vmatpush2.msra.mxu0 %v2033
    %2529 = vmatprep.subr.mxu0 %v2030
    %2530 = vmatpush2.msra.mxu0 %v2029
    %2531 = vmatprep.subr.mxu0 %v2026
    %2532 = vmatpush2.msra.mxu0 %v2025
    %2533 = vmatprep.subr.mxu0 %v2022
    %2534 = vmatpush2.msra.mxu0 %v2021
    %2535 = vmatprep.subr.mxu0 %v2018
    %2536 = vmatpush2.msra.mxu0 %v2017
    %2537 = vmatprep.subr.mxu0 %v2014
    %2538 = vmatpush2.msra.mxu0 %v2013
    %2539 = vmatprep.subr.mxu0 %v2010
    %2540 = vmatpush2.msra.mxu0 %v2009
    %2541 = vmatprep.subr.mxu0 %v2006
    %2542 = vmatpush2.msra.mxu0 %v2005
    %2543 = vmatprep.subr.mxu0 %v2002
    %2544 = vmatpush2.msra.mxu0 %v2001
    %2545 = vmatprep.subr.mxu0 %v1998
    %2546 = vmatpush2.msra.mxu0 %v1997
    %2547 = vmatprep.subr.mxu0 %v1994
    %2548 = vmatpush2.msra.mxu0 %v1993
    %2549 = vmatprep.subr.mxu0 %v1990
    %2550 = vmatpush2.msra.mxu0 %v1989
    %2551 = vmatprep.mubr.f32.mxu0 %v1923
    %2552 = vmatmul.mubr.f32.gmra.mxu0 %v1921
    %v2553 = vpop.f32.mrf.mxu0
    %v2554 = vadd.f32 %v2412, %v2553
    %v2555 = vpop.f32.mrf.mxu0
    %v2556 = vadd.f32 %v2414, %v2555
    %2557 = vdwg.mxu0
    %2558 = vmatprep.subr.mxu0 %v1988
    %2559 = vmatpush1.msra.mxu0 %v1987
    %2560 = vmatprep.subr.mxu0 %v1984
    %2561 = vmatpush1.msra.mxu0 %v1983
    %2562 = vmatprep.subr.mxu0 %v1980
    %2563 = vmatpush1.msra.mxu0 %v1979
    %2564 = vmatprep.subr.mxu0 %v1976
    %2565 = vmatpush1.msra.mxu0 %v1975
    %2566 = vmatprep.subr.mxu0 %v1972
    %2567 = vmatpush1.msra.mxu0 %v1971
    %2568 = vmatprep.subr.mxu0 %v1968
    %2569 = vmatpush1.msra.mxu0 %v1967
    %2570 = vmatprep.subr.mxu0 %v1964
    %2571 = vmatpush1.msra.mxu0 %v1963
    %2572 = vmatprep.subr.mxu0 %v1960
    %2573 = vmatpush1.msra.mxu0 %v1959
    %2574 = vmatprep.subr.mxu0 %v1956
    %2575 = vmatpush1.msra.mxu0 %v1955
    %2576 = vmatprep.subr.mxu0 %v1952
    %2577 = vmatpush1.msra.mxu0 %v1951
    %2578 = vmatprep.subr.mxu0 %v1948
    %2579 = vmatpush1.msra.mxu0 %v1947
    %2580 = vmatprep.subr.mxu0 %v1944
    %2581 = vmatpush1.msra.mxu0 %v1943
    %2582 = vmatprep.subr.mxu0 %v1940
    %2583 = vmatpush1.msra.mxu0 %v1939
    %2584 = vmatprep.subr.mxu0 %v1936
    %2585 = vmatpush1.msra.mxu0 %v1935
    %2586 = vmatprep.subr.mxu0 %v1932
    %2587 = vmatpush1.msra.mxu0 %v1931
    %2588 = vmatprep.subr.mxu0 %v1928
    %2589 = vmatpush1.msra.mxu0 %v1927
    %2590 = vmatprep.subr.mxu0 %v2052
    %2591 = vmatpush2.msra.mxu0 %v2051
    %2592 = vmatprep.subr.mxu0 %v2048
    %2593 = vmatpush2.msra.mxu0 %v2047
    %2594 = vmatprep.subr.mxu0 %v2044
    %2595 = vmatpush2.msra.mxu0 %v2043
    %2596 = vmatprep.subr.mxu0 %v2040
    %2597 = vmatpush2.msra.mxu0 %v2039
    %2598 = vmatprep.subr.mxu0 %v2036
    %2599 = vmatpush2.msra.mxu0 %v2035
    %2600 = vmatprep.subr.mxu0 %v2032
    %2601 = vmatpush2.msra.mxu0 %v2031
    %2602 = vmatprep.subr.mxu0 %v2028
    %2603 = vmatpush2.msra.mxu0 %v2027
    %2604 = vmatprep.subr.mxu0 %v2024
    %2605 = vmatpush2.msra.mxu0 %v2023
    %2606 = vmatprep.subr.mxu0 %v2020
    %2607 = vmatpush2.msra.mxu0 %v2019
    %2608 = vmatprep.subr.mxu0 %v2016
    %2609 = vmatpush2.msra.mxu0 %v2015
    %2610 = vmatprep.subr.mxu0 %v2012
    %2611 = vmatpush2.msra.mxu0 %v2011
    %2612 = vmatprep.subr.mxu0 %v2008
    %2613 = vmatpush2.msra.mxu0 %v2007
    %2614 = vmatprep.subr.mxu0 %v2004
    %2615 = vmatpush2.msra.mxu0 %v2003
    %2616 = vmatprep.subr.mxu0 %v2000
    %2617 = vmatpush2.msra.mxu0 %v1999
    %2618 = vmatprep.subr.mxu0 %v1996
    %2619 = vmatpush2.msra.mxu0 %v1995
    %2620 = vmatprep.subr.mxu0 %v1992
    %2621 = vmatpush2.msra.mxu0 %v1991
    %2622 = vmatprep.mubr.f32.mxu0 %v1923
    %2623 = vmatmul.mubr.f32.gmra.mxu0 %v1921
    %v2624 = vpop.f32.mrf.mxu0
    %v2625 = vadd.f32 %v2483, %v2624
    %v2626 = vpop.f32.mrf.mxu0
    %v2627 = vadd.f32 %v2485, %v2626
    %2628 = vdwg.mxu0
    %v2629 = vld [vmem:[%s4] sm:$0xf]
    %v2630 = vld [vmem:[%s5] sm:$0xf]
    %v2631 = vsel %vm1847, %v2554, 0.0
    %v2632 = vrot.slane %v2631, 4
    %v2633 = vadd.f32 %v2631, %v2632
    %v2634 = vrot.slane %v2633, 2
    %v2635 = vadd.f32 %v2633, %v2634
    %v2636 = vrot.slane %v2635, 1
    %v2637 = vadd.f32 %v2635, %v2636
    %v2638 = vsel %vm1847, %v2556, 0.0
    %v2639 = vrot.slane %v2638, 4
    %v2640 = vadd.f32 %v2638, %v2639
    %v2641 = vrot.slane %v2640, 2
    %v2642 = vadd.f32 %v2640, %v2641
    %v2643 = vrot.slane %v2642, 1
    %v2644 = vadd.f32 %v2642, %v2643
    %v2645 = vsel %vm1847, %v2625, 0.0
    %v2646 = vrot.slane %v2645, 4
    %v2647 = vadd.f32 %v2645, %v2646
    %v2648 = vrot.slane %v2647, 2
    %v2649 = vadd.f32 %v2647, %v2648
    %v2650 = vrot.slane %v2649, 1
    %v2651 = vadd.f32 %v2649, %v2650
    %v2652 = vsel %vm1847, %v2627, 0.0
    %v2653 = vrot.slane %v2652, 4
    %v2654 = vadd.f32 %v2652, %v2653
    %v2655 = vrot.slane %v2654, 2
    %v2656 = vadd.f32 %v2654, %v2655
    %v2657 = vrot.slane %v2656, 1
    %v2658 = vadd.f32 %v2656, %v2657
    %v2659 = vrcp.pop 4.0
    %v2660 = vmul.f32 %v2637, %v2659
    %v2661 = vmul.f32 %v2644, %v2659
    %v2662 = vmul.f32 %v2651, %v2659
    %v2663 = vmul.f32 %v2658, %v2659
    %v2664 = vsub.f32 %v2554, %v2660
    %v2665 = vsub.f32 %v2556, %v2661
    %v2666 = vsub.f32 %v2625, %v2662
    %v2667 = vsub.f32 %v2627, %v2663
    %v2668 = vmul.f32 %v2664, %v2664
    %v2669 = vmul.f32 %v2665, %v2665
    %v2670 = vmul.f32 %v2666, %v2666
    %v2671 = vmul.f32 %v2667, %v2667
    %v2672 = vsel %vm1847, %v2668, 0.0
    %v2673 = vrot.slane %v2672, 4
    %v2674 = vadd.f32 %v2672, %v2673
    %v2675 = vrot.slane %v2674, 2
    %v2676 = vadd.f32 %v2674, %v2675
    %v2677 = vrot.slane %v2676, 1
    %v2678 = vadd.f32 %v2676, %v2677
    %v2679 = vsel %vm1847, %v2669, 0.0
    %v2680 = vrot.slane %v2679, 4
    %v2681 = vadd.f32 %v2679, %v2680
    %v2682 = vrot.slane %v2681, 2
    %v2683 = vadd.f32 %v2681, %v2682
    %v2684 = vrot.slane %v2683, 1
    %v2685 = vadd.f32 %v2683, %v2684
    %v2686 = vsel %vm1847, %v2670, 0.0
    %v2687 = vrot.slane %v2686, 4
    %v2688 = vadd.f32 %v2686, %v2687
    %v2689 = vrot.slane %v2688, 2
    %v2690 = vadd.f32 %v2688, %v2689
    %v2691 = vrot.slane %v2690, 1
    %v2692 = vadd.f32 %v2690, %v2691
    %v2693 = vsel %vm1847, %v2671, 0.0
    %v2694 = vrot.slane %v2693, 4
    %v2695 = vadd.f32 %v2693, %v2694
    %v2696 = vrot.slane %v2695, 2
    %v2697 = vadd.f32 %v2695, %v2696
    %v2698 = vrot.slane %v2697, 1
    %v2699 = vadd.f32 %v2697, %v2698
    %v2700 = vmul.f32 %v2678, %v2659
    %v2701 = vmul.f32 %v2685, %v2659
    %v2702 = vmul.f32 %v2692, %v2659
    %v2703 = vmul.f32 %v2699, %v2659
    %v2704 = vadd.f32 %v2700, 1e-05
    %v2705 = vadd.f32 %v2701, 1e-05
    %v2706 = vadd.f32 %v2702, 1e-05
    %v2707 = vadd.f32 %v2703, 1e-05
    %v2708 = vrsqrt.pop %v2704
    %v2709 = vrsqrt.pop %v2705
    %v2710 = vrsqrt.pop %v2706
    %v2711 = vrsqrt.pop %v2707
    %v2712 = vmul.f32 %v2664, %v2708
    %v2713 = vmul.f32 %v2665, %v2709
    %v2714 = vmul.f32 %v2666, %v2710
    %v2715 = vmul.f32 %v2667, %v2711
    %v2717 = vlaneseq
    %v2718 = vshrl.u32 %v2717, 7
    %v2719 = vsub.s32 0, %v2718
    %v2720 = vrot.slane %v2629, %v2719
    %v2721 = vlaneseq
    %v2722 = vshrl.u32 %v2721, 7
    %v2723 = vsub.s32 1, %v2722
    %v2724 = vrot.slane %v2629, %v2723
    %v2725 = vlaneseq
    %v2726 = vshrl.u32 %v2725, 7
    %v2727 = vsub.s32 2, %v2726
    %v2728 = vrot.slane %v2629, %v2727
    %v2729 = vlaneseq
    %v2730 = vshrl.u32 %v2729, 7
    %v2731 = vsub.s32 3, %v2730
    %v2732 = vrot.slane %v2629, %v2731
    %v2737 = vmul.f32 %v2712, %v2720
    %v2738 = vmul.f32 %v2713, %v2724
    %v2739 = vmul.f32 %v2714, %v2728
    %v2740 = vmul.f32 %v2715, %v2732
    %v2742 = vlaneseq
    %v2743 = vshrl.u32 %v2742, 7
    %v2744 = vsub.s32 0, %v2743
    %v2745 = vrot.slane %v2630, %v2744
    %v2746 = vlaneseq
    %v2747 = vshrl.u32 %v2746, 7
    %v2748 = vsub.s32 1, %v2747
    %v2749 = vrot.slane %v2630, %v2748
    %v2750 = vlaneseq
    %v2751 = vshrl.u32 %v2750, 7
    %v2752 = vsub.s32 2, %v2751
    %v2753 = vrot.slane %v2630, %v2752
    %v2754 = vlaneseq
    %v2755 = vshrl.u32 %v2754, 7
    %v2756 = vsub.s32 3, %v2755
    %v2757 = vrot.slane %v2630, %v2756
    %v2762 = vadd.f32 %v2737, %v2745
    %v2763 = vadd.f32 %v2738, %v2749
    %v2764 = vadd.f32 %v2739, %v2753
    %v2765 = vadd.f32 %v2740, %v2757
    %v2770 = vcombine.low %v2762, %v2763
    %v2771 = vcombine.low %v2764, %v2765
    %v2774 = vadd.f32 %v130, %v2770
    %v2775 = vadd.f32 %v131, %v2771
    %v2776 = vld [vmem:[#allocation7] sm:$0xff]
    %v2777 = vld [vmem:[#allocation7 + $0x8] sm:$0xff]
    %v2778 = vld [vmem:[#allocation7 + $0x10] sm:$0xff]
    %v2779 = vld [vmem:[#allocation7 + $0x18] sm:$0xff]
    %v2780 = vld [vmem:[#allocation7 + $0x20] sm:$0xff]
    %v2781 = vld [vmem:[#allocation7 + $0x28] sm:$0xff]
    %v2782 = vld [vmem:[#allocation7 + $0x30] sm:$0xff]
    %v2783 = vld [vmem:[#allocation7 + $0x38] sm:$0xff]
    %v2784 = vld [vmem:[#allocation7 + $0x40] sm:$0xff]
    %v2785 = vld [vmem:[#allocation7 + $0x48] sm:$0xff]
    %v2786 = vld [vmem:[#allocation7 + $0x50] sm:$0xff]
    %v2787 = vld [vmem:[#allocation7 + $0x58] sm:$0xff]
    %v2788 = vld [vmem:[#allocation7 + $0x60] sm:$0xff]
    %v2789 = vld [vmem:[#allocation7 + $0x68] sm:$0xff]
    %v2790 = vld [vmem:[#allocation7 + $0x70] sm:$0xff]
    %v2791 = vld [vmem:[#allocation7 + $0x78] sm:$0xff]
    %v2792 = vld [vmem:[#allocation7 + $0x80] sm:$0xff]
    %v2793 = vld [vmem:[#allocation7 + $0x88] sm:$0xff]
    %v2794 = vld [vmem:[#allocation7 + $0x90] sm:$0xff]
    %v2795 = vld [vmem:[#allocation7 + $0x98] sm:$0xff]
    %v2796 = vld [vmem:[#allocation7 + $0xa0] sm:$0xff]
    %v2797 = vld [vmem:[#allocation7 + $0xa8] sm:$0xff]
    %v2798 = vld [vmem:[#allocation7 + $0xb0] sm:$0xff]
    %v2799 = vld [vmem:[#allocation7 + $0xb8] sm:$0xff]
    %v2800 = vld [vmem:[#allocation7 + $0xc0] sm:$0xff]
    %v2801 = vld [vmem:[#allocation7 + $0xc8] sm:$0xff]
    %v2802 = vld [vmem:[#allocation7 + $0xd0] sm:$0xff]
    %v2803 = vld [vmem:[#allocation7 + $0xd8] sm:$0xff]
    %v2804 = vld [vmem:[#allocation7 + $0xe0] sm:$0xff]
    %v2805 = vld [vmem:[#allocation7 + $0xe8] sm:$0xff]
    %v2806 = vld [vmem:[#allocation7 + $0xf0] sm:$0xff]
    %v2807 = vld [vmem:[#allocation7 + $0xf8] sm:$0xff]
    %v2808 = vld [vmem:[#allocation7 + $0x100] sm:$0xff]
    %v2809 = vld [vmem:[#allocation7 + $0x108] sm:$0xff]
    %v2810 = vld [vmem:[#allocation7 + $0x110] sm:$0xff]
    %v2811 = vld [vmem:[#allocation7 + $0x118] sm:$0xff]
    %v2812 = vld [vmem:[#allocation7 + $0x120] sm:$0xff]
    %v2813 = vld [vmem:[#allocation7 + $0x128] sm:$0xff]
    %v2814 = vld [vmem:[#allocation7 + $0x130] sm:$0xff]
    %v2815 = vld [vmem:[#allocation7 + $0x138] sm:$0xff]
    %v2816 = vld [vmem:[#allocation7 + $0x140] sm:$0xff]
    %v2817 = vld [vmem:[#allocation7 + $0x148] sm:$0xff]
    %v2818 = vld [vmem:[#allocation7 + $0x150] sm:$0xff]
    %v2819 = vld [vmem:[#allocation7 + $0x158] sm:$0xff]
    %v2820 = vld [vmem:[#allocation7 + $0x160] sm:$0xff]
    %v2821 = vld [vmem:[#allocation7 + $0x168] sm:$0xff]
    %v2822 = vld [vmem:[#allocation7 + $0x170] sm:$0xff]
    %v2823 = vld [vmem:[#allocation7 + $0x178] sm:$0xff]
    %v2824 = vld [vmem:[#allocation7 + $0x180] sm:$0xff]
    %v2825 = vld [vmem:[#allocation7 + $0x188] sm:$0xff]
    %v2826 = vld [vmem:[#allocation7 + $0x190] sm:$0xff]
    %v2827 = vld [vmem:[#allocation7 + $0x198] sm:$0xff]
    %v2828 = vld [vmem:[#allocation7 + $0x1a0] sm:$0xff]
    %v2829 = vld [vmem:[#allocation7 + $0x1a8] sm:$0xff]
    %v2830 = vld [vmem:[#allocation7 + $0x1b0] sm:$0xff]
    %v2831 = vld [vmem:[#allocation7 + $0x1b8] sm:$0xff]
    %v2832 = vld [vmem:[#allocation7 + $0x1c0] sm:$0xff]
    %v2833 = vld [vmem:[#allocation7 + $0x1c8] sm:$0xff]
    %v2834 = vld [vmem:[#allocation7 + $0x1d0] sm:$0xff]
    %v2835 = vld [vmem:[#allocation7 + $0x1d8] sm:$0xff]
    %v2836 = vld [vmem:[#allocation7 + $0x1e0] sm:$0xff]
    %v2837 = vld [vmem:[#allocation7 + $0x1e8] sm:$0xff]
    %v2838 = vld [vmem:[#allocation7 + $0x1f0] sm:$0xff]
    %v2839 = vld [vmem:[#allocation7 + $0x1f8] sm:$0xff]
    %v2840 = vld [vmem:[#allocation7 + $0x200] sm:$0xff]
    %v2841 = vld [vmem:[#allocation7 + $0x208] sm:$0xff]
    %v2842 = vld [vmem:[#allocation7 + $0x210] sm:$0xff]
    %v2843 = vld [vmem:[#allocation7 + $0x218] sm:$0xff]
    %v2844 = vld [vmem:[#allocation7 + $0x220] sm:$0xff]
    %v2845 = vld [vmem:[#allocation7 + $0x228] sm:$0xff]
    %v2846 = vld [vmem:[#allocation7 + $0x230] sm:$0xff]
    %v2847 = vld [vmem:[#allocation7 + $0x238] sm:$0xff]
    %v2848 = vld [vmem:[#allocation7 + $0x240] sm:$0xff]
    %v2849 = vld [vmem:[#allocation7 + $0x248] sm:$0xff]
    %v2850 = vld [vmem:[#allocation7 + $0x250] sm:$0xff]
    %v2851 = vld [vmem:[#allocation7 + $0x258] sm:$0xff]
    %v2852 = vld [vmem:[#allocation7 + $0x260] sm:$0xff]
    %v2853 = vld [vmem:[#allocation7 + $0x268] sm:$0xff]
    %v2854 = vld [vmem:[#allocation7 + $0x270] sm:$0xff]
    %v2855 = vld [vmem:[#allocation7 + $0x278] sm:$0xff]
    %v2856 = vld [vmem:[#allocation7 + $0x280] sm:$0xff]
    %v2857 = vld [vmem:[#allocation7 + $0x288] sm:$0xff]
    %v2858 = vld [vmem:[#allocation7 + $0x290] sm:$0xff]
    %v2859 = vld [vmem:[#allocation7 + $0x298] sm:$0xff]
    %v2860 = vld [vmem:[#allocation7 + $0x2a0] sm:$0xff]
    %v2861 = vld [vmem:[#allocation7 + $0x2a8] sm:$0xff]
    %v2862 = vld [vmem:[#allocation7 + $0x2b0] sm:$0xff]
    %v2863 = vld [vmem:[#allocation7 + $0x2b8] sm:$0xff]
    %v2864 = vld [vmem:[#allocation7 + $0x2c0] sm:$0xff]
    %v2865 = vld [vmem:[#allocation7 + $0x2c8] sm:$0xff]
    %v2866 = vld [vmem:[#allocation7 + $0x2d0] sm:$0xff]
    %v2867 = vld [vmem:[#allocation7 + $0x2d8] sm:$0xff]
    %v2868 = vld [vmem:[#allocation7 + $0x2e0] sm:$0xff]
    %v2869 = vld [vmem:[#allocation7 + $0x2e8] sm:$0xff]
    %v2870 = vld [vmem:[#allocation7 + $0x2f0] sm:$0xff]
    %v2871 = vld [vmem:[#allocation7 + $0x2f8] sm:$0xff]
    %v2872 = vld [vmem:[#allocation7 + $0x300] sm:$0xff]
    %v2873 = vld [vmem:[#allocation7 + $0x308] sm:$0xff]
    %v2874 = vld [vmem:[#allocation7 + $0x310] sm:$0xff]
    %v2875 = vld [vmem:[#allocation7 + $0x318] sm:$0xff]
    %v2876 = vld [vmem:[#allocation7 + $0x320] sm:$0xff]
    %v2877 = vld [vmem:[#allocation7 + $0x328] sm:$0xff]
    %v2878 = vld [vmem:[#allocation7 + $0x330] sm:$0xff]
    %v2879 = vld [vmem:[#allocation7 + $0x338] sm:$0xff]
    %v2880 = vld [vmem:[#allocation7 + $0x340] sm:$0xff]
    %v2881 = vld [vmem:[#allocation7 + $0x348] sm:$0xff]
    %v2882 = vld [vmem:[#allocation7 + $0x350] sm:$0xff]
    %v2883 = vld [vmem:[#allocation7 + $0x358] sm:$0xff]
    %v2884 = vld [vmem:[#allocation7 + $0x360] sm:$0xff]
    %v2885 = vld [vmem:[#allocation7 + $0x368] sm:$0xff]
    %v2886 = vld [vmem:[#allocation7 + $0x370] sm:$0xff]
    %v2887 = vld [vmem:[#allocation7 + $0x378] sm:$0xff]
    %v2888 = vld [vmem:[#allocation7 + $0x380] sm:$0xff]
    %v2889 = vld [vmem:[#allocation7 + $0x388] sm:$0xff]
    %v2890 = vld [vmem:[#allocation7 + $0x390] sm:$0xff]
    %v2891 = vld [vmem:[#allocation7 + $0x398] sm:$0xff]
    %v2892 = vld [vmem:[#allocation7 + $0x3a0] sm:$0xff]
    %v2893 = vld [vmem:[#allocation7 + $0x3a8] sm:$0xff]
    %v2894 = vld [vmem:[#allocation7 + $0x3b0] sm:$0xff]
    %v2895 = vld [vmem:[#allocation7 + $0x3b8] sm:$0xff]
    %v2896 = vld [vmem:[#allocation7 + $0x3c0] sm:$0xff]
    %v2897 = vld [vmem:[#allocation7 + $0x3c8] sm:$0xff]
    %v2898 = vld [vmem:[#allocation7 + $0x3d0] sm:$0xff]
    %v2899 = vld [vmem:[#allocation7 + $0x3d8] sm:$0xff]
    %v2900 = vld [vmem:[#allocation7 + $0x3e0] sm:$0xff]
    %v2901 = vld [vmem:[#allocation7 + $0x3e8] sm:$0xff]
    %v2902 = vld [vmem:[#allocation7 + $0x3f0] sm:$0xff]
    %v2903 = vld [vmem:[#allocation7 + $0x3f8] sm:$0xff]
    %v2904 = vld [vmem:[#allocation7 + $0x400] sm:$0xff]
    %v2905 = vld [vmem:[#allocation7 + $0x408] sm:$0xff]
    %v2906 = vld [vmem:[#allocation7 + $0x410] sm:$0xff]
    %v2907 = vld [vmem:[#allocation7 + $0x418] sm:$0xff]
    %v2908 = vld [vmem:[#allocation7 + $0x420] sm:$0xff]
    %v2909 = vld [vmem:[#allocation7 + $0x428] sm:$0xff]
    %v2910 = vld [vmem:[#allocation7 + $0x430] sm:$0xff]
    %v2911 = vld [vmem:[#allocation7 + $0x438] sm:$0xff]
    %v2912 = vld [vmem:[#allocation7 + $0x440] sm:$0xff]
    %v2913 = vld [vmem:[#allocation7 + $0x448] sm:$0xff]
    %v2914 = vld [vmem:[#allocation7 + $0x450] sm:$0xff]
    %v2915 = vld [vmem:[#allocation7 + $0x458] sm:$0xff]
    %v2916 = vld [vmem:[#allocation7 + $0x460] sm:$0xff]
    %v2917 = vld [vmem:[#allocation7 + $0x468] sm:$0xff]
    %v2918 = vld [vmem:[#allocation7 + $0x470] sm:$0xff]
    %v2919 = vld [vmem:[#allocation7 + $0x478] sm:$0xff]
    %v2920 = vld [vmem:[#allocation7 + $0x480] sm:$0xff]
    %v2921 = vld [vmem:[#allocation7 + $0x488] sm:$0xff]
    %v2922 = vld [vmem:[#allocation7 + $0x490] sm:$0xff]
    %v2923 = vld [vmem:[#allocation7 + $0x498] sm:$0xff]
    %v2924 = vld [vmem:[#allocation7 + $0x4a0] sm:$0xff]
    %v2925 = vld [vmem:[#allocation7 + $0x4a8] sm:$0xff]
    %v2926 = vld [vmem:[#allocation7 + $0x4b0] sm:$0xff]
    %v2927 = vld [vmem:[#allocation7 + $0x4b8] sm:$0xff]
    %v2928 = vld [vmem:[#allocation7 + $0x4c0] sm:$0xff]
    %v2929 = vld [vmem:[#allocation7 + $0x4c8] sm:$0xff]
    %v2930 = vld [vmem:[#allocation7 + $0x4d0] sm:$0xff]
    %v2931 = vld [vmem:[#allocation7 + $0x4d8] sm:$0xff]
    %v2932 = vld [vmem:[#allocation7 + $0x4e0] sm:$0xff]
    %v2933 = vld [vmem:[#allocation7 + $0x4e8] sm:$0xff]
    %v2934 = vld [vmem:[#allocation7 + $0x4f0] sm:$0xff]
    %v2935 = vld [vmem:[#allocation7 + $0x4f8] sm:$0xff]
    %v2936 = vld [vmem:[#allocation7 + $0x500] sm:$0xff]
    %v2937 = vld [vmem:[#allocation7 + $0x508] sm:$0xff]
    %v2938 = vld [vmem:[#allocation7 + $0x510] sm:$0xff]
    %v2939 = vld [vmem:[#allocation7 + $0x518] sm:$0xff]
    %v2940 = vld [vmem:[#allocation7 + $0x520] sm:$0xff]
    %v2941 = vld [vmem:[#allocation7 + $0x528] sm:$0xff]
    %v2942 = vld [vmem:[#allocation7 + $0x530] sm:$0xff]
    %v2943 = vld [vmem:[#allocation7 + $0x538] sm:$0xff]
    %v2944 = vld [vmem:[#allocation7 + $0x540] sm:$0xff]
    %v2945 = vld [vmem:[#allocation7 + $0x548] sm:$0xff]
    %v2946 = vld [vmem:[#allocation7 + $0x550] sm:$0xff]
    %v2947 = vld [vmem:[#allocation7 + $0x558] sm:$0xff]
    %v2948 = vld [vmem:[#allocation7 + $0x560] sm:$0xff]
    %v2949 = vld [vmem:[#allocation7 + $0x568] sm:$0xff]
    %v2950 = vld [vmem:[#allocation7 + $0x570] sm:$0xff]
    %v2951 = vld [vmem:[#allocation7 + $0x578] sm:$0xff]
    %v2952 = vld [vmem:[#allocation7 + $0x580] sm:$0xff]
    %v2953 = vld [vmem:[#allocation7 + $0x588] sm:$0xff]
    %v2954 = vld [vmem:[#allocation7 + $0x590] sm:$0xff]
    %v2955 = vld [vmem:[#allocation7 + $0x598] sm:$0xff]
    %v2956 = vld [vmem:[#allocation7 + $0x5a0] sm:$0xff]
    %v2957 = vld [vmem:[#allocation7 + $0x5a8] sm:$0xff]
    %v2958 = vld [vmem:[#allocation7 + $0x5b0] sm:$0xff]
    %v2959 = vld [vmem:[#allocation7 + $0x5b8] sm:$0xff]
    %v2960 = vld [vmem:[#allocation7 + $0x5c0] sm:$0xff]
    %v2961 = vld [vmem:[#allocation7 + $0x5c8] sm:$0xff]
    %v2962 = vld [vmem:[#allocation7 + $0x5d0] sm:$0xff]
    %v2963 = vld [vmem:[#allocation7 + $0x5d8] sm:$0xff]
    %v2964 = vld [vmem:[#allocation7 + $0x5e0] sm:$0xff]
    %v2965 = vld [vmem:[#allocation7 + $0x5e8] sm:$0xff]
    %v2966 = vld [vmem:[#allocation7 + $0x5f0] sm:$0xff]
    %v2967 = vld [vmem:[#allocation7 + $0x5f8] sm:$0xff]
    %v2968 = vld [vmem:[#allocation7 + $0x600] sm:$0xff]
    %v2969 = vld [vmem:[#allocation7 + $0x608] sm:$0xff]
    %v2970 = vld [vmem:[#allocation7 + $0x610] sm:$0xff]
    %v2971 = vld [vmem:[#allocation7 + $0x618] sm:$0xff]
    %v2972 = vld [vmem:[#allocation7 + $0x620] sm:$0xff]
    %v2973 = vld [vmem:[#allocation7 + $0x628] sm:$0xff]
    %v2974 = vld [vmem:[#allocation7 + $0x630] sm:$0xff]
    %v2975 = vld [vmem:[#allocation7 + $0x638] sm:$0xff]
    %v2976 = vld [vmem:[#allocation7 + $0x640] sm:$0xff]
    %v2977 = vld [vmem:[#allocation7 + $0x648] sm:$0xff]
    %v2978 = vld [vmem:[#allocation7 + $0x650] sm:$0xff]
    %v2979 = vld [vmem:[#allocation7 + $0x658] sm:$0xff]
    %v2980 = vld [vmem:[#allocation7 + $0x660] sm:$0xff]
    %v2981 = vld [vmem:[#allocation7 + $0x668] sm:$0xff]
    %v2982 = vld [vmem:[#allocation7 + $0x670] sm:$0xff]
    %v2983 = vld [vmem:[#allocation7 + $0x678] sm:$0xff]
    %v2984 = vld [vmem:[#allocation7 + $0x680] sm:$0xff]
    %v2985 = vld [vmem:[#allocation7 + $0x688] sm:$0xff]
    %v2986 = vld [vmem:[#allocation7 + $0x690] sm:$0xff]
    %v2987 = vld [vmem:[#allocation7 + $0x698] sm:$0xff]
    %v2988 = vld [vmem:[#allocation7 + $0x6a0] sm:$0xff]
    %v2989 = vld [vmem:[#allocation7 + $0x6a8] sm:$0xff]
    %v2990 = vld [vmem:[#allocation7 + $0x6b0] sm:$0xff]
    %v2991 = vld [vmem:[#allocation7 + $0x6b8] sm:$0xff]
    %v2992 = vld [vmem:[#allocation7 + $0x6c0] sm:$0xff]
    %v2993 = vld [vmem:[#allocation7 + $0x6c8] sm:$0xff]
    %v2994 = vld [vmem:[#allocation7 + $0x6d0] sm:$0xff]
    %v2995 = vld [vmem:[#allocation7 + $0x6d8] sm:$0xff]
    %v2996 = vld [vmem:[#allocation7 + $0x6e0] sm:$0xff]
    %v2997 = vld [vmem:[#allocation7 + $0x6e8] sm:$0xff]
    %v2998 = vld [vmem:[#allocation7 + $0x6f0] sm:$0xff]
    %v2999 = vld [vmem:[#allocation7 + $0x6f8] sm:$0xff]
    %v3000 = vld [vmem:[#allocation7 + $0x700] sm:$0xff]
    %v3001 = vld [vmem:[#allocation7 + $0x708] sm:$0xff]
    %v3002 = vld [vmem:[#allocation7 + $0x710] sm:$0xff]
    %v3003 = vld [vmem:[#allocation7 + $0x718] sm:$0xff]
    %v3004 = vld [vmem:[#allocation7 + $0x720] sm:$0xff]
    %v3005 = vld [vmem:[#allocation7 + $0x728] sm:$0xff]
    %v3006 = vld [vmem:[#allocation7 + $0x730] sm:$0xff]
    %v3007 = vld [vmem:[#allocation7 + $0x738] sm:$0xff]
    %v3008 = vld [vmem:[#allocation7 + $0x740] sm:$0xff]
    %v3009 = vld [vmem:[#allocation7 + $0x748] sm:$0xff]
    %v3010 = vld [vmem:[#allocation7 + $0x750] sm:$0xff]
    %v3011 = vld [vmem:[#allocation7 + $0x758] sm:$0xff]
    %v3012 = vld [vmem:[#allocation7 + $0x760] sm:$0xff]
    %v3013 = vld [vmem:[#allocation7 + $0x768] sm:$0xff]
    %v3014 = vld [vmem:[#allocation7 + $0x770] sm:$0xff]
    %v3015 = vld [vmem:[#allocation7 + $0x778] sm:$0xff]
    %v3016 = vld [vmem:[#allocation7 + $0x780] sm:$0xff]
    %v3017 = vld [vmem:[#allocation7 + $0x788] sm:$0xff]
    %v3018 = vld [vmem:[#allocation7 + $0x790] sm:$0xff]
    %v3019 = vld [vmem:[#allocation7 + $0x798] sm:$0xff]
    %v3020 = vld [vmem:[#allocation7 + $0x7a0] sm:$0xff]
    %v3021 = vld [vmem:[#allocation7 + $0x7a8] sm:$0xff]
    %v3022 = vld [vmem:[#allocation7 + $0x7b0] sm:$0xff]
    %v3023 = vld [vmem:[#allocation7 + $0x7b8] sm:$0xff]
    %v3024 = vld [vmem:[#allocation7 + $0x7c0] sm:$0xff]
    %v3025 = vld [vmem:[#allocation7 + $0x7c8] sm:$0xff]
    %v3026 = vld [vmem:[#allocation7 + $0x7d0] sm:$0xff]
    %v3027 = vld [vmem:[#allocation7 + $0x7d8] sm:$0xff]
    %v3028 = vld [vmem:[#allocation7 + $0x7e0] sm:$0xff]
    %v3029 = vld [vmem:[#allocation7 + $0x7e8] sm:$0xff]
    %v3030 = vld [vmem:[#allocation7 + $0x7f0] sm:$0xff]
    %v3031 = vld [vmem:[#allocation7 + $0x7f8] sm:$0xff]
    %v3032 = vld [vmem:[#allocation9] sm:$0xf]
    %v3034 = vlaneseq
    %v3035 = vshrl.u32 %v3034, 7
    %v3036 = vsub.s32 0, %v3035
    %v3037 = vrot.slane %v3032, %v3036
    %v3038 = vlaneseq
    %v3039 = vshrl.u32 %v3038, 7
    %v3040 = vsub.s32 1, %v3039
    %v3041 = vrot.slane %v3032, %v3040
    %v3042 = vlaneseq
    %v3043 = vshrl.u32 %v3042, 7
    %v3044 = vsub.s32 2, %v3043
    %v3045 = vrot.slane %v3032, %v3044
    %v3046 = vlaneseq
    %v3047 = vshrl.u32 %v3046, 7
    %v3048 = vsub.s32 3, %v3047
    %v3049 = vrot.slane %v3032, %v3048
    %v3056 = vcombine.high %v2774, %v2774
    %v3057 = vcombine.high %v2775, %v2775
    %3060 = vmatprep.subr.mxu0 %v2837
    %3061 = vmatpush1.msra.mxu0 %v2836
    %3062 = vmatprep.subr.mxu0 %v2833
    %3063 = vmatpush1.msra.mxu0 %v2832
    %3064 = vmatprep.subr.mxu0 %v2829
    %3065 = vmatpush1.msra.mxu0 %v2828
    %3066 = vmatprep.subr.mxu0 %v2825
    %3067 = vmatpush1.msra.mxu0 %v2824
    %3068 = vmatprep.subr.mxu0 %v2821
    %3069 = vmatpush1.msra.mxu0 %v2820
    %3070 = vmatprep.subr.mxu0 %v2817
    %3071 = vmatpush1.msra.mxu0 %v2816
    %3072 = vmatprep.subr.mxu0 %v2813
    %3073 = vmatpush1.msra.mxu0 %v2812
    %3074 = vmatprep.subr.mxu0 %v2809
    %3075 = vmatpush1.msra.mxu0 %v2808
    %3076 = vmatprep.subr.mxu0 %v2805
    %3077 = vmatpush1.msra.mxu0 %v2804
    %3078 = vmatprep.subr.mxu0 %v2801
    %3079 = vmatpush1.msra.mxu0 %v2800
    %3080 = vmatprep.subr.mxu0 %v2797
    %3081 = vmatpush1.msra.mxu0 %v2796
    %3082 = vmatprep.subr.mxu0 %v2793
    %3083 = vmatpush1.msra.mxu0 %v2792
    %3084 = vmatprep.subr.mxu0 %v2789
    %3085 = vmatpush1.msra.mxu0 %v2788
    %3086 = vmatprep.subr.mxu0 %v2785
    %3087 = vmatpush1.msra.mxu0 %v2784
    %3088 = vmatprep.subr.mxu0 %v2781
    %3089 = vmatpush1.msra.mxu0 %v2780
    %3090 = vmatprep.subr.mxu0 %v2777
    %3091 = vmatpush1.msra.mxu0 %v2776
    %3092 = vmatprep.subr.mxu0 %v2901
    %3093 = vmatpush2.msra.mxu0 %v2900
    %3094 = vmatprep.subr.mxu0 %v2897
    %3095 = vmatpush2.msra.mxu0 %v2896
    %3096 = vmatprep.subr.mxu0 %v2893
    %3097 = vmatpush2.msra.mxu0 %v2892
    %3098 = vmatprep.subr.mxu0 %v2889
    %3099 = vmatpush2.msra.mxu0 %v2888
    %3100 = vmatprep.subr.mxu0 %v2885
    %3101 = vmatpush2.msra.mxu0 %v2884
    %3102 = vmatprep.subr.mxu0 %v2881
    %3103 = vmatpush2.msra.mxu0 %v2880
    %3104 = vmatprep.subr.mxu0 %v2877
    %3105 = vmatpush2.msra.mxu0 %v2876
    %3106 = vmatprep.subr.mxu0 %v2873
    %3107 = vmatpush2.msra.mxu0 %v2872
    %3108 = vmatprep.subr.mxu0 %v2869
    %3109 = vmatpush2.msra.mxu0 %v2868
    %3110 = vmatprep.subr.mxu0 %v2865
    %3111 = vmatpush2.msra.mxu0 %v2864
    %3112 = vmatprep.subr.mxu0 %v2861
    %3113 = vmatpush2.msra.mxu0 %v2860
    %3114 = vmatprep.subr.mxu0 %v2857
    %3115 = vmatpush2.msra.mxu0 %v2856
    %3116 = vmatprep.subr.mxu0 %v2853
    %3117 = vmatpush2.msra.mxu0 %v2852
    %3118 = vmatprep.subr.mxu0 %v2849
    %3119 = vmatpush2.msra.mxu0 %v2848
    %3120 = vmatprep.subr.mxu0 %v2845
    %3121 = vmatpush2.msra.mxu0 %v2844
    %3122 = vmatprep.subr.mxu0 %v2841
    %3123 = vmatpush2.msra.mxu0 %v2840
    %3124 = vmatprep.mubr.f32.mxu0 %v3056
    %3125 = vmatmul.mubr.f32.gmra.mxu0 %v2774
    %v3126 = vpop.f32.mrf.mxu0
    %v3127 = vadd.f32 %v3037, %v3126
    %v3128 = vpop.f32.mrf.mxu0
    %v3129 = vadd.f32 %v3041, %v3128
    %3130 = vdwg.mxu0
    %3131 = vmatprep.subr.mxu0 %v2965
    %3132 = vmatpush1.msra.mxu0 %v2964
    %3133 = vmatprep.subr.mxu0 %v2961
    %3134 = vmatpush1.msra.mxu0 %v2960
    %3135 = vmatprep.subr.mxu0 %v2957
    %3136 = vmatpush1.msra.mxu0 %v2956
    %3137 = vmatprep.subr.mxu0 %v2953
    %3138 = vmatpush1.msra.mxu0 %v2952
    %3139 = vmatprep.subr.mxu0 %v2949
    %3140 = vmatpush1.msra.mxu0 %v2948
    %3141 = vmatprep.subr.mxu0 %v2945
    %3142 = vmatpush1.msra.mxu0 %v2944
    %3143 = vmatprep.subr.mxu0 %v2941
    %3144 = vmatpush1.msra.mxu0 %v2940
    %3145 = vmatprep.subr.mxu0 %v2937
    %3146 = vmatpush1.msra.mxu0 %v2936
    %3147 = vmatprep.subr.mxu0 %v2933
    %3148 = vmatpush1.msra.mxu0 %v2932
    %3149 = vmatprep.subr.mxu0 %v2929
    %3150 = vmatpush1.msra.mxu0 %v2928
    %3151 = vmatprep.subr.mxu0 %v2925
    %3152 = vmatpush1.msra.mxu0 %v2924
    %3153 = vmatprep.subr.mxu0 %v2921
    %3154 = vmatpush1.msra.mxu0 %v2920
    %3155 = vmatprep.subr.mxu0 %v2917
    %3156 = vmatpush1.msra.mxu0 %v2916
    %3157 = vmatprep.subr.mxu0 %v2913
    %3158 = vmatpush1.msra.mxu0 %v2912
    %3159 = vmatprep.subr.mxu0 %v2909
    %3160 = vmatpush1.msra.mxu0 %v2908
    %3161 = vmatprep.subr.mxu0 %v2905
    %3162 = vmatpush1.msra.mxu0 %v2904
    %3163 = vmatprep.subr.mxu0 %v3029
    %3164 = vmatpush2.msra.mxu0 %v3028
    %3165 = vmatprep.subr.mxu0 %v3025
    %3166 = vmatpush2.msra.mxu0 %v3024
    %3167 = vmatprep.subr.mxu0 %v3021
    %3168 = vmatpush2.msra.mxu0 %v3020
    %3169 = vmatprep.subr.mxu0 %v3017
    %3170 = vmatpush2.msra.mxu0 %v3016
    %3171 = vmatprep.subr.mxu0 %v3013
    %3172 = vmatpush2.msra.mxu0 %v3012
    %3173 = vmatprep.subr.mxu0 %v3009
    %3174 = vmatpush2.msra.mxu0 %v3008
    %3175 = vmatprep.subr.mxu0 %v3005
    %3176 = vmatpush2.msra.mxu0 %v3004
    %3177 = vmatprep.subr.mxu0 %v3001
    %3178 = vmatpush2.msra.mxu0 %v3000
    %3179 = vmatprep.subr.mxu0 %v2997
    %3180 = vmatpush2.msra.mxu0 %v2996
    %3181 = vmatprep.subr.mxu0 %v2993
    %3182 = vmatpush2.msra.mxu0 %v2992
    %3183 = vmatprep.subr.mxu0 %v2989
    %3184 = vmatpush2.msra.mxu0 %v2988
    %3185 = vmatprep.subr.mxu0 %v2985
    %3186 = vmatpush2.msra.mxu0 %v2984
    %3187 = vmatprep.subr.mxu0 %v2981
    %3188 = vmatpush2.msra.mxu0 %v2980
    %3189 = vmatprep.subr.mxu0 %v2977
    %3190 = vmatpush2.msra.mxu0 %v2976
    %3191 = vmatprep.subr.mxu0 %v2973
    %3192 = vmatpush2.msra.mxu0 %v2972
    %3193 = vmatprep.subr.mxu0 %v2969
    %3194 = vmatpush2.msra.mxu0 %v2968
    %3195 = vmatprep.mubr.f32.mxu0 %v3057
    %3196 = vmatmul.mubr.f32.gmra.mxu0 %v2775
    %v3197 = vpop.f32.mrf.mxu0
    %v3198 = vadd.f32 %v3127, %v3197
    %v3199 = vpop.f32.mrf.mxu0
    %v3200 = vadd.f32 %v3129, %v3199
    %3201 = vdwg.mxu0
    %3202 = vmatprep.subr.mxu0 %v2839
    %3203 = vmatpush1.msra.mxu0 %v2838
    %3204 = vmatprep.subr.mxu0 %v2835
    %3205 = vmatpush1.msra.mxu0 %v2834
    %3206 = vmatprep.subr.mxu0 %v2831
    %3207 = vmatpush1.msra.mxu0 %v2830
    %3208 = vmatprep.subr.mxu0 %v2827
    %3209 = vmatpush1.msra.mxu0 %v2826
    %3210 = vmatprep.subr.mxu0 %v2823
    %3211 = vmatpush1.msra.mxu0 %v2822
    %3212 = vmatprep.subr.mxu0 %v2819
    %3213 = vmatpush1.msra.mxu0 %v2818
    %3214 = vmatprep.subr.mxu0 %v2815
    %3215 = vmatpush1.msra.mxu0 %v2814
    %3216 = vmatprep.subr.mxu0 %v2811
    %3217 = vmatpush1.msra.mxu0 %v2810
    %3218 = vmatprep.subr.mxu0 %v2807
    %3219 = vmatpush1.msra.mxu0 %v2806
    %3220 = vmatprep.subr.mxu0 %v2803
    %3221 = vmatpush1.msra.mxu0 %v2802
    %3222 = vmatprep.subr.mxu0 %v2799
    %3223 = vmatpush1.msra.mxu0 %v2798
    %3224 = vmatprep.subr.mxu0 %v2795
    %3225 = vmatpush1.msra.mxu0 %v2794
    %3226 = vmatprep.subr.mxu0 %v2791
    %3227 = vmatpush1.msra.mxu0 %v2790
    %3228 = vmatprep.subr.mxu0 %v2787
    %3229 = vmatpush1.msra.mxu0 %v2786
    %3230 = vmatprep.subr.mxu0 %v2783
    %3231 = vmatpush1.msra.mxu0 %v2782
    %3232 = vmatprep.subr.mxu0 %v2779
    %3233 = vmatpush1.msra.mxu0 %v2778
    %3234 = vmatprep.subr.mxu0 %v2903
    %3235 = vmatpush2.msra.mxu0 %v2902
    %3236 = vmatprep.subr.mxu0 %v2899
    %3237 = vmatpush2.msra.mxu0 %v2898
    %3238 = vmatprep.subr.mxu0 %v2895
    %3239 = vmatpush2.msra.mxu0 %v2894
    %3240 = vmatprep.subr.mxu0 %v2891
    %3241 = vmatpush2.msra.mxu0 %v2890
    %3242 = vmatprep.subr.mxu0 %v2887
    %3243 = vmatpush2.msra.mxu0 %v2886
    %3244 = vmatprep.subr.mxu0 %v2883
    %3245 = vmatpush2.msra.mxu0 %v2882
    %3246 = vmatprep.subr.mxu0 %v2879
    %3247 = vmatpush2.msra.mxu0 %v2878
    %3248 = vmatprep.subr.mxu0 %v2875
    %3249 = vmatpush2.msra.mxu0 %v2874
    %3250 = vmatprep.subr.mxu0 %v2871
    %3251 = vmatpush2.msra.mxu0 %v2870
    %3252 = vmatprep.subr.mxu0 %v2867
    %3253 = vmatpush2.msra.mxu0 %v2866
    %3254 = vmatprep.subr.mxu0 %v2863
    %3255 = vmatpush2.msra.mxu0 %v2862
    %3256 = vmatprep.subr.mxu0 %v2859
    %3257 = vmatpush2.msra.mxu0 %v2858
    %3258 = vmatprep.subr.mxu0 %v2855
    %3259 = vmatpush2.msra.mxu0 %v2854
    %3260 = vmatprep.subr.mxu0 %v2851
    %3261 = vmatpush2.msra.mxu0 %v2850
    %3262 = vmatprep.subr.mxu0 %v2847
    %3263 = vmatpush2.msra.mxu0 %v2846
    %3264 = vmatprep.subr.mxu0 %v2843
    %3265 = vmatpush2.msra.mxu0 %v2842
    %3266 = vmatprep.mubr.f32.mxu0 %v3056
    %3267 = vmatmul.mubr.f32.gmra.mxu0 %v2774
    %v3268 = vpop.f32.mrf.mxu0
    %v3269 = vadd.f32 %v3045, %v3268
    %v3270 = vpop.f32.mrf.mxu0
    %v3271 = vadd.f32 %v3049, %v3270
    %3272 = vdwg.mxu0
    %3273 = vmatprep.subr.mxu0 %v2967
    %3274 = vmatpush1.msra.mxu0 %v2966
    %3275 = vmatprep.subr.mxu0 %v2963
    %3276 = vmatpush1.msra.mxu0 %v2962
    %3277 = vmatprep.subr.mxu0 %v2959
    %3278 = vmatpush1.msra.mxu0 %v2958
    %3279 = vmatprep.subr.mxu0 %v2955
    %3280 = vmatpush1.msra.mxu0 %v2954
    %3281 = vmatprep.subr.mxu0 %v2951
    %3282 = vmatpush1.msra.mxu0 %v2950
    %3283 = vmatprep.subr.mxu0 %v2947
    %3284 = vmatpush1.msra.mxu0 %v2946
    %3285 = vmatprep.subr.mxu0 %v2943
    %3286 = vmatpush1.msra.mxu0 %v2942
    %3287 = vmatprep.subr.mxu0 %v2939
    %3288 = vmatpush1.msra.mxu0 %v2938
    %3289 = vmatprep.subr.mxu0 %v2935
    %3290 = vmatpush1.msra.mxu0 %v2934
    %3291 = vmatprep.subr.mxu0 %v2931
    %3292 = vmatpush1.msra.mxu0 %v2930
    %3293 = vmatprep.subr.mxu0 %v2927
    %3294 = vmatpush1.msra.mxu0 %v2926
    %3295 = vmatprep.subr.mxu0 %v2923
    %3296 = vmatpush1.msra.mxu0 %v2922
    %3297 = vmatprep.subr.mxu0 %v2919
    %3298 = vmatpush1.msra.mxu0 %v2918
    %3299 = vmatprep.subr.mxu0 %v2915
    %3300 = vmatpush1.msra.mxu0 %v2914
    %3301 = vmatprep.subr.mxu0 %v2911
    %3302 = vmatpush1.msra.mxu0 %v2910
    %3303 = vmatprep.subr.mxu0 %v2907
    %3304 = vmatpush1.msra.mxu0 %v2906
    %3305 = vmatprep.subr.mxu0 %v3031
    %3306 = vmatpush2.msra.mxu0 %v3030
    %3307 = vmatprep.subr.mxu0 %v3027
    %3308 = vmatpush2.msra.mxu0 %v3026
    %3309 = vmatprep.subr.mxu0 %v3023
    %3310 = vmatpush2.msra.mxu0 %v3022
    %3311 = vmatprep.subr.mxu0 %v3019
    %3312 = vmatpush2.msra.mxu0 %v3018
    %3313 = vmatprep.subr.mxu0 %v3015
    %3314 = vmatpush2.msra.mxu0 %v3014
    %3315 = vmatprep.subr.mxu0 %v3011
    %3316 = vmatpush2.msra.mxu0 %v3010
    %3317 = vmatprep.subr.mxu0 %v3007
    %3318 = vmatpush2.msra.mxu0 %v3006
    %3319 = vmatprep.subr.mxu0 %v3003
    %3320 = vmatpush2.msra.mxu0 %v3002
    %3321 = vmatprep.subr.mxu0 %v2999
    %3322 = vmatpush2.msra.mxu0 %v2998
    %3323 = vmatprep.subr.mxu0 %v2995
    %3324 = vmatpush2.msra.mxu0 %v2994
    %3325 = vmatprep.subr.mxu0 %v2991
    %3326 = vmatpush2.msra.mxu0 %v2990
    %3327 = vmatprep.subr.mxu0 %v2987
    %3328 = vmatpush2.msra.mxu0 %v2986
    %3329 = vmatprep.subr.mxu0 %v2983
    %3330 = vmatpush2.msra.mxu0 %v2982
    %3331 = vmatprep.subr.mxu0 %v2979
    %3332 = vmatpush2.msra.mxu0 %v2978
    %3333 = vmatprep.subr.mxu0 %v2975
    %3334 = vmatpush2.msra.mxu0 %v2974
    %3335 = vmatprep.subr.mxu0 %v2971
    %3336 = vmatpush2.msra.mxu0 %v2970
    %3337 = vmatprep.mubr.f32.mxu0 %v3057
    %3338 = vmatmul.mubr.f32.gmra.mxu0 %v2775
    %v3339 = vpop.f32.mrf.mxu0
    %v3340 = vadd.f32 %v3269, %v3339
    %v3341 = vpop.f32.mrf.mxu0
    %v3342 = vadd.f32 %v3271, %v3341
    %3343 = vdwg.mxu0
    %v3344 = vmax.f32 %v3198, 0.0
    %v3345 = vmax.f32 %v3200, 0.0
    %v3346 = vmax.f32 %v3340, 0.0
    %v3347 = vmax.f32 %v3342, 0.0
    %v3348 = vld [vmem:[#allocation10] sm:$0xff]
    %v3349 = vld [vmem:[#allocation10 + $0x8] sm:$0xff]
    %v3350 = vld [vmem:[#allocation10 + $0x10] sm:$0xff]
    %v3351 = vld [vmem:[#allocation10 + $0x18] sm:$0xff]
    %v3352 = vld [vmem:[#allocation10 + $0x20] sm:$0xff]
    %v3353 = vld [vmem:[#allocation10 + $0x28] sm:$0xff]
    %v3354 = vld [vmem:[#allocation10 + $0x30] sm:$0xff]
    %v3355 = vld [vmem:[#allocation10 + $0x38] sm:$0xff]
    %v3356 = vld [vmem:[#allocation10 + $0x40] sm:$0xff]
    %v3357 = vld [vmem:[#allocation10 + $0x48] sm:$0xff]
    %v3358 = vld [vmem:[#allocation10 + $0x50] sm:$0xff]
    %v3359 = vld [vmem:[#allocation10 + $0x58] sm:$0xff]
    %v3360 = vld [vmem:[#allocation10 + $0x60] sm:$0xff]
    %v3361 = vld [vmem:[#allocation10 + $0x68] sm:$0xff]
    %v3362 = vld [vmem:[#allocation10 + $0x70] sm:$0xff]
    %v3363 = vld [vmem:[#allocation10 + $0x78] sm:$0xff]
    %v3364 = vld [vmem:[#allocation10 + $0x80] sm:$0xff]
    %v3365 = vld [vmem:[#allocation10 + $0x88] sm:$0xff]
    %v3366 = vld [vmem:[#allocation10 + $0x90] sm:$0xff]
    %v3367 = vld [vmem:[#allocation10 + $0x98] sm:$0xff]
    %v3368 = vld [vmem:[#allocation10 + $0xa0] sm:$0xff]
    %v3369 = vld [vmem:[#allocation10 + $0xa8] sm:$0xff]
    %v3370 = vld [vmem:[#allocation10 + $0xb0] sm:$0xff]
    %v3371 = vld [vmem:[#allocation10 + $0xb8] sm:$0xff]
    %v3372 = vld [vmem:[#allocation10 + $0xc0] sm:$0xff]
    %v3373 = vld [vmem:[#allocation10 + $0xc8] sm:$0xff]
    %v3374 = vld [vmem:[#allocation10 + $0xd0] sm:$0xff]
    %v3375 = vld [vmem:[#allocation10 + $0xd8] sm:$0xff]
    %v3376 = vld [vmem:[#allocation10 + $0xe0] sm:$0xff]
    %v3377 = vld [vmem:[#allocation10 + $0xe8] sm:$0xff]
    %v3378 = vld [vmem:[#allocation10 + $0xf0] sm:$0xff]
    %v3379 = vld [vmem:[#allocation10 + $0xf8] sm:$0xff]
    %v3380 = vld [vmem:[#allocation10 + $0x100] sm:$0xff]
    %v3381 = vld [vmem:[#allocation10 + $0x108] sm:$0xff]
    %v3382 = vld [vmem:[#allocation10 + $0x110] sm:$0xff]
    %v3383 = vld [vmem:[#allocation10 + $0x118] sm:$0xff]
    %v3384 = vld [vmem:[#allocation10 + $0x120] sm:$0xff]
    %v3385 = vld [vmem:[#allocation10 + $0x128] sm:$0xff]
    %v3386 = vld [vmem:[#allocation10 + $0x130] sm:$0xff]
    %v3387 = vld [vmem:[#allocation10 + $0x138] sm:$0xff]
    %v3388 = vld [vmem:[#allocation10 + $0x140] sm:$0xff]
    %v3389 = vld [vmem:[#allocation10 + $0x148] sm:$0xff]
    %v3390 = vld [vmem:[#allocation10 + $0x150] sm:$0xff]
    %v3391 = vld [vmem:[#allocation10 + $0x158] sm:$0xff]
    %v3392 = vld [vmem:[#allocation10 + $0x160] sm:$0xff]
    %v3393 = vld [vmem:[#allocation10 + $0x168] sm:$0xff]
    %v3394 = vld [vmem:[#allocation10 + $0x170] sm:$0xff]
    %v3395 = vld [vmem:[#allocation10 + $0x178] sm:$0xff]
    %v3396 = vld [vmem:[#allocation10 + $0x180] sm:$0xff]
    %v3397 = vld [vmem:[#allocation10 + $0x188] sm:$0xff]
    %v3398 = vld [vmem:[#allocation10 + $0x190] sm:$0xff]
    %v3399 = vld [vmem:[#allocation10 + $0x198] sm:$0xff]
    %v3400 = vld [vmem:[#allocation10 + $0x1a0] sm:$0xff]
    %v3401 = vld [vmem:[#allocation10 + $0x1a8] sm:$0xff]
    %v3402 = vld [vmem:[#allocation10 + $0x1b0] sm:$0xff]
    %v3403 = vld [vmem:[#allocation10 + $0x1b8] sm:$0xff]
    %v3404 = vld [vmem:[#allocation10 + $0x1c0] sm:$0xff]
    %v3405 = vld [vmem:[#allocation10 + $0x1c8] sm:$0xff]
    %v3406 = vld [vmem:[#allocation10 + $0x1d0] sm:$0xff]
    %v3407 = vld [vmem:[#allocation10 + $0x1d8] sm:$0xff]
    %v3408 = vld [vmem:[#allocation10 + $0x1e0] sm:$0xff]
    %v3409 = vld [vmem:[#allocation10 + $0x1e8] sm:$0xff]
    %v3410 = vld [vmem:[#allocation10 + $0x1f0] sm:$0xff]
    %v3411 = vld [vmem:[#allocation10 + $0x1f8] sm:$0xff]
    %v3412 = vld [vmem:[#allocation10 + $0x200] sm:$0xff]
    %v3413 = vld [vmem:[#allocation10 + $0x208] sm:$0xff]
    %v3414 = vld [vmem:[#allocation10 + $0x210] sm:$0xff]
    %v3415 = vld [vmem:[#allocation10 + $0x218] sm:$0xff]
    %v3416 = vld [vmem:[#allocation10 + $0x220] sm:$0xff]
    %v3417 = vld [vmem:[#allocation10 + $0x228] sm:$0xff]
    %v3418 = vld [vmem:[#allocation10 + $0x230] sm:$0xff]
    %v3419 = vld [vmem:[#allocation10 + $0x238] sm:$0xff]
    %v3420 = vld [vmem:[#allocation10 + $0x240] sm:$0xff]
    %v3421 = vld [vmem:[#allocation10 + $0x248] sm:$0xff]
    %v3422 = vld [vmem:[#allocation10 + $0x250] sm:$0xff]
    %v3423 = vld [vmem:[#allocation10 + $0x258] sm:$0xff]
    %v3424 = vld [vmem:[#allocation10 + $0x260] sm:$0xff]
    %v3425 = vld [vmem:[#allocation10 + $0x268] sm:$0xff]
    %v3426 = vld [vmem:[#allocation10 + $0x270] sm:$0xff]
    %v3427 = vld [vmem:[#allocation10 + $0x278] sm:$0xff]
    %v3428 = vld [vmem:[#allocation10 + $0x280] sm:$0xff]
    %v3429 = vld [vmem:[#allocation10 + $0x288] sm:$0xff]
    %v3430 = vld [vmem:[#allocation10 + $0x290] sm:$0xff]
    %v3431 = vld [vmem:[#allocation10 + $0x298] sm:$0xff]
    %v3432 = vld [vmem:[#allocation10 + $0x2a0] sm:$0xff]
    %v3433 = vld [vmem:[#allocation10 + $0x2a8] sm:$0xff]
    %v3434 = vld [vmem:[#allocation10 + $0x2b0] sm:$0xff]
    %v3435 = vld [vmem:[#allocation10 + $0x2b8] sm:$0xff]
    %v3436 = vld [vmem:[#allocation10 + $0x2c0] sm:$0xff]
    %v3437 = vld [vmem:[#allocation10 + $0x2c8] sm:$0xff]
    %v3438 = vld [vmem:[#allocation10 + $0x2d0] sm:$0xff]
    %v3439 = vld [vmem:[#allocation10 + $0x2d8] sm:$0xff]
    %v3440 = vld [vmem:[#allocation10 + $0x2e0] sm:$0xff]
    %v3441 = vld [vmem:[#allocation10 + $0x2e8] sm:$0xff]
    %v3442 = vld [vmem:[#allocation10 + $0x2f0] sm:$0xff]
    %v3443 = vld [vmem:[#allocation10 + $0x2f8] sm:$0xff]
    %v3444 = vld [vmem:[#allocation10 + $0x300] sm:$0xff]
    %v3445 = vld [vmem:[#allocation10 + $0x308] sm:$0xff]
    %v3446 = vld [vmem:[#allocation10 + $0x310] sm:$0xff]
    %v3447 = vld [vmem:[#allocation10 + $0x318] sm:$0xff]
    %v3448 = vld [vmem:[#allocation10 + $0x320] sm:$0xff]
    %v3449 = vld [vmem:[#allocation10 + $0x328] sm:$0xff]
    %v3450 = vld [vmem:[#allocation10 + $0x330] sm:$0xff]
    %v3451 = vld [vmem:[#allocation10 + $0x338] sm:$0xff]
    %v3452 = vld [vmem:[#allocation10 + $0x340] sm:$0xff]
    %v3453 = vld [vmem:[#allocation10 + $0x348] sm:$0xff]
    %v3454 = vld [vmem:[#allocation10 + $0x350] sm:$0xff]
    %v3455 = vld [vmem:[#allocation10 + $0x358] sm:$0xff]
    %v3456 = vld [vmem:[#allocation10 + $0x360] sm:$0xff]
    %v3457 = vld [vmem:[#allocation10 + $0x368] sm:$0xff]
    %v3458 = vld [vmem:[#allocation10 + $0x370] sm:$0xff]
    %v3459 = vld [vmem:[#allocation10 + $0x378] sm:$0xff]
    %v3460 = vld [vmem:[#allocation10 + $0x380] sm:$0xff]
    %v3461 = vld [vmem:[#allocation10 + $0x388] sm:$0xff]
    %v3462 = vld [vmem:[#allocation10 + $0x390] sm:$0xff]
    %v3463 = vld [vmem:[#allocation10 + $0x398] sm:$0xff]
    %v3464 = vld [vmem:[#allocation10 + $0x3a0] sm:$0xff]
    %v3465 = vld [vmem:[#allocation10 + $0x3a8] sm:$0xff]
    %v3466 = vld [vmem:[#allocation10 + $0x3b0] sm:$0xff]
    %v3467 = vld [vmem:[#allocation10 + $0x3b8] sm:$0xff]
    %v3468 = vld [vmem:[#allocation10 + $0x3c0] sm:$0xff]
    %v3469 = vld [vmem:[#allocation10 + $0x3c8] sm:$0xff]
    %v3470 = vld [vmem:[#allocation10 + $0x3d0] sm:$0xff]
    %v3471 = vld [vmem:[#allocation10 + $0x3d8] sm:$0xff]
    %v3472 = vld [vmem:[#allocation10 + $0x3e0] sm:$0xff]
    %v3473 = vld [vmem:[#allocation10 + $0x3e8] sm:$0xff]
    %v3474 = vld [vmem:[#allocation10 + $0x3f0] sm:$0xff]
    %v3475 = vld [vmem:[#allocation10 + $0x3f8] sm:$0xff]
    %v3476 = vld [vmem:[#allocation10 + $0x400] sm:$0xff]
    %v3477 = vld [vmem:[#allocation10 + $0x408] sm:$0xff]
    %v3478 = vld [vmem:[#allocation10 + $0x410] sm:$0xff]
    %v3479 = vld [vmem:[#allocation10 + $0x418] sm:$0xff]
    %v3480 = vld [vmem:[#allocation10 + $0x420] sm:$0xff]
    %v3481 = vld [vmem:[#allocation10 + $0x428] sm:$0xff]
    %v3482 = vld [vmem:[#allocation10 + $0x430] sm:$0xff]
    %v3483 = vld [vmem:[#allocation10 + $0x438] sm:$0xff]
    %v3484 = vld [vmem:[#allocation10 + $0x440] sm:$0xff]
    %v3485 = vld [vmem:[#allocation10 + $0x448] sm:$0xff]
    %v3486 = vld [vmem:[#allocation10 + $0x450] sm:$0xff]
    %v3487 = vld [vmem:[#allocation10 + $0x458] sm:$0xff]
    %v3488 = vld [vmem:[#allocation10 + $0x460] sm:$0xff]
    %v3489 = vld [vmem:[#allocation10 + $0x468] sm:$0xff]
    %v3490 = vld [vmem:[#allocation10 + $0x470] sm:$0xff]
    %v3491 = vld [vmem:[#allocation10 + $0x478] sm:$0xff]
    %v3492 = vld [vmem:[#allocation10 + $0x480] sm:$0xff]
    %v3493 = vld [vmem:[#allocation10 + $0x488] sm:$0xff]
    %v3494 = vld [vmem:[#allocation10 + $0x490] sm:$0xff]
    %v3495 = vld [vmem:[#allocation10 + $0x498] sm:$0xff]
    %v3496 = vld [vmem:[#allocation10 + $0x4a0] sm:$0xff]
    %v3497 = vld [vmem:[#allocation10 + $0x4a8] sm:$0xff]
    %v3498 = vld [vmem:[#allocation10 + $0x4b0] sm:$0xff]
    %v3499 = vld [vmem:[#allocation10 + $0x4b8] sm:$0xff]
    %v3500 = vld [vmem:[#allocation10 + $0x4c0] sm:$0xff]
    %v3501 = vld [vmem:[#allocation10 + $0x4c8] sm:$0xff]
    %v3502 = vld [vmem:[#allocation10 + $0x4d0] sm:$0xff]
    %v3503 = vld [vmem:[#allocation10 + $0x4d8] sm:$0xff]
    %v3504 = vld [vmem:[#allocation10 + $0x4e0] sm:$0xff]
    %v3505 = vld [vmem:[#allocation10 + $0x4e8] sm:$0xff]
    %v3506 = vld [vmem:[#allocation10 + $0x4f0] sm:$0xff]
    %v3507 = vld [vmem:[#allocation10 + $0x4f8] sm:$0xff]
    %v3508 = vld [vmem:[#allocation10 + $0x500] sm:$0xff]
    %v3509 = vld [vmem:[#allocation10 + $0x508] sm:$0xff]
    %v3510 = vld [vmem:[#allocation10 + $0x510] sm:$0xff]
    %v3511 = vld [vmem:[#allocation10 + $0x518] sm:$0xff]
    %v3512 = vld [vmem:[#allocation10 + $0x520] sm:$0xff]
    %v3513 = vld [vmem:[#allocation10 + $0x528] sm:$0xff]
    %v3514 = vld [vmem:[#allocation10 + $0x530] sm:$0xff]
    %v3515 = vld [vmem:[#allocation10 + $0x538] sm:$0xff]
    %v3516 = vld [vmem:[#allocation10 + $0x540] sm:$0xff]
    %v3517 = vld [vmem:[#allocation10 + $0x548] sm:$0xff]
    %v3518 = vld [vmem:[#allocation10 + $0x550] sm:$0xff]
    %v3519 = vld [vmem:[#allocation10 + $0x558] sm:$0xff]
    %v3520 = vld [vmem:[#allocation10 + $0x560] sm:$0xff]
    %v3521 = vld [vmem:[#allocation10 + $0x568] sm:$0xff]
    %v3522 = vld [vmem:[#allocation10 + $0x570] sm:$0xff]
    %v3523 = vld [vmem:[#allocation10 + $0x578] sm:$0xff]
    %v3524 = vld [vmem:[#allocation10 + $0x580] sm:$0xff]
    %v3525 = vld [vmem:[#allocation10 + $0x588] sm:$0xff]
    %v3526 = vld [vmem:[#allocation10 + $0x590] sm:$0xff]
    %v3527 = vld [vmem:[#allocation10 + $0x598] sm:$0xff]
    %v3528 = vld [vmem:[#allocation10 + $0x5a0] sm:$0xff]
    %v3529 = vld [vmem:[#allocation10 + $0x5a8] sm:$0xff]
    %v3530 = vld [vmem:[#allocation10 + $0x5b0] sm:$0xff]
    %v3531 = vld [vmem:[#allocation10 + $0x5b8] sm:$0xff]
    %v3532 = vld [vmem:[#allocation10 + $0x5c0] sm:$0xff]
    %v3533 = vld [vmem:[#allocation10 + $0x5c8] sm:$0xff]
    %v3534 = vld [vmem:[#allocation10 + $0x5d0] sm:$0xff]
    %v3535 = vld [vmem:[#allocation10 + $0x5d8] sm:$0xff]
    %v3536 = vld [vmem:[#allocation10 + $0x5e0] sm:$0xff]
    %v3537 = vld [vmem:[#allocation10 + $0x5e8] sm:$0xff]
    %v3538 = vld [vmem:[#allocation10 + $0x5f0] sm:$0xff]
    %v3539 = vld [vmem:[#allocation10 + $0x5f8] sm:$0xff]
    %v3540 = vld [vmem:[#allocation10 + $0x600] sm:$0xff]
    %v3541 = vld [vmem:[#allocation10 + $0x608] sm:$0xff]
    %v3542 = vld [vmem:[#allocation10 + $0x610] sm:$0xff]
    %v3543 = vld [vmem:[#allocation10 + $0x618] sm:$0xff]
    %v3544 = vld [vmem:[#allocation10 + $0x620] sm:$0xff]
    %v3545 = vld [vmem:[#allocation10 + $0x628] sm:$0xff]
    %v3546 = vld [vmem:[#allocation10 + $0x630] sm:$0xff]
    %v3547 = vld [vmem:[#allocation10 + $0x638] sm:$0xff]
    %v3548 = vld [vmem:[#allocation10 + $0x640] sm:$0xff]
    %v3549 = vld [vmem:[#allocation10 + $0x648] sm:$0xff]
    %v3550 = vld [vmem:[#allocation10 + $0x650] sm:$0xff]
    %v3551 = vld [vmem:[#allocation10 + $0x658] sm:$0xff]
    %v3552 = vld [vmem:[#allocation10 + $0x660] sm:$0xff]
    %v3553 = vld [vmem:[#allocation10 + $0x668] sm:$0xff]
    %v3554 = vld [vmem:[#allocation10 + $0x670] sm:$0xff]
    %v3555 = vld [vmem:[#allocation10 + $0x678] sm:$0xff]
    %v3556 = vld [vmem:[#allocation10 + $0x680] sm:$0xff]
    %v3557 = vld [vmem:[#allocation10 + $0x688] sm:$0xff]
    %v3558 = vld [vmem:[#allocation10 + $0x690] sm:$0xff]
    %v3559 = vld [vmem:[#allocation10 + $0x698] sm:$0xff]
    %v3560 = vld [vmem:[#allocation10 + $0x6a0] sm:$0xff]
    %v3561 = vld [vmem:[#allocation10 + $0x6a8] sm:$0xff]
    %v3562 = vld [vmem:[#allocation10 + $0x6b0] sm:$0xff]
    %v3563 = vld [vmem:[#allocation10 + $0x6b8] sm:$0xff]
    %v3564 = vld [vmem:[#allocation10 + $0x6c0] sm:$0xff]
    %v3565 = vld [vmem:[#allocation10 + $0x6c8] sm:$0xff]
    %v3566 = vld [vmem:[#allocation10 + $0x6d0] sm:$0xff]
    %v3567 = vld [vmem:[#allocation10 + $0x6d8] sm:$0xff]
    %v3568 = vld [vmem:[#allocation10 + $0x6e0] sm:$0xff]
    %v3569 = vld [vmem:[#allocation10 + $0x6e8] sm:$0xff]
    %v3570 = vld [vmem:[#allocation10 + $0x6f0] sm:$0xff]
    %v3571 = vld [vmem:[#allocation10 + $0x6f8] sm:$0xff]
    %v3572 = vld [vmem:[#allocation10 + $0x700] sm:$0xff]
    %v3573 = vld [vmem:[#allocation10 + $0x708] sm:$0xff]
    %v3574 = vld [vmem:[#allocation10 + $0x710] sm:$0xff]
    %v3575 = vld [vmem:[#allocation10 + $0x718] sm:$0xff]
    %v3576 = vld [vmem:[#allocation10 + $0x720] sm:$0xff]
    %v3577 = vld [vmem:[#allocation10 + $0x728] sm:$0xff]
    %v3578 = vld [vmem:[#allocation10 + $0x730] sm:$0xff]
    %v3579 = vld [vmem:[#allocation10 + $0x738] sm:$0xff]
    %v3580 = vld [vmem:[#allocation10 + $0x740] sm:$0xff]
    %v3581 = vld [vmem:[#allocation10 + $0x748] sm:$0xff]
    %v3582 = vld [vmem:[#allocation10 + $0x750] sm:$0xff]
    %v3583 = vld [vmem:[#allocation10 + $0x758] sm:$0xff]
    %v3584 = vld [vmem:[#allocation10 + $0x760] sm:$0xff]
    %v3585 = vld [vmem:[#allocation10 + $0x768] sm:$0xff]
    %v3586 = vld [vmem:[#allocation10 + $0x770] sm:$0xff]
    %v3587 = vld [vmem:[#allocation10 + $0x778] sm:$0xff]
    %v3588 = vld [vmem:[#allocation10 + $0x780] sm:$0xff]
    %v3589 = vld [vmem:[#allocation10 + $0x788] sm:$0xff]
    %v3590 = vld [vmem:[#allocation10 + $0x790] sm:$0xff]
    %v3591 = vld [vmem:[#allocation10 + $0x798] sm:$0xff]
    %v3592 = vld [vmem:[#allocation10 + $0x7a0] sm:$0xff]
    %v3593 = vld [vmem:[#allocation10 + $0x7a8] sm:$0xff]
    %v3594 = vld [vmem:[#allocation10 + $0x7b0] sm:$0xff]
    %v3595 = vld [vmem:[#allocation10 + $0x7b8] sm:$0xff]
    %v3596 = vld [vmem:[#allocation10 + $0x7c0] sm:$0xff]
    %v3597 = vld [vmem:[#allocation10 + $0x7c8] sm:$0xff]
    %v3598 = vld [vmem:[#allocation10 + $0x7d0] sm:$0xff]
    %v3599 = vld [vmem:[#allocation10 + $0x7d8] sm:$0xff]
    %v3600 = vld [vmem:[#allocation10 + $0x7e0] sm:$0xff]
    %v3601 = vld [vmem:[#allocation10 + $0x7e8] sm:$0xff]
    %v3602 = vld [vmem:[#allocation10 + $0x7f0] sm:$0xff]
    %v3603 = vld [vmem:[#allocation10 + $0x7f8] sm:$0xff]
    %3604 = vmatprep.subr.mxu0 %v3409
    %3605 = vmatpush1.msra.mxu0 %v3408
    %3606 = vmatprep.subr.mxu0 %v3405
    %3607 = vmatpush1.msra.mxu0 %v3404
    %3608 = vmatprep.subr.mxu0 %v3401
    %3609 = vmatpush1.msra.mxu0 %v3400
    %3610 = vmatprep.subr.mxu0 %v3397
    %3611 = vmatpush1.msra.mxu0 %v3396
    %3612 = vmatprep.subr.mxu0 %v3393
    %3613 = vmatpush1.msra.mxu0 %v3392
    %3614 = vmatprep.subr.mxu0 %v3389
    %3615 = vmatpush1.msra.mxu0 %v3388
    %3616 = vmatprep.subr.mxu0 %v3385
    %3617 = vmatpush1.msra.mxu0 %v3384
    %3618 = vmatprep.subr.mxu0 %v3381
    %3619 = vmatpush1.msra.mxu0 %v3380
    %3620 = vmatprep.subr.mxu0 %v3377
    %3621 = vmatpush1.msra.mxu0 %v3376
    %3622 = vmatprep.subr.mxu0 %v3373
    %3623 = vmatpush1.msra.mxu0 %v3372
    %3624 = vmatprep.subr.mxu0 %v3369
    %3625 = vmatpush1.msra.mxu0 %v3368
    %3626 = vmatprep.subr.mxu0 %v3365
    %3627 = vmatpush1.msra.mxu0 %v3364
    %3628 = vmatprep.subr.mxu0 %v3361
    %3629 = vmatpush1.msra.mxu0 %v3360
    %3630 = vmatprep.subr.mxu0 %v3357
    %3631 = vmatpush1.msra.mxu0 %v3356
    %3632 = vmatprep.subr.mxu0 %v3353
    %3633 = vmatpush1.msra.mxu0 %v3352
    %3634 = vmatprep.subr.mxu0 %v3349
    %3635 = vmatpush1.msra.mxu0 %v3348
    %3636 = vmatprep.subr.mxu0 %v3473
    %3637 = vmatpush2.msra.mxu0 %v3472
    %3638 = vmatprep.subr.mxu0 %v3469
    %3639 = vmatpush2.msra.mxu0 %v3468
    %3640 = vmatprep.subr.mxu0 %v3465
    %3641 = vmatpush2.msra.mxu0 %v3464
    %3642 = vmatprep.subr.mxu0 %v3461
    %3643 = vmatpush2.msra.mxu0 %v3460
    %3644 = vmatprep.subr.mxu0 %v3457
    %3645 = vmatpush2.msra.mxu0 %v3456
    %3646 = vmatprep.subr.mxu0 %v3453
    %3647 = vmatpush2.msra.mxu0 %v3452
    %3648 = vmatprep.subr.mxu0 %v3449
    %3649 = vmatpush2.msra.mxu0 %v3448
    %3650 = vmatprep.subr.mxu0 %v3445
    %3651 = vmatpush2.msra.mxu0 %v3444
    %3652 = vmatprep.subr.mxu0 %v3441
    %3653 = vmatpush2.msra.mxu0 %v3440
    %3654 = vmatprep.subr.mxu0 %v3437
    %3655 = vmatpush2.msra.mxu0 %v3436
    %3656 = vmatprep.subr.mxu0 %v3433
    %3657 = vmatpush2.msra.mxu0 %v3432
    %3658 = vmatprep.subr.mxu0 %v3429
    %3659 = vmatpush2.msra.mxu0 %v3428
    %3660 = vmatprep.subr.mxu0 %v3425
    %3661 = vmatpush2.msra.mxu0 %v3424
    %3662 = vmatprep.subr.mxu0 %v3421
    %3663 = vmatpush2.msra.mxu0 %v3420
    %3664 = vmatprep.subr.mxu0 %v3417
    %3665 = vmatpush2.msra.mxu0 %v3416
    %3666 = vmatprep.subr.mxu0 %v3413
    %3667 = vmatpush2.msra.mxu0 %v3412
    %3668 = vmatprep.mubr.f32.mxu0 %v3345
    %3669 = vmatmul.mubr.f32.gmra.mxu0 %v3344
    %v3670 = vpop.f32.mrf.mxu0
    %v3671 = vadd.f32 0.0, %v3670
    %v3672 = vpop.f32.mrf.mxu0
    %v3673 = vadd.f32 0.0, %v3672
    %3674 = vdwg.mxu0
    %3675 = vmatprep.subr.mxu0 %v3537
    %3676 = vmatpush1.msra.mxu0 %v3536
    %3677 = vmatprep.subr.mxu0 %v3533
    %3678 = vmatpush1.msra.mxu0 %v3532
    %3679 = vmatprep.subr.mxu0 %v3529
    %3680 = vmatpush1.msra.mxu0 %v3528
    %3681 = vmatprep.subr.mxu0 %v3525
    %3682 = vmatpush1.msra.mxu0 %v3524
    %3683 = vmatprep.subr.mxu0 %v3521
    %3684 = vmatpush1.msra.mxu0 %v3520
    %3685 = vmatprep.subr.mxu0 %v3517
    %3686 = vmatpush1.msra.mxu0 %v3516
    %3687 = vmatprep.subr.mxu0 %v3513
    %3688 = vmatpush1.msra.mxu0 %v3512
    %3689 = vmatprep.subr.mxu0 %v3509
    %3690 = vmatpush1.msra.mxu0 %v3508
    %3691 = vmatprep.subr.mxu0 %v3505
    %3692 = vmatpush1.msra.mxu0 %v3504
    %3693 = vmatprep.subr.mxu0 %v3501
    %3694 = vmatpush1.msra.mxu0 %v3500
    %3695 = vmatprep.subr.mxu0 %v3497
    %3696 = vmatpush1.msra.mxu0 %v3496
    %3697 = vmatprep.subr.mxu0 %v3493
    %3698 = vmatpush1.msra.mxu0 %v3492
    %3699 = vmatprep.subr.mxu0 %v3489
    %3700 = vmatpush1.msra.mxu0 %v3488
    %3701 = vmatprep.subr.mxu0 %v3485
    %3702 = vmatpush1.msra.mxu0 %v3484
    %3703 = vmatprep.subr.mxu0 %v3481
    %3704 = vmatpush1.msra.mxu0 %v3480
    %3705 = vmatprep.subr.mxu0 %v3477
    %3706 = vmatpush1.msra.mxu0 %v3476
    %3707 = vmatprep.subr.mxu0 %v3601
    %3708 = vmatpush2.msra.mxu0 %v3600
    %3709 = vmatprep.subr.mxu0 %v3597
    %3710 = vmatpush2.msra.mxu0 %v3596
    %3711 = vmatprep.subr.mxu0 %v3593
    %3712 = vmatpush2.msra.mxu0 %v3592
    %3713 = vmatprep.subr.mxu0 %v3589
    %3714 = vmatpush2.msra.mxu0 %v3588
    %3715 = vmatprep.subr.mxu0 %v3585
    %3716 = vmatpush2.msra.mxu0 %v3584
    %3717 = vmatprep.subr.mxu0 %v3581
    %3718 = vmatpush2.msra.mxu0 %v3580
    %3719 = vmatprep.subr.mxu0 %v3577
    %3720 = vmatpush2.msra.mxu0 %v3576
    %3721 = vmatprep.subr.mxu0 %v3573
    %3722 = vmatpush2.msra.mxu0 %v3572
    %3723 = vmatprep.subr.mxu0 %v3569
    %3724 = vmatpush2.msra.mxu0 %v3568
    %3725 = vmatprep.subr.mxu0 %v3565
    %3726 = vmatpush2.msra.mxu0 %v3564
    %3727 = vmatprep.subr.mxu0 %v3561
    %3728 = vmatpush2.msra.mxu0 %v3560
    %3729 = vmatprep.subr.mxu0 %v3557
    %3730 = vmatpush2.msra.mxu0 %v3556
    %3731 = vmatprep.subr.mxu0 %v3553
    %3732 = vmatpush2.msra.mxu0 %v3552
    %3733 = vmatprep.subr.mxu0 %v3549
    %3734 = vmatpush2.msra.mxu0 %v3548
    %3735 = vmatprep.subr.mxu0 %v3545
    %3736 = vmatpush2.msra.mxu0 %v3544
    %3737 = vmatprep.subr.mxu0 %v3541
    %3738 = vmatpush2.msra.mxu0 %v3540
    %3739 = vmatprep.mubr.f32.mxu0 %v3347
    %3740 = vmatmul.mubr.f32.gmra.mxu0 %v3346
    %v3741 = vpop.f32.mrf.mxu0
    %v3742 = vadd.f32 %v3671, %v3741
    %v3743 = vpop.f32.mrf.mxu0
    %v3744 = vadd.f32 %v3673, %v3743
    %3745 = vdwg.mxu0
    %3746 = vmatprep.subr.mxu0 %v3411
    %3747 = vmatpush1.msra.mxu0 %v3410
    %3748 = vmatprep.subr.mxu0 %v3407
    %3749 = vmatpush1.msra.mxu0 %v3406
    %3750 = vmatprep.subr.mxu0 %v3403
    %3751 = vmatpush1.msra.mxu0 %v3402
    %3752 = vmatprep.subr.mxu0 %v3399
    %3753 = vmatpush1.msra.mxu0 %v3398
    %3754 = vmatprep.subr.mxu0 %v3395
    %3755 = vmatpush1.msra.mxu0 %v3394
    %3756 = vmatprep.subr.mxu0 %v3391
    %3757 = vmatpush1.msra.mxu0 %v3390
    %3758 = vmatprep.subr.mxu0 %v3387
    %3759 = vmatpush1.msra.mxu0 %v3386
    %3760 = vmatprep.subr.mxu0 %v3383
    %3761 = vmatpush1.msra.mxu0 %v3382
    %3762 = vmatprep.subr.mxu0 %v3379
    %3763 = vmatpush1.msra.mxu0 %v3378
    %3764 = vmatprep.subr.mxu0 %v3375
    %3765 = vmatpush1.msra.mxu0 %v3374
    %3766 = vmatprep.subr.mxu0 %v3371
    %3767 = vmatpush1.msra.mxu0 %v3370
    %3768 = vmatprep.subr.mxu0 %v3367
    %3769 = vmatpush1.msra.mxu0 %v3366
    %3770 = vmatprep.subr.mxu0 %v3363
    %3771 = vmatpush1.msra.mxu0 %v3362
    %3772 = vmatprep.subr.mxu0 %v3359
    %3773 = vmatpush1.msra.mxu0 %v3358
    %3774 = vmatprep.subr.mxu0 %v3355
    %3775 = vmatpush1.msra.mxu0 %v3354
    %3776 = vmatprep.subr.mxu0 %v3351
    %3777 = vmatpush1.msra.mxu0 %v3350
    %3778 = vmatprep.subr.mxu0 %v3475
    %3779 = vmatpush2.msra.mxu0 %v3474
    %3780 = vmatprep.subr.mxu0 %v3471
    %3781 = vmatpush2.msra.mxu0 %v3470
    %3782 = vmatprep.subr.mxu0 %v3467
    %3783 = vmatpush2.msra.mxu0 %v3466
    %3784 = vmatprep.subr.mxu0 %v3463
    %3785 = vmatpush2.msra.mxu0 %v3462
    %3786 = vmatprep.subr.mxu0 %v3459
    %3787 = vmatpush2.msra.mxu0 %v3458
    %3788 = vmatprep.subr.mxu0 %v3455
    %3789 = vmatpush2.msra.mxu0 %v3454
    %3790 = vmatprep.subr.mxu0 %v3451
    %3791 = vmatpush2.msra.mxu0 %v3450
    %3792 = vmatprep.subr.mxu0 %v3447
    %3793 = vmatpush2.msra.mxu0 %v3446
    %3794 = vmatprep.subr.mxu0 %v3443
    %3795 = vmatpush2.msra.mxu0 %v3442
    %3796 = vmatprep.subr.mxu0 %v3439
    %3797 = vmatpush2.msra.mxu0 %v3438
    %3798 = vmatprep.subr.mxu0 %v3435
    %3799 = vmatpush2.msra.mxu0 %v3434
    %3800 = vmatprep.subr.mxu0 %v3431
    %3801 = vmatpush2.msra.mxu0 %v3430
    %3802 = vmatprep.subr.mxu0 %v3427
    %3803 = vmatpush2.msra.mxu0 %v3426
    %3804 = vmatprep.subr.mxu0 %v3423
    %3805 = vmatpush2.msra.mxu0 %v3422
    %3806 = vmatprep.subr.mxu0 %v3419
    %3807 = vmatpush2.msra.mxu0 %v3418
    %3808 = vmatprep.subr.mxu0 %v3415
    %3809 = vmatpush2.msra.mxu0 %v3414
    %3810 = vmatprep.mubr.f32.mxu0 %v3345
    %3811 = vmatmul.mubr.f32.gmra.mxu0 %v3344
    %v3812 = vpop.f32.mrf.mxu0
    %v3813 = vadd.f32 0.0, %v3812
    %v3814 = vpop.f32.mrf.mxu0
    %v3815 = vadd.f32 0.0, %v3814
    %3816 = vdwg.mxu0
    %3817 = vmatprep.subr.mxu0 %v3539
    %3818 = vmatpush1.msra.mxu0 %v3538
    %3819 = vmatprep.subr.mxu0 %v3535
    %3820 = vmatpush1.msra.mxu0 %v3534
    %3821 = vmatprep.subr.mxu0 %v3531
    %3822 = vmatpush1.msra.mxu0 %v3530
    %3823 = vmatprep.subr.mxu0 %v3527
    %3824 = vmatpush1.msra.mxu0 %v3526
    %3825 = vmatprep.subr.mxu0 %v3523
    %3826 = vmatpush1.msra.mxu0 %v3522
    %3827 = vmatprep.subr.mxu0 %v3519
    %3828 = vmatpush1.msra.mxu0 %v3518
    %3829 = vmatprep.subr.mxu0 %v3515
    %3830 = vmatpush1.msra.mxu0 %v3514
    %3831 = vmatprep.subr.mxu0 %v3511
    %3832 = vmatpush1.msra.mxu0 %v3510
    %3833 = vmatprep.subr.mxu0 %v3507
    %3834 = vmatpush1.msra.mxu0 %v3506
    %3835 = vmatprep.subr.mxu0 %v3503
    %3836 = vmatpush1.msra.mxu0 %v3502
    %3837 = vmatprep.subr.mxu0 %v3499
    %3838 = vmatpush1.msra.mxu0 %v3498
    %3839 = vmatprep.subr.mxu0 %v3495
    %3840 = vmatpush1.msra.mxu0 %v3494
    %3841 = vmatprep.subr.mxu0 %v3491
    %3842 = vmatpush1.msra.mxu0 %v3490
    %3843 = vmatprep.subr.mxu0 %v3487
    %3844 = vmatpush1.msra.mxu0 %v3486
    %3845 = vmatprep.subr.mxu0 %v3483
    %3846 = vmatpush1.msra.mxu0 %v3482
    %3847 = vmatprep.subr.mxu0 %v3479
    %3848 = vmatpush1.msra.mxu0 %v3478
    %3849 = vmatprep.subr.mxu0 %v3603
    %3850 = vmatpush2.msra.mxu0 %v3602
    %3851 = vmatprep.subr.mxu0 %v3599
    %3852 = vmatpush2.msra.mxu0 %v3598
    %3853 = vmatprep.subr.mxu0 %v3595
    %3854 = vmatpush2.msra.mxu0 %v3594
    %3855 = vmatprep.subr.mxu0 %v3591
    %3856 = vmatpush2.msra.mxu0 %v3590
    %3857 = vmatprep.subr.mxu0 %v3587
    %3858 = vmatpush2.msra.mxu0 %v3586
    %3859 = vmatprep.subr.mxu0 %v3583
    %3860 = vmatpush2.msra.mxu0 %v3582
    %3861 = vmatprep.subr.mxu0 %v3579
    %3862 = vmatpush2.msra.mxu0 %v3578
    %3863 = vmatprep.subr.mxu0 %v3575
    %3864 = vmatpush2.msra.mxu0 %v3574
    %3865 = vmatprep.subr.mxu0 %v3571
    %3866 = vmatpush2.msra.mxu0 %v3570
    %3867 = vmatprep.subr.mxu0 %v3567
    %3868 = vmatpush2.msra.mxu0 %v3566
    %3869 = vmatprep.subr.mxu0 %v3563
    %3870 = vmatpush2.msra.mxu0 %v3562
    %3871 = vmatprep.subr.mxu0 %v3559
    %3872 = vmatpush2.msra.mxu0 %v3558
    %3873 = vmatprep.subr.mxu0 %v3555
    %3874 = vmatpush2.msra.mxu0 %v3554
    %3875 = vmatprep.subr.mxu0 %v3551
    %3876 = vmatpush2.msra.mxu0 %v3550
    %3877 = vmatprep.subr.mxu0 %v3547
    %3878 = vmatpush2.msra.mxu0 %v3546
    %3879 = vmatprep.subr.mxu0 %v3543
    %3880 = vmatpush2.msra.mxu0 %v3542
    %3881 = vmatprep.mubr.f32.mxu0 %v3347
    %3882 = vmatmul.mubr.f32.gmra.mxu0 %v3346
    %v3883 = vpop.f32.mrf.mxu0
    %v3884 = vadd.f32 %v3813, %v3883
    %v3885 = vpop.f32.mrf.mxu0
    %v3886 = vadd.f32 %v3815, %v3885
    %3887 = vdwg.mxu0
    %v3892 = vcombine.low %v3742, %v3744
    %v3893 = vcombine.low %v3884, %v3886
    %v3896 = vadd.f32 %v2774, %v3892
    %v3897 = vadd.f32 %v2775, %v3893
    %v3898 = vld [vmem:[#allocation12] sm:$0xf]
    %v3900 = vlaneseq
    %v3901 = vshrl.u32 %v3900, 7
    %v3902 = vsub.s32 0, %v3901
    %v3903 = vrot.slane %v3898, %v3902
    %v3904 = vlaneseq
    %v3905 = vshrl.u32 %v3904, 7
    %v3906 = vsub.s32 1, %v3905
    %v3907 = vrot.slane %v3898, %v3906
    %v3908 = vlaneseq
    %v3909 = vshrl.u32 %v3908, 7
    %v3910 = vsub.s32 2, %v3909
    %v3911 = vrot.slane %v3898, %v3910
    %v3912 = vlaneseq
    %v3913 = vshrl.u32 %v3912, 7
    %v3914 = vsub.s32 3, %v3913
    %v3915 = vrot.slane %v3898, %v3914
    %v3916 = vcombine.low %v3903, %v3907
    %v3917 = vcombine.low %v3911, %v3915
    %v3920 = vadd.f32 %v3896, %v3916
    %v3921 = vadd.f32 %v3897, %v3917
    %v3922 = vld [vmem:[%s10] sm:$0xf]
    %v3923 = vld [vmem:[%s11] sm:$0xf]
    %v3926 = vcombine.high %v3920, %v3920
    %v3927 = vcombine.high %v3921, %v3921
    %v3930 = vsel %vm1847, %v3920, 0.0
    %v3931 = vrot.slane %v3930, 4
    %v3932 = vadd.f32 %v3930, %v3931
    %v3933 = vrot.slane %v3932, 2
    %v3934 = vadd.f32 %v3932, %v3933
    %v3935 = vrot.slane %v3934, 1
    %v3936 = vadd.f32 %v3934, %v3935
    %v3937 = vsel %vm1847, %v3926, 0.0
    %v3938 = vrot.slane %v3937, 4
    %v3939 = vadd.f32 %v3937, %v3938
    %v3940 = vrot.slane %v3939, 2
    %v3941 = vadd.f32 %v3939, %v3940
    %v3942 = vrot.slane %v3941, 1
    %v3943 = vadd.f32 %v3941, %v3942
    %v3944 = vsel %vm1847, %v3921, 0.0
    %v3945 = vrot.slane %v3944, 4
    %v3946 = vadd.f32 %v3944, %v3945
    %v3947 = vrot.slane %v3946, 2
    %v3948 = vadd.f32 %v3946, %v3947
    %v3949 = vrot.slane %v3948, 1
    %v3950 = vadd.f32 %v3948, %v3949
    %v3951 = vsel %vm1847, %v3927, 0.0
    %v3952 = vrot.slane %v3951, 4
    %v3953 = vadd.f32 %v3951, %v3952
    %v3954 = vrot.slane %v3953, 2
    %v3955 = vadd.f32 %v3953, %v3954
    %v3956 = vrot.slane %v3955, 1
    %v3957 = vadd.f32 %v3955, %v3956
    %v3958 = vmul.f32 %v3936, %v2659
    %v3959 = vmul.f32 %v3943, %v2659
    %v3960 = vmul.f32 %v3950, %v2659
    %v3961 = vmul.f32 %v3957, %v2659
    %v3966 = vcombine.low %v3958, %v3959
    %v3967 = vcombine.low %v3960, %v3961
    %v3970 = vsub.f32 %v3920, %v3966
    %v3971 = vsub.f32 %v3921, %v3967
    %v3972 = vmul.f32 %v3970, %v3970
    %v3973 = vmul.f32 %v3971, %v3971
    %v3976 = vcombine.high %v3972, %v3972
    %v3977 = vcombine.high %v3973, %v3973
    %v3980 = vsel %vm1847, %v3972, 0.0
    %v3981 = vrot.slane %v3980, 4
    %v3982 = vadd.f32 %v3980, %v3981
    %v3983 = vrot.slane %v3982, 2
    %v3984 = vadd.f32 %v3982, %v3983
    %v3985 = vrot.slane %v3984, 1
    %v3986 = vadd.f32 %v3984, %v3985
    %v3987 = vsel %vm1847, %v3976, 0.0
    %v3988 = vrot.slane %v3987, 4
    %v3989 = vadd.f32 %v3987, %v3988
    %v3990 = vrot.slane %v3989, 2
    %v3991 = vadd.f32 %v3989, %v3990
    %v3992 = vrot.slane %v3991, 1
    %v3993 = vadd.f32 %v3991, %v3992
    %v3994 = vsel %vm1847, %v3973, 0.0
    %v3995 = vrot.slane %v3994, 4
    %v3996 = vadd.f32 %v3994, %v3995
    %v3997 = vrot.slane %v3996, 2
    %v3998 = vadd.f32 %v3996, %v3997
    %v3999 = vrot.slane %v3998, 1
    %v4000 = vadd.f32 %v3998, %v3999
    %v4001 = vsel %vm1847, %v3977, 0.0
    %v4002 = vrot.slane %v4001, 4
    %v4003 = vadd.f32 %v4001, %v4002
    %v4004 = vrot.slane %v4003, 2
    %v4005 = vadd.f32 %v4003, %v4004
    %v4006 = vrot.slane %v4005, 1
    %v4007 = vadd.f32 %v4005, %v4006
    %v4008 = vmul.f32 %v3986, %v2659
    %v4009 = vmul.f32 %v3993, %v2659
    %v4010 = vmul.f32 %v4000, %v2659
    %v4011 = vmul.f32 %v4007, %v2659
    %v4012 = vadd.f32 %v4008, 1e-05
    %v4013 = vadd.f32 %v4009, 1e-05
    %v4014 = vadd.f32 %v4010, 1e-05
    %v4015 = vadd.f32 %v4011, 1e-05
    %v4016 = vrsqrt.pop %v4012
    %v4017 = vrsqrt.pop %v4013
    %v4018 = vrsqrt.pop %v4014
    %v4019 = vrsqrt.pop %v4015
    %v4024 = vcombine.low %v4016, %v4017
    %v4025 = vcombine.low %v4018, %v4019
    %v4028 = vmul.f32 %v3970, %v4024
    %v4029 = vmul.f32 %v3971, %v4025
    %v4031 = vlaneseq
    %v4032 = vshrl.u32 %v4031, 7
    %v4033 = vsub.s32 0, %v4032
    %v4034 = vrot.slane %v3922, %v4033
    %v4035 = vlaneseq
    %v4036 = vshrl.u32 %v4035, 7
    %v4037 = vsub.s32 1, %v4036
    %v4038 = vrot.slane %v3922, %v4037
    %v4039 = vlaneseq
    %v4040 = vshrl.u32 %v4039, 7
    %v4041 = vsub.s32 2, %v4040
    %v4042 = vrot.slane %v3922, %v4041
    %v4043 = vlaneseq
    %v4044 = vshrl.u32 %v4043, 7
    %v4045 = vsub.s32 3, %v4044
    %v4046 = vrot.slane %v3922, %v4045
    %v4047 = vcombine.low %v4034, %v4038
    %v4048 = vcombine.low %v4042, %v4046
    %v4051 = vmul.f32 %v4028, %v4047
    %v4052 = vmul.f32 %v4029, %v4048
    %v4054 = vlaneseq
    %v4055 = vshrl.u32 %v4054, 7
    %v4056 = vsub.s32 0, %v4055
    %v4057 = vrot.slane %v3923, %v4056
    %v4058 = vlaneseq
    %v4059 = vshrl.u32 %v4058, 7
    %v4060 = vsub.s32 1, %v4059
    %v4061 = vrot.slane %v3923, %v4060
    %v4062 = vlaneseq
    %v4063 = vshrl.u32 %v4062, 7
    %v4064 = vsub.s32 2, %v4063
    %v4065 = vrot.slane %v3923, %v4064
    %v4066 = vlaneseq
    %v4067 = vshrl.u32 %v4066, 7
    %v4068 = vsub.s32 3, %v4067
    %v4069 = vrot.slane %v3923, %v4068
    %v4070 = vcombine.low %v4057, %v4061
    %v4071 = vcombine.low %v4065, %v4069
    %v4074 = vadd.f32 %v4051, %v4070
    %v4075 = vadd.f32 %v4052, %v4071
    %4076 = vst [vmem:[%s12] sm:$0xff] %v4074
    %4077 = vst [vmem:[%s12 + $0x8] sm:$0xff] %v4075
    // Predicated region
    $region78: #{_forward.5} parent=1 // pred_check
      _
    $region79: #{_forward.5} parent=1 // pred_check_branch
      %4079 = sbr.rel (0) target = $region81
    $region80: #{_forward.5} parent=1 // pred_region
      _
    $region81: #{_forward.5} parent=1 // pred_fallthru
      _
    // Predicated region
    $region82: #{_forward.5} parent=1 // pred_check
      _
    $region83: #{_forward.5} parent=1 // pred_check_branch
      %4081 = sbr.rel (0) target = $region85
    $region84: #{_forward.5} parent=1 // pred_region
      _
    $region85: #{_forward.5} parent=1 // pred_fallthru
      _
    %4082 = vsyncpa [#allocation3], 1
    %4083 = vsyncpa [#allocation5], 1
    %4084 = vsyncpa [#allocation8], 1
    %4085 = vsyncpa [#allocation11], 1

</llo_original>
